<compile_context>
chip_gen: v7x
topology: tpu7x:2x2x1
jax: 0.10.0
libtpu: 0.0.40
codegen_flags: <defaults>
</compile_context>

<pallas_src>
import jax
import jax.numpy as jnp
from jax import lax
from jax.experimental import pallas as pl
from jax.experimental.pallas import tpu as pltpu

C = 128          # lane-padded channel / feature width
NEG = -1e30      # fc2 pad-logit bias so softmax ignores the padded classes


def _bcast_spec(shape):
    # Grid-invariant full-array block (weights/biases: DMA'd once, stay in VMEM).
    return pl.BlockSpec(shape, lambda *_: (0,) * len(shape))


# ------------------------------ fused kernel -------------------------------

def netz_fused_kernel(x_ref, w1_ref, b1_ref, w2_ref, b2_ref, w3_ref, b3_ref,
                      w4_ref, b4_ref, out_ref,
                      pooled1_ref, acc2_ref, pooled2_ref, row1_ref, row2_ref):
    B = x_ref.shape[0]            # batch tile (<= 8)
    f32 = jnp.float32
    bf16 = jnp.bfloat16

    # --- stage 1: conv1 (1->10, 5x5) + 2x2 max-pool + bias + ReLU -----------
    # Processed one pooled output row (= two conv rows) at a time; channels
    # live in lanes, so the 5x5 taps are shifted lane-broadcast MACs (VPU).
    b1 = b1_ref[...]                                            # (1, C)

    def conv1_row(ph, carry):
        acc = jnp.zeros((B, 2, 24, C), f32)
        for ki in range(5):
            for kj in range(5):
                slab = x_ref[:, pl.ds(2 * ph + ki, 2), kj:kj + 24, :]  # (B,2,24,1)
                acc = acc + slab * w1_ref[ki, kj, :]                   # lane bcast
        hmax = jnp.maximum(acc[:, 0], acc[:, 1])                # pool over H pair
        row1_ref[...] = hmax                                    # (B, 24, C)
        wmax = jnp.maximum(row1_ref[:, pl.ds(0, 12, 2), :],     # pool over W pair
                           row1_ref[:, pl.ds(1, 12, 2), :])     # (B, 12, C)
        pooled1_ref[:, ph] = jnp.maximum(wmax + b1, 0.0)
        return carry

    lax.fori_loop(0, 12, conv1_row, 0)

    # --- stage 2: conv2 (10->20, 5x5) as 25 shifted MXU matmuls -------------
    # TODO(synk): nn.Dropout2d is identity here (eval-mode semantics).
    acc2 = jnp.zeros((B * 64, C), f32)
    for ki in range(5):
        for kj in range(5):
            slab = pooled1_ref[:, ki:ki + 8, kj:kj + 8, :]      # (B, 8, 8, C)
            lhs = slab.reshape(B * 64, C).astype(bf16)          # rows = b*64+oh*8+ow
            acc2 = acc2 + jnp.dot(lhs, w2_ref[ki * 5 + kj],
                                  preferred_element_type=f32)
    acc2_ref[...] = acc2

    # --- stage 3: 2x2 max-pool + bias + ReLU on conv2 output ----------------
    b2 = b2_ref[...]                                            # (1, C)
    for b in range(B):
        for ph in range(4):
            s0 = b * 64 + 16 * ph
            hmax = jnp.maximum(acc2_ref[s0:s0 + 8, :],          # conv row 2*ph
                               acc2_ref[s0 + 8:s0 + 16, :])     # conv row 2*ph+1
            row2_ref[...] = hmax                                # (8, C), rows = ow
            wmax = jnp.maximum(row2_ref[pl.ds(0, 4, 2), :],
                               row2_ref[pl.ds(1, 4, 2), :])     # (4, C), rows = pw
            pooled2_ref[b, ph] = jnp.maximum(wmax + b2, 0.0)

    # --- stage 4: fc1 (320 -> 60) as 16 per-spatial-position matmuls --------
    # The torch NCHW flatten order is baked into w3 (w3[s, c, n]).
    fc1 = jnp.zeros((B, C), f32)
    for h in range(4):
        for w in range(4):
            a = pooled2_ref[:, h, w, :].astype(bf16)            # (B, C)
            fc1 = fc1 + jnp.dot(a, w3_ref[h * 4 + w],
                                preferred_element_type=f32)
    fc1 = jnp.maximum(fc1 + b3_ref[...], 0.0)                   # pad cols stay 0

    # --- stage 5: fc2 (60 -> 10) + log_softmax epilogue ----------------------
    logits = jnp.dot(fc1.astype(bf16), w4_ref[...],
                     preferred_element_type=f32) + b4_ref[...]  # pad cols ~ -1e30
    m = jnp.max(logits, axis=-1, keepdims=True)
    s = logits - m
    lse = jnp.log(jnp.sum(jnp.exp(s), axis=-1, keepdims=True))  # pads -> exp()=0
    out_ref[...] = s - lse


# -------------------------------- wrapper ----------------------------------

def netz_forward(prepped, x):
    """x: (B, 1, 28, 28) float32 NCHW (MNIST).  Returns (B, 10) log-probs."""
    B = x.shape[0]
    BT = B if B <= 8 else 8                 # batch tile (8 keeps blocks 8-aligned)
    nb = -(-B // BT)
    Bp = nb * BT

    x4 = x.reshape(B, 28, 28, 1)            # Cin == 1: pure relabel, no movement
    if Bp != B:
        x4 = jnp.pad(x4, ((0, Bp - B), (0, 0), (0, 0), (0, 0)))

    out_pad = pl.pallas_call(
        netz_fused_kernel,
        out_shape=jax.ShapeDtypeStruct((Bp, C), jnp.float32),
        grid=(nb,),
        in_specs=[
            pl.BlockSpec((BT, 28, 28, 1), lambda i: (i, 0, 0, 0)),  # input tile
            _bcast_spec((5, 5, C)),     # conv1 weights [ki, kj, co]
            _bcast_spec((1, C)),        # conv1 bias
            _bcast_spec((25, C, C)),    # conv2 weights [tap, ci, co] (bf16)
            _bcast_spec((1, C)),        # conv2 bias
            _bcast_spec((16, C, C)),    # fc1 weights  [h*4+w, c, n]  (bf16)
            _bcast_spec((1, C)),        # fc1 bias
            _bcast_spec((C, C)),        # fc2 weights  [k, n]         (bf16)
            _bcast_spec((1, C)),        # fc2 bias (pads = -1e30)
        ],
        out_specs=pl.BlockSpec((BT, C), lambda i: (i, 0)),
        scratch_shapes=[
            pltpu.VMEM((BT, 12, 12, C), jnp.float32),   # pooled conv1 output
            pltpu.VMEM((BT * 64, C), jnp.float32),      # conv2 output (pre-pool)
            pltpu.VMEM((BT, 4, 4, C), jnp.float32),     # pooled conv2 output
            pltpu.VMEM((BT, 24, C), jnp.float32),       # pool-1 row staging
            pltpu.VMEM((8, C), jnp.float32),            # pool-2 row staging
        ],
        compiler_params=pltpu.CompilerParams(
            dimension_semantics=("parallel",),          # batch tiles independent
            vmem_limit_bytes=32 * 1024 * 1024),
    )(x4,
      prepped["w1p"], prepped["b1p"],
      prepped["w2p"], prepped["b2p"],
      prepped["w3p"], prepped["b3p"],
      prepped["w4p"], prepped["b4p"])

    return out_pad[:B, :10]        # drop batch padding + lane padding of classes


# ------------------- one-time parameter repack (at init) -------------------

def _pad2(a, shape):
    out = jnp.zeros(shape, a.dtype)
    return out.at[tuple(slice(0, s) for s in a.shape)].set(a)


def prepare_params(params):
    """Permute to kernel layouts and lane-pad to 128 (done once, outside jit)."""
    w1 = params["conv1_w"][:, 0].transpose(1, 2, 0)                      # (5,5,10)
    w2 = params["conv2_w"].transpose(2, 3, 1, 0).reshape(25, 10, 20)     # (25,10,20)
    w3 = params["fc1_w"].reshape(60, 20, 16).transpose(2, 1, 0)          # (16,20,60)
    w4 = params["fc2_w"].T                                               # (60,10)
    b4 = jnp.full((1, C), NEG, jnp.float32).at[0, :10].set(params["fc2_b"])
    return {
        "w1p": _pad2(w1, (5, 5, C)),
        "b1p": _pad2(params["conv1_b"][None, :], (1, C)),
        "w2p": _pad2(w2, (25, C, C)).astype(jnp.bfloat16),
        "b2p": _pad2(params["conv2_b"][None, :], (1, C)),
        "w3p": _pad2(w3, (16, C, C)).astype(jnp.bfloat16),
        "b3p": _pad2(params["fc1_b"][None, :], (1, C)),
        "w4p": _pad2(w4, (C, C)).astype(jnp.bfloat16),
        "b4p": b4,
    }


# -------------------- pure-JAX reference (torch semantics) -----------------

def netz_reference(params, x):
    def conv(x, w, b):
        y = lax.conv_general_dilated(x, w, (1, 1), "VALID",
                                     dimension_numbers=("NCHW", "OIHW", "NCHW"))
        return y + b[None, :, None, None]

    def pool_relu(x):
        B, Cc, H, W = x.shape
        x = x.reshape(B, Cc, H // 2, 2, W // 2, 2).max(axis=(3, 5))
        return jnp.maximum(x, 0.0)

    x = pool_relu(conv(x, params["conv1_w"], params["conv1_b"]))
    x = pool_relu(conv(x, params["conv2_w"], params["conv2_b"]))   # dropout = id
    x = x.reshape(x.shape[0], -1)
    x = jnp.maximum(x @ params["fc1_w"].T + params["fc1_b"], 0.0)
    x = x @ params["fc2_w"].T + params["fc2_b"]
    return jax.nn.log_softmax(x, axis=-1)


# --------------------------- deterministic init -----------------------------

def init_params(key):
    ks = jax.random.split(key, 8)

    def u(k, shape, fan_in):
        bound = 1.0 / jnp.sqrt(jnp.float32(fan_in))
        return jax.random.uniform(k, shape, jnp.float32, -bound, bound)

    return {
        "conv1_w": u(ks[0], (10, 1, 5, 5), 1 * 5 * 5),
        "conv1_b": u(ks[1], (10,), 1 * 5 * 5),
        "conv2_w": u(ks[2], (20, 10, 5, 5), 10 * 5 * 5),
        "conv2_b": u(ks[3], (20,), 10 * 5 * 5),
        "fc1_w":   u(ks[4], (60, 320), 320),   # torch Linear: (out, in)
        "fc1_b":   u(ks[5], (60,), 320),
        "fc2_w":   u(ks[6], (10, 60), 60),
        "fc2_b":   u(ks[7], (10,), 60),
    }


if __name__ == "__main__":
    key = jax.random.PRNGKey(0)
    pkey, xkey = jax.random.split(key)
    params = init_params(pkey)
    prepped = prepare_params(params)          # one-time pad / permute to 128 lanes
    x = jax.random.normal(xkey, (2, 1, 28, 28), jnp.float32)  # MNIST-sized NCHW

    out = jax.block_until_ready(jax.jit(netz_forward)(prepped, x))

    assert out.shape == (2, 10) and out.dtype == jnp.float32
    # log_softmax rows must exp-sum to ~1
    assert bool(jnp.all(jnp.abs(jnp.sum(jnp.exp(out), axis=-1) - 1.0) < 1e-3))
    # match the pure-JAX reference (bf16 MXU inputs -> slightly loose tolerance)
    ref = jax.block_until_ready(jax.jit(netz_reference)(params, x))
    assert bool(jnp.allclose(out, ref, atol=2e-1)), "kernel deviates from reference"
    print("KERNEL_OK")
</pallas_src>

<mosaic_0001>
module attributes {stable_mosaic.version = 11 : i64} {
  func.func @netz_fused_kernel(%arg0: i32, %arg1: memref<2x28x28x1xf32, #tpu.memory_space<vmem>>, %arg2: memref<5x5x128xf32, #tpu.memory_space<vmem>>, %arg3: memref<1x128xf32, #tpu.memory_space<vmem>>, %arg4: memref<25x128x128xbf16, #tpu.memory_space<vmem>>, %arg5: memref<1x128xf32, #tpu.memory_space<vmem>>, %arg6: memref<16x128x128xbf16, #tpu.memory_space<vmem>>, %arg7: memref<1x128xf32, #tpu.memory_space<vmem>>, %arg8: memref<128x128xbf16, #tpu.memory_space<vmem>>, %arg9: memref<1x128xf32, #tpu.memory_space<vmem>>, %arg10: memref<2x128xf32, #tpu.memory_space<vmem>>, %arg11: memref<2x12x12x128xf32, #tpu.memory_space<vmem>>, %arg12: memref<128x128xf32, #tpu.memory_space<vmem>>, %arg13: memref<2x4x4x128xf32, #tpu.memory_space<vmem>>, %arg14: memref<2x24x128xf32, #tpu.memory_space<vmem>>, %arg15: memref<8x128xf32, #tpu.memory_space<vmem>>) attributes {dimension_semantics = [#tpu.dimension_semantics<parallel>], iteration_bounds = array<i64: 1>, scalar_prefetch = 0 : i64, scratch_operands = 5 : i64, tpu.core_type = #tpu.core_type<tc>, window_params = [{transform_indices = @transform_0, window_bounds = array<i64: 2, 28, 28, 1>}, {pipeline_mode = #tpu.pipeline_mode<synchronous>, transform_indices = @transform_1, window_bounds = array<i64: 5, 5, 128>}, {pipeline_mode = #tpu.pipeline_mode<synchronous>, transform_indices = @transform_2, window_bounds = array<i64: 1, 128>}, {pipeline_mode = #tpu.pipeline_mode<synchronous>, transform_indices = @transform_3, window_bounds = array<i64: 25, 128, 128>}, {pipeline_mode = #tpu.pipeline_mode<synchronous>, transform_indices = @transform_4, window_bounds = array<i64: 1, 128>}, {pipeline_mode = #tpu.pipeline_mode<synchronous>, transform_indices = @transform_5, window_bounds = array<i64: 16, 128, 128>}, {pipeline_mode = #tpu.pipeline_mode<synchronous>, transform_indices = @transform_6, window_bounds = array<i64: 1, 128>}, {pipeline_mode = #tpu.pipeline_mode<synchronous>, transform_indices = @transform_7, window_bounds = array<i64: 128, 128>}, {pipeline_mode = #tpu.pipeline_mode<synchronous>, transform_indices = @transform_8, window_bounds = array<i64: 1, 128>}, {transform_indices = @transform_9, window_bounds = array<i64: 2, 128>}]} {
    %c0 = arith.constant 0 : index
    %c0_0 = arith.constant 0 : index
    %0 = vector.load %arg3[%c0, %c0_0] : memref<1x128xf32, #tpu.memory_space<vmem>>, vector<1x128xf32>
    %c0_i32 = arith.constant 0 : i32
    %c12_i32 = arith.constant 12 : i32
    %1 = arith.addi %c0_i32, %c12_i32 : i32
    %c1_i32 = arith.constant 1 : i32
    scf.for %arg16 = %c0_i32 to %1 step %c1_i32  : i32 {
      %cst_431 = arith.constant 0.000000e+00 : f32
      %427 = vector.broadcast %cst_431 : f32 to vector<2x2x24x128xf32>
      %c2_i32 = arith.constant 2 : i32
      %428 = arith.muli %c2_i32, %arg16 : i32
      %c0_i32_432 = arith.constant 0 : i32
      %429 = arith.addi %428, %c0_i32_432 : i32
      %c0_433 = arith.constant 0 : index
      %430 = arith.index_cast %429 : i32 to index
      %c0_434 = arith.constant 0 : index
      %c0_435 = arith.constant 0 : index
      %431 = vector.load %arg1[%c0_433, %430, %c0_434, %c0_435] : memref<2x28x28x1xf32, #tpu.memory_space<vmem>>, vector<2x2x24x1xf32>
      %c0_436 = arith.constant 0 : index
      %c0_437 = arith.constant 0 : index
      %c0_438 = arith.constant 0 : index
      %432 = vector.load %arg2[%c0_436, %c0_437, %c0_438] : memref<5x5x128xf32, #tpu.memory_space<vmem>>, vector<1x1x128xf32>
      %433 = vector.shape_cast %432 : vector<1x1x128xf32> to vector<128xf32>
      %434 = vector.shape_cast %433 : vector<128xf32> to vector<1x1x1x128xf32>
      %435 = vector.broadcast %431 : vector<2x2x24x1xf32> to vector<2x2x24x128xf32>
      %436 = vector.broadcast %434 : vector<1x1x1x128xf32> to vector<2x2x24x128xf32>
      %437 = arith.mulf %435, %436 : vector<2x2x24x128xf32>
      %438 = arith.addf %427, %437 : vector<2x2x24x128xf32>
      %c2_i32_439 = arith.constant 2 : i32
      %439 = arith.muli %c2_i32_439, %arg16 : i32
      %c0_i32_440 = arith.constant 0 : i32
      %440 = arith.addi %439, %c0_i32_440 : i32
      %c0_441 = arith.constant 0 : index
      %441 = arith.index_cast %440 : i32 to index
      %c1_442 = arith.constant 1 : index
      %c0_443 = arith.constant 0 : index
      %442 = vector.load %arg1[%c0_441, %441, %c1_442, %c0_443] : memref<2x28x28x1xf32, #tpu.memory_space<vmem>>, vector<2x2x24x1xf32>
      %c0_444 = arith.constant 0 : index
      %c1_445 = arith.constant 1 : index
      %c0_446 = arith.constant 0 : index
      %443 = vector.load %arg2[%c0_444, %c1_445, %c0_446] : memref<5x5x128xf32, #tpu.memory_space<vmem>>, vector<1x1x128xf32>
      %444 = vector.shape_cast %443 : vector<1x1x128xf32> to vector<128xf32>
      %445 = vector.shape_cast %444 : vector<128xf32> to vector<1x1x1x128xf32>
      %446 = vector.broadcast %442 : vector<2x2x24x1xf32> to vector<2x2x24x128xf32>
      %447 = vector.broadcast %445 : vector<1x1x1x128xf32> to vector<2x2x24x128xf32>
      %448 = arith.mulf %446, %447 : vector<2x2x24x128xf32>
      %449 = arith.addf %438, %448 : vector<2x2x24x128xf32>
      %c2_i32_447 = arith.constant 2 : i32
      %450 = arith.muli %c2_i32_447, %arg16 : i32
      %c0_i32_448 = arith.constant 0 : i32
      %451 = arith.addi %450, %c0_i32_448 : i32
      %c0_449 = arith.constant 0 : index
      %452 = arith.index_cast %451 : i32 to index
      %c2_450 = arith.constant 2 : index
      %c0_451 = arith.constant 0 : index
      %453 = vector.load %arg1[%c0_449, %452, %c2_450, %c0_451] : memref<2x28x28x1xf32, #tpu.memory_space<vmem>>, vector<2x2x24x1xf32>
      %c0_452 = arith.constant 0 : index
      %c2_453 = arith.constant 2 : index
      %c0_454 = arith.constant 0 : index
      %454 = vector.load %arg2[%c0_452, %c2_453, %c0_454] : memref<5x5x128xf32, #tpu.memory_space<vmem>>, vector<1x1x128xf32>
      %455 = vector.shape_cast %454 : vector<1x1x128xf32> to vector<128xf32>
      %456 = vector.shape_cast %455 : vector<128xf32> to vector<1x1x1x128xf32>
      %457 = vector.broadcast %453 : vector<2x2x24x1xf32> to vector<2x2x24x128xf32>
      %458 = vector.broadcast %456 : vector<1x1x1x128xf32> to vector<2x2x24x128xf32>
      %459 = arith.mulf %457, %458 : vector<2x2x24x128xf32>
      %460 = arith.addf %449, %459 : vector<2x2x24x128xf32>
      %c2_i32_455 = arith.constant 2 : i32
      %461 = arith.muli %c2_i32_455, %arg16 : i32
      %c0_i32_456 = arith.constant 0 : i32
      %462 = arith.addi %461, %c0_i32_456 : i32
      %c0_457 = arith.constant 0 : index
      %463 = arith.index_cast %462 : i32 to index
      %c3_458 = arith.constant 3 : index
      %c0_459 = arith.constant 0 : index
      %464 = vector.load %arg1[%c0_457, %463, %c3_458, %c0_459] : memref<2x28x28x1xf32, #tpu.memory_space<vmem>>, vector<2x2x24x1xf32>
      %c0_460 = arith.constant 0 : index
      %c3_461 = arith.constant 3 : index
      %c0_462 = arith.constant 0 : index
      %465 = vector.load %arg2[%c0_460, %c3_461, %c0_462] : memref<5x5x128xf32, #tpu.memory_space<vmem>>, vector<1x1x128xf32>
      %466 = vector.shape_cast %465 : vector<1x1x128xf32> to vector<128xf32>
      %467 = vector.shape_cast %466 : vector<128xf32> to vector<1x1x1x128xf32>
      %468 = vector.broadcast %464 : vector<2x2x24x1xf32> to vector<2x2x24x128xf32>
      %469 = vector.broadcast %467 : vector<1x1x1x128xf32> to vector<2x2x24x128xf32>
      %470 = arith.mulf %468, %469 : vector<2x2x24x128xf32>
      %471 = arith.addf %460, %470 : vector<2x2x24x128xf32>
      %c2_i32_463 = arith.constant 2 : i32
      %472 = arith.muli %c2_i32_463, %arg16 : i32
      %c0_i32_464 = arith.constant 0 : i32
      %473 = arith.addi %472, %c0_i32_464 : i32
      %c0_465 = arith.constant 0 : index
      %474 = arith.index_cast %473 : i32 to index
      %c4_466 = arith.constant 4 : index
      %c0_467 = arith.constant 0 : index
      %475 = vector.load %arg1[%c0_465, %474, %c4_466, %c0_467] : memref<2x28x28x1xf32, #tpu.memory_space<vmem>>, vector<2x2x24x1xf32>
      %c0_468 = arith.constant 0 : index
      %c4_469 = arith.constant 4 : index
      %c0_470 = arith.constant 0 : index
      %476 = vector.load %arg2[%c0_468, %c4_469, %c0_470] : memref<5x5x128xf32, #tpu.memory_space<vmem>>, vector<1x1x128xf32>
      %477 = vector.shape_cast %476 : vector<1x1x128xf32> to vector<128xf32>
      %478 = vector.shape_cast %477 : vector<128xf32> to vector<1x1x1x128xf32>
      %479 = vector.broadcast %475 : vector<2x2x24x1xf32> to vector<2x2x24x128xf32>
      %480 = vector.broadcast %478 : vector<1x1x1x128xf32> to vector<2x2x24x128xf32>
      %481 = arith.mulf %479, %480 : vector<2x2x24x128xf32>
      %482 = arith.addf %471, %481 : vector<2x2x24x128xf32>
      %c2_i32_471 = arith.constant 2 : i32
      %483 = arith.muli %c2_i32_471, %arg16 : i32
      %c1_i32_472 = arith.constant 1 : i32
      %484 = arith.addi %483, %c1_i32_472 : i32
      %c0_473 = arith.constant 0 : index
      %485 = arith.index_cast %484 : i32 to index
      %c0_474 = arith.constant 0 : index
      %c0_475 = arith.constant 0 : index
      %486 = vector.load %arg1[%c0_473, %485, %c0_474, %c0_475] : memref<2x28x28x1xf32, #tpu.memory_space<vmem>>, vector<2x2x24x1xf32>
      %c1_476 = arith.constant 1 : index
      %c0_477 = arith.constant 0 : index
      %c0_478 = arith.constant 0 : index
      %487 = vector.load %arg2[%c1_476, %c0_477, %c0_478] : memref<5x5x128xf32, #tpu.memory_space<vmem>>, vector<1x1x128xf32>
      %488 = vector.shape_cast %487 : vector<1x1x128xf32> to vector<128xf32>
      %489 = vector.shape_cast %488 : vector<128xf32> to vector<1x1x1x128xf32>
      %490 = vector.broadcast %486 : vector<2x2x24x1xf32> to vector<2x2x24x128xf32>
      %491 = vector.broadcast %489 : vector<1x1x1x128xf32> to vector<2x2x24x128xf32>
      %492 = arith.mulf %490, %491 : vector<2x2x24x128xf32>
      %493 = arith.addf %482, %492 : vector<2x2x24x128xf32>
      %c2_i32_479 = arith.constant 2 : i32
      %494 = arith.muli %c2_i32_479, %arg16 : i32
      %c1_i32_480 = arith.constant 1 : i32
      %495 = arith.addi %494, %c1_i32_480 : i32
      %c0_481 = arith.constant 0 : index
      %496 = arith.index_cast %495 : i32 to index
      %c1_482 = arith.constant 1 : index
      %c0_483 = arith.constant 0 : index
      %497 = vector.load %arg1[%c0_481, %496, %c1_482, %c0_483] : memref<2x28x28x1xf32, #tpu.memory_space<vmem>>, vector<2x2x24x1xf32>
      %c1_484 = arith.constant 1 : index
      %c1_485 = arith.constant 1 : index
      %c0_486 = arith.constant 0 : index
      %498 = vector.load %arg2[%c1_484, %c1_485, %c0_486] : memref<5x5x128xf32, #tpu.memory_space<vmem>>, vector<1x1x128xf32>
      %499 = vector.shape_cast %498 : vector<1x1x128xf32> to vector<128xf32>
      %500 = vector.shape_cast %499 : vector<128xf32> to vector<1x1x1x128xf32>
      %501 = vector.broadcast %497 : vector<2x2x24x1xf32> to vector<2x2x24x128xf32>
      %502 = vector.broadcast %500 : vector<1x1x1x128xf32> to vector<2x2x24x128xf32>
      %503 = arith.mulf %501, %502 : vector<2x2x24x128xf32>
      %504 = arith.addf %493, %503 : vector<2x2x24x128xf32>
      %c2_i32_487 = arith.constant 2 : i32
      %505 = arith.muli %c2_i32_487, %arg16 : i32
      %c1_i32_488 = arith.constant 1 : i32
      %506 = arith.addi %505, %c1_i32_488 : i32
      %c0_489 = arith.constant 0 : index
      %507 = arith.index_cast %506 : i32 to index
      %c2_490 = arith.constant 2 : index
      %c0_491 = arith.constant 0 : index
      %508 = vector.load %arg1[%c0_489, %507, %c2_490, %c0_491] : memref<2x28x28x1xf32, #tpu.memory_space<vmem>>, vector<2x2x24x1xf32>
      %c1_492 = arith.constant 1 : index
      %c2_493 = arith.constant 2 : index
      %c0_494 = arith.constant 0 : index
      %509 = vector.load %arg2[%c1_492, %c2_493, %c0_494] : memref<5x5x128xf32, #tpu.memory_space<vmem>>, vector<1x1x128xf32>
      %510 = vector.shape_cast %509 : vector<1x1x128xf32> to vector<128xf32>
      %511 = vector.shape_cast %510 : vector<128xf32> to vector<1x1x1x128xf32>
      %512 = vector.broadcast %508 : vector<2x2x24x1xf32> to vector<2x2x24x128xf32>
      %513 = vector.broadcast %511 : vector<1x1x1x128xf32> to vector<2x2x24x128xf32>
      %514 = arith.mulf %512, %513 : vector<2x2x24x128xf32>
      %515 = arith.addf %504, %514 : vector<2x2x24x128xf32>
      %c2_i32_495 = arith.constant 2 : i32
      %516 = arith.muli %c2_i32_495, %arg16 : i32
      %c1_i32_496 = arith.constant 1 : i32
      %517 = arith.addi %516, %c1_i32_496 : i32
      %c0_497 = arith.constant 0 : index
      %518 = arith.index_cast %517 : i32 to index
      %c3_498 = arith.constant 3 : index
      %c0_499 = arith.constant 0 : index
      %519 = vector.load %arg1[%c0_497, %518, %c3_498, %c0_499] : memref<2x28x28x1xf32, #tpu.memory_space<vmem>>, vector<2x2x24x1xf32>
      %c1_500 = arith.constant 1 : index
      %c3_501 = arith.constant 3 : index
      %c0_502 = arith.constant 0 : index
      %520 = vector.load %arg2[%c1_500, %c3_501, %c0_502] : memref<5x5x128xf32, #tpu.memory_space<vmem>>, vector<1x1x128xf32>
      %521 = vector.shape_cast %520 : vector<1x1x128xf32> to vector<128xf32>
      %522 = vector.shape_cast %521 : vector<128xf32> to vector<1x1x1x128xf32>
      %523 = vector.broadcast %519 : vector<2x2x24x1xf32> to vector<2x2x24x128xf32>
      %524 = vector.broadcast %522 : vector<1x1x1x128xf32> to vector<2x2x24x128xf32>
      %525 = arith.mulf %523, %524 : vector<2x2x24x128xf32>
      %526 = arith.addf %515, %525 : vector<2x2x24x128xf32>
      %c2_i32_503 = arith.constant 2 : i32
      %527 = arith.muli %c2_i32_503, %arg16 : i32
      %c1_i32_504 = arith.constant 1 : i32
      %528 = arith.addi %527, %c1_i32_504 : i32
      %c0_505 = arith.constant 0 : index
      %529 = arith.index_cast %528 : i32 to index
      %c4_506 = arith.constant 4 : index
      %c0_507 = arith.constant 0 : index
      %530 = vector.load %arg1[%c0_505, %529, %c4_506, %c0_507] : memref<2x28x28x1xf32, #tpu.memory_space<vmem>>, vector<2x2x24x1xf32>
      %c1_508 = arith.constant 1 : index
      %c4_509 = arith.constant 4 : index
      %c0_510 = arith.constant 0 : index
      %531 = vector.load %arg2[%c1_508, %c4_509, %c0_510] : memref<5x5x128xf32, #tpu.memory_space<vmem>>, vector<1x1x128xf32>
      %532 = vector.shape_cast %531 : vector<1x1x128xf32> to vector<128xf32>
      %533 = vector.shape_cast %532 : vector<128xf32> to vector<1x1x1x128xf32>
      %534 = vector.broadcast %530 : vector<2x2x24x1xf32> to vector<2x2x24x128xf32>
      %535 = vector.broadcast %533 : vector<1x1x1x128xf32> to vector<2x2x24x128xf32>
      %536 = arith.mulf %534, %535 : vector<2x2x24x128xf32>
      %537 = arith.addf %526, %536 : vector<2x2x24x128xf32>
      %c2_i32_511 = arith.constant 2 : i32
      %538 = arith.muli %c2_i32_511, %arg16 : i32
      %c2_i32_512 = arith.constant 2 : i32
      %539 = arith.addi %538, %c2_i32_512 : i32
      %c0_513 = arith.constant 0 : index
      %540 = arith.index_cast %539 : i32 to index
      %c0_514 = arith.constant 0 : index
      %c0_515 = arith.constant 0 : index
      %541 = vector.load %arg1[%c0_513, %540, %c0_514, %c0_515] : memref<2x28x28x1xf32, #tpu.memory_space<vmem>>, vector<2x2x24x1xf32>
      %c2_516 = arith.constant 2 : index
      %c0_517 = arith.constant 0 : index
      %c0_518 = arith.constant 0 : index
      %542 = vector.load %arg2[%c2_516, %c0_517, %c0_518] : memref<5x5x128xf32, #tpu.memory_space<vmem>>, vector<1x1x128xf32>
      %543 = vector.shape_cast %542 : vector<1x1x128xf32> to vector<128xf32>
      %544 = vector.shape_cast %543 : vector<128xf32> to vector<1x1x1x128xf32>
      %545 = vector.broadcast %541 : vector<2x2x24x1xf32> to vector<2x2x24x128xf32>
      %546 = vector.broadcast %544 : vector<1x1x1x128xf32> to vector<2x2x24x128xf32>
      %547 = arith.mulf %545, %546 : vector<2x2x24x128xf32>
      %548 = arith.addf %537, %547 : vector<2x2x24x128xf32>
      %c2_i32_519 = arith.constant 2 : i32
      %549 = arith.muli %c2_i32_519, %arg16 : i32
      %c2_i32_520 = arith.constant 2 : i32
      %550 = arith.addi %549, %c2_i32_520 : i32
      %c0_521 = arith.constant 0 : index
      %551 = arith.index_cast %550 : i32 to index
      %c1_522 = arith.constant 1 : index
      %c0_523 = arith.constant 0 : index
      %552 = vector.load %arg1[%c0_521, %551, %c1_522, %c0_523] : memref<2x28x28x1xf32, #tpu.memory_space<vmem>>, vector<2x2x24x1xf32>
      %c2_524 = arith.constant 2 : index
      %c1_525 = arith.constant 1 : index
      %c0_526 = arith.constant 0 : index
      %553 = vector.load %arg2[%c2_524, %c1_525, %c0_526] : memref<5x5x128xf32, #tpu.memory_space<vmem>>, vector<1x1x128xf32>
      %554 = vector.shape_cast %553 : vector<1x1x128xf32> to vector<128xf32>
      %555 = vector.shape_cast %554 : vector<128xf32> to vector<1x1x1x128xf32>
      %556 = vector.broadcast %552 : vector<2x2x24x1xf32> to vector<2x2x24x128xf32>
      %557 = vector.broadcast %555 : vector<1x1x1x128xf32> to vector<2x2x24x128xf32>
      %558 = arith.mulf %556, %557 : vector<2x2x24x128xf32>
      %559 = arith.addf %548, %558 : vector<2x2x24x128xf32>
      %c2_i32_527 = arith.constant 2 : i32
      %560 = arith.muli %c2_i32_527, %arg16 : i32
      %c2_i32_528 = arith.constant 2 : i32
      %561 = arith.addi %560, %c2_i32_528 : i32
      %c0_529 = arith.constant 0 : index
      %562 = arith.index_cast %561 : i32 to index
      %c2_530 = arith.constant 2 : index
      %c0_531 = arith.constant 0 : index
      %563 = vector.load %arg1[%c0_529, %562, %c2_530, %c0_531] : memref<2x28x28x1xf32, #tpu.memory_space<vmem>>, vector<2x2x24x1xf32>
      %c2_532 = arith.constant 2 : index
      %c2_533 = arith.constant 2 : index
      %c0_534 = arith.constant 0 : index
      %564 = vector.load %arg2[%c2_532, %c2_533, %c0_534] : memref<5x5x128xf32, #tpu.memory_space<vmem>>, vector<1x1x128xf32>
      %565 = vector.shape_cast %564 : vector<1x1x128xf32> to vector<128xf32>
      %566 = vector.shape_cast %565 : vector<128xf32> to vector<1x1x1x128xf32>
      %567 = vector.broadcast %563 : vector<2x2x24x1xf32> to vector<2x2x24x128xf32>
      %568 = vector.broadcast %566 : vector<1x1x1x128xf32> to vector<2x2x24x128xf32>
      %569 = arith.mulf %567, %568 : vector<2x2x24x128xf32>
      %570 = arith.addf %559, %569 : vector<2x2x24x128xf32>
      %c2_i32_535 = arith.constant 2 : i32
      %571 = arith.muli %c2_i32_535, %arg16 : i32
      %c2_i32_536 = arith.constant 2 : i32
      %572 = arith.addi %571, %c2_i32_536 : i32
      %c0_537 = arith.constant 0 : index
      %573 = arith.index_cast %572 : i32 to index
      %c3_538 = arith.constant 3 : index
      %c0_539 = arith.constant 0 : index
      %574 = vector.load %arg1[%c0_537, %573, %c3_538, %c0_539] : memref<2x28x28x1xf32, #tpu.memory_space<vmem>>, vector<2x2x24x1xf32>
      %c2_540 = arith.constant 2 : index
      %c3_541 = arith.constant 3 : index
      %c0_542 = arith.constant 0 : index
      %575 = vector.load %arg2[%c2_540, %c3_541, %c0_542] : memref<5x5x128xf32, #tpu.memory_space<vmem>>, vector<1x1x128xf32>
      %576 = vector.shape_cast %575 : vector<1x1x128xf32> to vector<128xf32>
      %577 = vector.shape_cast %576 : vector<128xf32> to vector<1x1x1x128xf32>
      %578 = vector.broadcast %574 : vector<2x2x24x1xf32> to vector<2x2x24x128xf32>
      %579 = vector.broadcast %577 : vector<1x1x1x128xf32> to vector<2x2x24x128xf32>
      %580 = arith.mulf %578, %579 : vector<2x2x24x128xf32>
      %581 = arith.addf %570, %580 : vector<2x2x24x128xf32>
      %c2_i32_543 = arith.constant 2 : i32
      %582 = arith.muli %c2_i32_543, %arg16 : i32
      %c2_i32_544 = arith.constant 2 : i32
      %583 = arith.addi %582, %c2_i32_544 : i32
      %c0_545 = arith.constant 0 : index
      %584 = arith.index_cast %583 : i32 to index
      %c4_546 = arith.constant 4 : index
      %c0_547 = arith.constant 0 : index
      %585 = vector.load %arg1[%c0_545, %584, %c4_546, %c0_547] : memref<2x28x28x1xf32, #tpu.memory_space<vmem>>, vector<2x2x24x1xf32>
      %c2_548 = arith.constant 2 : index
      %c4_549 = arith.constant 4 : index
      %c0_550 = arith.constant 0 : index
      %586 = vector.load %arg2[%c2_548, %c4_549, %c0_550] : memref<5x5x128xf32, #tpu.memory_space<vmem>>, vector<1x1x128xf32>
      %587 = vector.shape_cast %586 : vector<1x1x128xf32> to vector<128xf32>
      %588 = vector.shape_cast %587 : vector<128xf32> to vector<1x1x1x128xf32>
      %589 = vector.broadcast %585 : vector<2x2x24x1xf32> to vector<2x2x24x128xf32>
      %590 = vector.broadcast %588 : vector<1x1x1x128xf32> to vector<2x2x24x128xf32>
      %591 = arith.mulf %589, %590 : vector<2x2x24x128xf32>
      %592 = arith.addf %581, %591 : vector<2x2x24x128xf32>
      %c2_i32_551 = arith.constant 2 : i32
      %593 = arith.muli %c2_i32_551, %arg16 : i32
      %c3_i32 = arith.constant 3 : i32
      %594 = arith.addi %593, %c3_i32 : i32
      %c0_552 = arith.constant 0 : index
      %595 = arith.index_cast %594 : i32 to index
      %c0_553 = arith.constant 0 : index
      %c0_554 = arith.constant 0 : index
      %596 = vector.load %arg1[%c0_552, %595, %c0_553, %c0_554] : memref<2x28x28x1xf32, #tpu.memory_space<vmem>>, vector<2x2x24x1xf32>
      %c3_555 = arith.constant 3 : index
      %c0_556 = arith.constant 0 : index
      %c0_557 = arith.constant 0 : index
      %597 = vector.load %arg2[%c3_555, %c0_556, %c0_557] : memref<5x5x128xf32, #tpu.memory_space<vmem>>, vector<1x1x128xf32>
      %598 = vector.shape_cast %597 : vector<1x1x128xf32> to vector<128xf32>
      %599 = vector.shape_cast %598 : vector<128xf32> to vector<1x1x1x128xf32>
      %600 = vector.broadcast %596 : vector<2x2x24x1xf32> to vector<2x2x24x128xf32>
      %601 = vector.broadcast %599 : vector<1x1x1x128xf32> to vector<2x2x24x128xf32>
      %602 = arith.mulf %600, %601 : vector<2x2x24x128xf32>
      %603 = arith.addf %592, %602 : vector<2x2x24x128xf32>
      %c2_i32_558 = arith.constant 2 : i32
      %604 = arith.muli %c2_i32_558, %arg16 : i32
      %c3_i32_559 = arith.constant 3 : i32
      %605 = arith.addi %604, %c3_i32_559 : i32
      %c0_560 = arith.constant 0 : index
      %606 = arith.index_cast %605 : i32 to index
      %c1_561 = arith.constant 1 : index
      %c0_562 = arith.constant 0 : index
      %607 = vector.load %arg1[%c0_560, %606, %c1_561, %c0_562] : memref<2x28x28x1xf32, #tpu.memory_space<vmem>>, vector<2x2x24x1xf32>
      %c3_563 = arith.constant 3 : index
      %c1_564 = arith.constant 1 : index
      %c0_565 = arith.constant 0 : index
      %608 = vector.load %arg2[%c3_563, %c1_564, %c0_565] : memref<5x5x128xf32, #tpu.memory_space<vmem>>, vector<1x1x128xf32>
      %609 = vector.shape_cast %608 : vector<1x1x128xf32> to vector<128xf32>
      %610 = vector.shape_cast %609 : vector<128xf32> to vector<1x1x1x128xf32>
      %611 = vector.broadcast %607 : vector<2x2x24x1xf32> to vector<2x2x24x128xf32>
      %612 = vector.broadcast %610 : vector<1x1x1x128xf32> to vector<2x2x24x128xf32>
      %613 = arith.mulf %611, %612 : vector<2x2x24x128xf32>
      %614 = arith.addf %603, %613 : vector<2x2x24x128xf32>
      %c2_i32_566 = arith.constant 2 : i32
      %615 = arith.muli %c2_i32_566, %arg16 : i32
      %c3_i32_567 = arith.constant 3 : i32
      %616 = arith.addi %615, %c3_i32_567 : i32
      %c0_568 = arith.constant 0 : index
      %617 = arith.index_cast %616 : i32 to index
      %c2_569 = arith.constant 2 : index
      %c0_570 = arith.constant 0 : index
      %618 = vector.load %arg1[%c0_568, %617, %c2_569, %c0_570] : memref<2x28x28x1xf32, #tpu.memory_space<vmem>>, vector<2x2x24x1xf32>
      %c3_571 = arith.constant 3 : index
      %c2_572 = arith.constant 2 : index
      %c0_573 = arith.constant 0 : index
      %619 = vector.load %arg2[%c3_571, %c2_572, %c0_573] : memref<5x5x128xf32, #tpu.memory_space<vmem>>, vector<1x1x128xf32>
      %620 = vector.shape_cast %619 : vector<1x1x128xf32> to vector<128xf32>
      %621 = vector.shape_cast %620 : vector<128xf32> to vector<1x1x1x128xf32>
      %622 = vector.broadcast %618 : vector<2x2x24x1xf32> to vector<2x2x24x128xf32>
      %623 = vector.broadcast %621 : vector<1x1x1x128xf32> to vector<2x2x24x128xf32>
      %624 = arith.mulf %622, %623 : vector<2x2x24x128xf32>
      %625 = arith.addf %614, %624 : vector<2x2x24x128xf32>
      %c2_i32_574 = arith.constant 2 : i32
      %626 = arith.muli %c2_i32_574, %arg16 : i32
      %c3_i32_575 = arith.constant 3 : i32
      %627 = arith.addi %626, %c3_i32_575 : i32
      %c0_576 = arith.constant 0 : index
      %628 = arith.index_cast %627 : i32 to index
      %c3_577 = arith.constant 3 : index
      %c0_578 = arith.constant 0 : index
      %629 = vector.load %arg1[%c0_576, %628, %c3_577, %c0_578] : memref<2x28x28x1xf32, #tpu.memory_space<vmem>>, vector<2x2x24x1xf32>
      %c3_579 = arith.constant 3 : index
      %c3_580 = arith.constant 3 : index
      %c0_581 = arith.constant 0 : index
      %630 = vector.load %arg2[%c3_579, %c3_580, %c0_581] : memref<5x5x128xf32, #tpu.memory_space<vmem>>, vector<1x1x128xf32>
      %631 = vector.shape_cast %630 : vector<1x1x128xf32> to vector<128xf32>
      %632 = vector.shape_cast %631 : vector<128xf32> to vector<1x1x1x128xf32>
      %633 = vector.broadcast %629 : vector<2x2x24x1xf32> to vector<2x2x24x128xf32>
      %634 = vector.broadcast %632 : vector<1x1x1x128xf32> to vector<2x2x24x128xf32>
      %635 = arith.mulf %633, %634 : vector<2x2x24x128xf32>
      %636 = arith.addf %625, %635 : vector<2x2x24x128xf32>
      %c2_i32_582 = arith.constant 2 : i32
      %637 = arith.muli %c2_i32_582, %arg16 : i32
      %c3_i32_583 = arith.constant 3 : i32
      %638 = arith.addi %637, %c3_i32_583 : i32
      %c0_584 = arith.constant 0 : index
      %639 = arith.index_cast %638 : i32 to index
      %c4_585 = arith.constant 4 : index
      %c0_586 = arith.constant 0 : index
      %640 = vector.load %arg1[%c0_584, %639, %c4_585, %c0_586] : memref<2x28x28x1xf32, #tpu.memory_space<vmem>>, vector<2x2x24x1xf32>
      %c3_587 = arith.constant 3 : index
      %c4_588 = arith.constant 4 : index
      %c0_589 = arith.constant 0 : index
      %641 = vector.load %arg2[%c3_587, %c4_588, %c0_589] : memref<5x5x128xf32, #tpu.memory_space<vmem>>, vector<1x1x128xf32>
      %642 = vector.shape_cast %641 : vector<1x1x128xf32> to vector<128xf32>
      %643 = vector.shape_cast %642 : vector<128xf32> to vector<1x1x1x128xf32>
      %644 = vector.broadcast %640 : vector<2x2x24x1xf32> to vector<2x2x24x128xf32>
      %645 = vector.broadcast %643 : vector<1x1x1x128xf32> to vector<2x2x24x128xf32>
      %646 = arith.mulf %644, %645 : vector<2x2x24x128xf32>
      %647 = arith.addf %636, %646 : vector<2x2x24x128xf32>
      %c2_i32_590 = arith.constant 2 : i32
      %648 = arith.muli %c2_i32_590, %arg16 : i32
      %c4_i32 = arith.constant 4 : i32
      %649 = arith.addi %648, %c4_i32 : i32
      %c0_591 = arith.constant 0 : index
      %650 = arith.index_cast %649 : i32 to index
      %c0_592 = arith.constant 0 : index
      %c0_593 = arith.constant 0 : index
      %651 = vector.load %arg1[%c0_591, %650, %c0_592, %c0_593] : memref<2x28x28x1xf32, #tpu.memory_space<vmem>>, vector<2x2x24x1xf32>
      %c4_594 = arith.constant 4 : index
      %c0_595 = arith.constant 0 : index
      %c0_596 = arith.constant 0 : index
      %652 = vector.load %arg2[%c4_594, %c0_595, %c0_596] : memref<5x5x128xf32, #tpu.memory_space<vmem>>, vector<1x1x128xf32>
      %653 = vector.shape_cast %652 : vector<1x1x128xf32> to vector<128xf32>
      %654 = vector.shape_cast %653 : vector<128xf32> to vector<1x1x1x128xf32>
      %655 = vector.broadcast %651 : vector<2x2x24x1xf32> to vector<2x2x24x128xf32>
      %656 = vector.broadcast %654 : vector<1x1x1x128xf32> to vector<2x2x24x128xf32>
      %657 = arith.mulf %655, %656 : vector<2x2x24x128xf32>
      %658 = arith.addf %647, %657 : vector<2x2x24x128xf32>
      %c2_i32_597 = arith.constant 2 : i32
      %659 = arith.muli %c2_i32_597, %arg16 : i32
      %c4_i32_598 = arith.constant 4 : i32
      %660 = arith.addi %659, %c4_i32_598 : i32
      %c0_599 = arith.constant 0 : index
      %661 = arith.index_cast %660 : i32 to index
      %c1_600 = arith.constant 1 : index
      %c0_601 = arith.constant 0 : index
      %662 = vector.load %arg1[%c0_599, %661, %c1_600, %c0_601] : memref<2x28x28x1xf32, #tpu.memory_space<vmem>>, vector<2x2x24x1xf32>
      %c4_602 = arith.constant 4 : index
      %c1_603 = arith.constant 1 : index
      %c0_604 = arith.constant 0 : index
      %663 = vector.load %arg2[%c4_602, %c1_603, %c0_604] : memref<5x5x128xf32, #tpu.memory_space<vmem>>, vector<1x1x128xf32>
      %664 = vector.shape_cast %663 : vector<1x1x128xf32> to vector<128xf32>
      %665 = vector.shape_cast %664 : vector<128xf32> to vector<1x1x1x128xf32>
      %666 = vector.broadcast %662 : vector<2x2x24x1xf32> to vector<2x2x24x128xf32>
      %667 = vector.broadcast %665 : vector<1x1x1x128xf32> to vector<2x2x24x128xf32>
      %668 = arith.mulf %666, %667 : vector<2x2x24x128xf32>
      %669 = arith.addf %658, %668 : vector<2x2x24x128xf32>
      %c2_i32_605 = arith.constant 2 : i32
      %670 = arith.muli %c2_i32_605, %arg16 : i32
      %c4_i32_606 = arith.constant 4 : i32
      %671 = arith.addi %670, %c4_i32_606 : i32
      %c0_607 = arith.constant 0 : index
      %672 = arith.index_cast %671 : i32 to index
      %c2_608 = arith.constant 2 : index
      %c0_609 = arith.constant 0 : index
      %673 = vector.load %arg1[%c0_607, %672, %c2_608, %c0_609] : memref<2x28x28x1xf32, #tpu.memory_space<vmem>>, vector<2x2x24x1xf32>
      %c4_610 = arith.constant 4 : index
      %c2_611 = arith.constant 2 : index
      %c0_612 = arith.constant 0 : index
      %674 = vector.load %arg2[%c4_610, %c2_611, %c0_612] : memref<5x5x128xf32, #tpu.memory_space<vmem>>, vector<1x1x128xf32>
      %675 = vector.shape_cast %674 : vector<1x1x128xf32> to vector<128xf32>
      %676 = vector.shape_cast %675 : vector<128xf32> to vector<1x1x1x128xf32>
      %677 = vector.broadcast %673 : vector<2x2x24x1xf32> to vector<2x2x24x128xf32>
      %678 = vector.broadcast %676 : vector<1x1x1x128xf32> to vector<2x2x24x128xf32>
      %679 = arith.mulf %677, %678 : vector<2x2x24x128xf32>
      %680 = arith.addf %669, %679 : vector<2x2x24x128xf32>
      %c2_i32_613 = arith.constant 2 : i32
      %681 = arith.muli %c2_i32_613, %arg16 : i32
      %c4_i32_614 = arith.constant 4 : i32
      %682 = arith.addi %681, %c4_i32_614 : i32
      %c0_615 = arith.constant 0 : index
      %683 = arith.index_cast %682 : i32 to index
      %c3_616 = arith.constant 3 : index
      %c0_617 = arith.constant 0 : index
      %684 = vector.load %arg1[%c0_615, %683, %c3_616, %c0_617] : memref<2x28x28x1xf32, #tpu.memory_space<vmem>>, vector<2x2x24x1xf32>
      %c4_618 = arith.constant 4 : index
      %c3_619 = arith.constant 3 : index
      %c0_620 = arith.constant 0 : index
      %685 = vector.load %arg2[%c4_618, %c3_619, %c0_620] : memref<5x5x128xf32, #tpu.memory_space<vmem>>, vector<1x1x128xf32>
      %686 = vector.shape_cast %685 : vector<1x1x128xf32> to vector<128xf32>
      %687 = vector.shape_cast %686 : vector<128xf32> to vector<1x1x1x128xf32>
      %688 = vector.broadcast %684 : vector<2x2x24x1xf32> to vector<2x2x24x128xf32>
      %689 = vector.broadcast %687 : vector<1x1x1x128xf32> to vector<2x2x24x128xf32>
      %690 = arith.mulf %688, %689 : vector<2x2x24x128xf32>
      %691 = arith.addf %680, %690 : vector<2x2x24x128xf32>
      %c2_i32_621 = arith.constant 2 : i32
      %692 = arith.muli %c2_i32_621, %arg16 : i32
      %c4_i32_622 = arith.constant 4 : i32
      %693 = arith.addi %692, %c4_i32_622 : i32
      %c0_623 = arith.constant 0 : index
      %694 = arith.index_cast %693 : i32 to index
      %c4_624 = arith.constant 4 : index
      %c0_625 = arith.constant 0 : index
      %695 = vector.load %arg1[%c0_623, %694, %c4_624, %c0_625] : memref<2x28x28x1xf32, #tpu.memory_space<vmem>>, vector<2x2x24x1xf32>
      %c4_626 = arith.constant 4 : index
      %c4_627 = arith.constant 4 : index
      %c0_628 = arith.constant 0 : index
      %696 = vector.load %arg2[%c4_626, %c4_627, %c0_628] : memref<5x5x128xf32, #tpu.memory_space<vmem>>, vector<1x1x128xf32>
      %697 = vector.shape_cast %696 : vector<1x1x128xf32> to vector<128xf32>
      %698 = vector.shape_cast %697 : vector<128xf32> to vector<1x1x1x128xf32>
      %699 = vector.broadcast %695 : vector<2x2x24x1xf32> to vector<2x2x24x128xf32>
      %700 = vector.broadcast %698 : vector<1x1x1x128xf32> to vector<2x2x24x128xf32>
      %701 = arith.mulf %699, %700 : vector<2x2x24x128xf32>
      %702 = arith.addf %691, %701 : vector<2x2x24x128xf32>
      %703 = vector.extract_strided_slice %702 {offsets = [0, 0, 0, 0], sizes = [2, 1, 24, 128], strides = [1, 1, 1, 1]} : vector<2x2x24x128xf32> to vector<2x1x24x128xf32>
      %704 = vector.shape_cast %703 : vector<2x1x24x128xf32> to vector<2x24x128xf32>
      %705 = vector.extract_strided_slice %702 {offsets = [0, 1, 0, 0], sizes = [2, 1, 24, 128], strides = [1, 1, 1, 1]} : vector<2x2x24x128xf32> to vector<2x1x24x128xf32>
      %706 = vector.shape_cast %705 : vector<2x1x24x128xf32> to vector<2x24x128xf32>
      %707 = arith.maximumf %704, %706 : vector<2x24x128xf32>
      %c0_629 = arith.constant 0 : index
      %c0_630 = arith.constant 0 : index
      %c0_631 = arith.constant 0 : index
      %708 = vector.load %arg14[%c0_629, %c0_630, %c0_631] : memref<2x24x128xf32, #tpu.memory_space<vmem>>, vector<2x24x128xf32>
      tpu.vector_store %arg14[%c0_629, %c0_630, %c0_631], %707 {strides = array<i32>} : memref<2x24x128xf32, #tpu.memory_space<vmem>>, vector<2x24x128xf32>,
      %c0_632 = arith.constant 0 : index
      %c0_633 = arith.constant 0 : index
      %c0_634 = arith.constant 0 : index
      %709 = tpu.strided_load %arg14[%c0_632, %c0_633, %c0_634] {strides = array<i32: 1, 2, 1>} : memref<2x24x128xf32, #tpu.memory_space<vmem>>, vector<2x12x128xf32>
      %c0_635 = arith.constant 0 : index
      %c1_636 = arith.constant 1 : index
      %c0_637 = arith.constant 0 : index
      %710 = tpu.strided_load %arg14[%c0_635, %c1_636, %c0_637] {strides = array<i32: 1, 2, 1>} : memref<2x24x128xf32, #tpu.memory_space<vmem>>, vector<2x12x128xf32>
      %711 = arith.maximumf %709, %710 : vector<2x12x128xf32>
      %712 = vector.shape_cast %0 : vector<1x128xf32> to vector<1x1x128xf32>
      %713 = vector.broadcast %712 : vector<1x1x128xf32> to vector<2x12x128xf32>
      %714 = arith.addf %711, %713 : vector<2x12x128xf32>
      %cst_638 = arith.constant 0.000000e+00 : f32
      %715 = vector.broadcast %cst_638 : f32 to vector<2x12x128xf32>
      %716 = arith.maximumf %714, %715 : vector<2x12x128xf32>
      %c0_639 = arith.constant 0 : index
      %717 = arith.index_cast %arg16 : i32 to index
      %c0_640 = arith.constant 0 : index
      %c0_641 = arith.constant 0 : index
      %718 = vector.load %arg11[%c0_639, %717, %c0_640, %c0_641] : memref<2x12x12x128xf32, #tpu.memory_space<vmem>>, vector<2x1x12x128xf32>
      %719 = vector.shape_cast %718 : vector<2x1x12x128xf32> to vector<2x12x128xf32>
      %720 = vector.shape_cast %716 : vector<2x12x128xf32> to vector<2x1x12x128xf32>
      tpu.vector_store %arg11[%c0_639, %717, %c0_640, %c0_641], %720 {strides = array<i32>} : memref<2x12x12x128xf32, #tpu.memory_space<vmem>>, vector<2x1x12x128xf32>,
    }
    %c12_i32_1 = arith.constant 12 : i32
    %cst = arith.constant 0.000000e+00 : f32
    %2 = vector.broadcast %cst : f32 to vector<128x128xf32>
    %c0_2 = arith.constant 0 : index
    %c0_3 = arith.constant 0 : index
    %c0_4 = arith.constant 0 : index
    %c0_5 = arith.constant 0 : index
    %3 = vector.load %arg11[%c0_2, %c0_3, %c0_4, %c0_5] : memref<2x12x12x128xf32, #tpu.memory_space<vmem>>, vector<2x8x8x128xf32>
    %4 = vector.shape_cast %3 : vector<2x8x8x128xf32> to vector<128x128xf32>
    %5 = arith.truncf %4 : vector<128x128xf32> to vector<128x128xbf16>
    %c0_6 = arith.constant 0 : index
    %c0_7 = arith.constant 0 : index
    %c0_8 = arith.constant 0 : index
    %6 = vector.load %arg4[%c0_6, %c0_7, %c0_8] : memref<25x128x128xbf16, #tpu.memory_space<vmem>>, vector<1x128x128xbf16>
    %7 = vector.shape_cast %6 : vector<1x128x128xbf16> to vector<128x128xbf16>
    %cst_9 = arith.constant dense<0.000000e+00> : vector<128x128xf32>
    %8 = tpu.matmul %5, %7, %cst_9 {dimension_numbers = #tpu.dot_dimension_numbers<[1], [0], [0], [1], [0, 0, 1, 1], [], []>} : vector<128x128xbf16>, vector<128x128xbf16>, vector<128x128xf32> -> vector<128x128xf32>
    %9 = arith.addf %2, %8 : vector<128x128xf32>
    %c0_10 = arith.constant 0 : index
    %c0_11 = arith.constant 0 : index
    %c1 = arith.constant 1 : index
    %c0_12 = arith.constant 0 : index
    %10 = vector.load %arg11[%c0_10, %c0_11, %c1, %c0_12] : memref<2x12x12x128xf32, #tpu.memory_space<vmem>>, vector<2x8x8x128xf32>
    %11 = vector.shape_cast %10 : vector<2x8x8x128xf32> to vector<128x128xf32>
    %12 = arith.truncf %11 : vector<128x128xf32> to vector<128x128xbf16>
    %c1_13 = arith.constant 1 : index
    %c0_14 = arith.constant 0 : index
    %c0_15 = arith.constant 0 : index
    %13 = vector.load %arg4[%c1_13, %c0_14, %c0_15] : memref<25x128x128xbf16, #tpu.memory_space<vmem>>, vector<1x128x128xbf16>
    %14 = vector.shape_cast %13 : vector<1x128x128xbf16> to vector<128x128xbf16>
    %cst_16 = arith.constant dense<0.000000e+00> : vector<128x128xf32>
    %15 = tpu.matmul %12, %14, %cst_16 {dimension_numbers = #tpu.dot_dimension_numbers<[1], [0], [0], [1], [0, 0, 1, 1], [], []>} : vector<128x128xbf16>, vector<128x128xbf16>, vector<128x128xf32> -> vector<128x128xf32>
    %16 = arith.addf %9, %15 : vector<128x128xf32>
    %c0_17 = arith.constant 0 : index
    %c0_18 = arith.constant 0 : index
    %c2 = arith.constant 2 : index
    %c0_19 = arith.constant 0 : index
    %17 = vector.load %arg11[%c0_17, %c0_18, %c2, %c0_19] : memref<2x12x12x128xf32, #tpu.memory_space<vmem>>, vector<2x8x8x128xf32>
    %18 = vector.shape_cast %17 : vector<2x8x8x128xf32> to vector<128x128xf32>
    %19 = arith.truncf %18 : vector<128x128xf32> to vector<128x128xbf16>
    %c2_20 = arith.constant 2 : index
    %c0_21 = arith.constant 0 : index
    %c0_22 = arith.constant 0 : index
    %20 = vector.load %arg4[%c2_20, %c0_21, %c0_22] : memref<25x128x128xbf16, #tpu.memory_space<vmem>>, vector<1x128x128xbf16>
    %21 = vector.shape_cast %20 : vector<1x128x128xbf16> to vector<128x128xbf16>
    %cst_23 = arith.constant dense<0.000000e+00> : vector<128x128xf32>
    %22 = tpu.matmul %19, %21, %cst_23 {dimension_numbers = #tpu.dot_dimension_numbers<[1], [0], [0], [1], [0, 0, 1, 1], [], []>} : vector<128x128xbf16>, vector<128x128xbf16>, vector<128x128xf32> -> vector<128x128xf32>
    %23 = arith.addf %16, %22 : vector<128x128xf32>
    %c0_24 = arith.constant 0 : index
    %c0_25 = arith.constant 0 : index
    %c3 = arith.constant 3 : index
    %c0_26 = arith.constant 0 : index
    %24 = vector.load %arg11[%c0_24, %c0_25, %c3, %c0_26] : memref<2x12x12x128xf32, #tpu.memory_space<vmem>>, vector<2x8x8x128xf32>
    %25 = vector.shape_cast %24 : vector<2x8x8x128xf32> to vector<128x128xf32>
    %26 = arith.truncf %25 : vector<128x128xf32> to vector<128x128xbf16>
    %c3_27 = arith.constant 3 : index
    %c0_28 = arith.constant 0 : index
    %c0_29 = arith.constant 0 : index
    %27 = vector.load %arg4[%c3_27, %c0_28, %c0_29] : memref<25x128x128xbf16, #tpu.memory_space<vmem>>, vector<1x128x128xbf16>
    %28 = vector.shape_cast %27 : vector<1x128x128xbf16> to vector<128x128xbf16>
    %cst_30 = arith.constant dense<0.000000e+00> : vector<128x128xf32>
    %29 = tpu.matmul %26, %28, %cst_30 {dimension_numbers = #tpu.dot_dimension_numbers<[1], [0], [0], [1], [0, 0, 1, 1], [], []>} : vector<128x128xbf16>, vector<128x128xbf16>, vector<128x128xf32> -> vector<128x128xf32>
    %30 = arith.addf %23, %29 : vector<128x128xf32>
    %c0_31 = arith.constant 0 : index
    %c0_32 = arith.constant 0 : index
    %c4 = arith.constant 4 : index
    %c0_33 = arith.constant 0 : index
    %31 = vector.load %arg11[%c0_31, %c0_32, %c4, %c0_33] : memref<2x12x12x128xf32, #tpu.memory_space<vmem>>, vector<2x8x8x128xf32>
    %32 = vector.shape_cast %31 : vector<2x8x8x128xf32> to vector<128x128xf32>
    %33 = arith.truncf %32 : vector<128x128xf32> to vector<128x128xbf16>
    %c4_34 = arith.constant 4 : index
    %c0_35 = arith.constant 0 : index
    %c0_36 = arith.constant 0 : index
    %34 = vector.load %arg4[%c4_34, %c0_35, %c0_36] : memref<25x128x128xbf16, #tpu.memory_space<vmem>>, vector<1x128x128xbf16>
    %35 = vector.shape_cast %34 : vector<1x128x128xbf16> to vector<128x128xbf16>
    %cst_37 = arith.constant dense<0.000000e+00> : vector<128x128xf32>
    %36 = tpu.matmul %33, %35, %cst_37 {dimension_numbers = #tpu.dot_dimension_numbers<[1], [0], [0], [1], [0, 0, 1, 1], [], []>} : vector<128x128xbf16>, vector<128x128xbf16>, vector<128x128xf32> -> vector<128x128xf32>
    %37 = arith.addf %30, %36 : vector<128x128xf32>
    %c0_38 = arith.constant 0 : index
    %c1_39 = arith.constant 1 : index
    %c0_40 = arith.constant 0 : index
    %c0_41 = arith.constant 0 : index
    %38 = vector.load %arg11[%c0_38, %c1_39, %c0_40, %c0_41] : memref<2x12x12x128xf32, #tpu.memory_space<vmem>>, vector<2x8x8x128xf32>
    %39 = vector.shape_cast %38 : vector<2x8x8x128xf32> to vector<128x128xf32>
    %40 = arith.truncf %39 : vector<128x128xf32> to vector<128x128xbf16>
    %c5 = arith.constant 5 : index
    %c0_42 = arith.constant 0 : index
    %c0_43 = arith.constant 0 : index
    %41 = vector.load %arg4[%c5, %c0_42, %c0_43] : memref<25x128x128xbf16, #tpu.memory_space<vmem>>, vector<1x128x128xbf16>
    %42 = vector.shape_cast %41 : vector<1x128x128xbf16> to vector<128x128xbf16>
    %cst_44 = arith.constant dense<0.000000e+00> : vector<128x128xf32>
    %43 = tpu.matmul %40, %42, %cst_44 {dimension_numbers = #tpu.dot_dimension_numbers<[1], [0], [0], [1], [0, 0, 1, 1], [], []>} : vector<128x128xbf16>, vector<128x128xbf16>, vector<128x128xf32> -> vector<128x128xf32>
    %44 = arith.addf %37, %43 : vector<128x128xf32>
    %c0_45 = arith.constant 0 : index
    %c1_46 = arith.constant 1 : index
    %c1_47 = arith.constant 1 : index
    %c0_48 = arith.constant 0 : index
    %45 = vector.load %arg11[%c0_45, %c1_46, %c1_47, %c0_48] : memref<2x12x12x128xf32, #tpu.memory_space<vmem>>, vector<2x8x8x128xf32>
    %46 = vector.shape_cast %45 : vector<2x8x8x128xf32> to vector<128x128xf32>
    %47 = arith.truncf %46 : vector<128x128xf32> to vector<128x128xbf16>
    %c6 = arith.constant 6 : index
    %c0_49 = arith.constant 0 : index
    %c0_50 = arith.constant 0 : index
    %48 = vector.load %arg4[%c6, %c0_49, %c0_50] : memref<25x128x128xbf16, #tpu.memory_space<vmem>>, vector<1x128x128xbf16>
    %49 = vector.shape_cast %48 : vector<1x128x128xbf16> to vector<128x128xbf16>
    %cst_51 = arith.constant dense<0.000000e+00> : vector<128x128xf32>
    %50 = tpu.matmul %47, %49, %cst_51 {dimension_numbers = #tpu.dot_dimension_numbers<[1], [0], [0], [1], [0, 0, 1, 1], [], []>} : vector<128x128xbf16>, vector<128x128xbf16>, vector<128x128xf32> -> vector<128x128xf32>
    %51 = arith.addf %44, %50 : vector<128x128xf32>
    %c0_52 = arith.constant 0 : index
    %c1_53 = arith.constant 1 : index
    %c2_54 = arith.constant 2 : index
    %c0_55 = arith.constant 0 : index
    %52 = vector.load %arg11[%c0_52, %c1_53, %c2_54, %c0_55] : memref<2x12x12x128xf32, #tpu.memory_space<vmem>>, vector<2x8x8x128xf32>
    %53 = vector.shape_cast %52 : vector<2x8x8x128xf32> to vector<128x128xf32>
    %54 = arith.truncf %53 : vector<128x128xf32> to vector<128x128xbf16>
    %c7 = arith.constant 7 : index
    %c0_56 = arith.constant 0 : index
    %c0_57 = arith.constant 0 : index
    %55 = vector.load %arg4[%c7, %c0_56, %c0_57] : memref<25x128x128xbf16, #tpu.memory_space<vmem>>, vector<1x128x128xbf16>
    %56 = vector.shape_cast %55 : vector<1x128x128xbf16> to vector<128x128xbf16>
    %cst_58 = arith.constant dense<0.000000e+00> : vector<128x128xf32>
    %57 = tpu.matmul %54, %56, %cst_58 {dimension_numbers = #tpu.dot_dimension_numbers<[1], [0], [0], [1], [0, 0, 1, 1], [], []>} : vector<128x128xbf16>, vector<128x128xbf16>, vector<128x128xf32> -> vector<128x128xf32>
    %58 = arith.addf %51, %57 : vector<128x128xf32>
    %c0_59 = arith.constant 0 : index
    %c1_60 = arith.constant 1 : index
    %c3_61 = arith.constant 3 : index
    %c0_62 = arith.constant 0 : index
    %59 = vector.load %arg11[%c0_59, %c1_60, %c3_61, %c0_62] : memref<2x12x12x128xf32, #tpu.memory_space<vmem>>, vector<2x8x8x128xf32>
    %60 = vector.shape_cast %59 : vector<2x8x8x128xf32> to vector<128x128xf32>
    %61 = arith.truncf %60 : vector<128x128xf32> to vector<128x128xbf16>
    %c8 = arith.constant 8 : index
    %c0_63 = arith.constant 0 : index
    %c0_64 = arith.constant 0 : index
    %62 = vector.load %arg4[%c8, %c0_63, %c0_64] : memref<25x128x128xbf16, #tpu.memory_space<vmem>>, vector<1x128x128xbf16>
    %63 = vector.shape_cast %62 : vector<1x128x128xbf16> to vector<128x128xbf16>
    %cst_65 = arith.constant dense<0.000000e+00> : vector<128x128xf32>
    %64 = tpu.matmul %61, %63, %cst_65 {dimension_numbers = #tpu.dot_dimension_numbers<[1], [0], [0], [1], [0, 0, 1, 1], [], []>} : vector<128x128xbf16>, vector<128x128xbf16>, vector<128x128xf32> -> vector<128x128xf32>
    %65 = arith.addf %58, %64 : vector<128x128xf32>
    %c0_66 = arith.constant 0 : index
    %c1_67 = arith.constant 1 : index
    %c4_68 = arith.constant 4 : index
    %c0_69 = arith.constant 0 : index
    %66 = vector.load %arg11[%c0_66, %c1_67, %c4_68, %c0_69] : memref<2x12x12x128xf32, #tpu.memory_space<vmem>>, vector<2x8x8x128xf32>
    %67 = vector.shape_cast %66 : vector<2x8x8x128xf32> to vector<128x128xf32>
    %68 = arith.truncf %67 : vector<128x128xf32> to vector<128x128xbf16>
    %c9 = arith.constant 9 : index
    %c0_70 = arith.constant 0 : index
    %c0_71 = arith.constant 0 : index
    %69 = vector.load %arg4[%c9, %c0_70, %c0_71] : memref<25x128x128xbf16, #tpu.memory_space<vmem>>, vector<1x128x128xbf16>
    %70 = vector.shape_cast %69 : vector<1x128x128xbf16> to vector<128x128xbf16>
    %cst_72 = arith.constant dense<0.000000e+00> : vector<128x128xf32>
    %71 = tpu.matmul %68, %70, %cst_72 {dimension_numbers = #tpu.dot_dimension_numbers<[1], [0], [0], [1], [0, 0, 1, 1], [], []>} : vector<128x128xbf16>, vector<128x128xbf16>, vector<128x128xf32> -> vector<128x128xf32>
    %72 = arith.addf %65, %71 : vector<128x128xf32>
    %c0_73 = arith.constant 0 : index
    %c2_74 = arith.constant 2 : index
    %c0_75 = arith.constant 0 : index
    %c0_76 = arith.constant 0 : index
    %73 = vector.load %arg11[%c0_73, %c2_74, %c0_75, %c0_76] : memref<2x12x12x128xf32, #tpu.memory_space<vmem>>, vector<2x8x8x128xf32>
    %74 = vector.shape_cast %73 : vector<2x8x8x128xf32> to vector<128x128xf32>
    %75 = arith.truncf %74 : vector<128x128xf32> to vector<128x128xbf16>
    %c10 = arith.constant 10 : index
    %c0_77 = arith.constant 0 : index
    %c0_78 = arith.constant 0 : index
    %76 = vector.load %arg4[%c10, %c0_77, %c0_78] : memref<25x128x128xbf16, #tpu.memory_space<vmem>>, vector<1x128x128xbf16>
    %77 = vector.shape_cast %76 : vector<1x128x128xbf16> to vector<128x128xbf16>
    %cst_79 = arith.constant dense<0.000000e+00> : vector<128x128xf32>
    %78 = tpu.matmul %75, %77, %cst_79 {dimension_numbers = #tpu.dot_dimension_numbers<[1], [0], [0], [1], [0, 0, 1, 1], [], []>} : vector<128x128xbf16>, vector<128x128xbf16>, vector<128x128xf32> -> vector<128x128xf32>
    %79 = arith.addf %72, %78 : vector<128x128xf32>
    %c0_80 = arith.constant 0 : index
    %c2_81 = arith.constant 2 : index
    %c1_82 = arith.constant 1 : index
    %c0_83 = arith.constant 0 : index
    %80 = vector.load %arg11[%c0_80, %c2_81, %c1_82, %c0_83] : memref<2x12x12x128xf32, #tpu.memory_space<vmem>>, vector<2x8x8x128xf32>
    %81 = vector.shape_cast %80 : vector<2x8x8x128xf32> to vector<128x128xf32>
    %82 = arith.truncf %81 : vector<128x128xf32> to vector<128x128xbf16>
    %c11 = arith.constant 11 : index
    %c0_84 = arith.constant 0 : index
    %c0_85 = arith.constant 0 : index
    %83 = vector.load %arg4[%c11, %c0_84, %c0_85] : memref<25x128x128xbf16, #tpu.memory_space<vmem>>, vector<1x128x128xbf16>
    %84 = vector.shape_cast %83 : vector<1x128x128xbf16> to vector<128x128xbf16>
    %cst_86 = arith.constant dense<0.000000e+00> : vector<128x128xf32>
    %85 = tpu.matmul %82, %84, %cst_86 {dimension_numbers = #tpu.dot_dimension_numbers<[1], [0], [0], [1], [0, 0, 1, 1], [], []>} : vector<128x128xbf16>, vector<128x128xbf16>, vector<128x128xf32> -> vector<128x128xf32>
    %86 = arith.addf %79, %85 : vector<128x128xf32>
    %c0_87 = arith.constant 0 : index
    %c2_88 = arith.constant 2 : index
    %c2_89 = arith.constant 2 : index
    %c0_90 = arith.constant 0 : index
    %87 = vector.load %arg11[%c0_87, %c2_88, %c2_89, %c0_90] : memref<2x12x12x128xf32, #tpu.memory_space<vmem>>, vector<2x8x8x128xf32>
    %88 = vector.shape_cast %87 : vector<2x8x8x128xf32> to vector<128x128xf32>
    %89 = arith.truncf %88 : vector<128x128xf32> to vector<128x128xbf16>
    %c12 = arith.constant 12 : index
    %c0_91 = arith.constant 0 : index
    %c0_92 = arith.constant 0 : index
    %90 = vector.load %arg4[%c12, %c0_91, %c0_92] : memref<25x128x128xbf16, #tpu.memory_space<vmem>>, vector<1x128x128xbf16>
    %91 = vector.shape_cast %90 : vector<1x128x128xbf16> to vector<128x128xbf16>
    %cst_93 = arith.constant dense<0.000000e+00> : vector<128x128xf32>
    %92 = tpu.matmul %89, %91, %cst_93 {dimension_numbers = #tpu.dot_dimension_numbers<[1], [0], [0], [1], [0, 0, 1, 1], [], []>} : vector<128x128xbf16>, vector<128x128xbf16>, vector<128x128xf32> -> vector<128x128xf32>
    %93 = arith.addf %86, %92 : vector<128x128xf32>
    %c0_94 = arith.constant 0 : index
    %c2_95 = arith.constant 2 : index
    %c3_96 = arith.constant 3 : index
    %c0_97 = arith.constant 0 : index
    %94 = vector.load %arg11[%c0_94, %c2_95, %c3_96, %c0_97] : memref<2x12x12x128xf32, #tpu.memory_space<vmem>>, vector<2x8x8x128xf32>
    %95 = vector.shape_cast %94 : vector<2x8x8x128xf32> to vector<128x128xf32>
    %96 = arith.truncf %95 : vector<128x128xf32> to vector<128x128xbf16>
    %c13 = arith.constant 13 : index
    %c0_98 = arith.constant 0 : index
    %c0_99 = arith.constant 0 : index
    %97 = vector.load %arg4[%c13, %c0_98, %c0_99] : memref<25x128x128xbf16, #tpu.memory_space<vmem>>, vector<1x128x128xbf16>
    %98 = vector.shape_cast %97 : vector<1x128x128xbf16> to vector<128x128xbf16>
    %cst_100 = arith.constant dense<0.000000e+00> : vector<128x128xf32>
    %99 = tpu.matmul %96, %98, %cst_100 {dimension_numbers = #tpu.dot_dimension_numbers<[1], [0], [0], [1], [0, 0, 1, 1], [], []>} : vector<128x128xbf16>, vector<128x128xbf16>, vector<128x128xf32> -> vector<128x128xf32>
    %100 = arith.addf %93, %99 : vector<128x128xf32>
    %c0_101 = arith.constant 0 : index
    %c2_102 = arith.constant 2 : index
    %c4_103 = arith.constant 4 : index
    %c0_104 = arith.constant 0 : index
    %101 = vector.load %arg11[%c0_101, %c2_102, %c4_103, %c0_104] : memref<2x12x12x128xf32, #tpu.memory_space<vmem>>, vector<2x8x8x128xf32>
    %102 = vector.shape_cast %101 : vector<2x8x8x128xf32> to vector<128x128xf32>
    %103 = arith.truncf %102 : vector<128x128xf32> to vector<128x128xbf16>
    %c14 = arith.constant 14 : index
    %c0_105 = arith.constant 0 : index
    %c0_106 = arith.constant 0 : index
    %104 = vector.load %arg4[%c14, %c0_105, %c0_106] : memref<25x128x128xbf16, #tpu.memory_space<vmem>>, vector<1x128x128xbf16>
    %105 = vector.shape_cast %104 : vector<1x128x128xbf16> to vector<128x128xbf16>
    %cst_107 = arith.constant dense<0.000000e+00> : vector<128x128xf32>
    %106 = tpu.matmul %103, %105, %cst_107 {dimension_numbers = #tpu.dot_dimension_numbers<[1], [0], [0], [1], [0, 0, 1, 1], [], []>} : vector<128x128xbf16>, vector<128x128xbf16>, vector<128x128xf32> -> vector<128x128xf32>
    %107 = arith.addf %100, %106 : vector<128x128xf32>
    %c0_108 = arith.constant 0 : index
    %c3_109 = arith.constant 3 : index
    %c0_110 = arith.constant 0 : index
    %c0_111 = arith.constant 0 : index
    %108 = vector.load %arg11[%c0_108, %c3_109, %c0_110, %c0_111] : memref<2x12x12x128xf32, #tpu.memory_space<vmem>>, vector<2x8x8x128xf32>
    %109 = vector.shape_cast %108 : vector<2x8x8x128xf32> to vector<128x128xf32>
    %110 = arith.truncf %109 : vector<128x128xf32> to vector<128x128xbf16>
    %c15 = arith.constant 15 : index
    %c0_112 = arith.constant 0 : index
    %c0_113 = arith.constant 0 : index
    %111 = vector.load %arg4[%c15, %c0_112, %c0_113] : memref<25x128x128xbf16, #tpu.memory_space<vmem>>, vector<1x128x128xbf16>
    %112 = vector.shape_cast %111 : vector<1x128x128xbf16> to vector<128x128xbf16>
    %cst_114 = arith.constant dense<0.000000e+00> : vector<128x128xf32>
    %113 = tpu.matmul %110, %112, %cst_114 {dimension_numbers = #tpu.dot_dimension_numbers<[1], [0], [0], [1], [0, 0, 1, 1], [], []>} : vector<128x128xbf16>, vector<128x128xbf16>, vector<128x128xf32> -> vector<128x128xf32>
    %114 = arith.addf %107, %113 : vector<128x128xf32>
    %c0_115 = arith.constant 0 : index
    %c3_116 = arith.constant 3 : index
    %c1_117 = arith.constant 1 : index
    %c0_118 = arith.constant 0 : index
    %115 = vector.load %arg11[%c0_115, %c3_116, %c1_117, %c0_118] : memref<2x12x12x128xf32, #tpu.memory_space<vmem>>, vector<2x8x8x128xf32>
    %116 = vector.shape_cast %115 : vector<2x8x8x128xf32> to vector<128x128xf32>
    %117 = arith.truncf %116 : vector<128x128xf32> to vector<128x128xbf16>
    %c16 = arith.constant 16 : index
    %c0_119 = arith.constant 0 : index
    %c0_120 = arith.constant 0 : index
    %118 = vector.load %arg4[%c16, %c0_119, %c0_120] : memref<25x128x128xbf16, #tpu.memory_space<vmem>>, vector<1x128x128xbf16>
    %119 = vector.shape_cast %118 : vector<1x128x128xbf16> to vector<128x128xbf16>
    %cst_121 = arith.constant dense<0.000000e+00> : vector<128x128xf32>
    %120 = tpu.matmul %117, %119, %cst_121 {dimension_numbers = #tpu.dot_dimension_numbers<[1], [0], [0], [1], [0, 0, 1, 1], [], []>} : vector<128x128xbf16>, vector<128x128xbf16>, vector<128x128xf32> -> vector<128x128xf32>
    %121 = arith.addf %114, %120 : vector<128x128xf32>
    %c0_122 = arith.constant 0 : index
    %c3_123 = arith.constant 3 : index
    %c2_124 = arith.constant 2 : index
    %c0_125 = arith.constant 0 : index
    %122 = vector.load %arg11[%c0_122, %c3_123, %c2_124, %c0_125] : memref<2x12x12x128xf32, #tpu.memory_space<vmem>>, vector<2x8x8x128xf32>
    %123 = vector.shape_cast %122 : vector<2x8x8x128xf32> to vector<128x128xf32>
    %124 = arith.truncf %123 : vector<128x128xf32> to vector<128x128xbf16>
    %c17 = arith.constant 17 : index
    %c0_126 = arith.constant 0 : index
    %c0_127 = arith.constant 0 : index
    %125 = vector.load %arg4[%c17, %c0_126, %c0_127] : memref<25x128x128xbf16, #tpu.memory_space<vmem>>, vector<1x128x128xbf16>
    %126 = vector.shape_cast %125 : vector<1x128x128xbf16> to vector<128x128xbf16>
    %cst_128 = arith.constant dense<0.000000e+00> : vector<128x128xf32>
    %127 = tpu.matmul %124, %126, %cst_128 {dimension_numbers = #tpu.dot_dimension_numbers<[1], [0], [0], [1], [0, 0, 1, 1], [], []>} : vector<128x128xbf16>, vector<128x128xbf16>, vector<128x128xf32> -> vector<128x128xf32>
    %128 = arith.addf %121, %127 : vector<128x128xf32>
    %c0_129 = arith.constant 0 : index
    %c3_130 = arith.constant 3 : index
    %c3_131 = arith.constant 3 : index
    %c0_132 = arith.constant 0 : index
    %129 = vector.load %arg11[%c0_129, %c3_130, %c3_131, %c0_132] : memref<2x12x12x128xf32, #tpu.memory_space<vmem>>, vector<2x8x8x128xf32>
    %130 = vector.shape_cast %129 : vector<2x8x8x128xf32> to vector<128x128xf32>
    %131 = arith.truncf %130 : vector<128x128xf32> to vector<128x128xbf16>
    %c18 = arith.constant 18 : index
    %c0_133 = arith.constant 0 : index
    %c0_134 = arith.constant 0 : index
    %132 = vector.load %arg4[%c18, %c0_133, %c0_134] : memref<25x128x128xbf16, #tpu.memory_space<vmem>>, vector<1x128x128xbf16>
    %133 = vector.shape_cast %132 : vector<1x128x128xbf16> to vector<128x128xbf16>
    %cst_135 = arith.constant dense<0.000000e+00> : vector<128x128xf32>
    %134 = tpu.matmul %131, %133, %cst_135 {dimension_numbers = #tpu.dot_dimension_numbers<[1], [0], [0], [1], [0, 0, 1, 1], [], []>} : vector<128x128xbf16>, vector<128x128xbf16>, vector<128x128xf32> -> vector<128x128xf32>
    %135 = arith.addf %128, %134 : vector<128x128xf32>
    %c0_136 = arith.constant 0 : index
    %c3_137 = arith.constant 3 : index
    %c4_138 = arith.constant 4 : index
    %c0_139 = arith.constant 0 : index
    %136 = vector.load %arg11[%c0_136, %c3_137, %c4_138, %c0_139] : memref<2x12x12x128xf32, #tpu.memory_space<vmem>>, vector<2x8x8x128xf32>
    %137 = vector.shape_cast %136 : vector<2x8x8x128xf32> to vector<128x128xf32>
    %138 = arith.truncf %137 : vector<128x128xf32> to vector<128x128xbf16>
    %c19 = arith.constant 19 : index
    %c0_140 = arith.constant 0 : index
    %c0_141 = arith.constant 0 : index
    %139 = vector.load %arg4[%c19, %c0_140, %c0_141] : memref<25x128x128xbf16, #tpu.memory_space<vmem>>, vector<1x128x128xbf16>
    %140 = vector.shape_cast %139 : vector<1x128x128xbf16> to vector<128x128xbf16>
    %cst_142 = arith.constant dense<0.000000e+00> : vector<128x128xf32>
    %141 = tpu.matmul %138, %140, %cst_142 {dimension_numbers = #tpu.dot_dimension_numbers<[1], [0], [0], [1], [0, 0, 1, 1], [], []>} : vector<128x128xbf16>, vector<128x128xbf16>, vector<128x128xf32> -> vector<128x128xf32>
    %142 = arith.addf %135, %141 : vector<128x128xf32>
    %c0_143 = arith.constant 0 : index
    %c4_144 = arith.constant 4 : index
    %c0_145 = arith.constant 0 : index
    %c0_146 = arith.constant 0 : index
    %143 = vector.load %arg11[%c0_143, %c4_144, %c0_145, %c0_146] : memref<2x12x12x128xf32, #tpu.memory_space<vmem>>, vector<2x8x8x128xf32>
    %144 = vector.shape_cast %143 : vector<2x8x8x128xf32> to vector<128x128xf32>
    %145 = arith.truncf %144 : vector<128x128xf32> to vector<128x128xbf16>
    %c20 = arith.constant 20 : index
    %c0_147 = arith.constant 0 : index
    %c0_148 = arith.constant 0 : index
    %146 = vector.load %arg4[%c20, %c0_147, %c0_148] : memref<25x128x128xbf16, #tpu.memory_space<vmem>>, vector<1x128x128xbf16>
    %147 = vector.shape_cast %146 : vector<1x128x128xbf16> to vector<128x128xbf16>
    %cst_149 = arith.constant dense<0.000000e+00> : vector<128x128xf32>
    %148 = tpu.matmul %145, %147, %cst_149 {dimension_numbers = #tpu.dot_dimension_numbers<[1], [0], [0], [1], [0, 0, 1, 1], [], []>} : vector<128x128xbf16>, vector<128x128xbf16>, vector<128x128xf32> -> vector<128x128xf32>
    %149 = arith.addf %142, %148 : vector<128x128xf32>
    %c0_150 = arith.constant 0 : index
    %c4_151 = arith.constant 4 : index
    %c1_152 = arith.constant 1 : index
    %c0_153 = arith.constant 0 : index
    %150 = vector.load %arg11[%c0_150, %c4_151, %c1_152, %c0_153] : memref<2x12x12x128xf32, #tpu.memory_space<vmem>>, vector<2x8x8x128xf32>
    %151 = vector.shape_cast %150 : vector<2x8x8x128xf32> to vector<128x128xf32>
    %152 = arith.truncf %151 : vector<128x128xf32> to vector<128x128xbf16>
    %c21 = arith.constant 21 : index
    %c0_154 = arith.constant 0 : index
    %c0_155 = arith.constant 0 : index
    %153 = vector.load %arg4[%c21, %c0_154, %c0_155] : memref<25x128x128xbf16, #tpu.memory_space<vmem>>, vector<1x128x128xbf16>
    %154 = vector.shape_cast %153 : vector<1x128x128xbf16> to vector<128x128xbf16>
    %cst_156 = arith.constant dense<0.000000e+00> : vector<128x128xf32>
    %155 = tpu.matmul %152, %154, %cst_156 {dimension_numbers = #tpu.dot_dimension_numbers<[1], [0], [0], [1], [0, 0, 1, 1], [], []>} : vector<128x128xbf16>, vector<128x128xbf16>, vector<128x128xf32> -> vector<128x128xf32>
    %156 = arith.addf %149, %155 : vector<128x128xf32>
    %c0_157 = arith.constant 0 : index
    %c4_158 = arith.constant 4 : index
    %c2_159 = arith.constant 2 : index
    %c0_160 = arith.constant 0 : index
    %157 = vector.load %arg11[%c0_157, %c4_158, %c2_159, %c0_160] : memref<2x12x12x128xf32, #tpu.memory_space<vmem>>, vector<2x8x8x128xf32>
    %158 = vector.shape_cast %157 : vector<2x8x8x128xf32> to vector<128x128xf32>
    %159 = arith.truncf %158 : vector<128x128xf32> to vector<128x128xbf16>
    %c22 = arith.constant 22 : index
    %c0_161 = arith.constant 0 : index
    %c0_162 = arith.constant 0 : index
    %160 = vector.load %arg4[%c22, %c0_161, %c0_162] : memref<25x128x128xbf16, #tpu.memory_space<vmem>>, vector<1x128x128xbf16>
    %161 = vector.shape_cast %160 : vector<1x128x128xbf16> to vector<128x128xbf16>
    %cst_163 = arith.constant dense<0.000000e+00> : vector<128x128xf32>
    %162 = tpu.matmul %159, %161, %cst_163 {dimension_numbers = #tpu.dot_dimension_numbers<[1], [0], [0], [1], [0, 0, 1, 1], [], []>} : vector<128x128xbf16>, vector<128x128xbf16>, vector<128x128xf32> -> vector<128x128xf32>
    %163 = arith.addf %156, %162 : vector<128x128xf32>
    %c0_164 = arith.constant 0 : index
    %c4_165 = arith.constant 4 : index
    %c3_166 = arith.constant 3 : index
    %c0_167 = arith.constant 0 : index
    %164 = vector.load %arg11[%c0_164, %c4_165, %c3_166, %c0_167] : memref<2x12x12x128xf32, #tpu.memory_space<vmem>>, vector<2x8x8x128xf32>
    %165 = vector.shape_cast %164 : vector<2x8x8x128xf32> to vector<128x128xf32>
    %166 = arith.truncf %165 : vector<128x128xf32> to vector<128x128xbf16>
    %c23 = arith.constant 23 : index
    %c0_168 = arith.constant 0 : index
    %c0_169 = arith.constant 0 : index
    %167 = vector.load %arg4[%c23, %c0_168, %c0_169] : memref<25x128x128xbf16, #tpu.memory_space<vmem>>, vector<1x128x128xbf16>
    %168 = vector.shape_cast %167 : vector<1x128x128xbf16> to vector<128x128xbf16>
    %cst_170 = arith.constant dense<0.000000e+00> : vector<128x128xf32>
    %169 = tpu.matmul %166, %168, %cst_170 {dimension_numbers = #tpu.dot_dimension_numbers<[1], [0], [0], [1], [0, 0, 1, 1], [], []>} : vector<128x128xbf16>, vector<128x128xbf16>, vector<128x128xf32> -> vector<128x128xf32>
    %170 = arith.addf %163, %169 : vector<128x128xf32>
    %c0_171 = arith.constant 0 : index
    %c4_172 = arith.constant 4 : index
    %c4_173 = arith.constant 4 : index
    %c0_174 = arith.constant 0 : index
    %171 = vector.load %arg11[%c0_171, %c4_172, %c4_173, %c0_174] : memref<2x12x12x128xf32, #tpu.memory_space<vmem>>, vector<2x8x8x128xf32>
    %172 = vector.shape_cast %171 : vector<2x8x8x128xf32> to vector<128x128xf32>
    %173 = arith.truncf %172 : vector<128x128xf32> to vector<128x128xbf16>
    %c24 = arith.constant 24 : index
    %c0_175 = arith.constant 0 : index
    %c0_176 = arith.constant 0 : index
    %174 = vector.load %arg4[%c24, %c0_175, %c0_176] : memref<25x128x128xbf16, #tpu.memory_space<vmem>>, vector<1x128x128xbf16>
    %175 = vector.shape_cast %174 : vector<1x128x128xbf16> to vector<128x128xbf16>
    %cst_177 = arith.constant dense<0.000000e+00> : vector<128x128xf32>
    %176 = tpu.matmul %173, %175, %cst_177 {dimension_numbers = #tpu.dot_dimension_numbers<[1], [0], [0], [1], [0, 0, 1, 1], [], []>} : vector<128x128xbf16>, vector<128x128xbf16>, vector<128x128xf32> -> vector<128x128xf32>
    %177 = arith.addf %170, %176 : vector<128x128xf32>
    %c0_178 = arith.constant 0 : index
    %c0_179 = arith.constant 0 : index
    %178 = vector.load %arg12[%c0_178, %c0_179] : memref<128x128xf32, #tpu.memory_space<vmem>>, vector<128x128xf32>
    tpu.vector_store %arg12[%c0_178, %c0_179], %177 {strides = array<i32>} : memref<128x128xf32, #tpu.memory_space<vmem>>, vector<128x128xf32>,
    %c0_180 = arith.constant 0 : index
    %c0_181 = arith.constant 0 : index
    %179 = vector.load %arg5[%c0_180, %c0_181] : memref<1x128xf32, #tpu.memory_space<vmem>>, vector<1x128xf32>
    %c0_182 = arith.constant 0 : index
    %c0_183 = arith.constant 0 : index
    %180 = vector.load %arg12[%c0_182, %c0_183] : memref<128x128xf32, #tpu.memory_space<vmem>>, vector<8x128xf32>
    %c8_184 = arith.constant 8 : index
    %c0_185 = arith.constant 0 : index
    %181 = vector.load %arg12[%c8_184, %c0_185] : memref<128x128xf32, #tpu.memory_space<vmem>>, vector<8x128xf32>
    %182 = arith.maximumf %180, %181 : vector<8x128xf32>
    %c0_186 = arith.constant 0 : index
    %c0_187 = arith.constant 0 : index
    %183 = vector.load %arg15[%c0_186, %c0_187] : memref<8x128xf32, #tpu.memory_space<vmem>>, vector<8x128xf32>
    tpu.vector_store %arg15[%c0_186, %c0_187], %182 {strides = array<i32>} : memref<8x128xf32, #tpu.memory_space<vmem>>, vector<8x128xf32>,
    %c0_188 = arith.constant 0 : index
    %c0_189 = arith.constant 0 : index
    %184 = tpu.strided_load %arg15[%c0_188, %c0_189] {strides = array<i32: 2, 1>} : memref<8x128xf32, #tpu.memory_space<vmem>>, vector<4x128xf32>
    %c1_190 = arith.constant 1 : index
    %c0_191 = arith.constant 0 : index
    %185 = tpu.strided_load %arg15[%c1_190, %c0_191] {strides = array<i32: 2, 1>} : memref<8x128xf32, #tpu.memory_space<vmem>>, vector<4x128xf32>
    %186 = arith.maximumf %184, %185 : vector<4x128xf32>
    %187 = vector.broadcast %179 : vector<1x128xf32> to vector<4x128xf32>
    %188 = arith.addf %186, %187 : vector<4x128xf32>
    %cst_192 = arith.constant 0.000000e+00 : f32
    %189 = vector.broadcast %cst_192 : f32 to vector<4x128xf32>
    %190 = arith.maximumf %188, %189 : vector<4x128xf32>
    %c0_193 = arith.constant 0 : index
    %c0_194 = arith.constant 0 : index
    %c0_195 = arith.constant 0 : index
    %c0_196 = arith.constant 0 : index
    %191 = vector.load %arg13[%c0_193, %c0_194, %c0_195, %c0_196] : memref<2x4x4x128xf32, #tpu.memory_space<vmem>>, vector<1x1x4x128xf32>
    %192 = vector.shape_cast %191 : vector<1x1x4x128xf32> to vector<4x128xf32>
    %193 = vector.shape_cast %190 : vector<4x128xf32> to vector<1x1x4x128xf32>
    tpu.vector_store %arg13[%c0_193, %c0_194, %c0_195, %c0_196], %193 {strides = array<i32>} : memref<2x4x4x128xf32, #tpu.memory_space<vmem>>, vector<1x1x4x128xf32>,
    %c16_197 = arith.constant 16 : index
    %c0_198 = arith.constant 0 : index
    %194 = vector.load %arg12[%c16_197, %c0_198] : memref<128x128xf32, #tpu.memory_space<vmem>>, vector<8x128xf32>
    %c24_199 = arith.constant 24 : index
    %c0_200 = arith.constant 0 : index
    %195 = vector.load %arg12[%c24_199, %c0_200] : memref<128x128xf32, #tpu.memory_space<vmem>>, vector<8x128xf32>
    %196 = arith.maximumf %194, %195 : vector<8x128xf32>
    %c0_201 = arith.constant 0 : index
    %c0_202 = arith.constant 0 : index
    %197 = vector.load %arg15[%c0_201, %c0_202] : memref<8x128xf32, #tpu.memory_space<vmem>>, vector<8x128xf32>
    tpu.vector_store %arg15[%c0_201, %c0_202], %196 {strides = array<i32>} : memref<8x128xf32, #tpu.memory_space<vmem>>, vector<8x128xf32>,
    %c0_203 = arith.constant 0 : index
    %c0_204 = arith.constant 0 : index
    %198 = tpu.strided_load %arg15[%c0_203, %c0_204] {strides = array<i32: 2, 1>} : memref<8x128xf32, #tpu.memory_space<vmem>>, vector<4x128xf32>
    %c1_205 = arith.constant 1 : index
    %c0_206 = arith.constant 0 : index
    %199 = tpu.strided_load %arg15[%c1_205, %c0_206] {strides = array<i32: 2, 1>} : memref<8x128xf32, #tpu.memory_space<vmem>>, vector<4x128xf32>
    %200 = arith.maximumf %198, %199 : vector<4x128xf32>
    %201 = vector.broadcast %179 : vector<1x128xf32> to vector<4x128xf32>
    %202 = arith.addf %200, %201 : vector<4x128xf32>
    %cst_207 = arith.constant 0.000000e+00 : f32
    %203 = vector.broadcast %cst_207 : f32 to vector<4x128xf32>
    %204 = arith.maximumf %202, %203 : vector<4x128xf32>
    %c0_208 = arith.constant 0 : index
    %c1_209 = arith.constant 1 : index
    %c0_210 = arith.constant 0 : index
    %c0_211 = arith.constant 0 : index
    %205 = vector.load %arg13[%c0_208, %c1_209, %c0_210, %c0_211] : memref<2x4x4x128xf32, #tpu.memory_space<vmem>>, vector<1x1x4x128xf32>
    %206 = vector.shape_cast %205 : vector<1x1x4x128xf32> to vector<4x128xf32>
    %207 = vector.shape_cast %204 : vector<4x128xf32> to vector<1x1x4x128xf32>
    tpu.vector_store %arg13[%c0_208, %c1_209, %c0_210, %c0_211], %207 {strides = array<i32>} : memref<2x4x4x128xf32, #tpu.memory_space<vmem>>, vector<1x1x4x128xf32>,
    %c32 = arith.constant 32 : index
    %c0_212 = arith.constant 0 : index
    %208 = vector.load %arg12[%c32, %c0_212] : memref<128x128xf32, #tpu.memory_space<vmem>>, vector<8x128xf32>
    %c40 = arith.constant 40 : index
    %c0_213 = arith.constant 0 : index
    %209 = vector.load %arg12[%c40, %c0_213] : memref<128x128xf32, #tpu.memory_space<vmem>>, vector<8x128xf32>
    %210 = arith.maximumf %208, %209 : vector<8x128xf32>
    %c0_214 = arith.constant 0 : index
    %c0_215 = arith.constant 0 : index
    %211 = vector.load %arg15[%c0_214, %c0_215] : memref<8x128xf32, #tpu.memory_space<vmem>>, vector<8x128xf32>
    tpu.vector_store %arg15[%c0_214, %c0_215], %210 {strides = array<i32>} : memref<8x128xf32, #tpu.memory_space<vmem>>, vector<8x128xf32>,
    %c0_216 = arith.constant 0 : index
    %c0_217 = arith.constant 0 : index
    %212 = tpu.strided_load %arg15[%c0_216, %c0_217] {strides = array<i32: 2, 1>} : memref<8x128xf32, #tpu.memory_space<vmem>>, vector<4x128xf32>
    %c1_218 = arith.constant 1 : index
    %c0_219 = arith.constant 0 : index
    %213 = tpu.strided_load %arg15[%c1_218, %c0_219] {strides = array<i32: 2, 1>} : memref<8x128xf32, #tpu.memory_space<vmem>>, vector<4x128xf32>
    %214 = arith.maximumf %212, %213 : vector<4x128xf32>
    %215 = vector.broadcast %179 : vector<1x128xf32> to vector<4x128xf32>
    %216 = arith.addf %214, %215 : vector<4x128xf32>
    %cst_220 = arith.constant 0.000000e+00 : f32
    %217 = vector.broadcast %cst_220 : f32 to vector<4x128xf32>
    %218 = arith.maximumf %216, %217 : vector<4x128xf32>
    %c0_221 = arith.constant 0 : index
    %c2_222 = arith.constant 2 : index
    %c0_223 = arith.constant 0 : index
    %c0_224 = arith.constant 0 : index
    %219 = vector.load %arg13[%c0_221, %c2_222, %c0_223, %c0_224] : memref<2x4x4x128xf32, #tpu.memory_space<vmem>>, vector<1x1x4x128xf32>
    %220 = vector.shape_cast %219 : vector<1x1x4x128xf32> to vector<4x128xf32>
    %221 = vector.shape_cast %218 : vector<4x128xf32> to vector<1x1x4x128xf32>
    tpu.vector_store %arg13[%c0_221, %c2_222, %c0_223, %c0_224], %221 {strides = array<i32>} : memref<2x4x4x128xf32, #tpu.memory_space<vmem>>, vector<1x1x4x128xf32>,
    %c48 = arith.constant 48 : index
    %c0_225 = arith.constant 0 : index
    %222 = vector.load %arg12[%c48, %c0_225] : memref<128x128xf32, #tpu.memory_space<vmem>>, vector<8x128xf32>
    %c56 = arith.constant 56 : index
    %c0_226 = arith.constant 0 : index
    %223 = vector.load %arg12[%c56, %c0_226] : memref<128x128xf32, #tpu.memory_space<vmem>>, vector<8x128xf32>
    %224 = arith.maximumf %222, %223 : vector<8x128xf32>
    %c0_227 = arith.constant 0 : index
    %c0_228 = arith.constant 0 : index
    %225 = vector.load %arg15[%c0_227, %c0_228] : memref<8x128xf32, #tpu.memory_space<vmem>>, vector<8x128xf32>
    tpu.vector_store %arg15[%c0_227, %c0_228], %224 {strides = array<i32>} : memref<8x128xf32, #tpu.memory_space<vmem>>, vector<8x128xf32>,
    %c0_229 = arith.constant 0 : index
    %c0_230 = arith.constant 0 : index
    %226 = tpu.strided_load %arg15[%c0_229, %c0_230] {strides = array<i32: 2, 1>} : memref<8x128xf32, #tpu.memory_space<vmem>>, vector<4x128xf32>
    %c1_231 = arith.constant 1 : index
    %c0_232 = arith.constant 0 : index
    %227 = tpu.strided_load %arg15[%c1_231, %c0_232] {strides = array<i32: 2, 1>} : memref<8x128xf32, #tpu.memory_space<vmem>>, vector<4x128xf32>
    %228 = arith.maximumf %226, %227 : vector<4x128xf32>
    %229 = vector.broadcast %179 : vector<1x128xf32> to vector<4x128xf32>
    %230 = arith.addf %228, %229 : vector<4x128xf32>
    %cst_233 = arith.constant 0.000000e+00 : f32
    %231 = vector.broadcast %cst_233 : f32 to vector<4x128xf32>
    %232 = arith.maximumf %230, %231 : vector<4x128xf32>
    %c0_234 = arith.constant 0 : index
    %c3_235 = arith.constant 3 : index
    %c0_236 = arith.constant 0 : index
    %c0_237 = arith.constant 0 : index
    %233 = vector.load %arg13[%c0_234, %c3_235, %c0_236, %c0_237] : memref<2x4x4x128xf32, #tpu.memory_space<vmem>>, vector<1x1x4x128xf32>
    %234 = vector.shape_cast %233 : vector<1x1x4x128xf32> to vector<4x128xf32>
    %235 = vector.shape_cast %232 : vector<4x128xf32> to vector<1x1x4x128xf32>
    tpu.vector_store %arg13[%c0_234, %c3_235, %c0_236, %c0_237], %235 {strides = array<i32>} : memref<2x4x4x128xf32, #tpu.memory_space<vmem>>, vector<1x1x4x128xf32>,
    %c64 = arith.constant 64 : index
    %c0_238 = arith.constant 0 : index
    %236 = vector.load %arg12[%c64, %c0_238] : memref<128x128xf32, #tpu.memory_space<vmem>>, vector<8x128xf32>
    %c72 = arith.constant 72 : index
    %c0_239 = arith.constant 0 : index
    %237 = vector.load %arg12[%c72, %c0_239] : memref<128x128xf32, #tpu.memory_space<vmem>>, vector<8x128xf32>
    %238 = arith.maximumf %236, %237 : vector<8x128xf32>
    %c0_240 = arith.constant 0 : index
    %c0_241 = arith.constant 0 : index
    %239 = vector.load %arg15[%c0_240, %c0_241] : memref<8x128xf32, #tpu.memory_space<vmem>>, vector<8x128xf32>
    tpu.vector_store %arg15[%c0_240, %c0_241], %238 {strides = array<i32>} : memref<8x128xf32, #tpu.memory_space<vmem>>, vector<8x128xf32>,
    %c0_242 = arith.constant 0 : index
    %c0_243 = arith.constant 0 : index
    %240 = tpu.strided_load %arg15[%c0_242, %c0_243] {strides = array<i32: 2, 1>} : memref<8x128xf32, #tpu.memory_space<vmem>>, vector<4x128xf32>
    %c1_244 = arith.constant 1 : index
    %c0_245 = arith.constant 0 : index
    %241 = tpu.strided_load %arg15[%c1_244, %c0_245] {strides = array<i32: 2, 1>} : memref<8x128xf32, #tpu.memory_space<vmem>>, vector<4x128xf32>
    %242 = arith.maximumf %240, %241 : vector<4x128xf32>
    %243 = vector.broadcast %179 : vector<1x128xf32> to vector<4x128xf32>
    %244 = arith.addf %242, %243 : vector<4x128xf32>
    %cst_246 = arith.constant 0.000000e+00 : f32
    %245 = vector.broadcast %cst_246 : f32 to vector<4x128xf32>
    %246 = arith.maximumf %244, %245 : vector<4x128xf32>
    %c1_247 = arith.constant 1 : index
    %c0_248 = arith.constant 0 : index
    %c0_249 = arith.constant 0 : index
    %c0_250 = arith.constant 0 : index
    %247 = vector.load %arg13[%c1_247, %c0_248, %c0_249, %c0_250] : memref<2x4x4x128xf32, #tpu.memory_space<vmem>>, vector<1x1x4x128xf32>
    %248 = vector.shape_cast %247 : vector<1x1x4x128xf32> to vector<4x128xf32>
    %249 = vector.shape_cast %246 : vector<4x128xf32> to vector<1x1x4x128xf32>
    tpu.vector_store %arg13[%c1_247, %c0_248, %c0_249, %c0_250], %249 {strides = array<i32>} : memref<2x4x4x128xf32, #tpu.memory_space<vmem>>, vector<1x1x4x128xf32>,
    %c80 = arith.constant 80 : index
    %c0_251 = arith.constant 0 : index
    %250 = vector.load %arg12[%c80, %c0_251] : memref<128x128xf32, #tpu.memory_space<vmem>>, vector<8x128xf32>
    %c88 = arith.constant 88 : index
    %c0_252 = arith.constant 0 : index
    %251 = vector.load %arg12[%c88, %c0_252] : memref<128x128xf32, #tpu.memory_space<vmem>>, vector<8x128xf32>
    %252 = arith.maximumf %250, %251 : vector<8x128xf32>
    %c0_253 = arith.constant 0 : index
    %c0_254 = arith.constant 0 : index
    %253 = vector.load %arg15[%c0_253, %c0_254] : memref<8x128xf32, #tpu.memory_space<vmem>>, vector<8x128xf32>
    tpu.vector_store %arg15[%c0_253, %c0_254], %252 {strides = array<i32>} : memref<8x128xf32, #tpu.memory_space<vmem>>, vector<8x128xf32>,
    %c0_255 = arith.constant 0 : index
    %c0_256 = arith.constant 0 : index
    %254 = tpu.strided_load %arg15[%c0_255, %c0_256] {strides = array<i32: 2, 1>} : memref<8x128xf32, #tpu.memory_space<vmem>>, vector<4x128xf32>
    %c1_257 = arith.constant 1 : index
    %c0_258 = arith.constant 0 : index
    %255 = tpu.strided_load %arg15[%c1_257, %c0_258] {strides = array<i32: 2, 1>} : memref<8x128xf32, #tpu.memory_space<vmem>>, vector<4x128xf32>
    %256 = arith.maximumf %254, %255 : vector<4x128xf32>
    %257 = vector.broadcast %179 : vector<1x128xf32> to vector<4x128xf32>
    %258 = arith.addf %256, %257 : vector<4x128xf32>
    %cst_259 = arith.constant 0.000000e+00 : f32
    %259 = vector.broadcast %cst_259 : f32 to vector<4x128xf32>
    %260 = arith.maximumf %258, %259 : vector<4x128xf32>
    %c1_260 = arith.constant 1 : index
    %c1_261 = arith.constant 1 : index
    %c0_262 = arith.constant 0 : index
    %c0_263 = arith.constant 0 : index
    %261 = vector.load %arg13[%c1_260, %c1_261, %c0_262, %c0_263] : memref<2x4x4x128xf32, #tpu.memory_space<vmem>>, vector<1x1x4x128xf32>
    %262 = vector.shape_cast %261 : vector<1x1x4x128xf32> to vector<4x128xf32>
    %263 = vector.shape_cast %260 : vector<4x128xf32> to vector<1x1x4x128xf32>
    tpu.vector_store %arg13[%c1_260, %c1_261, %c0_262, %c0_263], %263 {strides = array<i32>} : memref<2x4x4x128xf32, #tpu.memory_space<vmem>>, vector<1x1x4x128xf32>,
    %c96 = arith.constant 96 : index
    %c0_264 = arith.constant 0 : index
    %264 = vector.load %arg12[%c96, %c0_264] : memref<128x128xf32, #tpu.memory_space<vmem>>, vector<8x128xf32>
    %c104 = arith.constant 104 : index
    %c0_265 = arith.constant 0 : index
    %265 = vector.load %arg12[%c104, %c0_265] : memref<128x128xf32, #tpu.memory_space<vmem>>, vector<8x128xf32>
    %266 = arith.maximumf %264, %265 : vector<8x128xf32>
    %c0_266 = arith.constant 0 : index
    %c0_267 = arith.constant 0 : index
    %267 = vector.load %arg15[%c0_266, %c0_267] : memref<8x128xf32, #tpu.memory_space<vmem>>, vector<8x128xf32>
    tpu.vector_store %arg15[%c0_266, %c0_267], %266 {strides = array<i32>} : memref<8x128xf32, #tpu.memory_space<vmem>>, vector<8x128xf32>,
    %c0_268 = arith.constant 0 : index
    %c0_269 = arith.constant 0 : index
    %268 = tpu.strided_load %arg15[%c0_268, %c0_269] {strides = array<i32: 2, 1>} : memref<8x128xf32, #tpu.memory_space<vmem>>, vector<4x128xf32>
    %c1_270 = arith.constant 1 : index
    %c0_271 = arith.constant 0 : index
    %269 = tpu.strided_load %arg15[%c1_270, %c0_271] {strides = array<i32: 2, 1>} : memref<8x128xf32, #tpu.memory_space<vmem>>, vector<4x128xf32>
    %270 = arith.maximumf %268, %269 : vector<4x128xf32>
    %271 = vector.broadcast %179 : vector<1x128xf32> to vector<4x128xf32>
    %272 = arith.addf %270, %271 : vector<4x128xf32>
    %cst_272 = arith.constant 0.000000e+00 : f32
    %273 = vector.broadcast %cst_272 : f32 to vector<4x128xf32>
    %274 = arith.maximumf %272, %273 : vector<4x128xf32>
    %c1_273 = arith.constant 1 : index
    %c2_274 = arith.constant 2 : index
    %c0_275 = arith.constant 0 : index
    %c0_276 = arith.constant 0 : index
    %275 = vector.load %arg13[%c1_273, %c2_274, %c0_275, %c0_276] : memref<2x4x4x128xf32, #tpu.memory_space<vmem>>, vector<1x1x4x128xf32>
    %276 = vector.shape_cast %275 : vector<1x1x4x128xf32> to vector<4x128xf32>
    %277 = vector.shape_cast %274 : vector<4x128xf32> to vector<1x1x4x128xf32>
    tpu.vector_store %arg13[%c1_273, %c2_274, %c0_275, %c0_276], %277 {strides = array<i32>} : memref<2x4x4x128xf32, #tpu.memory_space<vmem>>, vector<1x1x4x128xf32>,
    %c112 = arith.constant 112 : index
    %c0_277 = arith.constant 0 : index
    %278 = vector.load %arg12[%c112, %c0_277] : memref<128x128xf32, #tpu.memory_space<vmem>>, vector<8x128xf32>
    %c120 = arith.constant 120 : index
    %c0_278 = arith.constant 0 : index
    %279 = vector.load %arg12[%c120, %c0_278] : memref<128x128xf32, #tpu.memory_space<vmem>>, vector<8x128xf32>
    %280 = arith.maximumf %278, %279 : vector<8x128xf32>
    %c0_279 = arith.constant 0 : index
    %c0_280 = arith.constant 0 : index
    %281 = vector.load %arg15[%c0_279, %c0_280] : memref<8x128xf32, #tpu.memory_space<vmem>>, vector<8x128xf32>
    tpu.vector_store %arg15[%c0_279, %c0_280], %280 {strides = array<i32>} : memref<8x128xf32, #tpu.memory_space<vmem>>, vector<8x128xf32>,
    %c0_281 = arith.constant 0 : index
    %c0_282 = arith.constant 0 : index
    %282 = tpu.strided_load %arg15[%c0_281, %c0_282] {strides = array<i32: 2, 1>} : memref<8x128xf32, #tpu.memory_space<vmem>>, vector<4x128xf32>
    %c1_283 = arith.constant 1 : index
    %c0_284 = arith.constant 0 : index
    %283 = tpu.strided_load %arg15[%c1_283, %c0_284] {strides = array<i32: 2, 1>} : memref<8x128xf32, #tpu.memory_space<vmem>>, vector<4x128xf32>
    %284 = arith.maximumf %282, %283 : vector<4x128xf32>
    %285 = vector.broadcast %179 : vector<1x128xf32> to vector<4x128xf32>
    %286 = arith.addf %284, %285 : vector<4x128xf32>
    %cst_285 = arith.constant 0.000000e+00 : f32
    %287 = vector.broadcast %cst_285 : f32 to vector<4x128xf32>
    %288 = arith.maximumf %286, %287 : vector<4x128xf32>
    %c1_286 = arith.constant 1 : index
    %c3_287 = arith.constant 3 : index
    %c0_288 = arith.constant 0 : index
    %c0_289 = arith.constant 0 : index
    %289 = vector.load %arg13[%c1_286, %c3_287, %c0_288, %c0_289] : memref<2x4x4x128xf32, #tpu.memory_space<vmem>>, vector<1x1x4x128xf32>
    %290 = vector.shape_cast %289 : vector<1x1x4x128xf32> to vector<4x128xf32>
    %291 = vector.shape_cast %288 : vector<4x128xf32> to vector<1x1x4x128xf32>
    tpu.vector_store %arg13[%c1_286, %c3_287, %c0_288, %c0_289], %291 {strides = array<i32>} : memref<2x4x4x128xf32, #tpu.memory_space<vmem>>, vector<1x1x4x128xf32>,
    %cst_290 = arith.constant 0.000000e+00 : f32
    %292 = vector.broadcast %cst_290 : f32 to vector<2x128xf32>
    %c0_291 = arith.constant 0 : index
    %c0_292 = arith.constant 0 : index
    %c0_293 = arith.constant 0 : index
    %c0_294 = arith.constant 0 : index
    %293 = vector.load %arg13[%c0_291, %c0_292, %c0_293, %c0_294] : memref<2x4x4x128xf32, #tpu.memory_space<vmem>>, vector<2x1x1x128xf32>
    %294 = vector.shape_cast %293 : vector<2x1x1x128xf32> to vector<2x128xf32>
    %295 = arith.truncf %294 : vector<2x128xf32> to vector<2x128xbf16>
    %c0_295 = arith.constant 0 : index
    %c0_296 = arith.constant 0 : index
    %c0_297 = arith.constant 0 : index
    %296 = vector.load %arg6[%c0_295, %c0_296, %c0_297] : memref<16x128x128xbf16, #tpu.memory_space<vmem>>, vector<1x128x128xbf16>
    %297 = vector.shape_cast %296 : vector<1x128x128xbf16> to vector<128x128xbf16>
    %cst_298 = arith.constant dense<0.000000e+00> : vector<2x128xf32>
    %298 = tpu.matmul %295, %297, %cst_298 {dimension_numbers = #tpu.dot_dimension_numbers<[1], [0], [0], [1], [0, 0, 1, 1], [], []>} : vector<2x128xbf16>, vector<128x128xbf16>, vector<2x128xf32> -> vector<2x128xf32>
    %299 = arith.addf %292, %298 : vector<2x128xf32>
    %c0_299 = arith.constant 0 : index
    %c0_300 = arith.constant 0 : index
    %c1_301 = arith.constant 1 : index
    %c0_302 = arith.constant 0 : index
    %300 = vector.load %arg13[%c0_299, %c0_300, %c1_301, %c0_302] : memref<2x4x4x128xf32, #tpu.memory_space<vmem>>, vector<2x1x1x128xf32>
    %301 = vector.shape_cast %300 : vector<2x1x1x128xf32> to vector<2x128xf32>
    %302 = arith.truncf %301 : vector<2x128xf32> to vector<2x128xbf16>
    %c1_303 = arith.constant 1 : index
    %c0_304 = arith.constant 0 : index
    %c0_305 = arith.constant 0 : index
    %303 = vector.load %arg6[%c1_303, %c0_304, %c0_305] : memref<16x128x128xbf16, #tpu.memory_space<vmem>>, vector<1x128x128xbf16>
    %304 = vector.shape_cast %303 : vector<1x128x128xbf16> to vector<128x128xbf16>
    %cst_306 = arith.constant dense<0.000000e+00> : vector<2x128xf32>
    %305 = tpu.matmul %302, %304, %cst_306 {dimension_numbers = #tpu.dot_dimension_numbers<[1], [0], [0], [1], [0, 0, 1, 1], [], []>} : vector<2x128xbf16>, vector<128x128xbf16>, vector<2x128xf32> -> vector<2x128xf32>
    %306 = arith.addf %299, %305 : vector<2x128xf32>
    %c0_307 = arith.constant 0 : index
    %c0_308 = arith.constant 0 : index
    %c2_309 = arith.constant 2 : index
    %c0_310 = arith.constant 0 : index
    %307 = vector.load %arg13[%c0_307, %c0_308, %c2_309, %c0_310] : memref<2x4x4x128xf32, #tpu.memory_space<vmem>>, vector<2x1x1x128xf32>
    %308 = vector.shape_cast %307 : vector<2x1x1x128xf32> to vector<2x128xf32>
    %309 = arith.truncf %308 : vector<2x128xf32> to vector<2x128xbf16>
    %c2_311 = arith.constant 2 : index
    %c0_312 = arith.constant 0 : index
    %c0_313 = arith.constant 0 : index
    %310 = vector.load %arg6[%c2_311, %c0_312, %c0_313] : memref<16x128x128xbf16, #tpu.memory_space<vmem>>, vector<1x128x128xbf16>
    %311 = vector.shape_cast %310 : vector<1x128x128xbf16> to vector<128x128xbf16>
    %cst_314 = arith.constant dense<0.000000e+00> : vector<2x128xf32>
    %312 = tpu.matmul %309, %311, %cst_314 {dimension_numbers = #tpu.dot_dimension_numbers<[1], [0], [0], [1], [0, 0, 1, 1], [], []>} : vector<2x128xbf16>, vector<128x128xbf16>, vector<2x128xf32> -> vector<2x128xf32>
    %313 = arith.addf %306, %312 : vector<2x128xf32>
    %c0_315 = arith.constant 0 : index
    %c0_316 = arith.constant 0 : index
    %c3_317 = arith.constant 3 : index
    %c0_318 = arith.constant 0 : index
    %314 = vector.load %arg13[%c0_315, %c0_316, %c3_317, %c0_318] : memref<2x4x4x128xf32, #tpu.memory_space<vmem>>, vector<2x1x1x128xf32>
    %315 = vector.shape_cast %314 : vector<2x1x1x128xf32> to vector<2x128xf32>
    %316 = arith.truncf %315 : vector<2x128xf32> to vector<2x128xbf16>
    %c3_319 = arith.constant 3 : index
    %c0_320 = arith.constant 0 : index
    %c0_321 = arith.constant 0 : index
    %317 = vector.load %arg6[%c3_319, %c0_320, %c0_321] : memref<16x128x128xbf16, #tpu.memory_space<vmem>>, vector<1x128x128xbf16>
    %318 = vector.shape_cast %317 : vector<1x128x128xbf16> to vector<128x128xbf16>
    %cst_322 = arith.constant dense<0.000000e+00> : vector<2x128xf32>
    %319 = tpu.matmul %316, %318, %cst_322 {dimension_numbers = #tpu.dot_dimension_numbers<[1], [0], [0], [1], [0, 0, 1, 1], [], []>} : vector<2x128xbf16>, vector<128x128xbf16>, vector<2x128xf32> -> vector<2x128xf32>
    %320 = arith.addf %313, %319 : vector<2x128xf32>
    %c0_323 = arith.constant 0 : index
    %c1_324 = arith.constant 1 : index
    %c0_325 = arith.constant 0 : index
    %c0_326 = arith.constant 0 : index
    %321 = vector.load %arg13[%c0_323, %c1_324, %c0_325, %c0_326] : memref<2x4x4x128xf32, #tpu.memory_space<vmem>>, vector<2x1x1x128xf32>
    %322 = vector.shape_cast %321 : vector<2x1x1x128xf32> to vector<2x128xf32>
    %323 = arith.truncf %322 : vector<2x128xf32> to vector<2x128xbf16>
    %c4_327 = arith.constant 4 : index
    %c0_328 = arith.constant 0 : index
    %c0_329 = arith.constant 0 : index
    %324 = vector.load %arg6[%c4_327, %c0_328, %c0_329] : memref<16x128x128xbf16, #tpu.memory_space<vmem>>, vector<1x128x128xbf16>
    %325 = vector.shape_cast %324 : vector<1x128x128xbf16> to vector<128x128xbf16>
    %cst_330 = arith.constant dense<0.000000e+00> : vector<2x128xf32>
    %326 = tpu.matmul %323, %325, %cst_330 {dimension_numbers = #tpu.dot_dimension_numbers<[1], [0], [0], [1], [0, 0, 1, 1], [], []>} : vector<2x128xbf16>, vector<128x128xbf16>, vector<2x128xf32> -> vector<2x128xf32>
    %327 = arith.addf %320, %326 : vector<2x128xf32>
    %c0_331 = arith.constant 0 : index
    %c1_332 = arith.constant 1 : index
    %c1_333 = arith.constant 1 : index
    %c0_334 = arith.constant 0 : index
    %328 = vector.load %arg13[%c0_331, %c1_332, %c1_333, %c0_334] : memref<2x4x4x128xf32, #tpu.memory_space<vmem>>, vector<2x1x1x128xf32>
    %329 = vector.shape_cast %328 : vector<2x1x1x128xf32> to vector<2x128xf32>
    %330 = arith.truncf %329 : vector<2x128xf32> to vector<2x128xbf16>
    %c5_335 = arith.constant 5 : index
    %c0_336 = arith.constant 0 : index
    %c0_337 = arith.constant 0 : index
    %331 = vector.load %arg6[%c5_335, %c0_336, %c0_337] : memref<16x128x128xbf16, #tpu.memory_space<vmem>>, vector<1x128x128xbf16>
    %332 = vector.shape_cast %331 : vector<1x128x128xbf16> to vector<128x128xbf16>
    %cst_338 = arith.constant dense<0.000000e+00> : vector<2x128xf32>
    %333 = tpu.matmul %330, %332, %cst_338 {dimension_numbers = #tpu.dot_dimension_numbers<[1], [0], [0], [1], [0, 0, 1, 1], [], []>} : vector<2x128xbf16>, vector<128x128xbf16>, vector<2x128xf32> -> vector<2x128xf32>
    %334 = arith.addf %327, %333 : vector<2x128xf32>
    %c0_339 = arith.constant 0 : index
    %c1_340 = arith.constant 1 : index
    %c2_341 = arith.constant 2 : index
    %c0_342 = arith.constant 0 : index
    %335 = vector.load %arg13[%c0_339, %c1_340, %c2_341, %c0_342] : memref<2x4x4x128xf32, #tpu.memory_space<vmem>>, vector<2x1x1x128xf32>
    %336 = vector.shape_cast %335 : vector<2x1x1x128xf32> to vector<2x128xf32>
    %337 = arith.truncf %336 : vector<2x128xf32> to vector<2x128xbf16>
    %c6_343 = arith.constant 6 : index
    %c0_344 = arith.constant 0 : index
    %c0_345 = arith.constant 0 : index
    %338 = vector.load %arg6[%c6_343, %c0_344, %c0_345] : memref<16x128x128xbf16, #tpu.memory_space<vmem>>, vector<1x128x128xbf16>
    %339 = vector.shape_cast %338 : vector<1x128x128xbf16> to vector<128x128xbf16>
    %cst_346 = arith.constant dense<0.000000e+00> : vector<2x128xf32>
    %340 = tpu.matmul %337, %339, %cst_346 {dimension_numbers = #tpu.dot_dimension_numbers<[1], [0], [0], [1], [0, 0, 1, 1], [], []>} : vector<2x128xbf16>, vector<128x128xbf16>, vector<2x128xf32> -> vector<2x128xf32>
    %341 = arith.addf %334, %340 : vector<2x128xf32>
    %c0_347 = arith.constant 0 : index
    %c1_348 = arith.constant 1 : index
    %c3_349 = arith.constant 3 : index
    %c0_350 = arith.constant 0 : index
    %342 = vector.load %arg13[%c0_347, %c1_348, %c3_349, %c0_350] : memref<2x4x4x128xf32, #tpu.memory_space<vmem>>, vector<2x1x1x128xf32>
    %343 = vector.shape_cast %342 : vector<2x1x1x128xf32> to vector<2x128xf32>
    %344 = arith.truncf %343 : vector<2x128xf32> to vector<2x128xbf16>
    %c7_351 = arith.constant 7 : index
    %c0_352 = arith.constant 0 : index
    %c0_353 = arith.constant 0 : index
    %345 = vector.load %arg6[%c7_351, %c0_352, %c0_353] : memref<16x128x128xbf16, #tpu.memory_space<vmem>>, vector<1x128x128xbf16>
    %346 = vector.shape_cast %345 : vector<1x128x128xbf16> to vector<128x128xbf16>
    %cst_354 = arith.constant dense<0.000000e+00> : vector<2x128xf32>
    %347 = tpu.matmul %344, %346, %cst_354 {dimension_numbers = #tpu.dot_dimension_numbers<[1], [0], [0], [1], [0, 0, 1, 1], [], []>} : vector<2x128xbf16>, vector<128x128xbf16>, vector<2x128xf32> -> vector<2x128xf32>
    %348 = arith.addf %341, %347 : vector<2x128xf32>
    %c0_355 = arith.constant 0 : index
    %c2_356 = arith.constant 2 : index
    %c0_357 = arith.constant 0 : index
    %c0_358 = arith.constant 0 : index
    %349 = vector.load %arg13[%c0_355, %c2_356, %c0_357, %c0_358] : memref<2x4x4x128xf32, #tpu.memory_space<vmem>>, vector<2x1x1x128xf32>
    %350 = vector.shape_cast %349 : vector<2x1x1x128xf32> to vector<2x128xf32>
    %351 = arith.truncf %350 : vector<2x128xf32> to vector<2x128xbf16>
    %c8_359 = arith.constant 8 : index
    %c0_360 = arith.constant 0 : index
    %c0_361 = arith.constant 0 : index
    %352 = vector.load %arg6[%c8_359, %c0_360, %c0_361] : memref<16x128x128xbf16, #tpu.memory_space<vmem>>, vector<1x128x128xbf16>
    %353 = vector.shape_cast %352 : vector<1x128x128xbf16> to vector<128x128xbf16>
    %cst_362 = arith.constant dense<0.000000e+00> : vector<2x128xf32>
    %354 = tpu.matmul %351, %353, %cst_362 {dimension_numbers = #tpu.dot_dimension_numbers<[1], [0], [0], [1], [0, 0, 1, 1], [], []>} : vector<2x128xbf16>, vector<128x128xbf16>, vector<2x128xf32> -> vector<2x128xf32>
    %355 = arith.addf %348, %354 : vector<2x128xf32>
    %c0_363 = arith.constant 0 : index
    %c2_364 = arith.constant 2 : index
    %c1_365 = arith.constant 1 : index
    %c0_366 = arith.constant 0 : index
    %356 = vector.load %arg13[%c0_363, %c2_364, %c1_365, %c0_366] : memref<2x4x4x128xf32, #tpu.memory_space<vmem>>, vector<2x1x1x128xf32>
    %357 = vector.shape_cast %356 : vector<2x1x1x128xf32> to vector<2x128xf32>
    %358 = arith.truncf %357 : vector<2x128xf32> to vector<2x128xbf16>
    %c9_367 = arith.constant 9 : index
    %c0_368 = arith.constant 0 : index
    %c0_369 = arith.constant 0 : index
    %359 = vector.load %arg6[%c9_367, %c0_368, %c0_369] : memref<16x128x128xbf16, #tpu.memory_space<vmem>>, vector<1x128x128xbf16>
    %360 = vector.shape_cast %359 : vector<1x128x128xbf16> to vector<128x128xbf16>
    %cst_370 = arith.constant dense<0.000000e+00> : vector<2x128xf32>
    %361 = tpu.matmul %358, %360, %cst_370 {dimension_numbers = #tpu.dot_dimension_numbers<[1], [0], [0], [1], [0, 0, 1, 1], [], []>} : vector<2x128xbf16>, vector<128x128xbf16>, vector<2x128xf32> -> vector<2x128xf32>
    %362 = arith.addf %355, %361 : vector<2x128xf32>
    %c0_371 = arith.constant 0 : index
    %c2_372 = arith.constant 2 : index
    %c2_373 = arith.constant 2 : index
    %c0_374 = arith.constant 0 : index
    %363 = vector.load %arg13[%c0_371, %c2_372, %c2_373, %c0_374] : memref<2x4x4x128xf32, #tpu.memory_space<vmem>>, vector<2x1x1x128xf32>
    %364 = vector.shape_cast %363 : vector<2x1x1x128xf32> to vector<2x128xf32>
    %365 = arith.truncf %364 : vector<2x128xf32> to vector<2x128xbf16>
    %c10_375 = arith.constant 10 : index
    %c0_376 = arith.constant 0 : index
    %c0_377 = arith.constant 0 : index
    %366 = vector.load %arg6[%c10_375, %c0_376, %c0_377] : memref<16x128x128xbf16, #tpu.memory_space<vmem>>, vector<1x128x128xbf16>
    %367 = vector.shape_cast %366 : vector<1x128x128xbf16> to vector<128x128xbf16>
    %cst_378 = arith.constant dense<0.000000e+00> : vector<2x128xf32>
    %368 = tpu.matmul %365, %367, %cst_378 {dimension_numbers = #tpu.dot_dimension_numbers<[1], [0], [0], [1], [0, 0, 1, 1], [], []>} : vector<2x128xbf16>, vector<128x128xbf16>, vector<2x128xf32> -> vector<2x128xf32>
    %369 = arith.addf %362, %368 : vector<2x128xf32>
    %c0_379 = arith.constant 0 : index
    %c2_380 = arith.constant 2 : index
    %c3_381 = arith.constant 3 : index
    %c0_382 = arith.constant 0 : index
    %370 = vector.load %arg13[%c0_379, %c2_380, %c3_381, %c0_382] : memref<2x4x4x128xf32, #tpu.memory_space<vmem>>, vector<2x1x1x128xf32>
    %371 = vector.shape_cast %370 : vector<2x1x1x128xf32> to vector<2x128xf32>
    %372 = arith.truncf %371 : vector<2x128xf32> to vector<2x128xbf16>
    %c11_383 = arith.constant 11 : index
    %c0_384 = arith.constant 0 : index
    %c0_385 = arith.constant 0 : index
    %373 = vector.load %arg6[%c11_383, %c0_384, %c0_385] : memref<16x128x128xbf16, #tpu.memory_space<vmem>>, vector<1x128x128xbf16>
    %374 = vector.shape_cast %373 : vector<1x128x128xbf16> to vector<128x128xbf16>
    %cst_386 = arith.constant dense<0.000000e+00> : vector<2x128xf32>
    %375 = tpu.matmul %372, %374, %cst_386 {dimension_numbers = #tpu.dot_dimension_numbers<[1], [0], [0], [1], [0, 0, 1, 1], [], []>} : vector<2x128xbf16>, vector<128x128xbf16>, vector<2x128xf32> -> vector<2x128xf32>
    %376 = arith.addf %369, %375 : vector<2x128xf32>
    %c0_387 = arith.constant 0 : index
    %c3_388 = arith.constant 3 : index
    %c0_389 = arith.constant 0 : index
    %c0_390 = arith.constant 0 : index
    %377 = vector.load %arg13[%c0_387, %c3_388, %c0_389, %c0_390] : memref<2x4x4x128xf32, #tpu.memory_space<vmem>>, vector<2x1x1x128xf32>
    %378 = vector.shape_cast %377 : vector<2x1x1x128xf32> to vector<2x128xf32>
    %379 = arith.truncf %378 : vector<2x128xf32> to vector<2x128xbf16>
    %c12_391 = arith.constant 12 : index
    %c0_392 = arith.constant 0 : index
    %c0_393 = arith.constant 0 : index
    %380 = vector.load %arg6[%c12_391, %c0_392, %c0_393] : memref<16x128x128xbf16, #tpu.memory_space<vmem>>, vector<1x128x128xbf16>
    %381 = vector.shape_cast %380 : vector<1x128x128xbf16> to vector<128x128xbf16>
    %cst_394 = arith.constant dense<0.000000e+00> : vector<2x128xf32>
    %382 = tpu.matmul %379, %381, %cst_394 {dimension_numbers = #tpu.dot_dimension_numbers<[1], [0], [0], [1], [0, 0, 1, 1], [], []>} : vector<2x128xbf16>, vector<128x128xbf16>, vector<2x128xf32> -> vector<2x128xf32>
    %383 = arith.addf %376, %382 : vector<2x128xf32>
    %c0_395 = arith.constant 0 : index
    %c3_396 = arith.constant 3 : index
    %c1_397 = arith.constant 1 : index
    %c0_398 = arith.constant 0 : index
    %384 = vector.load %arg13[%c0_395, %c3_396, %c1_397, %c0_398] : memref<2x4x4x128xf32, #tpu.memory_space<vmem>>, vector<2x1x1x128xf32>
    %385 = vector.shape_cast %384 : vector<2x1x1x128xf32> to vector<2x128xf32>
    %386 = arith.truncf %385 : vector<2x128xf32> to vector<2x128xbf16>
    %c13_399 = arith.constant 13 : index
    %c0_400 = arith.constant 0 : index
    %c0_401 = arith.constant 0 : index
    %387 = vector.load %arg6[%c13_399, %c0_400, %c0_401] : memref<16x128x128xbf16, #tpu.memory_space<vmem>>, vector<1x128x128xbf16>
    %388 = vector.shape_cast %387 : vector<1x128x128xbf16> to vector<128x128xbf16>
    %cst_402 = arith.constant dense<0.000000e+00> : vector<2x128xf32>
    %389 = tpu.matmul %386, %388, %cst_402 {dimension_numbers = #tpu.dot_dimension_numbers<[1], [0], [0], [1], [0, 0, 1, 1], [], []>} : vector<2x128xbf16>, vector<128x128xbf16>, vector<2x128xf32> -> vector<2x128xf32>
    %390 = arith.addf %383, %389 : vector<2x128xf32>
    %c0_403 = arith.constant 0 : index
    %c3_404 = arith.constant 3 : index
    %c2_405 = arith.constant 2 : index
    %c0_406 = arith.constant 0 : index
    %391 = vector.load %arg13[%c0_403, %c3_404, %c2_405, %c0_406] : memref<2x4x4x128xf32, #tpu.memory_space<vmem>>, vector<2x1x1x128xf32>
    %392 = vector.shape_cast %391 : vector<2x1x1x128xf32> to vector<2x128xf32>
    %393 = arith.truncf %392 : vector<2x128xf32> to vector<2x128xbf16>
    %c14_407 = arith.constant 14 : index
    %c0_408 = arith.constant 0 : index
    %c0_409 = arith.constant 0 : index
    %394 = vector.load %arg6[%c14_407, %c0_408, %c0_409] : memref<16x128x128xbf16, #tpu.memory_space<vmem>>, vector<1x128x128xbf16>
    %395 = vector.shape_cast %394 : vector<1x128x128xbf16> to vector<128x128xbf16>
    %cst_410 = arith.constant dense<0.000000e+00> : vector<2x128xf32>
    %396 = tpu.matmul %393, %395, %cst_410 {dimension_numbers = #tpu.dot_dimension_numbers<[1], [0], [0], [1], [0, 0, 1, 1], [], []>} : vector<2x128xbf16>, vector<128x128xbf16>, vector<2x128xf32> -> vector<2x128xf32>
    %397 = arith.addf %390, %396 : vector<2x128xf32>
    %c0_411 = arith.constant 0 : index
    %c3_412 = arith.constant 3 : index
    %c3_413 = arith.constant 3 : index
    %c0_414 = arith.constant 0 : index
    %398 = vector.load %arg13[%c0_411, %c3_412, %c3_413, %c0_414] : memref<2x4x4x128xf32, #tpu.memory_space<vmem>>, vector<2x1x1x128xf32>
    %399 = vector.shape_cast %398 : vector<2x1x1x128xf32> to vector<2x128xf32>
    %400 = arith.truncf %399 : vector<2x128xf32> to vector<2x128xbf16>
    %c15_415 = arith.constant 15 : index
    %c0_416 = arith.constant 0 : index
    %c0_417 = arith.constant 0 : index
    %401 = vector.load %arg6[%c15_415, %c0_416, %c0_417] : memref<16x128x128xbf16, #tpu.memory_space<vmem>>, vector<1x128x128xbf16>
    %402 = vector.shape_cast %401 : vector<1x128x128xbf16> to vector<128x128xbf16>
    %cst_418 = arith.constant dense<0.000000e+00> : vector<2x128xf32>
    %403 = tpu.matmul %400, %402, %cst_418 {dimension_numbers = #tpu.dot_dimension_numbers<[1], [0], [0], [1], [0, 0, 1, 1], [], []>} : vector<2x128xbf16>, vector<128x128xbf16>, vector<2x128xf32> -> vector<2x128xf32>
    %404 = arith.addf %397, %403 : vector<2x128xf32>
    %c0_419 = arith.constant 0 : index
    %c0_420 = arith.constant 0 : index
    %405 = vector.load %arg7[%c0_419, %c0_420] : memref<1x128xf32, #tpu.memory_space<vmem>>, vector<1x128xf32>
    %406 = vector.broadcast %405 : vector<1x128xf32> to vector<2x128xf32>
    %407 = arith.addf %404, %406 : vector<2x128xf32>
    %cst_421 = arith.constant 0.000000e+00 : f32
    %408 = vector.broadcast %cst_421 : f32 to vector<2x128xf32>
    %409 = arith.maximumf %407, %408 : vector<2x128xf32>
    %410 = arith.truncf %409 : vector<2x128xf32> to vector<2x128xbf16>
    %c0_422 = arith.constant 0 : index
    %c0_423 = arith.constant 0 : index
    %411 = vector.load %arg8[%c0_422, %c0_423] : memref<128x128xbf16, #tpu.memory_space<vmem>>, vector<128x128xbf16>
    %cst_424 = arith.constant dense<0.000000e+00> : vector<2x128xf32>
    %412 = tpu.matmul %410, %411, %cst_424 {dimension_numbers = #tpu.dot_dimension_numbers<[1], [0], [0], [1], [0, 0, 1, 1], [], []>} : vector<2x128xbf16>, vector<128x128xbf16>, vector<2x128xf32> -> vector<2x128xf32>
    %c0_425 = arith.constant 0 : index
    %c0_426 = arith.constant 0 : index
    %413 = vector.load %arg9[%c0_425, %c0_426] : memref<1x128xf32, #tpu.memory_space<vmem>>, vector<1x128xf32>
    %414 = vector.broadcast %413 : vector<1x128xf32> to vector<2x128xf32>
    %415 = arith.addf %412, %414 : vector<2x128xf32>
    %cst_427 = arith.constant dense<0xFF800000> : vector<2xf32>
    %416 = vector.multi_reduction <maximumf>, %415, %cst_427 [1] : vector<2x128xf32> to vector<2xf32>
    %417 = vector.shape_cast %416 : vector<2xf32> to vector<2x1xf32>
    %418 = vector.broadcast %417 : vector<2x1xf32> to vector<2x128xf32>
    %419 = arith.subf %415, %418 : vector<2x128xf32>
    %420 = math.exp %419 : vector<2x128xf32>
    %cst_428 = arith.constant dense<0.000000e+00> : vector<2xf32>
    %421 = vector.multi_reduction <add>, %420, %cst_428 [1] : vector<2x128xf32> to vector<2xf32>
    %422 = vector.shape_cast %421 : vector<2xf32> to vector<2x1xf32>
    %423 = math.log %422 : vector<2x1xf32>
    %424 = vector.broadcast %423 : vector<2x1xf32> to vector<2x128xf32>
    %425 = arith.subf %419, %424 : vector<2x128xf32>
    %c0_429 = arith.constant 0 : index
    %c0_430 = arith.constant 0 : index
    %426 = vector.load %arg10[%c0_429, %c0_430] : memref<2x128xf32, #tpu.memory_space<vmem>>, vector<2x128xf32>
    tpu.vector_store %arg10[%c0_429, %c0_430], %425 {strides = array<i32>} : memref<2x128xf32, #tpu.memory_space<vmem>>, vector<2x128xf32>,
    return
  }
  func.func @transform_0(%arg0: i32) -> (i32, i32, i32, i32) {
    %c0_i32 = arith.constant 0 : i32
    %c0_i32_0 = arith.constant 0 : i32
    %c0_i32_1 = arith.constant 0 : i32
    %c0_i32_2 = arith.constant 0 : i32
    return %arg0, %c0_i32, %c0_i32_0, %c0_i32_1 : i32, i32, i32, i32
  }
  func.func @transform_1(%arg0: i32) -> (i32, i32, i32) {
    %c0_i32 = arith.constant 0 : i32
    %c0_i32_0 = arith.constant 0 : i32
    %c0_i32_1 = arith.constant 0 : i32
    %c0_i32_2 = arith.constant 0 : i32
    return %c0_i32, %c0_i32_0, %c0_i32_1 : i32, i32, i32
  }
  func.func @transform_2(%arg0: i32) -> (i32, i32) {
    %c0_i32 = arith.constant 0 : i32
    %c0_i32_0 = arith.constant 0 : i32
    %c0_i32_1 = arith.constant 0 : i32
    return %c0_i32, %c0_i32_0 : i32, i32
  }
  func.func @transform_3(%arg0: i32) -> (i32, i32, i32) {
    %c0_i32 = arith.constant 0 : i32
    %c0_i32_0 = arith.constant 0 : i32
    %c0_i32_1 = arith.constant 0 : i32
    %c0_i32_2 = arith.constant 0 : i32
    return %c0_i32, %c0_i32_0, %c0_i32_1 : i32, i32, i32
  }
  func.func @transform_4(%arg0: i32) -> (i32, i32) {
    %c0_i32 = arith.constant 0 : i32
    %c0_i32_0 = arith.constant 0 : i32
    %c0_i32_1 = arith.constant 0 : i32
    return %c0_i32, %c0_i32_0 : i32, i32
  }
  func.func @transform_5(%arg0: i32) -> (i32, i32, i32) {
    %c0_i32 = arith.constant 0 : i32
    %c0_i32_0 = arith.constant 0 : i32
    %c0_i32_1 = arith.constant 0 : i32
    %c0_i32_2 = arith.constant 0 : i32
    return %c0_i32, %c0_i32_0, %c0_i32_1 : i32, i32, i32
  }
  func.func @transform_6(%arg0: i32) -> (i32, i32) {
    %c0_i32 = arith.constant 0 : i32
    %c0_i32_0 = arith.constant 0 : i32
    %c0_i32_1 = arith.constant 0 : i32
    return %c0_i32, %c0_i32_0 : i32, i32
  }
  func.func @transform_7(%arg0: i32) -> (i32, i32) {
    %c0_i32 = arith.constant 0 : i32
    %c0_i32_0 = arith.constant 0 : i32
    %c0_i32_1 = arith.constant 0 : i32
    return %c0_i32, %c0_i32_0 : i32, i32
  }
  func.func @transform_8(%arg0: i32) -> (i32, i32) {
    %c0_i32 = arith.constant 0 : i32
    %c0_i32_0 = arith.constant 0 : i32
    %c0_i32_1 = arith.constant 0 : i32
    return %c0_i32, %c0_i32_0 : i32, i32
  }
  func.func @transform_9(%arg0: i32) -> (i32, i32) {
    %c0_i32 = arith.constant 0 : i32
    %c0_i32_0 = arith.constant 0 : i32
    return %arg0, %c0_i32 : i32, i32
  }
}

</mosaic_0001>

<llo_original>
// kernel: netz_forward.1
$region0: #{netz_forward.1}
  #allocation0 [shape = 'u32[]', space=smem, size = 0x4, offset = 0x4, fixed_abs, tag = 'smem constant byte address 0x4 - core index']
  #allocation1 [shape = 'u32[144,128]{1,0:T(1,128)}', space=vmem, size = 0x12000, scoped, tag = 'internal scratch']
  #allocation2 [shape = 'f32[2,12,12,128]{3,2,1,0:T(8,128)}', space=vmem, size = 0x30000, scoped, tag = 'scratch operand']
  #allocation3 [shape = 'f32[128,128]{1,0:T(8,128)}', space=vmem, size = 0x10000, scoped, tag = 'scratch operand']
  #allocation4 [shape = 'f32[2,4,4,128]{3,2,1,0:T(4,128)}', space=vmem, size = 0x4000, scoped, tag = 'scratch operand']
  #allocation5 [shape = 'f32[2,24,128]{2,1,0:T(8,128)}', space=vmem, size = 0x6000, scoped, tag = 'scratch operand']
  #allocation6 [shape = 'f32[8,128]{1,0:T(8,128)}', space=vmem, size = 0x1000, scoped, tag = 'scratch operand']
  %s0 = inlined_call_operand.vmem [shape: f32[2,28,28,1], index: 0, kind: input, shape index: {}]
  %s1 = inlined_call_operand.vmem [shape: f32[5,5,128], index: 1, kind: input, shape index: {}]
  %s2 = inlined_call_operand.vmem [shape: f32[1,128], index: 2, kind: input, shape index: {}]
  %s3 = inlined_call_operand.vmem [shape: bf16[25,128,128], index: 3, kind: input, shape index: {}]
  %s4 = inlined_call_operand.vmem [shape: f32[1,128], index: 4, kind: input, shape index: {}]
  %s5 = inlined_call_operand.hbm [shape: bf16[16,128,128], index: 5, kind: input, shape index: {}]
  %s6 = inlined_call_operand.vmem [shape: f32[1,128], index: 6, kind: input, shape index: {}]
  %s7 = inlined_call_operand.vmem [shape: bf16[128,128], index: 7, kind: input, shape index: {}]
  %s8 = inlined_call_operand.vmem [shape: f32[1,128], index: 8, kind: input, shape index: {}]
  %s9 = inlined_call_operand.hbm [shape: f32[2,128], index: 9, kind: output, shape index: {}]
  %s10 = sld [smem:[#allocation0]]
  $region57: #{netz_forward.1} parent=0
    _
  %s12 = ssub.s32 1, %s10
  %s13 = scalar_select 0, %s12, %s10
  $region1: #{netz_forward.1} parent=0
    #allocation7 [shape = 'u8[524288]{0}', space=vmem, size = 0x80000, scoped, tag = 'input window, operand 5, single buffered']
    #allocation8 [shape = 's32[1]{0}', space=sflag, size = 0x4, scoped, tag = 'scoped memory for netz_forward.1']
    #allocation9 [shape = 's32[1]{0}', space=sflag, size = 0x4, scoped, tag = 'scoped memory for netz_forward.1']
    #allocation10 [shape = 'u8[1024]{0}', space=vmem, size = 0x400, scoped, tag = 'output window, operand 0, single buffered']
    %14 = vsyncpa [#allocation8], 0
    %15 = vsyncpa [#allocation9], 0
    // Predicated region
    $region2: #{netz_forward.1} parent=1 // pred_check
      _
    $region3: #{netz_forward.1} parent=1 // pred_check_branch
      %17 = sbr.rel (0) target = $region5
    $region4: #{netz_forward.1} parent=1 // pred_region
      _
    $region5: #{netz_forward.1} parent=1 // pred_fallthru
      _
    // Predicated region
    $region6: #{netz_forward.1} parent=1 // pred_check
      _
    $region7: #{netz_forward.1} parent=1 // pred_check_branch
      %19 = sbr.rel (0) target = $region9
    $region8: #{netz_forward.1} parent=1 // pred_region
      _
    $region9: #{netz_forward.1} parent=1 // pred_fallthru
      _
    // Predicated region
    $region10: #{netz_forward.1} parent=1 // pred_check
      _
    $region11: #{netz_forward.1} parent=1 // pred_check_branch
      %21 = sbr.rel (0) target = $region13
    $region12: #{netz_forward.1} parent=1 // pred_region
      _
    $region13: #{netz_forward.1} parent=1 // pred_fallthru
      _
    // Predicated region
    $region14: #{netz_forward.1} parent=1 // pred_check
      _
    $region15: #{netz_forward.1} parent=1 // pred_check_branch
      %23 = sbr.rel (0) target = $region17
    $region16: #{netz_forward.1} parent=1 // pred_region
      _
    $region17: #{netz_forward.1} parent=1 // pred_fallthru
      _
    // Predicated region
    $region18: #{netz_forward.1} parent=1 // pred_check
      _
    $region19: #{netz_forward.1} parent=1 // pred_check_branch
      %25 = sbr.rel (0) target = $region21
    $region20: #{netz_forward.1} parent=1 // pred_region
      _
    $region21: #{netz_forward.1} parent=1 // pred_fallthru
      _
    // Predicated region
    $region22: #{netz_forward.1} parent=1 // pred_check
      _
    $region23: #{netz_forward.1} parent=1 // pred_check_branch
      %27 = sbr.rel (0) target = $region25
    $region24: #{netz_forward.1} parent=1 // pred_region
      %s29 = ssub.s32 16384, 16384
      %30 = vsyncadd [#allocation8], %s29
      %s31 = sshll.u32 [#allocation7], 4
      %s32 = int_to_ptr.vmem [resolvable:$true] %s31
      %37 = dma.hbm_to_vmem [thread:$0]  %s5, 16384, %s32, [#allocation8], 64, 64, 4
    $region25: #{netz_forward.1} parent=1 // pred_fallthru
      _
    // Predicated region
    $region26: #{netz_forward.1} parent=1 // pred_check
      _
    $region27: #{netz_forward.1} parent=1 // pred_check_branch
      %39 = sbr.rel (0) target = $region29
    $region28: #{netz_forward.1} parent=1 // pred_region
      _
    $region29: #{netz_forward.1} parent=1 // pred_fallthru
      _
    // Predicated region
    $region30: #{netz_forward.1} parent=1 // pred_check
      _
    $region31: #{netz_forward.1} parent=1 // pred_check_branch
      %41 = sbr.rel (0) target = $region33
    $region32: #{netz_forward.1} parent=1 // pred_region
      _
    $region33: #{netz_forward.1} parent=1 // pred_fallthru
      _
    // Predicated region
    $region34: #{netz_forward.1} parent=1 // pred_check
      _
    $region35: #{netz_forward.1} parent=1 // pred_check_branch
      %43 = sbr.rel (0) target = $region37
    $region36: #{netz_forward.1} parent=1 // pred_region
      _
    $region37: #{netz_forward.1} parent=1 // pred_fallthru
      _
    // Predicated region
    $region38: #{netz_forward.1} parent=1 // pred_check
      _
    $region39: #{netz_forward.1} parent=1 // pred_check_branch
      %45 = sbr.rel (0) target = $region41
    $region40: #{netz_forward.1} parent=1 // pred_region
      %46 = dma.done [#allocation8], 16384
    $region41: #{netz_forward.1} parent=1 // pred_fallthru
      _
    %v48 = vld [vmem:[%s2] sm:$0x1]
    loop: start=0, step=1, limit=12
    $region42: #{netz_forward.1} parent=1 // loop_pre_header
      _
    $region43: #{netz_forward.1} parent=1 // loop_header
      %s50 = sphi 0, %s54
      %p51 = scmp.ge.s32.totalorder %s50, 12
    $region44: #{netz_forward.1} parent=1 // loop_header_branch
      %53 = sbr.rel (%p51) target = $region48
    $region45: #{netz_forward.1} parent=1 // loop_body
      %s55 = smul.u32 %s50, 2
      %s56 = smul.u32 %s55, 32
      %s57 = scalar_lea.vmem %s0, %s56
      %v58 = vld [vmem:[%s57] sm:$0xff]
      %v59 = vld [vmem:[%s57 + $0x8] sm:$0xff]
      %v60 = vld [vmem:[%s57 + $0x10] sm:$0xff]
      %v61 = vld [vmem:[%s57 + $0x20] sm:$0xff]
      %v62 = vld [vmem:[%s57 + $0x28] sm:$0xff]
      %v63 = vld [vmem:[%s57 + $0x30] sm:$0xff]
      %v64 = vld [vmem:[%s57 + $0x380] sm:$0xff]
      %v65 = vld [vmem:[%s57 + $0x388] sm:$0xff]
      %v66 = vld [vmem:[%s57 + $0x390] sm:$0xff]
      %v67 = vld [vmem:[%s57 + $0x3a0] sm:$0xff]
      %v68 = vld [vmem:[%s57 + $0x3a8] sm:$0xff]
      %v69 = vld [vmem:[%s57 + $0x3b0] sm:$0xff]
      %v70 = vld [vmem:[%s1] sm:$0x1]
      %72 = vset.pattern.permute.xlu0 0
      %73 = vperm.xlu0 %72, %v58
      %v74 = vpop.permute.xlu0 %73
      %77 = vset.pattern.permute.xlu0 0
      %78 = vperm.xlu0 %77, %v59
      %v79 = vpop.permute.xlu0 %78
      %82 = vset.pattern.permute.xlu0 0
      %83 = vperm.xlu0 %82, %v60
      %v84 = vpop.permute.xlu0 %83
      %87 = vset.pattern.permute.xlu0 0
      %88 = vperm.xlu0 %87, %v61
      %v89 = vpop.permute.xlu0 %88
      %92 = vset.pattern.permute.xlu0 0
      %93 = vperm.xlu0 %92, %v62
      %v94 = vpop.permute.xlu0 %93
      %97 = vset.pattern.permute.xlu0 0
      %98 = vperm.xlu0 %97, %v63
      %v99 = vpop.permute.xlu0 %98
      %102 = vset.pattern.permute.xlu0 0
      %103 = vperm.xlu0 %102, %v64
      %v104 = vpop.permute.xlu0 %103
      %107 = vset.pattern.permute.xlu0 0
      %108 = vperm.xlu0 %107, %v65
      %v109 = vpop.permute.xlu0 %108
      %112 = vset.pattern.permute.xlu0 0
      %113 = vperm.xlu0 %112, %v66
      %v114 = vpop.permute.xlu0 %113
      %117 = vset.pattern.permute.xlu0 0
      %118 = vperm.xlu0 %117, %v67
      %v119 = vpop.permute.xlu0 %118
      %122 = vset.pattern.permute.xlu0 0
      %123 = vperm.xlu0 %122, %v68
      %v124 = vpop.permute.xlu0 %123
      %127 = vset.pattern.permute.xlu0 0
      %128 = vperm.xlu0 %127, %v69
      %v129 = vpop.permute.xlu0 %128
      %v131 = vlaneseq
      %v132 = vshrl.u32 %v131, 7
      %v133 = vsub.s32 0, %v132
      %v134 = vrot.slane %v70, %v133
      %v135 = vmul.f32 %v74, %v134
      %v136 = vmul.f32 %v79, %v134
      %v137 = vmul.f32 %v84, %v134
      %v138 = vmul.f32 %v89, %v134
      %v139 = vmul.f32 %v94, %v134
      %v140 = vmul.f32 %v99, %v134
      %v141 = vmul.f32 %v104, %v134
      %v142 = vmul.f32 %v109, %v134
      %v143 = vmul.f32 %v114, %v134
      %v144 = vmul.f32 %v119, %v134
      %v145 = vmul.f32 %v124, %v134
      %v146 = vmul.f32 %v129, %v134
      %v147 = vadd.f32 %v135, 0.0
      %v148 = vadd.f32 %v136, 0.0
      %v149 = vadd.f32 %v137, 0.0
      %v150 = vadd.f32 %v138, 0.0
      %v151 = vadd.f32 %v139, 0.0
      %v152 = vadd.f32 %v140, 0.0
      %v153 = vadd.f32 %v141, 0.0
      %v154 = vadd.f32 %v142, 0.0
      %v155 = vadd.f32 %v143, 0.0
      %v156 = vadd.f32 %v144, 0.0
      %v157 = vadd.f32 %v145, 0.0
      %v158 = vadd.f32 %v146, 0.0
      %v159 = vld [vmem:[%s57 + $0x1] sm:$0xff]
      %v160 = vld [vmem:[%s57 + $0x9] sm:$0xff]
      %v161 = vld [vmem:[%s57 + $0x11] sm:$0xff]
      %v162 = vld [vmem:[%s57 + $0x21] sm:$0xff]
      %v163 = vld [vmem:[%s57 + $0x29] sm:$0xff]
      %v164 = vld [vmem:[%s57 + $0x31] sm:$0xff]
      %v165 = vld [vmem:[%s57 + $0x381] sm:$0xff]
      %v166 = vld [vmem:[%s57 + $0x389] sm:$0xff]
      %v167 = vld [vmem:[%s57 + $0x391] sm:$0xff]
      %v168 = vld [vmem:[%s57 + $0x3a1] sm:$0xff]
      %v169 = vld [vmem:[%s57 + $0x3a9] sm:$0xff]
      %v170 = vld [vmem:[%s57 + $0x3b1] sm:$0xff]
      %v171 = vld [vmem:[%s1 + $0x1] sm:$0x1]
      %173 = vset.pattern.permute.xlu0 0
      %174 = vperm.xlu0 %173, %v159
      %v175 = vpop.permute.xlu0 %174
      %178 = vset.pattern.permute.xlu0 0
      %179 = vperm.xlu0 %178, %v160
      %v180 = vpop.permute.xlu0 %179
      %183 = vset.pattern.permute.xlu0 0
      %184 = vperm.xlu0 %183, %v161
      %v185 = vpop.permute.xlu0 %184
      %188 = vset.pattern.permute.xlu0 0
      %189 = vperm.xlu0 %188, %v162
      %v190 = vpop.permute.xlu0 %189
      %193 = vset.pattern.permute.xlu0 0
      %194 = vperm.xlu0 %193, %v163
      %v195 = vpop.permute.xlu0 %194
      %198 = vset.pattern.permute.xlu0 0
      %199 = vperm.xlu0 %198, %v164
      %v200 = vpop.permute.xlu0 %199
      %203 = vset.pattern.permute.xlu0 0
      %204 = vperm.xlu0 %203, %v165
      %v205 = vpop.permute.xlu0 %204
      %208 = vset.pattern.permute.xlu0 0
      %209 = vperm.xlu0 %208, %v166
      %v210 = vpop.permute.xlu0 %209
      %213 = vset.pattern.permute.xlu0 0
      %214 = vperm.xlu0 %213, %v167
      %v215 = vpop.permute.xlu0 %214
      %218 = vset.pattern.permute.xlu0 0
      %219 = vperm.xlu0 %218, %v168
      %v220 = vpop.permute.xlu0 %219
      %223 = vset.pattern.permute.xlu0 0
      %224 = vperm.xlu0 %223, %v169
      %v225 = vpop.permute.xlu0 %224
      %228 = vset.pattern.permute.xlu0 0
      %229 = vperm.xlu0 %228, %v170
      %v230 = vpop.permute.xlu0 %229
      %v232 = vlaneseq
      %v233 = vshrl.u32 %v232, 7
      %v234 = vsub.s32 0, %v233
      %v235 = vrot.slane %v171, %v234
      %v236 = vmul.f32 %v175, %v235
      %v237 = vmul.f32 %v180, %v235
      %v238 = vmul.f32 %v185, %v235
      %v239 = vmul.f32 %v190, %v235
      %v240 = vmul.f32 %v195, %v235
      %v241 = vmul.f32 %v200, %v235
      %v242 = vmul.f32 %v205, %v235
      %v243 = vmul.f32 %v210, %v235
      %v244 = vmul.f32 %v215, %v235
      %v245 = vmul.f32 %v220, %v235
      %v246 = vmul.f32 %v225, %v235
      %v247 = vmul.f32 %v230, %v235
      %v248 = vadd.f32 %v147, %v236
      %v249 = vadd.f32 %v148, %v237
      %v250 = vadd.f32 %v149, %v238
      %v251 = vadd.f32 %v150, %v239
      %v252 = vadd.f32 %v151, %v240
      %v253 = vadd.f32 %v152, %v241
      %v254 = vadd.f32 %v153, %v242
      %v255 = vadd.f32 %v154, %v243
      %v256 = vadd.f32 %v155, %v244
      %v257 = vadd.f32 %v156, %v245
      %v258 = vadd.f32 %v157, %v246
      %v259 = vadd.f32 %v158, %v247
      %v260 = vld [vmem:[%s57 + $0x2] sm:$0xff]
      %v261 = vld [vmem:[%s57 + $0xa] sm:$0xff]
      %v262 = vld [vmem:[%s57 + $0x12] sm:$0xff]
      %v263 = vld [vmem:[%s57 + $0x22] sm:$0xff]
      %v264 = vld [vmem:[%s57 + $0x2a] sm:$0xff]
      %v265 = vld [vmem:[%s57 + $0x32] sm:$0xff]
      %v266 = vld [vmem:[%s57 + $0x382] sm:$0xff]
      %v267 = vld [vmem:[%s57 + $0x38a] sm:$0xff]
      %v268 = vld [vmem:[%s57 + $0x392] sm:$0xff]
      %v269 = vld [vmem:[%s57 + $0x3a2] sm:$0xff]
      %v270 = vld [vmem:[%s57 + $0x3aa] sm:$0xff]
      %v271 = vld [vmem:[%s57 + $0x3b2] sm:$0xff]
      %v272 = vld [vmem:[%s1 + $0x2] sm:$0x1]
      %274 = vset.pattern.permute.xlu0 0
      %275 = vperm.xlu0 %274, %v260
      %v276 = vpop.permute.xlu0 %275
      %279 = vset.pattern.permute.xlu0 0
      %280 = vperm.xlu0 %279, %v261
      %v281 = vpop.permute.xlu0 %280
      %284 = vset.pattern.permute.xlu0 0
      %285 = vperm.xlu0 %284, %v262
      %v286 = vpop.permute.xlu0 %285
      %289 = vset.pattern.permute.xlu0 0
      %290 = vperm.xlu0 %289, %v263
      %v291 = vpop.permute.xlu0 %290
      %294 = vset.pattern.permute.xlu0 0
      %295 = vperm.xlu0 %294, %v264
      %v296 = vpop.permute.xlu0 %295
      %299 = vset.pattern.permute.xlu0 0
      %300 = vperm.xlu0 %299, %v265
      %v301 = vpop.permute.xlu0 %300
      %304 = vset.pattern.permute.xlu0 0
      %305 = vperm.xlu0 %304, %v266
      %v306 = vpop.permute.xlu0 %305
      %309 = vset.pattern.permute.xlu0 0
      %310 = vperm.xlu0 %309, %v267
      %v311 = vpop.permute.xlu0 %310
      %314 = vset.pattern.permute.xlu0 0
      %315 = vperm.xlu0 %314, %v268
      %v316 = vpop.permute.xlu0 %315
      %319 = vset.pattern.permute.xlu0 0
      %320 = vperm.xlu0 %319, %v269
      %v321 = vpop.permute.xlu0 %320
      %324 = vset.pattern.permute.xlu0 0
      %325 = vperm.xlu0 %324, %v270
      %v326 = vpop.permute.xlu0 %325
      %329 = vset.pattern.permute.xlu0 0
      %330 = vperm.xlu0 %329, %v271
      %v331 = vpop.permute.xlu0 %330
      %v333 = vlaneseq
      %v334 = vshrl.u32 %v333, 7
      %v335 = vsub.s32 0, %v334
      %v336 = vrot.slane %v272, %v335
      %v337 = vmul.f32 %v276, %v336
      %v338 = vmul.f32 %v281, %v336
      %v339 = vmul.f32 %v286, %v336
      %v340 = vmul.f32 %v291, %v336
      %v341 = vmul.f32 %v296, %v336
      %v342 = vmul.f32 %v301, %v336
      %v343 = vmul.f32 %v306, %v336
      %v344 = vmul.f32 %v311, %v336
      %v345 = vmul.f32 %v316, %v336
      %v346 = vmul.f32 %v321, %v336
      %v347 = vmul.f32 %v326, %v336
      %v348 = vmul.f32 %v331, %v336
      %v349 = vadd.f32 %v248, %v337
      %v350 = vadd.f32 %v249, %v338
      %v351 = vadd.f32 %v250, %v339
      %v352 = vadd.f32 %v251, %v340
      %v353 = vadd.f32 %v252, %v341
      %v354 = vadd.f32 %v253, %v342
      %v355 = vadd.f32 %v254, %v343
      %v356 = vadd.f32 %v255, %v344
      %v357 = vadd.f32 %v256, %v345
      %v358 = vadd.f32 %v257, %v346
      %v359 = vadd.f32 %v258, %v347
      %v360 = vadd.f32 %v259, %v348
      %v361 = vld [vmem:[%s57 + $0x3] sm:$0xff]
      %v362 = vld [vmem:[%s57 + $0xb] sm:$0xff]
      %v363 = vld [vmem:[%s57 + $0x13] sm:$0xff]
      %v364 = vld [vmem:[%s57 + $0x23] sm:$0xff]
      %v365 = vld [vmem:[%s57 + $0x2b] sm:$0xff]
      %v366 = vld [vmem:[%s57 + $0x33] sm:$0xff]
      %v367 = vld [vmem:[%s57 + $0x383] sm:$0xff]
      %v368 = vld [vmem:[%s57 + $0x38b] sm:$0xff]
      %v369 = vld [vmem:[%s57 + $0x393] sm:$0xff]
      %v370 = vld [vmem:[%s57 + $0x3a3] sm:$0xff]
      %v371 = vld [vmem:[%s57 + $0x3ab] sm:$0xff]
      %v372 = vld [vmem:[%s57 + $0x3b3] sm:$0xff]
      %v373 = vld [vmem:[%s1 + $0x3] sm:$0x1]
      %375 = vset.pattern.permute.xlu0 0
      %376 = vperm.xlu0 %375, %v361
      %v377 = vpop.permute.xlu0 %376
      %380 = vset.pattern.permute.xlu0 0
      %381 = vperm.xlu0 %380, %v362
      %v382 = vpop.permute.xlu0 %381
      %385 = vset.pattern.permute.xlu0 0
      %386 = vperm.xlu0 %385, %v363
      %v387 = vpop.permute.xlu0 %386
      %390 = vset.pattern.permute.xlu0 0
      %391 = vperm.xlu0 %390, %v364
      %v392 = vpop.permute.xlu0 %391
      %395 = vset.pattern.permute.xlu0 0
      %396 = vperm.xlu0 %395, %v365
      %v397 = vpop.permute.xlu0 %396
      %400 = vset.pattern.permute.xlu0 0
      %401 = vperm.xlu0 %400, %v366
      %v402 = vpop.permute.xlu0 %401
      %405 = vset.pattern.permute.xlu0 0
      %406 = vperm.xlu0 %405, %v367
      %v407 = vpop.permute.xlu0 %406
      %410 = vset.pattern.permute.xlu0 0
      %411 = vperm.xlu0 %410, %v368
      %v412 = vpop.permute.xlu0 %411
      %415 = vset.pattern.permute.xlu0 0
      %416 = vperm.xlu0 %415, %v369
      %v417 = vpop.permute.xlu0 %416
      %420 = vset.pattern.permute.xlu0 0
      %421 = vperm.xlu0 %420, %v370
      %v422 = vpop.permute.xlu0 %421
      %425 = vset.pattern.permute.xlu0 0
      %426 = vperm.xlu0 %425, %v371
      %v427 = vpop.permute.xlu0 %426
      %430 = vset.pattern.permute.xlu0 0
      %431 = vperm.xlu0 %430, %v372
      %v432 = vpop.permute.xlu0 %431
      %v434 = vlaneseq
      %v435 = vshrl.u32 %v434, 7
      %v436 = vsub.s32 0, %v435
      %v437 = vrot.slane %v373, %v436
      %v438 = vmul.f32 %v377, %v437
      %v439 = vmul.f32 %v382, %v437
      %v440 = vmul.f32 %v387, %v437
      %v441 = vmul.f32 %v392, %v437
      %v442 = vmul.f32 %v397, %v437
      %v443 = vmul.f32 %v402, %v437
      %v444 = vmul.f32 %v407, %v437
      %v445 = vmul.f32 %v412, %v437
      %v446 = vmul.f32 %v417, %v437
      %v447 = vmul.f32 %v422, %v437
      %v448 = vmul.f32 %v427, %v437
      %v449 = vmul.f32 %v432, %v437
      %v450 = vadd.f32 %v349, %v438
      %v451 = vadd.f32 %v350, %v439
      %v452 = vadd.f32 %v351, %v440
      %v453 = vadd.f32 %v352, %v441
      %v454 = vadd.f32 %v353, %v442
      %v455 = vadd.f32 %v354, %v443
      %v456 = vadd.f32 %v355, %v444
      %v457 = vadd.f32 %v356, %v445
      %v458 = vadd.f32 %v357, %v446
      %v459 = vadd.f32 %v358, %v447
      %v460 = vadd.f32 %v359, %v448
      %v461 = vadd.f32 %v360, %v449
      %v462 = vld [vmem:[%s57 + $0x4] sm:$0xff]
      %v463 = vld [vmem:[%s57 + $0xc] sm:$0xff]
      %v464 = vld [vmem:[%s57 + $0x14] sm:$0xff]
      %v465 = vld [vmem:[%s57 + $0x24] sm:$0xff]
      %v466 = vld [vmem:[%s57 + $0x2c] sm:$0xff]
      %v467 = vld [vmem:[%s57 + $0x34] sm:$0xff]
      %v468 = vld [vmem:[%s57 + $0x384] sm:$0xff]
      %v469 = vld [vmem:[%s57 + $0x38c] sm:$0xff]
      %v470 = vld [vmem:[%s57 + $0x394] sm:$0xff]
      %v471 = vld [vmem:[%s57 + $0x3a4] sm:$0xff]
      %v472 = vld [vmem:[%s57 + $0x3ac] sm:$0xff]
      %v473 = vld [vmem:[%s57 + $0x3b4] sm:$0xff]
      %v474 = vld [vmem:[%s1 + $0x4] sm:$0x1]
      %476 = vset.pattern.permute.xlu0 0
      %477 = vperm.xlu0 %476, %v462
      %v478 = vpop.permute.xlu0 %477
      %481 = vset.pattern.permute.xlu0 0
      %482 = vperm.xlu0 %481, %v463
      %v483 = vpop.permute.xlu0 %482
      %486 = vset.pattern.permute.xlu0 0
      %487 = vperm.xlu0 %486, %v464
      %v488 = vpop.permute.xlu0 %487
      %491 = vset.pattern.permute.xlu0 0
      %492 = vperm.xlu0 %491, %v465
      %v493 = vpop.permute.xlu0 %492
      %496 = vset.pattern.permute.xlu0 0
      %497 = vperm.xlu0 %496, %v466
      %v498 = vpop.permute.xlu0 %497
      %501 = vset.pattern.permute.xlu0 0
      %502 = vperm.xlu0 %501, %v467
      %v503 = vpop.permute.xlu0 %502
      %506 = vset.pattern.permute.xlu0 0
      %507 = vperm.xlu0 %506, %v468
      %v508 = vpop.permute.xlu0 %507
      %511 = vset.pattern.permute.xlu0 0
      %512 = vperm.xlu0 %511, %v469
      %v513 = vpop.permute.xlu0 %512
      %516 = vset.pattern.permute.xlu0 0
      %517 = vperm.xlu0 %516, %v470
      %v518 = vpop.permute.xlu0 %517
      %521 = vset.pattern.permute.xlu0 0
      %522 = vperm.xlu0 %521, %v471
      %v523 = vpop.permute.xlu0 %522
      %526 = vset.pattern.permute.xlu0 0
      %527 = vperm.xlu0 %526, %v472
      %v528 = vpop.permute.xlu0 %527
      %531 = vset.pattern.permute.xlu0 0
      %532 = vperm.xlu0 %531, %v473
      %v533 = vpop.permute.xlu0 %532
      %v535 = vlaneseq
      %v536 = vshrl.u32 %v535, 7
      %v537 = vsub.s32 0, %v536
      %v538 = vrot.slane %v474, %v537
      %v539 = vmul.f32 %v478, %v538
      %v540 = vmul.f32 %v483, %v538
      %v541 = vmul.f32 %v488, %v538
      %v542 = vmul.f32 %v493, %v538
      %v543 = vmul.f32 %v498, %v538
      %v544 = vmul.f32 %v503, %v538
      %v545 = vmul.f32 %v508, %v538
      %v546 = vmul.f32 %v513, %v538
      %v547 = vmul.f32 %v518, %v538
      %v548 = vmul.f32 %v523, %v538
      %v549 = vmul.f32 %v528, %v538
      %v550 = vmul.f32 %v533, %v538
      %v551 = vadd.f32 %v450, %v539
      %v552 = vadd.f32 %v451, %v540
      %v553 = vadd.f32 %v452, %v541
      %v554 = vadd.f32 %v453, %v542
      %v555 = vadd.f32 %v454, %v543
      %v556 = vadd.f32 %v455, %v544
      %v557 = vadd.f32 %v456, %v545
      %v558 = vadd.f32 %v457, %v546
      %v559 = vadd.f32 %v458, %v547
      %v560 = vadd.f32 %v459, %v548
      %v561 = vadd.f32 %v460, %v549
      %v562 = vadd.f32 %v461, %v550
      %s563 = sadd.s32 %s55, 1
      %s564 = smul.u32 %s563, 32
      %s565 = scalar_lea.vmem %s0, %s564
      %v566 = vld [vmem:[%s565] sm:$0xff]
      %v567 = vld [vmem:[%s565 + $0x8] sm:$0xff]
      %v568 = vld [vmem:[%s565 + $0x10] sm:$0xff]
      %v569 = vld [vmem:[%s565 + $0x20] sm:$0xff]
      %v570 = vld [vmem:[%s565 + $0x28] sm:$0xff]
      %v571 = vld [vmem:[%s565 + $0x30] sm:$0xff]
      %v572 = vld [vmem:[%s565 + $0x380] sm:$0xff]
      %v573 = vld [vmem:[%s565 + $0x388] sm:$0xff]
      %v574 = vld [vmem:[%s565 + $0x390] sm:$0xff]
      %v575 = vld [vmem:[%s565 + $0x3a0] sm:$0xff]
      %v576 = vld [vmem:[%s565 + $0x3a8] sm:$0xff]
      %v577 = vld [vmem:[%s565 + $0x3b0] sm:$0xff]
      %s578 = scalar_lea.vmem %s1, 8
      %v579 = vld [vmem:[%s578] sm:$0x1]
      %581 = vset.pattern.permute.xlu0 0
      %582 = vperm.xlu0 %581, %v566
      %v583 = vpop.permute.xlu0 %582
      %586 = vset.pattern.permute.xlu0 0
      %587 = vperm.xlu0 %586, %v567
      %v588 = vpop.permute.xlu0 %587
      %591 = vset.pattern.permute.xlu0 0
      %592 = vperm.xlu0 %591, %v568
      %v593 = vpop.permute.xlu0 %592
      %596 = vset.pattern.permute.xlu0 0
      %597 = vperm.xlu0 %596, %v569
      %v598 = vpop.permute.xlu0 %597
      %601 = vset.pattern.permute.xlu0 0
      %602 = vperm.xlu0 %601, %v570
      %v603 = vpop.permute.xlu0 %602
      %606 = vset.pattern.permute.xlu0 0
      %607 = vperm.xlu0 %606, %v571
      %v608 = vpop.permute.xlu0 %607
      %611 = vset.pattern.permute.xlu0 0
      %612 = vperm.xlu0 %611, %v572
      %v613 = vpop.permute.xlu0 %612
      %616 = vset.pattern.permute.xlu0 0
      %617 = vperm.xlu0 %616, %v573
      %v618 = vpop.permute.xlu0 %617
      %621 = vset.pattern.permute.xlu0 0
      %622 = vperm.xlu0 %621, %v574
      %v623 = vpop.permute.xlu0 %622
      %626 = vset.pattern.permute.xlu0 0
      %627 = vperm.xlu0 %626, %v575
      %v628 = vpop.permute.xlu0 %627
      %631 = vset.pattern.permute.xlu0 0
      %632 = vperm.xlu0 %631, %v576
      %v633 = vpop.permute.xlu0 %632
      %636 = vset.pattern.permute.xlu0 0
      %637 = vperm.xlu0 %636, %v577
      %v638 = vpop.permute.xlu0 %637
      %v640 = vlaneseq
      %v641 = vshrl.u32 %v640, 7
      %v642 = vsub.s32 0, %v641
      %v643 = vrot.slane %v579, %v642
      %v644 = vmul.f32 %v583, %v643
      %v645 = vmul.f32 %v588, %v643
      %v646 = vmul.f32 %v593, %v643
      %v647 = vmul.f32 %v598, %v643
      %v648 = vmul.f32 %v603, %v643
      %v649 = vmul.f32 %v608, %v643
      %v650 = vmul.f32 %v613, %v643
      %v651 = vmul.f32 %v618, %v643
      %v652 = vmul.f32 %v623, %v643
      %v653 = vmul.f32 %v628, %v643
      %v654 = vmul.f32 %v633, %v643
      %v655 = vmul.f32 %v638, %v643
      %v656 = vadd.f32 %v551, %v644
      %v657 = vadd.f32 %v552, %v645
      %v658 = vadd.f32 %v553, %v646
      %v659 = vadd.f32 %v554, %v647
      %v660 = vadd.f32 %v555, %v648
      %v661 = vadd.f32 %v556, %v649
      %v662 = vadd.f32 %v557, %v650
      %v663 = vadd.f32 %v558, %v651
      %v664 = vadd.f32 %v559, %v652
      %v665 = vadd.f32 %v560, %v653
      %v666 = vadd.f32 %v561, %v654
      %v667 = vadd.f32 %v562, %v655
      %v668 = vld [vmem:[%s565 + $0x1] sm:$0xff]
      %v669 = vld [vmem:[%s565 + $0x9] sm:$0xff]
      %v670 = vld [vmem:[%s565 + $0x11] sm:$0xff]
      %v671 = vld [vmem:[%s565 + $0x21] sm:$0xff]
      %v672 = vld [vmem:[%s565 + $0x29] sm:$0xff]
      %v673 = vld [vmem:[%s565 + $0x31] sm:$0xff]
      %v674 = vld [vmem:[%s565 + $0x381] sm:$0xff]
      %v675 = vld [vmem:[%s565 + $0x389] sm:$0xff]
      %v676 = vld [vmem:[%s565 + $0x391] sm:$0xff]
      %v677 = vld [vmem:[%s565 + $0x3a1] sm:$0xff]
      %v678 = vld [vmem:[%s565 + $0x3a9] sm:$0xff]
      %v679 = vld [vmem:[%s565 + $0x3b1] sm:$0xff]
      %v680 = vld [vmem:[%s578 + $0x1] sm:$0x1]
      %682 = vset.pattern.permute.xlu0 0
      %683 = vperm.xlu0 %682, %v668
      %v684 = vpop.permute.xlu0 %683
      %687 = vset.pattern.permute.xlu0 0
      %688 = vperm.xlu0 %687, %v669
      %v689 = vpop.permute.xlu0 %688
      %692 = vset.pattern.permute.xlu0 0
      %693 = vperm.xlu0 %692, %v670
      %v694 = vpop.permute.xlu0 %693
      %697 = vset.pattern.permute.xlu0 0
      %698 = vperm.xlu0 %697, %v671
      %v699 = vpop.permute.xlu0 %698
      %702 = vset.pattern.permute.xlu0 0
      %703 = vperm.xlu0 %702, %v672
      %v704 = vpop.permute.xlu0 %703
      %707 = vset.pattern.permute.xlu0 0
      %708 = vperm.xlu0 %707, %v673
      %v709 = vpop.permute.xlu0 %708
      %712 = vset.pattern.permute.xlu0 0
      %713 = vperm.xlu0 %712, %v674
      %v714 = vpop.permute.xlu0 %713
      %717 = vset.pattern.permute.xlu0 0
      %718 = vperm.xlu0 %717, %v675
      %v719 = vpop.permute.xlu0 %718
      %722 = vset.pattern.permute.xlu0 0
      %723 = vperm.xlu0 %722, %v676
      %v724 = vpop.permute.xlu0 %723
      %727 = vset.pattern.permute.xlu0 0
      %728 = vperm.xlu0 %727, %v677
      %v729 = vpop.permute.xlu0 %728
      %732 = vset.pattern.permute.xlu0 0
      %733 = vperm.xlu0 %732, %v678
      %v734 = vpop.permute.xlu0 %733
      %737 = vset.pattern.permute.xlu0 0
      %738 = vperm.xlu0 %737, %v679
      %v739 = vpop.permute.xlu0 %738
      %v741 = vlaneseq
      %v742 = vshrl.u32 %v741, 7
      %v743 = vsub.s32 0, %v742
      %v744 = vrot.slane %v680, %v743
      %v745 = vmul.f32 %v684, %v744
      %v746 = vmul.f32 %v689, %v744
      %v747 = vmul.f32 %v694, %v744
      %v748 = vmul.f32 %v699, %v744
      %v749 = vmul.f32 %v704, %v744
      %v750 = vmul.f32 %v709, %v744
      %v751 = vmul.f32 %v714, %v744
      %v752 = vmul.f32 %v719, %v744
      %v753 = vmul.f32 %v724, %v744
      %v754 = vmul.f32 %v729, %v744
      %v755 = vmul.f32 %v734, %v744
      %v756 = vmul.f32 %v739, %v744
      %v757 = vadd.f32 %v656, %v745
      %v758 = vadd.f32 %v657, %v746
      %v759 = vadd.f32 %v658, %v747
      %v760 = vadd.f32 %v659, %v748
      %v761 = vadd.f32 %v660, %v749
      %v762 = vadd.f32 %v661, %v750
      %v763 = vadd.f32 %v662, %v751
      %v764 = vadd.f32 %v663, %v752
      %v765 = vadd.f32 %v664, %v753
      %v766 = vadd.f32 %v665, %v754
      %v767 = vadd.f32 %v666, %v755
      %v768 = vadd.f32 %v667, %v756
      %v769 = vld [vmem:[%s565 + $0x2] sm:$0xff]
      %v770 = vld [vmem:[%s565 + $0xa] sm:$0xff]
      %v771 = vld [vmem:[%s565 + $0x12] sm:$0xff]
      %v772 = vld [vmem:[%s565 + $0x22] sm:$0xff]
      %v773 = vld [vmem:[%s565 + $0x2a] sm:$0xff]
      %v774 = vld [vmem:[%s565 + $0x32] sm:$0xff]
      %v775 = vld [vmem:[%s565 + $0x382] sm:$0xff]
      %v776 = vld [vmem:[%s565 + $0x38a] sm:$0xff]
      %v777 = vld [vmem:[%s565 + $0x392] sm:$0xff]
      %v778 = vld [vmem:[%s565 + $0x3a2] sm:$0xff]
      %v779 = vld [vmem:[%s565 + $0x3aa] sm:$0xff]
      %v780 = vld [vmem:[%s565 + $0x3b2] sm:$0xff]
      %v781 = vld [vmem:[%s578 + $0x2] sm:$0x1]
      %783 = vset.pattern.permute.xlu0 0
      %784 = vperm.xlu0 %783, %v769
      %v785 = vpop.permute.xlu0 %784
      %788 = vset.pattern.permute.xlu0 0
      %789 = vperm.xlu0 %788, %v770
      %v790 = vpop.permute.xlu0 %789
      %793 = vset.pattern.permute.xlu0 0
      %794 = vperm.xlu0 %793, %v771
      %v795 = vpop.permute.xlu0 %794
      %798 = vset.pattern.permute.xlu0 0
      %799 = vperm.xlu0 %798, %v772
      %v800 = vpop.permute.xlu0 %799
      %803 = vset.pattern.permute.xlu0 0
      %804 = vperm.xlu0 %803, %v773
      %v805 = vpop.permute.xlu0 %804
      %808 = vset.pattern.permute.xlu0 0
      %809 = vperm.xlu0 %808, %v774
      %v810 = vpop.permute.xlu0 %809
      %813 = vset.pattern.permute.xlu0 0
      %814 = vperm.xlu0 %813, %v775
      %v815 = vpop.permute.xlu0 %814
      %818 = vset.pattern.permute.xlu0 0
      %819 = vperm.xlu0 %818, %v776
      %v820 = vpop.permute.xlu0 %819
      %823 = vset.pattern.permute.xlu0 0
      %824 = vperm.xlu0 %823, %v777
      %v825 = vpop.permute.xlu0 %824
      %828 = vset.pattern.permute.xlu0 0
      %829 = vperm.xlu0 %828, %v778
      %v830 = vpop.permute.xlu0 %829
      %833 = vset.pattern.permute.xlu0 0
      %834 = vperm.xlu0 %833, %v779
      %v835 = vpop.permute.xlu0 %834
      %838 = vset.pattern.permute.xlu0 0
      %839 = vperm.xlu0 %838, %v780
      %v840 = vpop.permute.xlu0 %839
      %v842 = vlaneseq
      %v843 = vshrl.u32 %v842, 7
      %v844 = vsub.s32 0, %v843
      %v845 = vrot.slane %v781, %v844
      %v846 = vmul.f32 %v785, %v845
      %v847 = vmul.f32 %v790, %v845
      %v848 = vmul.f32 %v795, %v845
      %v849 = vmul.f32 %v800, %v845
      %v850 = vmul.f32 %v805, %v845
      %v851 = vmul.f32 %v810, %v845
      %v852 = vmul.f32 %v815, %v845
      %v853 = vmul.f32 %v820, %v845
      %v854 = vmul.f32 %v825, %v845
      %v855 = vmul.f32 %v830, %v845
      %v856 = vmul.f32 %v835, %v845
      %v857 = vmul.f32 %v840, %v845
      %v858 = vadd.f32 %v757, %v846
      %v859 = vadd.f32 %v758, %v847
      %v860 = vadd.f32 %v759, %v848
      %v861 = vadd.f32 %v760, %v849
      %v862 = vadd.f32 %v761, %v850
      %v863 = vadd.f32 %v762, %v851
      %v864 = vadd.f32 %v763, %v852
      %v865 = vadd.f32 %v764, %v853
      %v866 = vadd.f32 %v765, %v854
      %v867 = vadd.f32 %v766, %v855
      %v868 = vadd.f32 %v767, %v856
      %v869 = vadd.f32 %v768, %v857
      %v870 = vld [vmem:[%s565 + $0x3] sm:$0xff]
      %v871 = vld [vmem:[%s565 + $0xb] sm:$0xff]
      %v872 = vld [vmem:[%s565 + $0x13] sm:$0xff]
      %v873 = vld [vmem:[%s565 + $0x23] sm:$0xff]
      %v874 = vld [vmem:[%s565 + $0x2b] sm:$0xff]
      %v875 = vld [vmem:[%s565 + $0x33] sm:$0xff]
      %v876 = vld [vmem:[%s565 + $0x383] sm:$0xff]
      %v877 = vld [vmem:[%s565 + $0x38b] sm:$0xff]
      %v878 = vld [vmem:[%s565 + $0x393] sm:$0xff]
      %v879 = vld [vmem:[%s565 + $0x3a3] sm:$0xff]
      %v880 = vld [vmem:[%s565 + $0x3ab] sm:$0xff]
      %v881 = vld [vmem:[%s565 + $0x3b3] sm:$0xff]
      %v882 = vld [vmem:[%s578 + $0x3] sm:$0x1]
      %884 = vset.pattern.permute.xlu0 0
      %885 = vperm.xlu0 %884, %v870
      %v886 = vpop.permute.xlu0 %885
      %889 = vset.pattern.permute.xlu0 0
      %890 = vperm.xlu0 %889, %v871
      %v891 = vpop.permute.xlu0 %890
      %894 = vset.pattern.permute.xlu0 0
      %895 = vperm.xlu0 %894, %v872
      %v896 = vpop.permute.xlu0 %895
      %899 = vset.pattern.permute.xlu0 0
      %900 = vperm.xlu0 %899, %v873
      %v901 = vpop.permute.xlu0 %900
      %904 = vset.pattern.permute.xlu0 0
      %905 = vperm.xlu0 %904, %v874
      %v906 = vpop.permute.xlu0 %905
      %909 = vset.pattern.permute.xlu0 0
      %910 = vperm.xlu0 %909, %v875
      %v911 = vpop.permute.xlu0 %910
      %914 = vset.pattern.permute.xlu0 0
      %915 = vperm.xlu0 %914, %v876
      %v916 = vpop.permute.xlu0 %915
      %919 = vset.pattern.permute.xlu0 0
      %920 = vperm.xlu0 %919, %v877
      %v921 = vpop.permute.xlu0 %920
      %924 = vset.pattern.permute.xlu0 0
      %925 = vperm.xlu0 %924, %v878
      %v926 = vpop.permute.xlu0 %925
      %929 = vset.pattern.permute.xlu0 0
      %930 = vperm.xlu0 %929, %v879
      %v931 = vpop.permute.xlu0 %930
      %934 = vset.pattern.permute.xlu0 0
      %935 = vperm.xlu0 %934, %v880
      %v936 = vpop.permute.xlu0 %935
      %939 = vset.pattern.permute.xlu0 0
      %940 = vperm.xlu0 %939, %v881
      %v941 = vpop.permute.xlu0 %940
      %v943 = vlaneseq
      %v944 = vshrl.u32 %v943, 7
      %v945 = vsub.s32 0, %v944
      %v946 = vrot.slane %v882, %v945
      %v947 = vmul.f32 %v886, %v946
      %v948 = vmul.f32 %v891, %v946
      %v949 = vmul.f32 %v896, %v946
      %v950 = vmul.f32 %v901, %v946
      %v951 = vmul.f32 %v906, %v946
      %v952 = vmul.f32 %v911, %v946
      %v953 = vmul.f32 %v916, %v946
      %v954 = vmul.f32 %v921, %v946
      %v955 = vmul.f32 %v926, %v946
      %v956 = vmul.f32 %v931, %v946
      %v957 = vmul.f32 %v936, %v946
      %v958 = vmul.f32 %v941, %v946
      %v959 = vadd.f32 %v858, %v947
      %v960 = vadd.f32 %v859, %v948
      %v961 = vadd.f32 %v860, %v949
      %v962 = vadd.f32 %v861, %v950
      %v963 = vadd.f32 %v862, %v951
      %v964 = vadd.f32 %v863, %v952
      %v965 = vadd.f32 %v864, %v953
      %v966 = vadd.f32 %v865, %v954
      %v967 = vadd.f32 %v866, %v955
      %v968 = vadd.f32 %v867, %v956
      %v969 = vadd.f32 %v868, %v957
      %v970 = vadd.f32 %v869, %v958
      %v971 = vld [vmem:[%s565 + $0x4] sm:$0xff]
      %v972 = vld [vmem:[%s565 + $0xc] sm:$0xff]
      %v973 = vld [vmem:[%s565 + $0x14] sm:$0xff]
      %v974 = vld [vmem:[%s565 + $0x24] sm:$0xff]
      %v975 = vld [vmem:[%s565 + $0x2c] sm:$0xff]
      %v976 = vld [vmem:[%s565 + $0x34] sm:$0xff]
      %v977 = vld [vmem:[%s565 + $0x384] sm:$0xff]
      %v978 = vld [vmem:[%s565 + $0x38c] sm:$0xff]
      %v979 = vld [vmem:[%s565 + $0x394] sm:$0xff]
      %v980 = vld [vmem:[%s565 + $0x3a4] sm:$0xff]
      %v981 = vld [vmem:[%s565 + $0x3ac] sm:$0xff]
      %v982 = vld [vmem:[%s565 + $0x3b4] sm:$0xff]
      %v983 = vld [vmem:[%s578 + $0x4] sm:$0x1]
      %985 = vset.pattern.permute.xlu0 0
      %986 = vperm.xlu0 %985, %v971
      %v987 = vpop.permute.xlu0 %986
      %990 = vset.pattern.permute.xlu0 0
      %991 = vperm.xlu0 %990, %v972
      %v992 = vpop.permute.xlu0 %991
      %995 = vset.pattern.permute.xlu0 0
      %996 = vperm.xlu0 %995, %v973
      %v997 = vpop.permute.xlu0 %996
      %1000 = vset.pattern.permute.xlu0 0
      %1001 = vperm.xlu0 %1000, %v974
      %v1002 = vpop.permute.xlu0 %1001
      %1005 = vset.pattern.permute.xlu0 0
      %1006 = vperm.xlu0 %1005, %v975
      %v1007 = vpop.permute.xlu0 %1006
      %1010 = vset.pattern.permute.xlu0 0
      %1011 = vperm.xlu0 %1010, %v976
      %v1012 = vpop.permute.xlu0 %1011
      %1015 = vset.pattern.permute.xlu0 0
      %1016 = vperm.xlu0 %1015, %v977
      %v1017 = vpop.permute.xlu0 %1016
      %1020 = vset.pattern.permute.xlu0 0
      %1021 = vperm.xlu0 %1020, %v978
      %v1022 = vpop.permute.xlu0 %1021
      %1025 = vset.pattern.permute.xlu0 0
      %1026 = vperm.xlu0 %1025, %v979
      %v1027 = vpop.permute.xlu0 %1026
      %1030 = vset.pattern.permute.xlu0 0
      %1031 = vperm.xlu0 %1030, %v980
      %v1032 = vpop.permute.xlu0 %1031
      %1035 = vset.pattern.permute.xlu0 0
      %1036 = vperm.xlu0 %1035, %v981
      %v1037 = vpop.permute.xlu0 %1036
      %1040 = vset.pattern.permute.xlu0 0
      %1041 = vperm.xlu0 %1040, %v982
      %v1042 = vpop.permute.xlu0 %1041
      %v1044 = vlaneseq
      %v1045 = vshrl.u32 %v1044, 7
      %v1046 = vsub.s32 0, %v1045
      %v1047 = vrot.slane %v983, %v1046
      %v1048 = vmul.f32 %v987, %v1047
      %v1049 = vmul.f32 %v992, %v1047
      %v1050 = vmul.f32 %v997, %v1047
      %v1051 = vmul.f32 %v1002, %v1047
      %v1052 = vmul.f32 %v1007, %v1047
      %v1053 = vmul.f32 %v1012, %v1047
      %v1054 = vmul.f32 %v1017, %v1047
      %v1055 = vmul.f32 %v1022, %v1047
      %v1056 = vmul.f32 %v1027, %v1047
      %v1057 = vmul.f32 %v1032, %v1047
      %v1058 = vmul.f32 %v1037, %v1047
      %v1059 = vmul.f32 %v1042, %v1047
      %v1060 = vadd.f32 %v959, %v1048
      %v1061 = vadd.f32 %v960, %v1049
      %v1062 = vadd.f32 %v961, %v1050
      %v1063 = vadd.f32 %v962, %v1051
      %v1064 = vadd.f32 %v963, %v1052
      %v1065 = vadd.f32 %v964, %v1053
      %v1066 = vadd.f32 %v965, %v1054
      %v1067 = vadd.f32 %v966, %v1055
      %v1068 = vadd.f32 %v967, %v1056
      %v1069 = vadd.f32 %v968, %v1057
      %v1070 = vadd.f32 %v969, %v1058
      %v1071 = vadd.f32 %v970, %v1059
      %s1072 = sadd.s32 %s55, 2
      %s1073 = smul.u32 %s1072, 32
      %s1074 = scalar_lea.vmem %s0, %s1073
      %v1075 = vld [vmem:[%s1074] sm:$0xff]
      %v1076 = vld [vmem:[%s1074 + $0x8] sm:$0xff]
      %v1077 = vld [vmem:[%s1074 + $0x10] sm:$0xff]
      %v1078 = vld [vmem:[%s1074 + $0x20] sm:$0xff]
      %v1079 = vld [vmem:[%s1074 + $0x28] sm:$0xff]
      %v1080 = vld [vmem:[%s1074 + $0x30] sm:$0xff]
      %v1081 = vld [vmem:[%s1074 + $0x380] sm:$0xff]
      %v1082 = vld [vmem:[%s1074 + $0x388] sm:$0xff]
      %v1083 = vld [vmem:[%s1074 + $0x390] sm:$0xff]
      %v1084 = vld [vmem:[%s1074 + $0x3a0] sm:$0xff]
      %v1085 = vld [vmem:[%s1074 + $0x3a8] sm:$0xff]
      %v1086 = vld [vmem:[%s1074 + $0x3b0] sm:$0xff]
      %s1087 = scalar_lea.vmem %s1, 16
      %v1088 = vld [vmem:[%s1087] sm:$0x1]
      %1090 = vset.pattern.permute.xlu0 0
      %1091 = vperm.xlu0 %1090, %v1075
      %v1092 = vpop.permute.xlu0 %1091
      %1095 = vset.pattern.permute.xlu0 0
      %1096 = vperm.xlu0 %1095, %v1076
      %v1097 = vpop.permute.xlu0 %1096
      %1100 = vset.pattern.permute.xlu0 0
      %1101 = vperm.xlu0 %1100, %v1077
      %v1102 = vpop.permute.xlu0 %1101
      %1105 = vset.pattern.permute.xlu0 0
      %1106 = vperm.xlu0 %1105, %v1078
      %v1107 = vpop.permute.xlu0 %1106
      %1110 = vset.pattern.permute.xlu0 0
      %1111 = vperm.xlu0 %1110, %v1079
      %v1112 = vpop.permute.xlu0 %1111
      %1115 = vset.pattern.permute.xlu0 0
      %1116 = vperm.xlu0 %1115, %v1080
      %v1117 = vpop.permute.xlu0 %1116
      %1120 = vset.pattern.permute.xlu0 0
      %1121 = vperm.xlu0 %1120, %v1081
      %v1122 = vpop.permute.xlu0 %1121
      %1125 = vset.pattern.permute.xlu0 0
      %1126 = vperm.xlu0 %1125, %v1082
      %v1127 = vpop.permute.xlu0 %1126
      %1130 = vset.pattern.permute.xlu0 0
      %1131 = vperm.xlu0 %1130, %v1083
      %v1132 = vpop.permute.xlu0 %1131
      %1135 = vset.pattern.permute.xlu0 0
      %1136 = vperm.xlu0 %1135, %v1084
      %v1137 = vpop.permute.xlu0 %1136
      %1140 = vset.pattern.permute.xlu0 0
      %1141 = vperm.xlu0 %1140, %v1085
      %v1142 = vpop.permute.xlu0 %1141
      %1145 = vset.pattern.permute.xlu0 0
      %1146 = vperm.xlu0 %1145, %v1086
      %v1147 = vpop.permute.xlu0 %1146
      %v1149 = vlaneseq
      %v1150 = vshrl.u32 %v1149, 7
      %v1151 = vsub.s32 0, %v1150
      %v1152 = vrot.slane %v1088, %v1151
      %v1153 = vmul.f32 %v1092, %v1152
      %v1154 = vmul.f32 %v1097, %v1152
      %v1155 = vmul.f32 %v1102, %v1152
      %v1156 = vmul.f32 %v1107, %v1152
      %v1157 = vmul.f32 %v1112, %v1152
      %v1158 = vmul.f32 %v1117, %v1152
      %v1159 = vmul.f32 %v1122, %v1152
      %v1160 = vmul.f32 %v1127, %v1152
      %v1161 = vmul.f32 %v1132, %v1152
      %v1162 = vmul.f32 %v1137, %v1152
      %v1163 = vmul.f32 %v1142, %v1152
      %v1164 = vmul.f32 %v1147, %v1152
      %v1165 = vadd.f32 %v1060, %v1153
      %v1166 = vadd.f32 %v1061, %v1154
      %v1167 = vadd.f32 %v1062, %v1155
      %v1168 = vadd.f32 %v1063, %v1156
      %v1169 = vadd.f32 %v1064, %v1157
      %v1170 = vadd.f32 %v1065, %v1158
      %v1171 = vadd.f32 %v1066, %v1159
      %v1172 = vadd.f32 %v1067, %v1160
      %v1173 = vadd.f32 %v1068, %v1161
      %v1174 = vadd.f32 %v1069, %v1162
      %v1175 = vadd.f32 %v1070, %v1163
      %v1176 = vadd.f32 %v1071, %v1164
      %v1177 = vld [vmem:[%s1074 + $0x1] sm:$0xff]
      %v1178 = vld [vmem:[%s1074 + $0x9] sm:$0xff]
      %v1179 = vld [vmem:[%s1074 + $0x11] sm:$0xff]
      %v1180 = vld [vmem:[%s1074 + $0x21] sm:$0xff]
      %v1181 = vld [vmem:[%s1074 + $0x29] sm:$0xff]
      %v1182 = vld [vmem:[%s1074 + $0x31] sm:$0xff]
      %v1183 = vld [vmem:[%s1074 + $0x381] sm:$0xff]
      %v1184 = vld [vmem:[%s1074 + $0x389] sm:$0xff]
      %v1185 = vld [vmem:[%s1074 + $0x391] sm:$0xff]
      %v1186 = vld [vmem:[%s1074 + $0x3a1] sm:$0xff]
      %v1187 = vld [vmem:[%s1074 + $0x3a9] sm:$0xff]
      %v1188 = vld [vmem:[%s1074 + $0x3b1] sm:$0xff]
      %v1189 = vld [vmem:[%s1087 + $0x1] sm:$0x1]
      %1191 = vset.pattern.permute.xlu0 0
      %1192 = vperm.xlu0 %1191, %v1177
      %v1193 = vpop.permute.xlu0 %1192
      %1196 = vset.pattern.permute.xlu0 0
      %1197 = vperm.xlu0 %1196, %v1178
      %v1198 = vpop.permute.xlu0 %1197
      %1201 = vset.pattern.permute.xlu0 0
      %1202 = vperm.xlu0 %1201, %v1179
      %v1203 = vpop.permute.xlu0 %1202
      %1206 = vset.pattern.permute.xlu0 0
      %1207 = vperm.xlu0 %1206, %v1180
      %v1208 = vpop.permute.xlu0 %1207
      %1211 = vset.pattern.permute.xlu0 0
      %1212 = vperm.xlu0 %1211, %v1181
      %v1213 = vpop.permute.xlu0 %1212
      %1216 = vset.pattern.permute.xlu0 0
      %1217 = vperm.xlu0 %1216, %v1182
      %v1218 = vpop.permute.xlu0 %1217
      %1221 = vset.pattern.permute.xlu0 0
      %1222 = vperm.xlu0 %1221, %v1183
      %v1223 = vpop.permute.xlu0 %1222
      %1226 = vset.pattern.permute.xlu0 0
      %1227 = vperm.xlu0 %1226, %v1184
      %v1228 = vpop.permute.xlu0 %1227
      %1231 = vset.pattern.permute.xlu0 0
      %1232 = vperm.xlu0 %1231, %v1185
      %v1233 = vpop.permute.xlu0 %1232
      %1236 = vset.pattern.permute.xlu0 0
      %1237 = vperm.xlu0 %1236, %v1186
      %v1238 = vpop.permute.xlu0 %1237
      %1241 = vset.pattern.permute.xlu0 0
      %1242 = vperm.xlu0 %1241, %v1187
      %v1243 = vpop.permute.xlu0 %1242
      %1246 = vset.pattern.permute.xlu0 0
      %1247 = vperm.xlu0 %1246, %v1188
      %v1248 = vpop.permute.xlu0 %1247
      %v1250 = vlaneseq
      %v1251 = vshrl.u32 %v1250, 7
      %v1252 = vsub.s32 0, %v1251
      %v1253 = vrot.slane %v1189, %v1252
      %v1254 = vmul.f32 %v1193, %v1253
      %v1255 = vmul.f32 %v1198, %v1253
      %v1256 = vmul.f32 %v1203, %v1253
      %v1257 = vmul.f32 %v1208, %v1253
      %v1258 = vmul.f32 %v1213, %v1253
      %v1259 = vmul.f32 %v1218, %v1253
      %v1260 = vmul.f32 %v1223, %v1253
      %v1261 = vmul.f32 %v1228, %v1253
      %v1262 = vmul.f32 %v1233, %v1253
      %v1263 = vmul.f32 %v1238, %v1253
      %v1264 = vmul.f32 %v1243, %v1253
      %v1265 = vmul.f32 %v1248, %v1253
      %v1266 = vadd.f32 %v1165, %v1254
      %v1267 = vadd.f32 %v1166, %v1255
      %v1268 = vadd.f32 %v1167, %v1256
      %v1269 = vadd.f32 %v1168, %v1257
      %v1270 = vadd.f32 %v1169, %v1258
      %v1271 = vadd.f32 %v1170, %v1259
      %v1272 = vadd.f32 %v1171, %v1260
      %v1273 = vadd.f32 %v1172, %v1261
      %v1274 = vadd.f32 %v1173, %v1262
      %v1275 = vadd.f32 %v1174, %v1263
      %v1276 = vadd.f32 %v1175, %v1264
      %v1277 = vadd.f32 %v1176, %v1265
      %v1278 = vld [vmem:[%s1074 + $0x2] sm:$0xff]
      %v1279 = vld [vmem:[%s1074 + $0xa] sm:$0xff]
      %v1280 = vld [vmem:[%s1074 + $0x12] sm:$0xff]
      %v1281 = vld [vmem:[%s1074 + $0x22] sm:$0xff]
      %v1282 = vld [vmem:[%s1074 + $0x2a] sm:$0xff]
      %v1283 = vld [vmem:[%s1074 + $0x32] sm:$0xff]
      %v1284 = vld [vmem:[%s1074 + $0x382] sm:$0xff]
      %v1285 = vld [vmem:[%s1074 + $0x38a] sm:$0xff]
      %v1286 = vld [vmem:[%s1074 + $0x392] sm:$0xff]
      %v1287 = vld [vmem:[%s1074 + $0x3a2] sm:$0xff]
      %v1288 = vld [vmem:[%s1074 + $0x3aa] sm:$0xff]
      %v1289 = vld [vmem:[%s1074 + $0x3b2] sm:$0xff]
      %v1290 = vld [vmem:[%s1087 + $0x2] sm:$0x1]
      %1292 = vset.pattern.permute.xlu0 0
      %1293 = vperm.xlu0 %1292, %v1278
      %v1294 = vpop.permute.xlu0 %1293
      %1297 = vset.pattern.permute.xlu0 0
      %1298 = vperm.xlu0 %1297, %v1279
      %v1299 = vpop.permute.xlu0 %1298
      %1302 = vset.pattern.permute.xlu0 0
      %1303 = vperm.xlu0 %1302, %v1280
      %v1304 = vpop.permute.xlu0 %1303
      %1307 = vset.pattern.permute.xlu0 0
      %1308 = vperm.xlu0 %1307, %v1281
      %v1309 = vpop.permute.xlu0 %1308
      %1312 = vset.pattern.permute.xlu0 0
      %1313 = vperm.xlu0 %1312, %v1282
      %v1314 = vpop.permute.xlu0 %1313
      %1317 = vset.pattern.permute.xlu0 0
      %1318 = vperm.xlu0 %1317, %v1283
      %v1319 = vpop.permute.xlu0 %1318
      %1322 = vset.pattern.permute.xlu0 0
      %1323 = vperm.xlu0 %1322, %v1284
      %v1324 = vpop.permute.xlu0 %1323
      %1327 = vset.pattern.permute.xlu0 0
      %1328 = vperm.xlu0 %1327, %v1285
      %v1329 = vpop.permute.xlu0 %1328
      %1332 = vset.pattern.permute.xlu0 0
      %1333 = vperm.xlu0 %1332, %v1286
      %v1334 = vpop.permute.xlu0 %1333
      %1337 = vset.pattern.permute.xlu0 0
      %1338 = vperm.xlu0 %1337, %v1287
      %v1339 = vpop.permute.xlu0 %1338
      %1342 = vset.pattern.permute.xlu0 0
      %1343 = vperm.xlu0 %1342, %v1288
      %v1344 = vpop.permute.xlu0 %1343
      %1347 = vset.pattern.permute.xlu0 0
      %1348 = vperm.xlu0 %1347, %v1289
      %v1349 = vpop.permute.xlu0 %1348
      %v1351 = vlaneseq
      %v1352 = vshrl.u32 %v1351, 7
      %v1353 = vsub.s32 0, %v1352
      %v1354 = vrot.slane %v1290, %v1353
      %v1355 = vmul.f32 %v1294, %v1354
      %v1356 = vmul.f32 %v1299, %v1354
      %v1357 = vmul.f32 %v1304, %v1354
      %v1358 = vmul.f32 %v1309, %v1354
      %v1359 = vmul.f32 %v1314, %v1354
      %v1360 = vmul.f32 %v1319, %v1354
      %v1361 = vmul.f32 %v1324, %v1354
      %v1362 = vmul.f32 %v1329, %v1354
      %v1363 = vmul.f32 %v1334, %v1354
      %v1364 = vmul.f32 %v1339, %v1354
      %v1365 = vmul.f32 %v1344, %v1354
      %v1366 = vmul.f32 %v1349, %v1354
      %v1367 = vadd.f32 %v1266, %v1355
      %v1368 = vadd.f32 %v1267, %v1356
      %v1369 = vadd.f32 %v1268, %v1357
      %v1370 = vadd.f32 %v1269, %v1358
      %v1371 = vadd.f32 %v1270, %v1359
      %v1372 = vadd.f32 %v1271, %v1360
      %v1373 = vadd.f32 %v1272, %v1361
      %v1374 = vadd.f32 %v1273, %v1362
      %v1375 = vadd.f32 %v1274, %v1363
      %v1376 = vadd.f32 %v1275, %v1364
      %v1377 = vadd.f32 %v1276, %v1365
      %v1378 = vadd.f32 %v1277, %v1366
      %v1379 = vld [vmem:[%s1074 + $0x3] sm:$0xff]
      %v1380 = vld [vmem:[%s1074 + $0xb] sm:$0xff]
      %v1381 = vld [vmem:[%s1074 + $0x13] sm:$0xff]
      %v1382 = vld [vmem:[%s1074 + $0x23] sm:$0xff]
      %v1383 = vld [vmem:[%s1074 + $0x2b] sm:$0xff]
      %v1384 = vld [vmem:[%s1074 + $0x33] sm:$0xff]
      %v1385 = vld [vmem:[%s1074 + $0x383] sm:$0xff]
      %v1386 = vld [vmem:[%s1074 + $0x38b] sm:$0xff]
      %v1387 = vld [vmem:[%s1074 + $0x393] sm:$0xff]
      %v1388 = vld [vmem:[%s1074 + $0x3a3] sm:$0xff]
      %v1389 = vld [vmem:[%s1074 + $0x3ab] sm:$0xff]
      %v1390 = vld [vmem:[%s1074 + $0x3b3] sm:$0xff]
      %v1391 = vld [vmem:[%s1087 + $0x3] sm:$0x1]
      %1393 = vset.pattern.permute.xlu0 0
      %1394 = vperm.xlu0 %1393, %v1379
      %v1395 = vpop.permute.xlu0 %1394
      %1398 = vset.pattern.permute.xlu0 0
      %1399 = vperm.xlu0 %1398, %v1380
      %v1400 = vpop.permute.xlu0 %1399
      %1403 = vset.pattern.permute.xlu0 0
      %1404 = vperm.xlu0 %1403, %v1381
      %v1405 = vpop.permute.xlu0 %1404
      %1408 = vset.pattern.permute.xlu0 0
      %1409 = vperm.xlu0 %1408, %v1382
      %v1410 = vpop.permute.xlu0 %1409
      %1413 = vset.pattern.permute.xlu0 0
      %1414 = vperm.xlu0 %1413, %v1383
      %v1415 = vpop.permute.xlu0 %1414
      %1418 = vset.pattern.permute.xlu0 0
      %1419 = vperm.xlu0 %1418, %v1384
      %v1420 = vpop.permute.xlu0 %1419
      %1423 = vset.pattern.permute.xlu0 0
      %1424 = vperm.xlu0 %1423, %v1385
      %v1425 = vpop.permute.xlu0 %1424
      %1428 = vset.pattern.permute.xlu0 0
      %1429 = vperm.xlu0 %1428, %v1386
      %v1430 = vpop.permute.xlu0 %1429
      %1433 = vset.pattern.permute.xlu0 0
      %1434 = vperm.xlu0 %1433, %v1387
      %v1435 = vpop.permute.xlu0 %1434
      %1438 = vset.pattern.permute.xlu0 0
      %1439 = vperm.xlu0 %1438, %v1388
      %v1440 = vpop.permute.xlu0 %1439
      %1443 = vset.pattern.permute.xlu0 0
      %1444 = vperm.xlu0 %1443, %v1389
      %v1445 = vpop.permute.xlu0 %1444
      %1448 = vset.pattern.permute.xlu0 0
      %1449 = vperm.xlu0 %1448, %v1390
      %v1450 = vpop.permute.xlu0 %1449
      %v1452 = vlaneseq
      %v1453 = vshrl.u32 %v1452, 7
      %v1454 = vsub.s32 0, %v1453
      %v1455 = vrot.slane %v1391, %v1454
      %v1456 = vmul.f32 %v1395, %v1455
      %v1457 = vmul.f32 %v1400, %v1455
      %v1458 = vmul.f32 %v1405, %v1455
      %v1459 = vmul.f32 %v1410, %v1455
      %v1460 = vmul.f32 %v1415, %v1455
      %v1461 = vmul.f32 %v1420, %v1455
      %v1462 = vmul.f32 %v1425, %v1455
      %v1463 = vmul.f32 %v1430, %v1455
      %v1464 = vmul.f32 %v1435, %v1455
      %v1465 = vmul.f32 %v1440, %v1455
      %v1466 = vmul.f32 %v1445, %v1455
      %v1467 = vmul.f32 %v1450, %v1455
      %v1468 = vadd.f32 %v1367, %v1456
      %v1469 = vadd.f32 %v1368, %v1457
      %v1470 = vadd.f32 %v1369, %v1458
      %v1471 = vadd.f32 %v1370, %v1459
      %v1472 = vadd.f32 %v1371, %v1460
      %v1473 = vadd.f32 %v1372, %v1461
      %v1474 = vadd.f32 %v1373, %v1462
      %v1475 = vadd.f32 %v1374, %v1463
      %v1476 = vadd.f32 %v1375, %v1464
      %v1477 = vadd.f32 %v1376, %v1465
      %v1478 = vadd.f32 %v1377, %v1466
      %v1479 = vadd.f32 %v1378, %v1467
      %v1480 = vld [vmem:[%s1074 + $0x4] sm:$0xff]
      %v1481 = vld [vmem:[%s1074 + $0xc] sm:$0xff]
      %v1482 = vld [vmem:[%s1074 + $0x14] sm:$0xff]
      %v1483 = vld [vmem:[%s1074 + $0x24] sm:$0xff]
      %v1484 = vld [vmem:[%s1074 + $0x2c] sm:$0xff]
      %v1485 = vld [vmem:[%s1074 + $0x34] sm:$0xff]
      %v1486 = vld [vmem:[%s1074 + $0x384] sm:$0xff]
      %v1487 = vld [vmem:[%s1074 + $0x38c] sm:$0xff]
      %v1488 = vld [vmem:[%s1074 + $0x394] sm:$0xff]
      %v1489 = vld [vmem:[%s1074 + $0x3a4] sm:$0xff]
      %v1490 = vld [vmem:[%s1074 + $0x3ac] sm:$0xff]
      %v1491 = vld [vmem:[%s1074 + $0x3b4] sm:$0xff]
      %v1492 = vld [vmem:[%s1087 + $0x4] sm:$0x1]
      %1494 = vset.pattern.permute.xlu0 0
      %1495 = vperm.xlu0 %1494, %v1480
      %v1496 = vpop.permute.xlu0 %1495
      %1499 = vset.pattern.permute.xlu0 0
      %1500 = vperm.xlu0 %1499, %v1481
      %v1501 = vpop.permute.xlu0 %1500
      %1504 = vset.pattern.permute.xlu0 0
      %1505 = vperm.xlu0 %1504, %v1482
      %v1506 = vpop.permute.xlu0 %1505
      %1509 = vset.pattern.permute.xlu0 0
      %1510 = vperm.xlu0 %1509, %v1483
      %v1511 = vpop.permute.xlu0 %1510
      %1514 = vset.pattern.permute.xlu0 0
      %1515 = vperm.xlu0 %1514, %v1484
      %v1516 = vpop.permute.xlu0 %1515
      %1519 = vset.pattern.permute.xlu0 0
      %1520 = vperm.xlu0 %1519, %v1485
      %v1521 = vpop.permute.xlu0 %1520
      %1524 = vset.pattern.permute.xlu0 0
      %1525 = vperm.xlu0 %1524, %v1486
      %v1526 = vpop.permute.xlu0 %1525
      %1529 = vset.pattern.permute.xlu0 0
      %1530 = vperm.xlu0 %1529, %v1487
      %v1531 = vpop.permute.xlu0 %1530
      %1534 = vset.pattern.permute.xlu0 0
      %1535 = vperm.xlu0 %1534, %v1488
      %v1536 = vpop.permute.xlu0 %1535
      %1539 = vset.pattern.permute.xlu0 0
      %1540 = vperm.xlu0 %1539, %v1489
      %v1541 = vpop.permute.xlu0 %1540
      %1544 = vset.pattern.permute.xlu0 0
      %1545 = vperm.xlu0 %1544, %v1490
      %v1546 = vpop.permute.xlu0 %1545
      %1549 = vset.pattern.permute.xlu0 0
      %1550 = vperm.xlu0 %1549, %v1491
      %v1551 = vpop.permute.xlu0 %1550
      %v1553 = vlaneseq
      %v1554 = vshrl.u32 %v1553, 7
      %v1555 = vsub.s32 0, %v1554
      %v1556 = vrot.slane %v1492, %v1555
      %v1557 = vmul.f32 %v1496, %v1556
      %v1558 = vmul.f32 %v1501, %v1556
      %v1559 = vmul.f32 %v1506, %v1556
      %v1560 = vmul.f32 %v1511, %v1556
      %v1561 = vmul.f32 %v1516, %v1556
      %v1562 = vmul.f32 %v1521, %v1556
      %v1563 = vmul.f32 %v1526, %v1556
      %v1564 = vmul.f32 %v1531, %v1556
      %v1565 = vmul.f32 %v1536, %v1556
      %v1566 = vmul.f32 %v1541, %v1556
      %v1567 = vmul.f32 %v1546, %v1556
      %v1568 = vmul.f32 %v1551, %v1556
      %v1569 = vadd.f32 %v1468, %v1557
      %v1570 = vadd.f32 %v1469, %v1558
      %v1571 = vadd.f32 %v1470, %v1559
      %v1572 = vadd.f32 %v1471, %v1560
      %v1573 = vadd.f32 %v1472, %v1561
      %v1574 = vadd.f32 %v1473, %v1562
      %v1575 = vadd.f32 %v1474, %v1563
      %v1576 = vadd.f32 %v1475, %v1564
      %v1577 = vadd.f32 %v1476, %v1565
      %v1578 = vadd.f32 %v1477, %v1566
      %v1579 = vadd.f32 %v1478, %v1567
      %v1580 = vadd.f32 %v1479, %v1568
      %s1581 = sadd.s32 %s55, 3
      %s1582 = smul.u32 %s1581, 32
      %s1583 = scalar_lea.vmem %s0, %s1582
      %v1584 = vld [vmem:[%s1583] sm:$0xff]
      %v1585 = vld [vmem:[%s1583 + $0x8] sm:$0xff]
      %v1586 = vld [vmem:[%s1583 + $0x10] sm:$0xff]
      %v1587 = vld [vmem:[%s1583 + $0x20] sm:$0xff]
      %v1588 = vld [vmem:[%s1583 + $0x28] sm:$0xff]
      %v1589 = vld [vmem:[%s1583 + $0x30] sm:$0xff]
      %v1590 = vld [vmem:[%s1583 + $0x380] sm:$0xff]
      %v1591 = vld [vmem:[%s1583 + $0x388] sm:$0xff]
      %v1592 = vld [vmem:[%s1583 + $0x390] sm:$0xff]
      %v1593 = vld [vmem:[%s1583 + $0x3a0] sm:$0xff]
      %v1594 = vld [vmem:[%s1583 + $0x3a8] sm:$0xff]
      %v1595 = vld [vmem:[%s1583 + $0x3b0] sm:$0xff]
      %s1596 = scalar_lea.vmem %s1, 24
      %v1597 = vld [vmem:[%s1596] sm:$0x1]
      %1599 = vset.pattern.permute.xlu0 0
      %1600 = vperm.xlu0 %1599, %v1584
      %v1601 = vpop.permute.xlu0 %1600
      %1604 = vset.pattern.permute.xlu0 0
      %1605 = vperm.xlu0 %1604, %v1585
      %v1606 = vpop.permute.xlu0 %1605
      %1609 = vset.pattern.permute.xlu0 0
      %1610 = vperm.xlu0 %1609, %v1586
      %v1611 = vpop.permute.xlu0 %1610
      %1614 = vset.pattern.permute.xlu0 0
      %1615 = vperm.xlu0 %1614, %v1587
      %v1616 = vpop.permute.xlu0 %1615
      %1619 = vset.pattern.permute.xlu0 0
      %1620 = vperm.xlu0 %1619, %v1588
      %v1621 = vpop.permute.xlu0 %1620
      %1624 = vset.pattern.permute.xlu0 0
      %1625 = vperm.xlu0 %1624, %v1589
      %v1626 = vpop.permute.xlu0 %1625
      %1629 = vset.pattern.permute.xlu0 0
      %1630 = vperm.xlu0 %1629, %v1590
      %v1631 = vpop.permute.xlu0 %1630
      %1634 = vset.pattern.permute.xlu0 0
      %1635 = vperm.xlu0 %1634, %v1591
      %v1636 = vpop.permute.xlu0 %1635
      %1639 = vset.pattern.permute.xlu0 0
      %1640 = vperm.xlu0 %1639, %v1592
      %v1641 = vpop.permute.xlu0 %1640
      %1644 = vset.pattern.permute.xlu0 0
      %1645 = vperm.xlu0 %1644, %v1593
      %v1646 = vpop.permute.xlu0 %1645
      %1649 = vset.pattern.permute.xlu0 0
      %1650 = vperm.xlu0 %1649, %v1594
      %v1651 = vpop.permute.xlu0 %1650
      %1654 = vset.pattern.permute.xlu0 0
      %1655 = vperm.xlu0 %1654, %v1595
      %v1656 = vpop.permute.xlu0 %1655
      %v1658 = vlaneseq
      %v1659 = vshrl.u32 %v1658, 7
      %v1660 = vsub.s32 0, %v1659
      %v1661 = vrot.slane %v1597, %v1660
      %v1662 = vmul.f32 %v1601, %v1661
      %v1663 = vmul.f32 %v1606, %v1661
      %v1664 = vmul.f32 %v1611, %v1661
      %v1665 = vmul.f32 %v1616, %v1661
      %v1666 = vmul.f32 %v1621, %v1661
      %v1667 = vmul.f32 %v1626, %v1661
      %v1668 = vmul.f32 %v1631, %v1661
      %v1669 = vmul.f32 %v1636, %v1661
      %v1670 = vmul.f32 %v1641, %v1661
      %v1671 = vmul.f32 %v1646, %v1661
      %v1672 = vmul.f32 %v1651, %v1661
      %v1673 = vmul.f32 %v1656, %v1661
      %v1674 = vadd.f32 %v1569, %v1662
      %v1675 = vadd.f32 %v1570, %v1663
      %v1676 = vadd.f32 %v1571, %v1664
      %v1677 = vadd.f32 %v1572, %v1665
      %v1678 = vadd.f32 %v1573, %v1666
      %v1679 = vadd.f32 %v1574, %v1667
      %v1680 = vadd.f32 %v1575, %v1668
      %v1681 = vadd.f32 %v1576, %v1669
      %v1682 = vadd.f32 %v1577, %v1670
      %v1683 = vadd.f32 %v1578, %v1671
      %v1684 = vadd.f32 %v1579, %v1672
      %v1685 = vadd.f32 %v1580, %v1673
      %v1686 = vld [vmem:[%s1583 + $0x1] sm:$0xff]
      %v1687 = vld [vmem:[%s1583 + $0x9] sm:$0xff]
      %v1688 = vld [vmem:[%s1583 + $0x11] sm:$0xff]
      %v1689 = vld [vmem:[%s1583 + $0x21] sm:$0xff]
      %v1690 = vld [vmem:[%s1583 + $0x29] sm:$0xff]
      %v1691 = vld [vmem:[%s1583 + $0x31] sm:$0xff]
      %v1692 = vld [vmem:[%s1583 + $0x381] sm:$0xff]
      %v1693 = vld [vmem:[%s1583 + $0x389] sm:$0xff]
      %v1694 = vld [vmem:[%s1583 + $0x391] sm:$0xff]
      %v1695 = vld [vmem:[%s1583 + $0x3a1] sm:$0xff]
      %v1696 = vld [vmem:[%s1583 + $0x3a9] sm:$0xff]
      %v1697 = vld [vmem:[%s1583 + $0x3b1] sm:$0xff]
      %v1698 = vld [vmem:[%s1596 + $0x1] sm:$0x1]
      %1700 = vset.pattern.permute.xlu0 0
      %1701 = vperm.xlu0 %1700, %v1686
      %v1702 = vpop.permute.xlu0 %1701
      %1705 = vset.pattern.permute.xlu0 0
      %1706 = vperm.xlu0 %1705, %v1687
      %v1707 = vpop.permute.xlu0 %1706
      %1710 = vset.pattern.permute.xlu0 0
      %1711 = vperm.xlu0 %1710, %v1688
      %v1712 = vpop.permute.xlu0 %1711
      %1715 = vset.pattern.permute.xlu0 0
      %1716 = vperm.xlu0 %1715, %v1689
      %v1717 = vpop.permute.xlu0 %1716
      %1720 = vset.pattern.permute.xlu0 0
      %1721 = vperm.xlu0 %1720, %v1690
      %v1722 = vpop.permute.xlu0 %1721
      %1725 = vset.pattern.permute.xlu0 0
      %1726 = vperm.xlu0 %1725, %v1691
      %v1727 = vpop.permute.xlu0 %1726
      %1730 = vset.pattern.permute.xlu0 0
      %1731 = vperm.xlu0 %1730, %v1692
      %v1732 = vpop.permute.xlu0 %1731
      %1735 = vset.pattern.permute.xlu0 0
      %1736 = vperm.xlu0 %1735, %v1693
      %v1737 = vpop.permute.xlu0 %1736
      %1740 = vset.pattern.permute.xlu0 0
      %1741 = vperm.xlu0 %1740, %v1694
      %v1742 = vpop.permute.xlu0 %1741
      %1745 = vset.pattern.permute.xlu0 0
      %1746 = vperm.xlu0 %1745, %v1695
      %v1747 = vpop.permute.xlu0 %1746
      %1750 = vset.pattern.permute.xlu0 0
      %1751 = vperm.xlu0 %1750, %v1696
      %v1752 = vpop.permute.xlu0 %1751
      %1755 = vset.pattern.permute.xlu0 0
      %1756 = vperm.xlu0 %1755, %v1697
      %v1757 = vpop.permute.xlu0 %1756
      %v1759 = vlaneseq
      %v1760 = vshrl.u32 %v1759, 7
      %v1761 = vsub.s32 0, %v1760
      %v1762 = vrot.slane %v1698, %v1761
      %v1763 = vmul.f32 %v1702, %v1762
      %v1764 = vmul.f32 %v1707, %v1762
      %v1765 = vmul.f32 %v1712, %v1762
      %v1766 = vmul.f32 %v1717, %v1762
      %v1767 = vmul.f32 %v1722, %v1762
      %v1768 = vmul.f32 %v1727, %v1762
      %v1769 = vmul.f32 %v1732, %v1762
      %v1770 = vmul.f32 %v1737, %v1762
      %v1771 = vmul.f32 %v1742, %v1762
      %v1772 = vmul.f32 %v1747, %v1762
      %v1773 = vmul.f32 %v1752, %v1762
      %v1774 = vmul.f32 %v1757, %v1762
      %v1775 = vadd.f32 %v1674, %v1763
      %v1776 = vadd.f32 %v1675, %v1764
      %v1777 = vadd.f32 %v1676, %v1765
      %v1778 = vadd.f32 %v1677, %v1766
      %v1779 = vadd.f32 %v1678, %v1767
      %v1780 = vadd.f32 %v1679, %v1768
      %v1781 = vadd.f32 %v1680, %v1769
      %v1782 = vadd.f32 %v1681, %v1770
      %v1783 = vadd.f32 %v1682, %v1771
      %v1784 = vadd.f32 %v1683, %v1772
      %v1785 = vadd.f32 %v1684, %v1773
      %v1786 = vadd.f32 %v1685, %v1774
      %v1787 = vld [vmem:[%s1583 + $0x2] sm:$0xff]
      %v1788 = vld [vmem:[%s1583 + $0xa] sm:$0xff]
      %v1789 = vld [vmem:[%s1583 + $0x12] sm:$0xff]
      %v1790 = vld [vmem:[%s1583 + $0x22] sm:$0xff]
      %v1791 = vld [vmem:[%s1583 + $0x2a] sm:$0xff]
      %v1792 = vld [vmem:[%s1583 + $0x32] sm:$0xff]
      %v1793 = vld [vmem:[%s1583 + $0x382] sm:$0xff]
      %v1794 = vld [vmem:[%s1583 + $0x38a] sm:$0xff]
      %v1795 = vld [vmem:[%s1583 + $0x392] sm:$0xff]
      %v1796 = vld [vmem:[%s1583 + $0x3a2] sm:$0xff]
      %v1797 = vld [vmem:[%s1583 + $0x3aa] sm:$0xff]
      %v1798 = vld [vmem:[%s1583 + $0x3b2] sm:$0xff]
      %v1799 = vld [vmem:[%s1596 + $0x2] sm:$0x1]
      %1801 = vset.pattern.permute.xlu0 0
      %1802 = vperm.xlu0 %1801, %v1787
      %v1803 = vpop.permute.xlu0 %1802
      %1806 = vset.pattern.permute.xlu0 0
      %1807 = vperm.xlu0 %1806, %v1788
      %v1808 = vpop.permute.xlu0 %1807
      %1811 = vset.pattern.permute.xlu0 0
      %1812 = vperm.xlu0 %1811, %v1789
      %v1813 = vpop.permute.xlu0 %1812
      %1816 = vset.pattern.permute.xlu0 0
      %1817 = vperm.xlu0 %1816, %v1790
      %v1818 = vpop.permute.xlu0 %1817
      %1821 = vset.pattern.permute.xlu0 0
      %1822 = vperm.xlu0 %1821, %v1791
      %v1823 = vpop.permute.xlu0 %1822
      %1826 = vset.pattern.permute.xlu0 0
      %1827 = vperm.xlu0 %1826, %v1792
      %v1828 = vpop.permute.xlu0 %1827
      %1831 = vset.pattern.permute.xlu0 0
      %1832 = vperm.xlu0 %1831, %v1793
      %v1833 = vpop.permute.xlu0 %1832
      %1836 = vset.pattern.permute.xlu0 0
      %1837 = vperm.xlu0 %1836, %v1794
      %v1838 = vpop.permute.xlu0 %1837
      %1841 = vset.pattern.permute.xlu0 0
      %1842 = vperm.xlu0 %1841, %v1795
      %v1843 = vpop.permute.xlu0 %1842
      %1846 = vset.pattern.permute.xlu0 0
      %1847 = vperm.xlu0 %1846, %v1796
      %v1848 = vpop.permute.xlu0 %1847
      %1851 = vset.pattern.permute.xlu0 0
      %1852 = vperm.xlu0 %1851, %v1797
      %v1853 = vpop.permute.xlu0 %1852
      %1856 = vset.pattern.permute.xlu0 0
      %1857 = vperm.xlu0 %1856, %v1798
      %v1858 = vpop.permute.xlu0 %1857
      %v1860 = vlaneseq
      %v1861 = vshrl.u32 %v1860, 7
      %v1862 = vsub.s32 0, %v1861
      %v1863 = vrot.slane %v1799, %v1862
      %v1864 = vmul.f32 %v1803, %v1863
      %v1865 = vmul.f32 %v1808, %v1863
      %v1866 = vmul.f32 %v1813, %v1863
      %v1867 = vmul.f32 %v1818, %v1863
      %v1868 = vmul.f32 %v1823, %v1863
      %v1869 = vmul.f32 %v1828, %v1863
      %v1870 = vmul.f32 %v1833, %v1863
      %v1871 = vmul.f32 %v1838, %v1863
      %v1872 = vmul.f32 %v1843, %v1863
      %v1873 = vmul.f32 %v1848, %v1863
      %v1874 = vmul.f32 %v1853, %v1863
      %v1875 = vmul.f32 %v1858, %v1863
      %v1876 = vadd.f32 %v1775, %v1864
      %v1877 = vadd.f32 %v1776, %v1865
      %v1878 = vadd.f32 %v1777, %v1866
      %v1879 = vadd.f32 %v1778, %v1867
      %v1880 = vadd.f32 %v1779, %v1868
      %v1881 = vadd.f32 %v1780, %v1869
      %v1882 = vadd.f32 %v1781, %v1870
      %v1883 = vadd.f32 %v1782, %v1871
      %v1884 = vadd.f32 %v1783, %v1872
      %v1885 = vadd.f32 %v1784, %v1873
      %v1886 = vadd.f32 %v1785, %v1874
      %v1887 = vadd.f32 %v1786, %v1875
      %v1888 = vld [vmem:[%s1583 + $0x3] sm:$0xff]
      %v1889 = vld [vmem:[%s1583 + $0xb] sm:$0xff]
      %v1890 = vld [vmem:[%s1583 + $0x13] sm:$0xff]
      %v1891 = vld [vmem:[%s1583 + $0x23] sm:$0xff]
      %v1892 = vld [vmem:[%s1583 + $0x2b] sm:$0xff]
      %v1893 = vld [vmem:[%s1583 + $0x33] sm:$0xff]
      %v1894 = vld [vmem:[%s1583 + $0x383] sm:$0xff]
      %v1895 = vld [vmem:[%s1583 + $0x38b] sm:$0xff]
      %v1896 = vld [vmem:[%s1583 + $0x393] sm:$0xff]
      %v1897 = vld [vmem:[%s1583 + $0x3a3] sm:$0xff]
      %v1898 = vld [vmem:[%s1583 + $0x3ab] sm:$0xff]
      %v1899 = vld [vmem:[%s1583 + $0x3b3] sm:$0xff]
      %v1900 = vld [vmem:[%s1596 + $0x3] sm:$0x1]
      %1902 = vset.pattern.permute.xlu0 0
      %1903 = vperm.xlu0 %1902, %v1888
      %v1904 = vpop.permute.xlu0 %1903
      %1907 = vset.pattern.permute.xlu0 0
      %1908 = vperm.xlu0 %1907, %v1889
      %v1909 = vpop.permute.xlu0 %1908
      %1912 = vset.pattern.permute.xlu0 0
      %1913 = vperm.xlu0 %1912, %v1890
      %v1914 = vpop.permute.xlu0 %1913
      %1917 = vset.pattern.permute.xlu0 0
      %1918 = vperm.xlu0 %1917, %v1891
      %v1919 = vpop.permute.xlu0 %1918
      %1922 = vset.pattern.permute.xlu0 0
      %1923 = vperm.xlu0 %1922, %v1892
      %v1924 = vpop.permute.xlu0 %1923
      %1927 = vset.pattern.permute.xlu0 0
      %1928 = vperm.xlu0 %1927, %v1893
      %v1929 = vpop.permute.xlu0 %1928
      %1932 = vset.pattern.permute.xlu0 0
      %1933 = vperm.xlu0 %1932, %v1894
      %v1934 = vpop.permute.xlu0 %1933
      %1937 = vset.pattern.permute.xlu0 0
      %1938 = vperm.xlu0 %1937, %v1895
      %v1939 = vpop.permute.xlu0 %1938
      %1942 = vset.pattern.permute.xlu0 0
      %1943 = vperm.xlu0 %1942, %v1896
      %v1944 = vpop.permute.xlu0 %1943
      %1947 = vset.pattern.permute.xlu0 0
      %1948 = vperm.xlu0 %1947, %v1897
      %v1949 = vpop.permute.xlu0 %1948
      %1952 = vset.pattern.permute.xlu0 0
      %1953 = vperm.xlu0 %1952, %v1898
      %v1954 = vpop.permute.xlu0 %1953
      %1957 = vset.pattern.permute.xlu0 0
      %1958 = vperm.xlu0 %1957, %v1899
      %v1959 = vpop.permute.xlu0 %1958
      %v1961 = vlaneseq
      %v1962 = vshrl.u32 %v1961, 7
      %v1963 = vsub.s32 0, %v1962
      %v1964 = vrot.slane %v1900, %v1963
      %v1965 = vmul.f32 %v1904, %v1964
      %v1966 = vmul.f32 %v1909, %v1964
      %v1967 = vmul.f32 %v1914, %v1964
      %v1968 = vmul.f32 %v1919, %v1964
      %v1969 = vmul.f32 %v1924, %v1964
      %v1970 = vmul.f32 %v1929, %v1964
      %v1971 = vmul.f32 %v1934, %v1964
      %v1972 = vmul.f32 %v1939, %v1964
      %v1973 = vmul.f32 %v1944, %v1964
      %v1974 = vmul.f32 %v1949, %v1964
      %v1975 = vmul.f32 %v1954, %v1964
      %v1976 = vmul.f32 %v1959, %v1964
      %v1977 = vadd.f32 %v1876, %v1965
      %v1978 = vadd.f32 %v1877, %v1966
      %v1979 = vadd.f32 %v1878, %v1967
      %v1980 = vadd.f32 %v1879, %v1968
      %v1981 = vadd.f32 %v1880, %v1969
      %v1982 = vadd.f32 %v1881, %v1970
      %v1983 = vadd.f32 %v1882, %v1971
      %v1984 = vadd.f32 %v1883, %v1972
      %v1985 = vadd.f32 %v1884, %v1973
      %v1986 = vadd.f32 %v1885, %v1974
      %v1987 = vadd.f32 %v1886, %v1975
      %v1988 = vadd.f32 %v1887, %v1976
      %v1989 = vld [vmem:[%s1583 + $0x4] sm:$0xff]
      %v1990 = vld [vmem:[%s1583 + $0xc] sm:$0xff]
      %v1991 = vld [vmem:[%s1583 + $0x14] sm:$0xff]
      %v1992 = vld [vmem:[%s1583 + $0x24] sm:$0xff]
      %v1993 = vld [vmem:[%s1583 + $0x2c] sm:$0xff]
      %v1994 = vld [vmem:[%s1583 + $0x34] sm:$0xff]
      %v1995 = vld [vmem:[%s1583 + $0x384] sm:$0xff]
      %v1996 = vld [vmem:[%s1583 + $0x38c] sm:$0xff]
      %v1997 = vld [vmem:[%s1583 + $0x394] sm:$0xff]
      %v1998 = vld [vmem:[%s1583 + $0x3a4] sm:$0xff]
      %v1999 = vld [vmem:[%s1583 + $0x3ac] sm:$0xff]
      %v2000 = vld [vmem:[%s1583 + $0x3b4] sm:$0xff]
      %v2001 = vld [vmem:[%s1596 + $0x4] sm:$0x1]
      %2003 = vset.pattern.permute.xlu0 0
      %2004 = vperm.xlu0 %2003, %v1989
      %v2005 = vpop.permute.xlu0 %2004
      %2008 = vset.pattern.permute.xlu0 0
      %2009 = vperm.xlu0 %2008, %v1990
      %v2010 = vpop.permute.xlu0 %2009
      %2013 = vset.pattern.permute.xlu0 0
      %2014 = vperm.xlu0 %2013, %v1991
      %v2015 = vpop.permute.xlu0 %2014
      %2018 = vset.pattern.permute.xlu0 0
      %2019 = vperm.xlu0 %2018, %v1992
      %v2020 = vpop.permute.xlu0 %2019
      %2023 = vset.pattern.permute.xlu0 0
      %2024 = vperm.xlu0 %2023, %v1993
      %v2025 = vpop.permute.xlu0 %2024
      %2028 = vset.pattern.permute.xlu0 0
      %2029 = vperm.xlu0 %2028, %v1994
      %v2030 = vpop.permute.xlu0 %2029
      %2033 = vset.pattern.permute.xlu0 0
      %2034 = vperm.xlu0 %2033, %v1995
      %v2035 = vpop.permute.xlu0 %2034
      %2038 = vset.pattern.permute.xlu0 0
      %2039 = vperm.xlu0 %2038, %v1996
      %v2040 = vpop.permute.xlu0 %2039
      %2043 = vset.pattern.permute.xlu0 0
      %2044 = vperm.xlu0 %2043, %v1997
      %v2045 = vpop.permute.xlu0 %2044
      %2048 = vset.pattern.permute.xlu0 0
      %2049 = vperm.xlu0 %2048, %v1998
      %v2050 = vpop.permute.xlu0 %2049
      %2053 = vset.pattern.permute.xlu0 0
      %2054 = vperm.xlu0 %2053, %v1999
      %v2055 = vpop.permute.xlu0 %2054
      %2058 = vset.pattern.permute.xlu0 0
      %2059 = vperm.xlu0 %2058, %v2000
      %v2060 = vpop.permute.xlu0 %2059
      %v2062 = vlaneseq
      %v2063 = vshrl.u32 %v2062, 7
      %v2064 = vsub.s32 0, %v2063
      %v2065 = vrot.slane %v2001, %v2064
      %v2066 = vmul.f32 %v2005, %v2065
      %v2067 = vmul.f32 %v2010, %v2065
      %v2068 = vmul.f32 %v2015, %v2065
      %v2069 = vmul.f32 %v2020, %v2065
      %v2070 = vmul.f32 %v2025, %v2065
      %v2071 = vmul.f32 %v2030, %v2065
      %v2072 = vmul.f32 %v2035, %v2065
      %v2073 = vmul.f32 %v2040, %v2065
      %v2074 = vmul.f32 %v2045, %v2065
      %v2075 = vmul.f32 %v2050, %v2065
      %v2076 = vmul.f32 %v2055, %v2065
      %v2077 = vmul.f32 %v2060, %v2065
      %v2078 = vadd.f32 %v1977, %v2066
      %v2079 = vadd.f32 %v1978, %v2067
      %v2080 = vadd.f32 %v1979, %v2068
      %v2081 = vadd.f32 %v1980, %v2069
      %v2082 = vadd.f32 %v1981, %v2070
      %v2083 = vadd.f32 %v1982, %v2071
      %v2084 = vadd.f32 %v1983, %v2072
      %v2085 = vadd.f32 %v1984, %v2073
      %v2086 = vadd.f32 %v1985, %v2074
      %v2087 = vadd.f32 %v1986, %v2075
      %v2088 = vadd.f32 %v1987, %v2076
      %v2089 = vadd.f32 %v1988, %v2077
      %s2090 = sadd.s32 %s55, 4
      %s2091 = smul.u32 %s2090, 32
      %s2092 = scalar_lea.vmem %s0, %s2091
      %v2093 = vld [vmem:[%s2092] sm:$0xff]
      %v2094 = vld [vmem:[%s2092 + $0x8] sm:$0xff]
      %v2095 = vld [vmem:[%s2092 + $0x10] sm:$0xff]
      %v2096 = vld [vmem:[%s2092 + $0x20] sm:$0xff]
      %v2097 = vld [vmem:[%s2092 + $0x28] sm:$0xff]
      %v2098 = vld [vmem:[%s2092 + $0x30] sm:$0xff]
      %v2099 = vld [vmem:[%s2092 + $0x380] sm:$0xff]
      %v2100 = vld [vmem:[%s2092 + $0x388] sm:$0xff]
      %v2101 = vld [vmem:[%s2092 + $0x390] sm:$0xff]
      %v2102 = vld [vmem:[%s2092 + $0x3a0] sm:$0xff]
      %v2103 = vld [vmem:[%s2092 + $0x3a8] sm:$0xff]
      %v2104 = vld [vmem:[%s2092 + $0x3b0] sm:$0xff]
      %s2105 = scalar_lea.vmem %s1, 32
      %v2106 = vld [vmem:[%s2105] sm:$0x1]
      %2108 = vset.pattern.permute.xlu0 0
      %2109 = vperm.xlu0 %2108, %v2093
      %v2110 = vpop.permute.xlu0 %2109
      %2113 = vset.pattern.permute.xlu0 0
      %2114 = vperm.xlu0 %2113, %v2094
      %v2115 = vpop.permute.xlu0 %2114
      %2118 = vset.pattern.permute.xlu0 0
      %2119 = vperm.xlu0 %2118, %v2095
      %v2120 = vpop.permute.xlu0 %2119
      %2123 = vset.pattern.permute.xlu0 0
      %2124 = vperm.xlu0 %2123, %v2096
      %v2125 = vpop.permute.xlu0 %2124
      %2128 = vset.pattern.permute.xlu0 0
      %2129 = vperm.xlu0 %2128, %v2097
      %v2130 = vpop.permute.xlu0 %2129
      %2133 = vset.pattern.permute.xlu0 0
      %2134 = vperm.xlu0 %2133, %v2098
      %v2135 = vpop.permute.xlu0 %2134
      %2138 = vset.pattern.permute.xlu0 0
      %2139 = vperm.xlu0 %2138, %v2099
      %v2140 = vpop.permute.xlu0 %2139
      %2143 = vset.pattern.permute.xlu0 0
      %2144 = vperm.xlu0 %2143, %v2100
      %v2145 = vpop.permute.xlu0 %2144
      %2148 = vset.pattern.permute.xlu0 0
      %2149 = vperm.xlu0 %2148, %v2101
      %v2150 = vpop.permute.xlu0 %2149
      %2153 = vset.pattern.permute.xlu0 0
      %2154 = vperm.xlu0 %2153, %v2102
      %v2155 = vpop.permute.xlu0 %2154
      %2158 = vset.pattern.permute.xlu0 0
      %2159 = vperm.xlu0 %2158, %v2103
      %v2160 = vpop.permute.xlu0 %2159
      %2163 = vset.pattern.permute.xlu0 0
      %2164 = vperm.xlu0 %2163, %v2104
      %v2165 = vpop.permute.xlu0 %2164
      %v2167 = vlaneseq
      %v2168 = vshrl.u32 %v2167, 7
      %v2169 = vsub.s32 0, %v2168
      %v2170 = vrot.slane %v2106, %v2169
      %v2171 = vmul.f32 %v2110, %v2170
      %v2172 = vmul.f32 %v2115, %v2170
      %v2173 = vmul.f32 %v2120, %v2170
      %v2174 = vmul.f32 %v2125, %v2170
      %v2175 = vmul.f32 %v2130, %v2170
      %v2176 = vmul.f32 %v2135, %v2170
      %v2177 = vmul.f32 %v2140, %v2170
      %v2178 = vmul.f32 %v2145, %v2170
      %v2179 = vmul.f32 %v2150, %v2170
      %v2180 = vmul.f32 %v2155, %v2170
      %v2181 = vmul.f32 %v2160, %v2170
      %v2182 = vmul.f32 %v2165, %v2170
      %v2183 = vadd.f32 %v2078, %v2171
      %v2184 = vadd.f32 %v2079, %v2172
      %v2185 = vadd.f32 %v2080, %v2173
      %v2186 = vadd.f32 %v2081, %v2174
      %v2187 = vadd.f32 %v2082, %v2175
      %v2188 = vadd.f32 %v2083, %v2176
      %v2189 = vadd.f32 %v2084, %v2177
      %v2190 = vadd.f32 %v2085, %v2178
      %v2191 = vadd.f32 %v2086, %v2179
      %v2192 = vadd.f32 %v2087, %v2180
      %v2193 = vadd.f32 %v2088, %v2181
      %v2194 = vadd.f32 %v2089, %v2182
      %v2195 = vld [vmem:[%s2092 + $0x1] sm:$0xff]
      %v2196 = vld [vmem:[%s2092 + $0x9] sm:$0xff]
      %v2197 = vld [vmem:[%s2092 + $0x11] sm:$0xff]
      %v2198 = vld [vmem:[%s2092 + $0x21] sm:$0xff]
      %v2199 = vld [vmem:[%s2092 + $0x29] sm:$0xff]
      %v2200 = vld [vmem:[%s2092 + $0x31] sm:$0xff]
      %v2201 = vld [vmem:[%s2092 + $0x381] sm:$0xff]
      %v2202 = vld [vmem:[%s2092 + $0x389] sm:$0xff]
      %v2203 = vld [vmem:[%s2092 + $0x391] sm:$0xff]
      %v2204 = vld [vmem:[%s2092 + $0x3a1] sm:$0xff]
      %v2205 = vld [vmem:[%s2092 + $0x3a9] sm:$0xff]
      %v2206 = vld [vmem:[%s2092 + $0x3b1] sm:$0xff]
      %v2207 = vld [vmem:[%s2105 + $0x1] sm:$0x1]
      %2209 = vset.pattern.permute.xlu0 0
      %2210 = vperm.xlu0 %2209, %v2195
      %v2211 = vpop.permute.xlu0 %2210
      %2214 = vset.pattern.permute.xlu0 0
      %2215 = vperm.xlu0 %2214, %v2196
      %v2216 = vpop.permute.xlu0 %2215
      %2219 = vset.pattern.permute.xlu0 0
      %2220 = vperm.xlu0 %2219, %v2197
      %v2221 = vpop.permute.xlu0 %2220
      %2224 = vset.pattern.permute.xlu0 0
      %2225 = vperm.xlu0 %2224, %v2198
      %v2226 = vpop.permute.xlu0 %2225
      %2229 = vset.pattern.permute.xlu0 0
      %2230 = vperm.xlu0 %2229, %v2199
      %v2231 = vpop.permute.xlu0 %2230
      %2234 = vset.pattern.permute.xlu0 0
      %2235 = vperm.xlu0 %2234, %v2200
      %v2236 = vpop.permute.xlu0 %2235
      %2239 = vset.pattern.permute.xlu0 0
      %2240 = vperm.xlu0 %2239, %v2201
      %v2241 = vpop.permute.xlu0 %2240
      %2244 = vset.pattern.permute.xlu0 0
      %2245 = vperm.xlu0 %2244, %v2202
      %v2246 = vpop.permute.xlu0 %2245
      %2249 = vset.pattern.permute.xlu0 0
      %2250 = vperm.xlu0 %2249, %v2203
      %v2251 = vpop.permute.xlu0 %2250
      %2254 = vset.pattern.permute.xlu0 0
      %2255 = vperm.xlu0 %2254, %v2204
      %v2256 = vpop.permute.xlu0 %2255
      %2259 = vset.pattern.permute.xlu0 0
      %2260 = vperm.xlu0 %2259, %v2205
      %v2261 = vpop.permute.xlu0 %2260
      %2264 = vset.pattern.permute.xlu0 0
      %2265 = vperm.xlu0 %2264, %v2206
      %v2266 = vpop.permute.xlu0 %2265
      %v2268 = vlaneseq
      %v2269 = vshrl.u32 %v2268, 7
      %v2270 = vsub.s32 0, %v2269
      %v2271 = vrot.slane %v2207, %v2270
      %v2272 = vmul.f32 %v2211, %v2271
      %v2273 = vmul.f32 %v2216, %v2271
      %v2274 = vmul.f32 %v2221, %v2271
      %v2275 = vmul.f32 %v2226, %v2271
      %v2276 = vmul.f32 %v2231, %v2271
      %v2277 = vmul.f32 %v2236, %v2271
      %v2278 = vmul.f32 %v2241, %v2271
      %v2279 = vmul.f32 %v2246, %v2271
      %v2280 = vmul.f32 %v2251, %v2271
      %v2281 = vmul.f32 %v2256, %v2271
      %v2282 = vmul.f32 %v2261, %v2271
      %v2283 = vmul.f32 %v2266, %v2271
      %v2284 = vadd.f32 %v2183, %v2272
      %v2285 = vadd.f32 %v2184, %v2273
      %v2286 = vadd.f32 %v2185, %v2274
      %v2287 = vadd.f32 %v2186, %v2275
      %v2288 = vadd.f32 %v2187, %v2276
      %v2289 = vadd.f32 %v2188, %v2277
      %v2290 = vadd.f32 %v2189, %v2278
      %v2291 = vadd.f32 %v2190, %v2279
      %v2292 = vadd.f32 %v2191, %v2280
      %v2293 = vadd.f32 %v2192, %v2281
      %v2294 = vadd.f32 %v2193, %v2282
      %v2295 = vadd.f32 %v2194, %v2283
      %v2296 = vld [vmem:[%s2092 + $0x2] sm:$0xff]
      %v2297 = vld [vmem:[%s2092 + $0xa] sm:$0xff]
      %v2298 = vld [vmem:[%s2092 + $0x12] sm:$0xff]
      %v2299 = vld [vmem:[%s2092 + $0x22] sm:$0xff]
      %v2300 = vld [vmem:[%s2092 + $0x2a] sm:$0xff]
      %v2301 = vld [vmem:[%s2092 + $0x32] sm:$0xff]
      %v2302 = vld [vmem:[%s2092 + $0x382] sm:$0xff]
      %v2303 = vld [vmem:[%s2092 + $0x38a] sm:$0xff]
      %v2304 = vld [vmem:[%s2092 + $0x392] sm:$0xff]
      %v2305 = vld [vmem:[%s2092 + $0x3a2] sm:$0xff]
      %v2306 = vld [vmem:[%s2092 + $0x3aa] sm:$0xff]
      %v2307 = vld [vmem:[%s2092 + $0x3b2] sm:$0xff]
      %v2308 = vld [vmem:[%s2105 + $0x2] sm:$0x1]
      %2310 = vset.pattern.permute.xlu0 0
      %2311 = vperm.xlu0 %2310, %v2296
      %v2312 = vpop.permute.xlu0 %2311
      %2315 = vset.pattern.permute.xlu0 0
      %2316 = vperm.xlu0 %2315, %v2297
      %v2317 = vpop.permute.xlu0 %2316
      %2320 = vset.pattern.permute.xlu0 0
      %2321 = vperm.xlu0 %2320, %v2298
      %v2322 = vpop.permute.xlu0 %2321
      %2325 = vset.pattern.permute.xlu0 0
      %2326 = vperm.xlu0 %2325, %v2299
      %v2327 = vpop.permute.xlu0 %2326
      %2330 = vset.pattern.permute.xlu0 0
      %2331 = vperm.xlu0 %2330, %v2300
      %v2332 = vpop.permute.xlu0 %2331
      %2335 = vset.pattern.permute.xlu0 0
      %2336 = vperm.xlu0 %2335, %v2301
      %v2337 = vpop.permute.xlu0 %2336
      %2340 = vset.pattern.permute.xlu0 0
      %2341 = vperm.xlu0 %2340, %v2302
      %v2342 = vpop.permute.xlu0 %2341
      %2345 = vset.pattern.permute.xlu0 0
      %2346 = vperm.xlu0 %2345, %v2303
      %v2347 = vpop.permute.xlu0 %2346
      %2350 = vset.pattern.permute.xlu0 0
      %2351 = vperm.xlu0 %2350, %v2304
      %v2352 = vpop.permute.xlu0 %2351
      %2355 = vset.pattern.permute.xlu0 0
      %2356 = vperm.xlu0 %2355, %v2305
      %v2357 = vpop.permute.xlu0 %2356
      %2360 = vset.pattern.permute.xlu0 0
      %2361 = vperm.xlu0 %2360, %v2306
      %v2362 = vpop.permute.xlu0 %2361
      %2365 = vset.pattern.permute.xlu0 0
      %2366 = vperm.xlu0 %2365, %v2307
      %v2367 = vpop.permute.xlu0 %2366
      %v2369 = vlaneseq
      %v2370 = vshrl.u32 %v2369, 7
      %v2371 = vsub.s32 0, %v2370
      %v2372 = vrot.slane %v2308, %v2371
      %v2373 = vmul.f32 %v2312, %v2372
      %v2374 = vmul.f32 %v2317, %v2372
      %v2375 = vmul.f32 %v2322, %v2372
      %v2376 = vmul.f32 %v2327, %v2372
      %v2377 = vmul.f32 %v2332, %v2372
      %v2378 = vmul.f32 %v2337, %v2372
      %v2379 = vmul.f32 %v2342, %v2372
      %v2380 = vmul.f32 %v2347, %v2372
      %v2381 = vmul.f32 %v2352, %v2372
      %v2382 = vmul.f32 %v2357, %v2372
      %v2383 = vmul.f32 %v2362, %v2372
      %v2384 = vmul.f32 %v2367, %v2372
      %v2385 = vadd.f32 %v2284, %v2373
      %v2386 = vadd.f32 %v2285, %v2374
      %v2387 = vadd.f32 %v2286, %v2375
      %v2388 = vadd.f32 %v2287, %v2376
      %v2389 = vadd.f32 %v2288, %v2377
      %v2390 = vadd.f32 %v2289, %v2378
      %v2391 = vadd.f32 %v2290, %v2379
      %v2392 = vadd.f32 %v2291, %v2380
      %v2393 = vadd.f32 %v2292, %v2381
      %v2394 = vadd.f32 %v2293, %v2382
      %v2395 = vadd.f32 %v2294, %v2383
      %v2396 = vadd.f32 %v2295, %v2384
      %v2397 = vld [vmem:[%s2092 + $0x3] sm:$0xff]
      %v2398 = vld [vmem:[%s2092 + $0xb] sm:$0xff]
      %v2399 = vld [vmem:[%s2092 + $0x13] sm:$0xff]
      %v2400 = vld [vmem:[%s2092 + $0x23] sm:$0xff]
      %v2401 = vld [vmem:[%s2092 + $0x2b] sm:$0xff]
      %v2402 = vld [vmem:[%s2092 + $0x33] sm:$0xff]
      %v2403 = vld [vmem:[%s2092 + $0x383] sm:$0xff]
      %v2404 = vld [vmem:[%s2092 + $0x38b] sm:$0xff]
      %v2405 = vld [vmem:[%s2092 + $0x393] sm:$0xff]
      %v2406 = vld [vmem:[%s2092 + $0x3a3] sm:$0xff]
      %v2407 = vld [vmem:[%s2092 + $0x3ab] sm:$0xff]
      %v2408 = vld [vmem:[%s2092 + $0x3b3] sm:$0xff]
      %v2409 = vld [vmem:[%s2105 + $0x3] sm:$0x1]
      %2411 = vset.pattern.permute.xlu0 0
      %2412 = vperm.xlu0 %2411, %v2397
      %v2413 = vpop.permute.xlu0 %2412
      %2416 = vset.pattern.permute.xlu0 0
      %2417 = vperm.xlu0 %2416, %v2398
      %v2418 = vpop.permute.xlu0 %2417
      %2421 = vset.pattern.permute.xlu0 0
      %2422 = vperm.xlu0 %2421, %v2399
      %v2423 = vpop.permute.xlu0 %2422
      %2426 = vset.pattern.permute.xlu0 0
      %2427 = vperm.xlu0 %2426, %v2400
      %v2428 = vpop.permute.xlu0 %2427
      %2431 = vset.pattern.permute.xlu0 0
      %2432 = vperm.xlu0 %2431, %v2401
      %v2433 = vpop.permute.xlu0 %2432
      %2436 = vset.pattern.permute.xlu0 0
      %2437 = vperm.xlu0 %2436, %v2402
      %v2438 = vpop.permute.xlu0 %2437
      %2441 = vset.pattern.permute.xlu0 0
      %2442 = vperm.xlu0 %2441, %v2403
      %v2443 = vpop.permute.xlu0 %2442
      %2446 = vset.pattern.permute.xlu0 0
      %2447 = vperm.xlu0 %2446, %v2404
      %v2448 = vpop.permute.xlu0 %2447
      %2451 = vset.pattern.permute.xlu0 0
      %2452 = vperm.xlu0 %2451, %v2405
      %v2453 = vpop.permute.xlu0 %2452
      %2456 = vset.pattern.permute.xlu0 0
      %2457 = vperm.xlu0 %2456, %v2406
      %v2458 = vpop.permute.xlu0 %2457
      %2461 = vset.pattern.permute.xlu0 0
      %2462 = vperm.xlu0 %2461, %v2407
      %v2463 = vpop.permute.xlu0 %2462
      %2466 = vset.pattern.permute.xlu0 0
      %2467 = vperm.xlu0 %2466, %v2408
      %v2468 = vpop.permute.xlu0 %2467
      %v2470 = vlaneseq
      %v2471 = vshrl.u32 %v2470, 7
      %v2472 = vsub.s32 0, %v2471
      %v2473 = vrot.slane %v2409, %v2472
      %v2474 = vmul.f32 %v2413, %v2473
      %v2475 = vmul.f32 %v2418, %v2473
      %v2476 = vmul.f32 %v2423, %v2473
      %v2477 = vmul.f32 %v2428, %v2473
      %v2478 = vmul.f32 %v2433, %v2473
      %v2479 = vmul.f32 %v2438, %v2473
      %v2480 = vmul.f32 %v2443, %v2473
      %v2481 = vmul.f32 %v2448, %v2473
      %v2482 = vmul.f32 %v2453, %v2473
      %v2483 = vmul.f32 %v2458, %v2473
      %v2484 = vmul.f32 %v2463, %v2473
      %v2485 = vmul.f32 %v2468, %v2473
      %v2486 = vadd.f32 %v2385, %v2474
      %v2487 = vadd.f32 %v2386, %v2475
      %v2488 = vadd.f32 %v2387, %v2476
      %v2489 = vadd.f32 %v2388, %v2477
      %v2490 = vadd.f32 %v2389, %v2478
      %v2491 = vadd.f32 %v2390, %v2479
      %v2492 = vadd.f32 %v2391, %v2480
      %v2493 = vadd.f32 %v2392, %v2481
      %v2494 = vadd.f32 %v2393, %v2482
      %v2495 = vadd.f32 %v2394, %v2483
      %v2496 = vadd.f32 %v2395, %v2484
      %v2497 = vadd.f32 %v2396, %v2485
      %v2498 = vld [vmem:[%s2092 + $0x4] sm:$0xff]
      %v2499 = vld [vmem:[%s2092 + $0xc] sm:$0xff]
      %v2500 = vld [vmem:[%s2092 + $0x14] sm:$0xff]
      %v2501 = vld [vmem:[%s2092 + $0x24] sm:$0xff]
      %v2502 = vld [vmem:[%s2092 + $0x2c] sm:$0xff]
      %v2503 = vld [vmem:[%s2092 + $0x34] sm:$0xff]
      %v2504 = vld [vmem:[%s2092 + $0x384] sm:$0xff]
      %v2505 = vld [vmem:[%s2092 + $0x38c] sm:$0xff]
      %v2506 = vld [vmem:[%s2092 + $0x394] sm:$0xff]
      %v2507 = vld [vmem:[%s2092 + $0x3a4] sm:$0xff]
      %v2508 = vld [vmem:[%s2092 + $0x3ac] sm:$0xff]
      %v2509 = vld [vmem:[%s2092 + $0x3b4] sm:$0xff]
      %v2510 = vld [vmem:[%s2105 + $0x4] sm:$0x1]
      %2512 = vset.pattern.permute.xlu0 0
      %2513 = vperm.xlu0 %2512, %v2498
      %v2514 = vpop.permute.xlu0 %2513
      %2517 = vset.pattern.permute.xlu0 0
      %2518 = vperm.xlu0 %2517, %v2499
      %v2519 = vpop.permute.xlu0 %2518
      %2522 = vset.pattern.permute.xlu0 0
      %2523 = vperm.xlu0 %2522, %v2500
      %v2524 = vpop.permute.xlu0 %2523
      %2527 = vset.pattern.permute.xlu0 0
      %2528 = vperm.xlu0 %2527, %v2501
      %v2529 = vpop.permute.xlu0 %2528
      %2532 = vset.pattern.permute.xlu0 0
      %2533 = vperm.xlu0 %2532, %v2502
      %v2534 = vpop.permute.xlu0 %2533
      %2537 = vset.pattern.permute.xlu0 0
      %2538 = vperm.xlu0 %2537, %v2503
      %v2539 = vpop.permute.xlu0 %2538
      %2542 = vset.pattern.permute.xlu0 0
      %2543 = vperm.xlu0 %2542, %v2504
      %v2544 = vpop.permute.xlu0 %2543
      %2547 = vset.pattern.permute.xlu0 0
      %2548 = vperm.xlu0 %2547, %v2505
      %v2549 = vpop.permute.xlu0 %2548
      %2552 = vset.pattern.permute.xlu0 0
      %2553 = vperm.xlu0 %2552, %v2506
      %v2554 = vpop.permute.xlu0 %2553
      %2557 = vset.pattern.permute.xlu0 0
      %2558 = vperm.xlu0 %2557, %v2507
      %v2559 = vpop.permute.xlu0 %2558
      %2562 = vset.pattern.permute.xlu0 0
      %2563 = vperm.xlu0 %2562, %v2508
      %v2564 = vpop.permute.xlu0 %2563
      %2567 = vset.pattern.permute.xlu0 0
      %2568 = vperm.xlu0 %2567, %v2509
      %v2569 = vpop.permute.xlu0 %2568
      %v2571 = vlaneseq
      %v2572 = vshrl.u32 %v2571, 7
      %v2573 = vsub.s32 0, %v2572
      %v2574 = vrot.slane %v2510, %v2573
      %v2575 = vmul.f32 %v2514, %v2574
      %v2576 = vmul.f32 %v2519, %v2574
      %v2577 = vmul.f32 %v2524, %v2574
      %v2578 = vmul.f32 %v2529, %v2574
      %v2579 = vmul.f32 %v2534, %v2574
      %v2580 = vmul.f32 %v2539, %v2574
      %v2581 = vmul.f32 %v2544, %v2574
      %v2582 = vmul.f32 %v2549, %v2574
      %v2583 = vmul.f32 %v2554, %v2574
      %v2584 = vmul.f32 %v2559, %v2574
      %v2585 = vmul.f32 %v2564, %v2574
      %v2586 = vmul.f32 %v2569, %v2574
      %v2587 = vadd.f32 %v2486, %v2575
      %v2588 = vadd.f32 %v2487, %v2576
      %v2589 = vadd.f32 %v2488, %v2577
      %v2590 = vadd.f32 %v2489, %v2578
      %v2591 = vadd.f32 %v2490, %v2579
      %v2592 = vadd.f32 %v2491, %v2580
      %v2593 = vadd.f32 %v2492, %v2581
      %v2594 = vadd.f32 %v2493, %v2582
      %v2595 = vadd.f32 %v2494, %v2583
      %v2596 = vadd.f32 %v2495, %v2584
      %v2597 = vadd.f32 %v2496, %v2585
      %v2598 = vadd.f32 %v2497, %v2586
      %v2599 = vmax.f32 %v2587, %v2590
      %v2600 = vmax.f32 %v2588, %v2591
      %v2601 = vmax.f32 %v2589, %v2592
      %v2602 = vmax.f32 %v2593, %v2596
      %v2603 = vmax.f32 %v2594, %v2597
      %v2604 = vmax.f32 %v2595, %v2598
      %2605 = vst [vmem:[#allocation5] sm:$0xff] %v2599
      %2606 = vst [vmem:[#allocation5 + $0x8] sm:$0xff] %v2600
      %2607 = vst [vmem:[#allocation5 + $0x10] sm:$0xff] %v2601
      %2608 = vst [vmem:[#allocation5 + $0x18] sm:$0xff] %v2602
      %2609 = vst [vmem:[#allocation5 + $0x20] sm:$0xff] %v2603
      %2610 = vst [vmem:[#allocation5 + $0x28] sm:$0xff] %v2604
      %v2611 = vld [vmem:[#allocation5] ss:$2 sm:$0xff]
      %s2612 = scalar_lea.vmem [#allocation5], 16
      %v2613 = vld [vmem:[%s2612] ss:$2 sm:$0xf]
      %s2614 = scalar_lea.vmem [#allocation5], 24
      %v2615 = vld [vmem:[%s2614] ss:$2 sm:$0xff]
      %s2616 = scalar_lea.vmem [#allocation5], 40
      %v2617 = vld [vmem:[%s2616] ss:$2 sm:$0xf]
      %s2618 = scalar_lea.vmem [#allocation5], 1
      %v2619 = vld [vmem:[%s2618] ss:$2 sm:$0xff]
      %s2620 = scalar_lea.vmem [#allocation5], 17
      %v2621 = vld [vmem:[%s2620] ss:$2 sm:$0xf]
      %s2622 = scalar_lea.vmem [#allocation5], 25
      %v2623 = vld [vmem:[%s2622] ss:$2 sm:$0xff]
      %s2624 = scalar_lea.vmem [#allocation5], 41
      %v2625 = vld [vmem:[%s2624] ss:$2 sm:$0xf]
      %v2626 = vmax.f32 %v2611, %v2619
      %v2627 = vmax.f32 %v2613, %v2621
      %v2628 = vmax.f32 %v2615, %v2623
      %v2629 = vmax.f32 %v2617, %v2625
      %v2631 = vlaneseq
      %v2632 = vshrl.u32 %v2631, 7
      %v2633 = vsub.s32 0, %v2632
      %v2634 = vrot.slane %v48, %v2633
      %v2636 = vadd.f32 %v2626, %v2634
      %v2637 = vadd.f32 %v2627, %v2634
      %v2638 = vadd.f32 %v2628, %v2634
      %v2639 = vadd.f32 %v2629, %v2634
      %v2640 = vmax.f32 %v2636, 0.0
      %v2641 = vmax.f32 %v2637, 0.0
      %v2642 = vmax.f32 %v2638, 0.0
      %v2643 = vmax.f32 %v2639, 0.0
      %s2644 = smul.u32 %s50, 16
      %s2645 = scalar_lea.vmem [#allocation2], %s2644
      %2646 = vst [vmem:[%s2645] sm:$0xff] %v2640
      %2647 = vst [vmem:[%s2645 + $0x8] sm:$0xf] %v2641
      %2648 = vst [vmem:[%s2645 + $0xc0] sm:$0xff] %v2642
      %2649 = vst [vmem:[%s2645 + $0xc8] sm:$0xf] %v2643
    $region46: #{netz_forward.1} parent=1 // loop_footer
      %s54 = sadd.s32 1, %s50
    $region47: #{netz_forward.1} parent=1 // loop_footer_branch
      %49 = sbr.rel target = $region43
    $region48: #{netz_forward.1} parent=1 // loop_exit
      _
    %v2650 = vld [vmem:[#allocation2] sm:$0xff]
    %v2651 = vld [vmem:[#allocation2 + $0x10] sm:$0xff]
    %v2652 = vld [vmem:[#allocation2 + $0x20] sm:$0xff]
    %v2653 = vld [vmem:[#allocation2 + $0x30] sm:$0xff]
    %v2654 = vld [vmem:[#allocation2 + $0x40] sm:$0xff]
    %v2655 = vld [vmem:[#allocation2 + $0x50] sm:$0xff]
    %v2656 = vld [vmem:[#allocation2 + $0x60] sm:$0xff]
    %v2657 = vld [vmem:[#allocation2 + $0x70] sm:$0xff]
    %v2658 = vld [vmem:[#allocation2 + $0xc0] sm:$0xff]
    %v2659 = vld [vmem:[#allocation2 + $0xd0] sm:$0xff]
    %v2660 = vld [vmem:[#allocation2 + $0xe0] sm:$0xff]
    %v2661 = vld [vmem:[#allocation2 + $0xf0] sm:$0xff]
    %v2662 = vld [vmem:[#allocation2 + $0x100] sm:$0xff]
    %v2663 = vld [vmem:[#allocation2 + $0x110] sm:$0xff]
    %v2664 = vld [vmem:[#allocation2 + $0x120] sm:$0xff]
    %v2665 = vld [vmem:[#allocation2 + $0x130] sm:$0xff]
    %v2666 = vpack.c.bf16 %v2651, %v2650
    %v2667 = vpack.c.bf16 %v2653, %v2652
    %v2668 = vpack.c.bf16 %v2655, %v2654
    %v2669 = vpack.c.bf16 %v2657, %v2656
    %v2670 = vpack.c.bf16 %v2659, %v2658
    %v2671 = vpack.c.bf16 %v2661, %v2660
    %v2672 = vpack.c.bf16 %v2663, %v2662
    %v2673 = vpack.c.bf16 %v2665, %v2664
    %v2674 = vld [vmem:[%s3] sm:$0xf]
    %v2675 = vld [vmem:[%s3 + $0x4] sm:$0xf]
    %v2676 = vld [vmem:[%s3 + $0x8] sm:$0xf]
    %v2677 = vld [vmem:[%s3 + $0xc] sm:$0xf]
    %v2678 = vld [vmem:[%s3 + $0x10] sm:$0xf]
    %v2679 = vld [vmem:[%s3 + $0x14] sm:$0xf]
    %v2680 = vld [vmem:[%s3 + $0x18] sm:$0xf]
    %v2681 = vld [vmem:[%s3 + $0x1c] sm:$0xf]
    %v2682 = vld [vmem:[%s3 + $0x20] sm:$0xf]
    %v2683 = vld [vmem:[%s3 + $0x24] sm:$0xf]
    %v2684 = vld [vmem:[%s3 + $0x28] sm:$0xf]
    %v2685 = vld [vmem:[%s3 + $0x2c] sm:$0xf]
    %v2686 = vld [vmem:[%s3 + $0x30] sm:$0xf]
    %v2687 = vld [vmem:[%s3 + $0x34] sm:$0xf]
    %v2688 = vld [vmem:[%s3 + $0x38] sm:$0xf]
    %v2689 = vld [vmem:[%s3 + $0x3c] sm:$0xf]
    %v2690 = vld [vmem:[#allocation2 + $0x1] sm:$0xff]
    %v2691 = vld [vmem:[#allocation2 + $0x11] sm:$0xff]
    %v2692 = vld [vmem:[#allocation2 + $0x21] sm:$0xff]
    %v2693 = vld [vmem:[#allocation2 + $0x31] sm:$0xff]
    %v2694 = vld [vmem:[#allocation2 + $0x41] sm:$0xff]
    %v2695 = vld [vmem:[#allocation2 + $0x51] sm:$0xff]
    %v2696 = vld [vmem:[#allocation2 + $0x61] sm:$0xff]
    %v2697 = vld [vmem:[#allocation2 + $0x71] sm:$0xff]
    %v2698 = vld [vmem:[#allocation2 + $0xc1] sm:$0xff]
    %v2699 = vld [vmem:[#allocation2 + $0xd1] sm:$0xff]
    %v2700 = vld [vmem:[#allocation2 + $0xe1] sm:$0xff]
    %v2701 = vld [vmem:[#allocation2 + $0xf1] sm:$0xff]
    %v2702 = vld [vmem:[#allocation2 + $0x101] sm:$0xff]
    %v2703 = vld [vmem:[#allocation2 + $0x111] sm:$0xff]
    %v2704 = vld [vmem:[#allocation2 + $0x121] sm:$0xff]
    %v2705 = vld [vmem:[#allocation2 + $0x131] sm:$0xff]
    %v2706 = vpack.c.bf16 %v2691, %v2690
    %v2707 = vpack.c.bf16 %v2693, %v2692
    %v2708 = vpack.c.bf16 %v2695, %v2694
    %v2709 = vpack.c.bf16 %v2697, %v2696
    %v2710 = vpack.c.bf16 %v2699, %v2698
    %v2711 = vpack.c.bf16 %v2701, %v2700
    %v2712 = vpack.c.bf16 %v2703, %v2702
    %v2713 = vpack.c.bf16 %v2705, %v2704
    %s2714 = scalar_lea.vmem %s3, 64
    %v2715 = vld [vmem:[%s2714] sm:$0xf]
    %v2716 = vld [vmem:[%s2714 + $0x4] sm:$0xf]
    %v2717 = vld [vmem:[%s2714 + $0x8] sm:$0xf]
    %v2718 = vld [vmem:[%s2714 + $0xc] sm:$0xf]
    %v2719 = vld [vmem:[%s2714 + $0x10] sm:$0xf]
    %v2720 = vld [vmem:[%s2714 + $0x14] sm:$0xf]
    %v2721 = vld [vmem:[%s2714 + $0x18] sm:$0xf]
    %v2722 = vld [vmem:[%s2714 + $0x1c] sm:$0xf]
    %v2723 = vld [vmem:[%s2714 + $0x20] sm:$0xf]
    %v2724 = vld [vmem:[%s2714 + $0x24] sm:$0xf]
    %v2725 = vld [vmem:[%s2714 + $0x28] sm:$0xf]
    %v2726 = vld [vmem:[%s2714 + $0x2c] sm:$0xf]
    %v2727 = vld [vmem:[%s2714 + $0x30] sm:$0xf]
    %v2728 = vld [vmem:[%s2714 + $0x34] sm:$0xf]
    %v2729 = vld [vmem:[%s2714 + $0x38] sm:$0xf]
    %v2730 = vld [vmem:[%s2714 + $0x3c] sm:$0xf]
    %v2747 = vunpack.c.l.b16 %v2715
    %v2748 = vunpack.c.l.b16 %v2716
    %v2749 = vunpack.c.l.b16 %v2717
    %v2750 = vunpack.c.l.b16 %v2718
    %v2751 = vunpack.c.l.b16 %v2719
    %v2752 = vunpack.c.l.b16 %v2720
    %v2753 = vunpack.c.l.b16 %v2721
    %v2754 = vunpack.c.l.b16 %v2722
    %v2755 = vunpack.c.l.b16 %v2723
    %v2756 = vunpack.c.l.b16 %v2724
    %v2757 = vunpack.c.l.b16 %v2725
    %v2758 = vunpack.c.l.b16 %v2726
    %v2759 = vunpack.c.l.b16 %v2727
    %v2760 = vunpack.c.l.b16 %v2728
    %v2761 = vunpack.c.l.b16 %v2729
    %v2762 = vunpack.c.l.b16 %v2730
    %v2763 = vpack.c.b16 %v2748, %v2747
    %v2764 = vpack.c.b16 %v2750, %v2749
    %v2765 = vpack.c.b16 %v2752, %v2751
    %v2766 = vpack.c.b16 %v2754, %v2753
    %v2767 = vpack.c.b16 %v2756, %v2755
    %v2768 = vpack.c.b16 %v2758, %v2757
    %v2769 = vpack.c.b16 %v2760, %v2759
    %v2770 = vpack.c.b16 %v2762, %v2761
    %2779 = vmatprep.subr.bf16.mxu0 0
    %2780 = vmatpush1.bf16.msra.mxu0 %v2763
    %2781 = vmatprep.subr.bf16.mxu0 0
    %2782 = vmatpush1.bf16.msra.mxu0 %v2764
    %2783 = vmatprep.subr.bf16.mxu0 0
    %2784 = vmatpush1.bf16.msra.mxu0 %v2765
    %2785 = vmatprep.subr.bf16.mxu0 0
    %2786 = vmatpush1.bf16.msra.mxu0 %v2766
    %2787 = vmatprep.subr.bf16.mxu0 0
    %2788 = vmatpush1.bf16.msra.mxu0 %v2767
    %2789 = vmatprep.subr.bf16.mxu0 0
    %2790 = vmatpush1.bf16.msra.mxu0 %v2768
    %2791 = vmatprep.subr.bf16.mxu0 0
    %2792 = vmatpush1.bf16.msra.mxu0 %v2769
    %2793 = vmatprep.subr.bf16.mxu0 0
    %2794 = vmatpush1.bf16.msra.mxu0 %v2770
    %2795 = vmatprep.subr.bf16.mxu0 0
    %2796 = vmatpush1.bf16.msra.mxu0 0
    %2797 = vmatprep.subr.bf16.mxu0 0
    %2798 = vmatpush1.bf16.msra.mxu0 0
    %2799 = vmatprep.subr.bf16.mxu0 0
    %2800 = vmatpush1.bf16.msra.mxu0 0
    %2801 = vmatprep.subr.bf16.mxu0 0
    %2802 = vmatpush1.bf16.msra.mxu0 0
    %2803 = vmatprep.subr.bf16.mxu0 0
    %2804 = vmatpush1.bf16.msra.mxu0 0
    %2805 = vmatprep.subr.bf16.mxu0 0
    %2806 = vmatpush1.bf16.msra.mxu0 0
    %2807 = vmatprep.subr.bf16.mxu0 0
    %2808 = vmatpush1.bf16.msra.mxu0 0
    %2809 = vmatprep.subr.bf16.mxu0 0
    %2810 = vmatpush1.bf16.msra.mxu0 0
    %2811 = vmatprep.mubr.bf16.mxu0 0
    %2812 = vmatmul.mubr.bf16.gmra.mrb[0].mxu0 %v2706
    %v2813 = vpop.f32.mrb[0].mxu0
    %v2814 = vadd.f32 0.0, %v2813
    %v2815 = vpop.f32.mrb[0].mxu0
    %v2816 = vpop.f32.mrb[0].mxu0
    %v2817 = vadd.f32 0.0, %v2816
    %v2818 = vpop.f32.mrb[0].mxu0
    %2819 = vmatprep.mubr.bf16.mxu0 0
    %2820 = vmatmul.mubr.bf16.gmra.mrb[0].mxu0 %v2707
    %v2821 = vpop.f32.mrb[0].mxu0
    %v2822 = vadd.f32 0.0, %v2821
    %v2823 = vpop.f32.mrb[0].mxu0
    %v2824 = vpop.f32.mrb[0].mxu0
    %v2825 = vadd.f32 0.0, %v2824
    %v2826 = vpop.f32.mrb[0].mxu0
    %2827 = vmatprep.mubr.bf16.mxu0 0
    %2828 = vmatmul.mubr.bf16.gmra.mrb[0].mxu0 %v2708
    %v2829 = vpop.f32.mrb[0].mxu0
    %v2830 = vadd.f32 0.0, %v2829
    %v2831 = vpop.f32.mrb[0].mxu0
    %v2832 = vpop.f32.mrb[0].mxu0
    %v2833 = vadd.f32 0.0, %v2832
    %v2834 = vpop.f32.mrb[0].mxu0
    %2835 = vmatprep.mubr.bf16.mxu0 0
    %2836 = vmatmul.mubr.bf16.gmra.mrb[0].mxu0 %v2709
    %v2837 = vpop.f32.mrb[0].mxu0
    %v2838 = vadd.f32 0.0, %v2837
    %v2839 = vpop.f32.mrb[0].mxu0
    %v2840 = vpop.f32.mrb[0].mxu0
    %v2841 = vadd.f32 0.0, %v2840
    %v2842 = vpop.f32.mrb[0].mxu0
    %2843 = vmatprep.mubr.bf16.mxu0 0
    %2844 = vmatmul.mubr.bf16.gmra.mrb[0].mxu0 %v2710
    %v2845 = vpop.f32.mrb[0].mxu0
    %v2846 = vadd.f32 0.0, %v2845
    %v2847 = vpop.f32.mrb[0].mxu0
    %v2848 = vpop.f32.mrb[0].mxu0
    %v2849 = vadd.f32 0.0, %v2848
    %v2850 = vpop.f32.mrb[0].mxu0
    %2851 = vmatprep.mubr.bf16.mxu0 0
    %2852 = vmatmul.mubr.bf16.gmra.mrb[0].mxu0 %v2711
    %v2853 = vpop.f32.mrb[0].mxu0
    %v2854 = vadd.f32 0.0, %v2853
    %v2855 = vpop.f32.mrb[0].mxu0
    %v2856 = vpop.f32.mrb[0].mxu0
    %v2857 = vadd.f32 0.0, %v2856
    %v2858 = vpop.f32.mrb[0].mxu0
    %2859 = vmatprep.mubr.bf16.mxu0 0
    %2860 = vmatmul.mubr.bf16.gmra.mrb[0].mxu0 %v2712
    %v2861 = vpop.f32.mrb[0].mxu0
    %v2862 = vadd.f32 0.0, %v2861
    %v2863 = vpop.f32.mrb[0].mxu0
    %v2864 = vpop.f32.mrb[0].mxu0
    %v2865 = vadd.f32 0.0, %v2864
    %v2866 = vpop.f32.mrb[0].mxu0
    %2867 = vmatprep.mubr.bf16.mxu0 0
    %2868 = vmatmul.mubr.bf16.gmra.mrb[0].mxu0 %v2713
    %v2869 = vpop.f32.mrb[0].mxu0
    %v2870 = vadd.f32 0.0, %v2869
    %v2871 = vpop.f32.mrb[0].mxu0
    %v2872 = vpop.f32.mrb[0].mxu0
    %v2873 = vadd.f32 0.0, %v2872
    %v2874 = vpop.f32.mrb[0].mxu0
    %2875 = vdwg.mxu0
    %v2892 = vunpack.c.l.b16 %v2674
    %v2893 = vunpack.c.l.b16 %v2675
    %v2894 = vunpack.c.l.b16 %v2676
    %v2895 = vunpack.c.l.b16 %v2677
    %v2896 = vunpack.c.l.b16 %v2678
    %v2897 = vunpack.c.l.b16 %v2679
    %v2898 = vunpack.c.l.b16 %v2680
    %v2899 = vunpack.c.l.b16 %v2681
    %v2900 = vunpack.c.l.b16 %v2682
    %v2901 = vunpack.c.l.b16 %v2683
    %v2902 = vunpack.c.l.b16 %v2684
    %v2903 = vunpack.c.l.b16 %v2685
    %v2904 = vunpack.c.l.b16 %v2686
    %v2905 = vunpack.c.l.b16 %v2687
    %v2906 = vunpack.c.l.b16 %v2688
    %v2907 = vunpack.c.l.b16 %v2689
    %v2908 = vpack.c.b16 %v2893, %v2892
    %v2909 = vpack.c.b16 %v2895, %v2894
    %v2910 = vpack.c.b16 %v2897, %v2896
    %v2911 = vpack.c.b16 %v2899, %v2898
    %v2912 = vpack.c.b16 %v2901, %v2900
    %v2913 = vpack.c.b16 %v2903, %v2902
    %v2914 = vpack.c.b16 %v2905, %v2904
    %v2915 = vpack.c.b16 %v2907, %v2906
    %2924 = vmatprep.subr.bf16.mxu0 0
    %2925 = vmatpush1.bf16.msra.mxu0 %v2908
    %2926 = vmatprep.subr.bf16.mxu0 0
    %2927 = vmatpush1.bf16.msra.mxu0 %v2909
    %2928 = vmatprep.subr.bf16.mxu0 0
    %2929 = vmatpush1.bf16.msra.mxu0 %v2910
    %2930 = vmatprep.subr.bf16.mxu0 0
    %2931 = vmatpush1.bf16.msra.mxu0 %v2911
    %2932 = vmatprep.subr.bf16.mxu0 0
    %2933 = vmatpush1.bf16.msra.mxu0 %v2912
    %2934 = vmatprep.subr.bf16.mxu0 0
    %2935 = vmatpush1.bf16.msra.mxu0 %v2913
    %2936 = vmatprep.subr.bf16.mxu0 0
    %2937 = vmatpush1.bf16.msra.mxu0 %v2914
    %2938 = vmatprep.subr.bf16.mxu0 0
    %2939 = vmatpush1.bf16.msra.mxu0 %v2915
    %2940 = vmatprep.subr.bf16.mxu0 0
    %2941 = vmatpush1.bf16.msra.mxu0 0
    %2942 = vmatprep.subr.bf16.mxu0 0
    %2943 = vmatpush1.bf16.msra.mxu0 0
    %2944 = vmatprep.subr.bf16.mxu0 0
    %2945 = vmatpush1.bf16.msra.mxu0 0
    %2946 = vmatprep.subr.bf16.mxu0 0
    %2947 = vmatpush1.bf16.msra.mxu0 0
    %2948 = vmatprep.subr.bf16.mxu0 0
    %2949 = vmatpush1.bf16.msra.mxu0 0
    %2950 = vmatprep.subr.bf16.mxu0 0
    %2951 = vmatpush1.bf16.msra.mxu0 0
    %2952 = vmatprep.subr.bf16.mxu0 0
    %2953 = vmatpush1.bf16.msra.mxu0 0
    %2954 = vmatprep.subr.bf16.mxu0 0
    %2955 = vmatpush1.bf16.msra.mxu0 0
    %2956 = vmatprep.mubr.bf16.mxu0 0
    %2957 = vmatmul.mubr.bf16.gmra.mrb[0].mxu0 %v2666
    %v2958 = vpop.f32.mrb[0].mxu0
    %v2959 = vadd.f32 %v2814, %v2958
    %v2960 = vpop.f32.mrb[0].mxu0
    %v2961 = vpop.f32.mrb[0].mxu0
    %v2962 = vadd.f32 %v2817, %v2961
    %v2963 = vpop.f32.mrb[0].mxu0
    %2964 = vmatprep.mubr.bf16.mxu0 0
    %2965 = vmatmul.mubr.bf16.gmra.mrb[0].mxu0 %v2667
    %v2966 = vpop.f32.mrb[0].mxu0
    %v2967 = vadd.f32 %v2822, %v2966
    %v2968 = vpop.f32.mrb[0].mxu0
    %v2969 = vpop.f32.mrb[0].mxu0
    %v2970 = vadd.f32 %v2825, %v2969
    %v2971 = vpop.f32.mrb[0].mxu0
    %2972 = vmatprep.mubr.bf16.mxu0 0
    %2973 = vmatmul.mubr.bf16.gmra.mrb[0].mxu0 %v2668
    %v2974 = vpop.f32.mrb[0].mxu0
    %v2975 = vadd.f32 %v2830, %v2974
    %v2976 = vpop.f32.mrb[0].mxu0
    %v2977 = vpop.f32.mrb[0].mxu0
    %v2978 = vadd.f32 %v2833, %v2977
    %v2979 = vpop.f32.mrb[0].mxu0
    %2980 = vmatprep.mubr.bf16.mxu0 0
    %2981 = vmatmul.mubr.bf16.gmra.mrb[0].mxu0 %v2669
    %v2982 = vpop.f32.mrb[0].mxu0
    %v2983 = vadd.f32 %v2838, %v2982
    %v2984 = vpop.f32.mrb[0].mxu0
    %v2985 = vpop.f32.mrb[0].mxu0
    %v2986 = vadd.f32 %v2841, %v2985
    %v2987 = vpop.f32.mrb[0].mxu0
    %2988 = vmatprep.mubr.bf16.mxu0 0
    %2989 = vmatmul.mubr.bf16.gmra.mrb[0].mxu0 %v2670
    %v2990 = vpop.f32.mrb[0].mxu0
    %v2991 = vadd.f32 %v2846, %v2990
    %v2992 = vpop.f32.mrb[0].mxu0
    %v2993 = vpop.f32.mrb[0].mxu0
    %v2994 = vadd.f32 %v2849, %v2993
    %v2995 = vpop.f32.mrb[0].mxu0
    %2996 = vmatprep.mubr.bf16.mxu0 0
    %2997 = vmatmul.mubr.bf16.gmra.mrb[0].mxu0 %v2671
    %v2998 = vpop.f32.mrb[0].mxu0
    %v2999 = vadd.f32 %v2854, %v2998
    %v3000 = vpop.f32.mrb[0].mxu0
    %v3001 = vpop.f32.mrb[0].mxu0
    %v3002 = vadd.f32 %v2857, %v3001
    %v3003 = vpop.f32.mrb[0].mxu0
    %3004 = vmatprep.mubr.bf16.mxu0 0
    %3005 = vmatmul.mubr.bf16.gmra.mrb[0].mxu0 %v2672
    %v3006 = vpop.f32.mrb[0].mxu0
    %v3007 = vadd.f32 %v2862, %v3006
    %v3008 = vpop.f32.mrb[0].mxu0
    %v3009 = vpop.f32.mrb[0].mxu0
    %v3010 = vadd.f32 %v2865, %v3009
    %v3011 = vpop.f32.mrb[0].mxu0
    %3012 = vmatprep.mubr.bf16.mxu0 0
    %3013 = vmatmul.mubr.bf16.gmra.mrb[0].mxu0 %v2673
    %v3014 = vpop.f32.mrb[0].mxu0
    %v3015 = vadd.f32 %v2870, %v3014
    %v3016 = vpop.f32.mrb[0].mxu0
    %v3017 = vpop.f32.mrb[0].mxu0
    %v3018 = vadd.f32 %v2873, %v3017
    %v3019 = vpop.f32.mrb[0].mxu0
    %3020 = vdwg.mxu0
    %v3021 = vld [vmem:[#allocation2 + $0x2] sm:$0xff]
    %v3022 = vld [vmem:[#allocation2 + $0x12] sm:$0xff]
    %v3023 = vld [vmem:[#allocation2 + $0x22] sm:$0xff]
    %v3024 = vld [vmem:[#allocation2 + $0x32] sm:$0xff]
    %v3025 = vld [vmem:[#allocation2 + $0x42] sm:$0xff]
    %v3026 = vld [vmem:[#allocation2 + $0x52] sm:$0xff]
    %v3027 = vld [vmem:[#allocation2 + $0x62] sm:$0xff]
    %v3028 = vld [vmem:[#allocation2 + $0x72] sm:$0xff]
    %v3029 = vld [vmem:[#allocation2 + $0xc2] sm:$0xff]
    %v3030 = vld [vmem:[#allocation2 + $0xd2] sm:$0xff]
    %v3031 = vld [vmem:[#allocation2 + $0xe2] sm:$0xff]
    %v3032 = vld [vmem:[#allocation2 + $0xf2] sm:$0xff]
    %v3033 = vld [vmem:[#allocation2 + $0x102] sm:$0xff]
    %v3034 = vld [vmem:[#allocation2 + $0x112] sm:$0xff]
    %v3035 = vld [vmem:[#allocation2 + $0x122] sm:$0xff]
    %v3036 = vld [vmem:[#allocation2 + $0x132] sm:$0xff]
    %v3037 = vpack.c.bf16 %v3022, %v3021
    %v3038 = vpack.c.bf16 %v3024, %v3023
    %v3039 = vpack.c.bf16 %v3026, %v3025
    %v3040 = vpack.c.bf16 %v3028, %v3027
    %v3041 = vpack.c.bf16 %v3030, %v3029
    %v3042 = vpack.c.bf16 %v3032, %v3031
    %v3043 = vpack.c.bf16 %v3034, %v3033
    %v3044 = vpack.c.bf16 %v3036, %v3035
    %s3045 = scalar_lea.vmem %s3, 128
    %v3046 = vld [vmem:[%s3045] sm:$0xf]
    %v3047 = vld [vmem:[%s3045 + $0x4] sm:$0xf]
    %v3048 = vld [vmem:[%s3045 + $0x8] sm:$0xf]
    %v3049 = vld [vmem:[%s3045 + $0xc] sm:$0xf]
    %v3050 = vld [vmem:[%s3045 + $0x10] sm:$0xf]
    %v3051 = vld [vmem:[%s3045 + $0x14] sm:$0xf]
    %v3052 = vld [vmem:[%s3045 + $0x18] sm:$0xf]
    %v3053 = vld [vmem:[%s3045 + $0x1c] sm:$0xf]
    %v3054 = vld [vmem:[%s3045 + $0x20] sm:$0xf]
    %v3055 = vld [vmem:[%s3045 + $0x24] sm:$0xf]
    %v3056 = vld [vmem:[%s3045 + $0x28] sm:$0xf]
    %v3057 = vld [vmem:[%s3045 + $0x2c] sm:$0xf]
    %v3058 = vld [vmem:[%s3045 + $0x30] sm:$0xf]
    %v3059 = vld [vmem:[%s3045 + $0x34] sm:$0xf]
    %v3060 = vld [vmem:[%s3045 + $0x38] sm:$0xf]
    %v3061 = vld [vmem:[%s3045 + $0x3c] sm:$0xf]
    %v3078 = vunpack.c.l.b16 %v3046
    %v3079 = vunpack.c.l.b16 %v3047
    %v3080 = vunpack.c.l.b16 %v3048
    %v3081 = vunpack.c.l.b16 %v3049
    %v3082 = vunpack.c.l.b16 %v3050
    %v3083 = vunpack.c.l.b16 %v3051
    %v3084 = vunpack.c.l.b16 %v3052
    %v3085 = vunpack.c.l.b16 %v3053
    %v3086 = vunpack.c.l.b16 %v3054
    %v3087 = vunpack.c.l.b16 %v3055
    %v3088 = vunpack.c.l.b16 %v3056
    %v3089 = vunpack.c.l.b16 %v3057
    %v3090 = vunpack.c.l.b16 %v3058
    %v3091 = vunpack.c.l.b16 %v3059
    %v3092 = vunpack.c.l.b16 %v3060
    %v3093 = vunpack.c.l.b16 %v3061
    %v3094 = vpack.c.b16 %v3079, %v3078
    %v3095 = vpack.c.b16 %v3081, %v3080
    %v3096 = vpack.c.b16 %v3083, %v3082
    %v3097 = vpack.c.b16 %v3085, %v3084
    %v3098 = vpack.c.b16 %v3087, %v3086
    %v3099 = vpack.c.b16 %v3089, %v3088
    %v3100 = vpack.c.b16 %v3091, %v3090
    %v3101 = vpack.c.b16 %v3093, %v3092
    %3110 = vmatprep.subr.bf16.mxu0 0
    %3111 = vmatpush1.bf16.msra.mxu0 %v3094
    %3112 = vmatprep.subr.bf16.mxu0 0
    %3113 = vmatpush1.bf16.msra.mxu0 %v3095
    %3114 = vmatprep.subr.bf16.mxu0 0
    %3115 = vmatpush1.bf16.msra.mxu0 %v3096
    %3116 = vmatprep.subr.bf16.mxu0 0
    %3117 = vmatpush1.bf16.msra.mxu0 %v3097
    %3118 = vmatprep.subr.bf16.mxu0 0
    %3119 = vmatpush1.bf16.msra.mxu0 %v3098
    %3120 = vmatprep.subr.bf16.mxu0 0
    %3121 = vmatpush1.bf16.msra.mxu0 %v3099
    %3122 = vmatprep.subr.bf16.mxu0 0
    %3123 = vmatpush1.bf16.msra.mxu0 %v3100
    %3124 = vmatprep.subr.bf16.mxu0 0
    %3125 = vmatpush1.bf16.msra.mxu0 %v3101
    %3126 = vmatprep.subr.bf16.mxu0 0
    %3127 = vmatpush1.bf16.msra.mxu0 0
    %3128 = vmatprep.subr.bf16.mxu0 0
    %3129 = vmatpush1.bf16.msra.mxu0 0
    %3130 = vmatprep.subr.bf16.mxu0 0
    %3131 = vmatpush1.bf16.msra.mxu0 0
    %3132 = vmatprep.subr.bf16.mxu0 0
    %3133 = vmatpush1.bf16.msra.mxu0 0
    %3134 = vmatprep.subr.bf16.mxu0 0
    %3135 = vmatpush1.bf16.msra.mxu0 0
    %3136 = vmatprep.subr.bf16.mxu0 0
    %3137 = vmatpush1.bf16.msra.mxu0 0
    %3138 = vmatprep.subr.bf16.mxu0 0
    %3139 = vmatpush1.bf16.msra.mxu0 0
    %3140 = vmatprep.subr.bf16.mxu0 0
    %3141 = vmatpush1.bf16.msra.mxu0 0
    %3142 = vmatprep.mubr.bf16.mxu0 0
    %3143 = vmatmul.mubr.bf16.gmra.mrb[0].mxu0 %v3037
    %v3144 = vpop.f32.mrb[0].mxu0
    %v3145 = vadd.f32 0.0, %v3144
    %v3146 = vpop.f32.mrb[0].mxu0
    %v3147 = vpop.f32.mrb[0].mxu0
    %v3148 = vadd.f32 0.0, %v3147
    %v3149 = vpop.f32.mrb[0].mxu0
    %3150 = vmatprep.mubr.bf16.mxu0 0
    %3151 = vmatmul.mubr.bf16.gmra.mrb[0].mxu0 %v3038
    %v3152 = vpop.f32.mrb[0].mxu0
    %v3153 = vadd.f32 0.0, %v3152
    %v3154 = vpop.f32.mrb[0].mxu0
    %v3155 = vpop.f32.mrb[0].mxu0
    %v3156 = vadd.f32 0.0, %v3155
    %v3157 = vpop.f32.mrb[0].mxu0
    %3158 = vmatprep.mubr.bf16.mxu0 0
    %3159 = vmatmul.mubr.bf16.gmra.mrb[0].mxu0 %v3039
    %v3160 = vpop.f32.mrb[0].mxu0
    %v3161 = vadd.f32 0.0, %v3160
    %v3162 = vpop.f32.mrb[0].mxu0
    %v3163 = vpop.f32.mrb[0].mxu0
    %v3164 = vadd.f32 0.0, %v3163
    %v3165 = vpop.f32.mrb[0].mxu0
    %3166 = vmatprep.mubr.bf16.mxu0 0
    %3167 = vmatmul.mubr.bf16.gmra.mrb[0].mxu0 %v3040
    %v3168 = vpop.f32.mrb[0].mxu0
    %v3169 = vadd.f32 0.0, %v3168
    %v3170 = vpop.f32.mrb[0].mxu0
    %v3171 = vpop.f32.mrb[0].mxu0
    %v3172 = vadd.f32 0.0, %v3171
    %v3173 = vpop.f32.mrb[0].mxu0
    %3174 = vmatprep.mubr.bf16.mxu0 0
    %3175 = vmatmul.mubr.bf16.gmra.mrb[0].mxu0 %v3041
    %v3176 = vpop.f32.mrb[0].mxu0
    %v3177 = vadd.f32 0.0, %v3176
    %v3178 = vpop.f32.mrb[0].mxu0
    %v3179 = vpop.f32.mrb[0].mxu0
    %v3180 = vadd.f32 0.0, %v3179
    %v3181 = vpop.f32.mrb[0].mxu0
    %3182 = vmatprep.mubr.bf16.mxu0 0
    %3183 = vmatmul.mubr.bf16.gmra.mrb[0].mxu0 %v3042
    %v3184 = vpop.f32.mrb[0].mxu0
    %v3185 = vadd.f32 0.0, %v3184
    %v3186 = vpop.f32.mrb[0].mxu0
    %v3187 = vpop.f32.mrb[0].mxu0
    %v3188 = vadd.f32 0.0, %v3187
    %v3189 = vpop.f32.mrb[0].mxu0
    %3190 = vmatprep.mubr.bf16.mxu0 0
    %3191 = vmatmul.mubr.bf16.gmra.mrb[0].mxu0 %v3043
    %v3192 = vpop.f32.mrb[0].mxu0
    %v3193 = vadd.f32 0.0, %v3192
    %v3194 = vpop.f32.mrb[0].mxu0
    %v3195 = vpop.f32.mrb[0].mxu0
    %v3196 = vadd.f32 0.0, %v3195
    %v3197 = vpop.f32.mrb[0].mxu0
    %3198 = vmatprep.mubr.bf16.mxu0 0
    %3199 = vmatmul.mubr.bf16.gmra.mrb[0].mxu0 %v3044
    %v3200 = vpop.f32.mrb[0].mxu0
    %v3201 = vadd.f32 0.0, %v3200
    %v3202 = vpop.f32.mrb[0].mxu0
    %v3203 = vpop.f32.mrb[0].mxu0
    %v3204 = vadd.f32 0.0, %v3203
    %v3205 = vpop.f32.mrb[0].mxu0
    %3206 = vdwg.mxu0
    %v3207 = vadd.f32 %v2959, %v3145
    %v3208 = vadd.f32 %v2962, %v3148
    %v3209 = vadd.f32 %v2967, %v3153
    %v3210 = vadd.f32 %v2970, %v3156
    %v3211 = vadd.f32 %v2975, %v3161
    %v3212 = vadd.f32 %v2978, %v3164
    %v3213 = vadd.f32 %v2983, %v3169
    %v3214 = vadd.f32 %v2986, %v3172
    %v3215 = vadd.f32 %v2991, %v3177
    %v3216 = vadd.f32 %v2994, %v3180
    %v3217 = vadd.f32 %v2999, %v3185
    %v3218 = vadd.f32 %v3002, %v3188
    %v3219 = vadd.f32 %v3007, %v3193
    %v3220 = vadd.f32 %v3010, %v3196
    %v3221 = vadd.f32 %v3015, %v3201
    %v3222 = vadd.f32 %v3018, %v3204
    %v3223 = vld [vmem:[#allocation2 + $0x3] sm:$0xff]
    %v3224 = vld [vmem:[#allocation2 + $0x13] sm:$0xff]
    %v3225 = vld [vmem:[#allocation2 + $0x23] sm:$0xff]
    %v3226 = vld [vmem:[#allocation2 + $0x33] sm:$0xff]
    %v3227 = vld [vmem:[#allocation2 + $0x43] sm:$0xff]
    %v3228 = vld [vmem:[#allocation2 + $0x53] sm:$0xff]
    %v3229 = vld [vmem:[#allocation2 + $0x63] sm:$0xff]
    %v3230 = vld [vmem:[#allocation2 + $0x73] sm:$0xff]
    %v3231 = vld [vmem:[#allocation2 + $0xc3] sm:$0xff]
    %v3232 = vld [vmem:[#allocation2 + $0xd3] sm:$0xff]
    %v3233 = vld [vmem:[#allocation2 + $0xe3] sm:$0xff]
    %v3234 = vld [vmem:[#allocation2 + $0xf3] sm:$0xff]
    %v3235 = vld [vmem:[#allocation2 + $0x103] sm:$0xff]
    %v3236 = vld [vmem:[#allocation2 + $0x113] sm:$0xff]
    %v3237 = vld [vmem:[#allocation2 + $0x123] sm:$0xff]
    %v3238 = vld [vmem:[#allocation2 + $0x133] sm:$0xff]
    %v3239 = vpack.c.bf16 %v3224, %v3223
    %v3240 = vpack.c.bf16 %v3226, %v3225
    %v3241 = vpack.c.bf16 %v3228, %v3227
    %v3242 = vpack.c.bf16 %v3230, %v3229
    %v3243 = vpack.c.bf16 %v3232, %v3231
    %v3244 = vpack.c.bf16 %v3234, %v3233
    %v3245 = vpack.c.bf16 %v3236, %v3235
    %v3246 = vpack.c.bf16 %v3238, %v3237
    %s3247 = scalar_lea.vmem %s3, 192
    %v3248 = vld [vmem:[%s3247] sm:$0xf]
    %v3249 = vld [vmem:[%s3247 + $0x4] sm:$0xf]
    %v3250 = vld [vmem:[%s3247 + $0x8] sm:$0xf]
    %v3251 = vld [vmem:[%s3247 + $0xc] sm:$0xf]
    %v3252 = vld [vmem:[%s3247 + $0x10] sm:$0xf]
    %v3253 = vld [vmem:[%s3247 + $0x14] sm:$0xf]
    %v3254 = vld [vmem:[%s3247 + $0x18] sm:$0xf]
    %v3255 = vld [vmem:[%s3247 + $0x1c] sm:$0xf]
    %v3256 = vld [vmem:[%s3247 + $0x20] sm:$0xf]
    %v3257 = vld [vmem:[%s3247 + $0x24] sm:$0xf]
    %v3258 = vld [vmem:[%s3247 + $0x28] sm:$0xf]
    %v3259 = vld [vmem:[%s3247 + $0x2c] sm:$0xf]
    %v3260 = vld [vmem:[%s3247 + $0x30] sm:$0xf]
    %v3261 = vld [vmem:[%s3247 + $0x34] sm:$0xf]
    %v3262 = vld [vmem:[%s3247 + $0x38] sm:$0xf]
    %v3263 = vld [vmem:[%s3247 + $0x3c] sm:$0xf]
    %v3280 = vunpack.c.l.b16 %v3248
    %v3281 = vunpack.c.l.b16 %v3249
    %v3282 = vunpack.c.l.b16 %v3250
    %v3283 = vunpack.c.l.b16 %v3251
    %v3284 = vunpack.c.l.b16 %v3252
    %v3285 = vunpack.c.l.b16 %v3253
    %v3286 = vunpack.c.l.b16 %v3254
    %v3287 = vunpack.c.l.b16 %v3255
    %v3288 = vunpack.c.l.b16 %v3256
    %v3289 = vunpack.c.l.b16 %v3257
    %v3290 = vunpack.c.l.b16 %v3258
    %v3291 = vunpack.c.l.b16 %v3259
    %v3292 = vunpack.c.l.b16 %v3260
    %v3293 = vunpack.c.l.b16 %v3261
    %v3294 = vunpack.c.l.b16 %v3262
    %v3295 = vunpack.c.l.b16 %v3263
    %v3296 = vpack.c.b16 %v3281, %v3280
    %v3297 = vpack.c.b16 %v3283, %v3282
    %v3298 = vpack.c.b16 %v3285, %v3284
    %v3299 = vpack.c.b16 %v3287, %v3286
    %v3300 = vpack.c.b16 %v3289, %v3288
    %v3301 = vpack.c.b16 %v3291, %v3290
    %v3302 = vpack.c.b16 %v3293, %v3292
    %v3303 = vpack.c.b16 %v3295, %v3294
    %3312 = vmatprep.subr.bf16.mxu0 0
    %3313 = vmatpush1.bf16.msra.mxu0 %v3296
    %3314 = vmatprep.subr.bf16.mxu0 0
    %3315 = vmatpush1.bf16.msra.mxu0 %v3297
    %3316 = vmatprep.subr.bf16.mxu0 0
    %3317 = vmatpush1.bf16.msra.mxu0 %v3298
    %3318 = vmatprep.subr.bf16.mxu0 0
    %3319 = vmatpush1.bf16.msra.mxu0 %v3299
    %3320 = vmatprep.subr.bf16.mxu0 0
    %3321 = vmatpush1.bf16.msra.mxu0 %v3300
    %3322 = vmatprep.subr.bf16.mxu0 0
    %3323 = vmatpush1.bf16.msra.mxu0 %v3301
    %3324 = vmatprep.subr.bf16.mxu0 0
    %3325 = vmatpush1.bf16.msra.mxu0 %v3302
    %3326 = vmatprep.subr.bf16.mxu0 0
    %3327 = vmatpush1.bf16.msra.mxu0 %v3303
    %3328 = vmatprep.subr.bf16.mxu0 0
    %3329 = vmatpush1.bf16.msra.mxu0 0
    %3330 = vmatprep.subr.bf16.mxu0 0
    %3331 = vmatpush1.bf16.msra.mxu0 0
    %3332 = vmatprep.subr.bf16.mxu0 0
    %3333 = vmatpush1.bf16.msra.mxu0 0
    %3334 = vmatprep.subr.bf16.mxu0 0
    %3335 = vmatpush1.bf16.msra.mxu0 0
    %3336 = vmatprep.subr.bf16.mxu0 0
    %3337 = vmatpush1.bf16.msra.mxu0 0
    %3338 = vmatprep.subr.bf16.mxu0 0
    %3339 = vmatpush1.bf16.msra.mxu0 0
    %3340 = vmatprep.subr.bf16.mxu0 0
    %3341 = vmatpush1.bf16.msra.mxu0 0
    %3342 = vmatprep.subr.bf16.mxu0 0
    %3343 = vmatpush1.bf16.msra.mxu0 0
    %3344 = vmatprep.mubr.bf16.mxu0 0
    %3345 = vmatmul.mubr.bf16.gmra.mrb[0].mxu0 %v3239
    %v3346 = vpop.f32.mrb[0].mxu0
    %v3347 = vadd.f32 0.0, %v3346
    %v3348 = vpop.f32.mrb[0].mxu0
    %v3349 = vpop.f32.mrb[0].mxu0
    %v3350 = vadd.f32 0.0, %v3349
    %v3351 = vpop.f32.mrb[0].mxu0
    %3352 = vmatprep.mubr.bf16.mxu0 0
    %3353 = vmatmul.mubr.bf16.gmra.mrb[0].mxu0 %v3240
    %v3354 = vpop.f32.mrb[0].mxu0
    %v3355 = vadd.f32 0.0, %v3354
    %v3356 = vpop.f32.mrb[0].mxu0
    %v3357 = vpop.f32.mrb[0].mxu0
    %v3358 = vadd.f32 0.0, %v3357
    %v3359 = vpop.f32.mrb[0].mxu0
    %3360 = vmatprep.mubr.bf16.mxu0 0
    %3361 = vmatmul.mubr.bf16.gmra.mrb[0].mxu0 %v3241
    %v3362 = vpop.f32.mrb[0].mxu0
    %v3363 = vadd.f32 0.0, %v3362
    %v3364 = vpop.f32.mrb[0].mxu0
    %v3365 = vpop.f32.mrb[0].mxu0
    %v3366 = vadd.f32 0.0, %v3365
    %v3367 = vpop.f32.mrb[0].mxu0
    %3368 = vmatprep.mubr.bf16.mxu0 0
    %3369 = vmatmul.mubr.bf16.gmra.mrb[0].mxu0 %v3242
    %v3370 = vpop.f32.mrb[0].mxu0
    %v3371 = vadd.f32 0.0, %v3370
    %v3372 = vpop.f32.mrb[0].mxu0
    %v3373 = vpop.f32.mrb[0].mxu0
    %v3374 = vadd.f32 0.0, %v3373
    %v3375 = vpop.f32.mrb[0].mxu0
    %3376 = vmatprep.mubr.bf16.mxu0 0
    %3377 = vmatmul.mubr.bf16.gmra.mrb[0].mxu0 %v3243
    %v3378 = vpop.f32.mrb[0].mxu0
    %v3379 = vadd.f32 0.0, %v3378
    %v3380 = vpop.f32.mrb[0].mxu0
    %v3381 = vpop.f32.mrb[0].mxu0
    %v3382 = vadd.f32 0.0, %v3381
    %v3383 = vpop.f32.mrb[0].mxu0
    %3384 = vmatprep.mubr.bf16.mxu0 0
    %3385 = vmatmul.mubr.bf16.gmra.mrb[0].mxu0 %v3244
    %v3386 = vpop.f32.mrb[0].mxu0
    %v3387 = vadd.f32 0.0, %v3386
    %v3388 = vpop.f32.mrb[0].mxu0
    %v3389 = vpop.f32.mrb[0].mxu0
    %v3390 = vadd.f32 0.0, %v3389
    %v3391 = vpop.f32.mrb[0].mxu0
    %3392 = vmatprep.mubr.bf16.mxu0 0
    %3393 = vmatmul.mubr.bf16.gmra.mrb[0].mxu0 %v3245
    %v3394 = vpop.f32.mrb[0].mxu0
    %v3395 = vadd.f32 0.0, %v3394
    %v3396 = vpop.f32.mrb[0].mxu0
    %v3397 = vpop.f32.mrb[0].mxu0
    %v3398 = vadd.f32 0.0, %v3397
    %v3399 = vpop.f32.mrb[0].mxu0
    %3400 = vmatprep.mubr.bf16.mxu0 0
    %3401 = vmatmul.mubr.bf16.gmra.mrb[0].mxu0 %v3246
    %v3402 = vpop.f32.mrb[0].mxu0
    %v3403 = vadd.f32 0.0, %v3402
    %v3404 = vpop.f32.mrb[0].mxu0
    %v3405 = vpop.f32.mrb[0].mxu0
    %v3406 = vadd.f32 0.0, %v3405
    %v3407 = vpop.f32.mrb[0].mxu0
    %3408 = vdwg.mxu0
    %v3409 = vadd.f32 %v3207, %v3347
    %v3410 = vadd.f32 %v3208, %v3350
    %v3411 = vadd.f32 %v3209, %v3355
    %v3412 = vadd.f32 %v3210, %v3358
    %v3413 = vadd.f32 %v3211, %v3363
    %v3414 = vadd.f32 %v3212, %v3366
    %v3415 = vadd.f32 %v3213, %v3371
    %v3416 = vadd.f32 %v3214, %v3374
    %v3417 = vadd.f32 %v3215, %v3379
    %v3418 = vadd.f32 %v3216, %v3382
    %v3419 = vadd.f32 %v3217, %v3387
    %v3420 = vadd.f32 %v3218, %v3390
    %v3421 = vadd.f32 %v3219, %v3395
    %v3422 = vadd.f32 %v3220, %v3398
    %v3423 = vadd.f32 %v3221, %v3403
    %v3424 = vadd.f32 %v3222, %v3406
    %v3425 = vld [vmem:[#allocation2 + $0x4] sm:$0xff]
    %v3426 = vld [vmem:[#allocation2 + $0x14] sm:$0xff]
    %v3427 = vld [vmem:[#allocation2 + $0x24] sm:$0xff]
    %v3428 = vld [vmem:[#allocation2 + $0x34] sm:$0xff]
    %v3429 = vld [vmem:[#allocation2 + $0x44] sm:$0xff]
    %v3430 = vld [vmem:[#allocation2 + $0x54] sm:$0xff]
    %v3431 = vld [vmem:[#allocation2 + $0x64] sm:$0xff]
    %v3432 = vld [vmem:[#allocation2 + $0x74] sm:$0xff]
    %v3433 = vld [vmem:[#allocation2 + $0xc4] sm:$0xff]
    %v3434 = vld [vmem:[#allocation2 + $0xd4] sm:$0xff]
    %v3435 = vld [vmem:[#allocation2 + $0xe4] sm:$0xff]
    %v3436 = vld [vmem:[#allocation2 + $0xf4] sm:$0xff]
    %v3437 = vld [vmem:[#allocation2 + $0x104] sm:$0xff]
    %v3438 = vld [vmem:[#allocation2 + $0x114] sm:$0xff]
    %v3439 = vld [vmem:[#allocation2 + $0x124] sm:$0xff]
    %v3440 = vld [vmem:[#allocation2 + $0x134] sm:$0xff]
    %v3441 = vpack.c.bf16 %v3426, %v3425
    %v3442 = vpack.c.bf16 %v3428, %v3427
    %v3443 = vpack.c.bf16 %v3430, %v3429
    %v3444 = vpack.c.bf16 %v3432, %v3431
    %v3445 = vpack.c.bf16 %v3434, %v3433
    %v3446 = vpack.c.bf16 %v3436, %v3435
    %v3447 = vpack.c.bf16 %v3438, %v3437
    %v3448 = vpack.c.bf16 %v3440, %v3439
    %s3449 = scalar_lea.vmem %s3, 256
    %v3450 = vld [vmem:[%s3449] sm:$0xf]
    %v3451 = vld [vmem:[%s3449 + $0x4] sm:$0xf]
    %v3452 = vld [vmem:[%s3449 + $0x8] sm:$0xf]
    %v3453 = vld [vmem:[%s3449 + $0xc] sm:$0xf]
    %v3454 = vld [vmem:[%s3449 + $0x10] sm:$0xf]
    %v3455 = vld [vmem:[%s3449 + $0x14] sm:$0xf]
    %v3456 = vld [vmem:[%s3449 + $0x18] sm:$0xf]
    %v3457 = vld [vmem:[%s3449 + $0x1c] sm:$0xf]
    %v3458 = vld [vmem:[%s3449 + $0x20] sm:$0xf]
    %v3459 = vld [vmem:[%s3449 + $0x24] sm:$0xf]
    %v3460 = vld [vmem:[%s3449 + $0x28] sm:$0xf]
    %v3461 = vld [vmem:[%s3449 + $0x2c] sm:$0xf]
    %v3462 = vld [vmem:[%s3449 + $0x30] sm:$0xf]
    %v3463 = vld [vmem:[%s3449 + $0x34] sm:$0xf]
    %v3464 = vld [vmem:[%s3449 + $0x38] sm:$0xf]
    %v3465 = vld [vmem:[%s3449 + $0x3c] sm:$0xf]
    %v3482 = vunpack.c.l.b16 %v3450
    %v3483 = vunpack.c.l.b16 %v3451
    %v3484 = vunpack.c.l.b16 %v3452
    %v3485 = vunpack.c.l.b16 %v3453
    %v3486 = vunpack.c.l.b16 %v3454
    %v3487 = vunpack.c.l.b16 %v3455
    %v3488 = vunpack.c.l.b16 %v3456
    %v3489 = vunpack.c.l.b16 %v3457
    %v3490 = vunpack.c.l.b16 %v3458
    %v3491 = vunpack.c.l.b16 %v3459
    %v3492 = vunpack.c.l.b16 %v3460
    %v3493 = vunpack.c.l.b16 %v3461
    %v3494 = vunpack.c.l.b16 %v3462
    %v3495 = vunpack.c.l.b16 %v3463
    %v3496 = vunpack.c.l.b16 %v3464
    %v3497 = vunpack.c.l.b16 %v3465
    %v3498 = vpack.c.b16 %v3483, %v3482
    %v3499 = vpack.c.b16 %v3485, %v3484
    %v3500 = vpack.c.b16 %v3487, %v3486
    %v3501 = vpack.c.b16 %v3489, %v3488
    %v3502 = vpack.c.b16 %v3491, %v3490
    %v3503 = vpack.c.b16 %v3493, %v3492
    %v3504 = vpack.c.b16 %v3495, %v3494
    %v3505 = vpack.c.b16 %v3497, %v3496
    %3514 = vmatprep.subr.bf16.mxu0 0
    %3515 = vmatpush1.bf16.msra.mxu0 %v3498
    %3516 = vmatprep.subr.bf16.mxu0 0
    %3517 = vmatpush1.bf16.msra.mxu0 %v3499
    %3518 = vmatprep.subr.bf16.mxu0 0
    %3519 = vmatpush1.bf16.msra.mxu0 %v3500
    %3520 = vmatprep.subr.bf16.mxu0 0
    %3521 = vmatpush1.bf16.msra.mxu0 %v3501
    %3522 = vmatprep.subr.bf16.mxu0 0
    %3523 = vmatpush1.bf16.msra.mxu0 %v3502
    %3524 = vmatprep.subr.bf16.mxu0 0
    %3525 = vmatpush1.bf16.msra.mxu0 %v3503
    %3526 = vmatprep.subr.bf16.mxu0 0
    %3527 = vmatpush1.bf16.msra.mxu0 %v3504
    %3528 = vmatprep.subr.bf16.mxu0 0
    %3529 = vmatpush1.bf16.msra.mxu0 %v3505
    %3530 = vmatprep.subr.bf16.mxu0 0
    %3531 = vmatpush1.bf16.msra.mxu0 0
    %3532 = vmatprep.subr.bf16.mxu0 0
    %3533 = vmatpush1.bf16.msra.mxu0 0
    %3534 = vmatprep.subr.bf16.mxu0 0
    %3535 = vmatpush1.bf16.msra.mxu0 0
    %3536 = vmatprep.subr.bf16.mxu0 0
    %3537 = vmatpush1.bf16.msra.mxu0 0
    %3538 = vmatprep.subr.bf16.mxu0 0
    %3539 = vmatpush1.bf16.msra.mxu0 0
    %3540 = vmatprep.subr.bf16.mxu0 0
    %3541 = vmatpush1.bf16.msra.mxu0 0
    %3542 = vmatprep.subr.bf16.mxu0 0
    %3543 = vmatpush1.bf16.msra.mxu0 0
    %3544 = vmatprep.subr.bf16.mxu0 0
    %3545 = vmatpush1.bf16.msra.mxu0 0
    %3546 = vmatprep.mubr.bf16.mxu0 0
    %3547 = vmatmul.mubr.bf16.gmra.mrb[0].mxu0 %v3441
    %v3548 = vpop.f32.mrb[0].mxu0
    %v3549 = vadd.f32 0.0, %v3548
    %v3550 = vpop.f32.mrb[0].mxu0
    %v3551 = vpop.f32.mrb[0].mxu0
    %v3552 = vadd.f32 0.0, %v3551
    %v3553 = vpop.f32.mrb[0].mxu0
    %3554 = vmatprep.mubr.bf16.mxu0 0
    %3555 = vmatmul.mubr.bf16.gmra.mrb[0].mxu0 %v3442
    %v3556 = vpop.f32.mrb[0].mxu0
    %v3557 = vadd.f32 0.0, %v3556
    %v3558 = vpop.f32.mrb[0].mxu0
    %v3559 = vpop.f32.mrb[0].mxu0
    %v3560 = vadd.f32 0.0, %v3559
    %v3561 = vpop.f32.mrb[0].mxu0
    %3562 = vmatprep.mubr.bf16.mxu0 0
    %3563 = vmatmul.mubr.bf16.gmra.mrb[0].mxu0 %v3443
    %v3564 = vpop.f32.mrb[0].mxu0
    %v3565 = vadd.f32 0.0, %v3564
    %v3566 = vpop.f32.mrb[0].mxu0
    %v3567 = vpop.f32.mrb[0].mxu0
    %v3568 = vadd.f32 0.0, %v3567
    %v3569 = vpop.f32.mrb[0].mxu0
    %3570 = vmatprep.mubr.bf16.mxu0 0
    %3571 = vmatmul.mubr.bf16.gmra.mrb[0].mxu0 %v3444
    %v3572 = vpop.f32.mrb[0].mxu0
    %v3573 = vadd.f32 0.0, %v3572
    %v3574 = vpop.f32.mrb[0].mxu0
    %v3575 = vpop.f32.mrb[0].mxu0
    %v3576 = vadd.f32 0.0, %v3575
    %v3577 = vpop.f32.mrb[0].mxu0
    %3578 = vmatprep.mubr.bf16.mxu0 0
    %3579 = vmatmul.mubr.bf16.gmra.mrb[0].mxu0 %v3445
    %v3580 = vpop.f32.mrb[0].mxu0
    %v3581 = vadd.f32 0.0, %v3580
    %v3582 = vpop.f32.mrb[0].mxu0
    %v3583 = vpop.f32.mrb[0].mxu0
    %v3584 = vadd.f32 0.0, %v3583
    %v3585 = vpop.f32.mrb[0].mxu0
    %3586 = vmatprep.mubr.bf16.mxu0 0
    %3587 = vmatmul.mubr.bf16.gmra.mrb[0].mxu0 %v3446
    %v3588 = vpop.f32.mrb[0].mxu0
    %v3589 = vadd.f32 0.0, %v3588
    %v3590 = vpop.f32.mrb[0].mxu0
    %v3591 = vpop.f32.mrb[0].mxu0
    %v3592 = vadd.f32 0.0, %v3591
    %v3593 = vpop.f32.mrb[0].mxu0
    %3594 = vmatprep.mubr.bf16.mxu0 0
    %3595 = vmatmul.mubr.bf16.gmra.mrb[0].mxu0 %v3447
    %v3596 = vpop.f32.mrb[0].mxu0
    %v3597 = vadd.f32 0.0, %v3596
    %v3598 = vpop.f32.mrb[0].mxu0
    %v3599 = vpop.f32.mrb[0].mxu0
    %v3600 = vadd.f32 0.0, %v3599
    %v3601 = vpop.f32.mrb[0].mxu0
    %3602 = vmatprep.mubr.bf16.mxu0 0
    %3603 = vmatmul.mubr.bf16.gmra.mrb[0].mxu0 %v3448
    %v3604 = vpop.f32.mrb[0].mxu0
    %v3605 = vadd.f32 0.0, %v3604
    %v3606 = vpop.f32.mrb[0].mxu0
    %v3607 = vpop.f32.mrb[0].mxu0
    %v3608 = vadd.f32 0.0, %v3607
    %v3609 = vpop.f32.mrb[0].mxu0
    %3610 = vdwg.mxu0
    %v3611 = vadd.f32 %v3409, %v3549
    %v3612 = vadd.f32 %v3410, %v3552
    %v3613 = vadd.f32 %v3411, %v3557
    %v3614 = vadd.f32 %v3412, %v3560
    %v3615 = vadd.f32 %v3413, %v3565
    %v3616 = vadd.f32 %v3414, %v3568
    %v3617 = vadd.f32 %v3415, %v3573
    %v3618 = vadd.f32 %v3416, %v3576
    %v3619 = vadd.f32 %v3417, %v3581
    %v3620 = vadd.f32 %v3418, %v3584
    %v3621 = vadd.f32 %v3419, %v3589
    %v3622 = vadd.f32 %v3420, %v3592
    %v3623 = vadd.f32 %v3421, %v3597
    %v3624 = vadd.f32 %v3422, %v3600
    %v3625 = vadd.f32 %v3423, %v3605
    %v3626 = vadd.f32 %v3424, %v3608
    %s3627 = scalar_lea.vmem [#allocation2], 16
    %v3628 = vld [vmem:[%s3627] sm:$0xff]
    %v3629 = vld [vmem:[%s3627 + $0x10] sm:$0xff]
    %v3630 = vld [vmem:[%s3627 + $0x20] sm:$0xff]
    %v3631 = vld [vmem:[%s3627 + $0x30] sm:$0xff]
    %v3632 = vld [vmem:[%s3627 + $0x40] sm:$0xff]
    %v3633 = vld [vmem:[%s3627 + $0x50] sm:$0xff]
    %v3634 = vld [vmem:[%s3627 + $0x60] sm:$0xff]
    %v3635 = vld [vmem:[%s3627 + $0x70] sm:$0xff]
    %v3636 = vld [vmem:[%s3627 + $0xc0] sm:$0xff]
    %v3637 = vld [vmem:[%s3627 + $0xd0] sm:$0xff]
    %v3638 = vld [vmem:[%s3627 + $0xe0] sm:$0xff]
    %v3639 = vld [vmem:[%s3627 + $0xf0] sm:$0xff]
    %v3640 = vld [vmem:[%s3627 + $0x100] sm:$0xff]
    %v3641 = vld [vmem:[%s3627 + $0x110] sm:$0xff]
    %v3642 = vld [vmem:[%s3627 + $0x120] sm:$0xff]
    %v3643 = vld [vmem:[%s3627 + $0x130] sm:$0xff]
    %v3644 = vpack.c.bf16 %v3629, %v3628
    %v3645 = vpack.c.bf16 %v3631, %v3630
    %v3646 = vpack.c.bf16 %v3633, %v3632
    %v3647 = vpack.c.bf16 %v3635, %v3634
    %v3648 = vpack.c.bf16 %v3637, %v3636
    %v3649 = vpack.c.bf16 %v3639, %v3638
    %v3650 = vpack.c.bf16 %v3641, %v3640
    %v3651 = vpack.c.bf16 %v3643, %v3642
    %s3652 = scalar_lea.vmem %s3, 320
    %v3653 = vld [vmem:[%s3652] sm:$0xf]
    %v3654 = vld [vmem:[%s3652 + $0x4] sm:$0xf]
    %v3655 = vld [vmem:[%s3652 + $0x8] sm:$0xf]
    %v3656 = vld [vmem:[%s3652 + $0xc] sm:$0xf]
    %v3657 = vld [vmem:[%s3652 + $0x10] sm:$0xf]
    %v3658 = vld [vmem:[%s3652 + $0x14] sm:$0xf]
    %v3659 = vld [vmem:[%s3652 + $0x18] sm:$0xf]
    %v3660 = vld [vmem:[%s3652 + $0x1c] sm:$0xf]
    %v3661 = vld [vmem:[%s3652 + $0x20] sm:$0xf]
    %v3662 = vld [vmem:[%s3652 + $0x24] sm:$0xf]
    %v3663 = vld [vmem:[%s3652 + $0x28] sm:$0xf]
    %v3664 = vld [vmem:[%s3652 + $0x2c] sm:$0xf]
    %v3665 = vld [vmem:[%s3652 + $0x30] sm:$0xf]
    %v3666 = vld [vmem:[%s3652 + $0x34] sm:$0xf]
    %v3667 = vld [vmem:[%s3652 + $0x38] sm:$0xf]
    %v3668 = vld [vmem:[%s3652 + $0x3c] sm:$0xf]
    %v3685 = vunpack.c.l.b16 %v3653
    %v3686 = vunpack.c.l.b16 %v3654
    %v3687 = vunpack.c.l.b16 %v3655
    %v3688 = vunpack.c.l.b16 %v3656
    %v3689 = vunpack.c.l.b16 %v3657
    %v3690 = vunpack.c.l.b16 %v3658
    %v3691 = vunpack.c.l.b16 %v3659
    %v3692 = vunpack.c.l.b16 %v3660
    %v3693 = vunpack.c.l.b16 %v3661
    %v3694 = vunpack.c.l.b16 %v3662
    %v3695 = vunpack.c.l.b16 %v3663
    %v3696 = vunpack.c.l.b16 %v3664
    %v3697 = vunpack.c.l.b16 %v3665
    %v3698 = vunpack.c.l.b16 %v3666
    %v3699 = vunpack.c.l.b16 %v3667
    %v3700 = vunpack.c.l.b16 %v3668
    %v3701 = vpack.c.b16 %v3686, %v3685
    %v3702 = vpack.c.b16 %v3688, %v3687
    %v3703 = vpack.c.b16 %v3690, %v3689
    %v3704 = vpack.c.b16 %v3692, %v3691
    %v3705 = vpack.c.b16 %v3694, %v3693
    %v3706 = vpack.c.b16 %v3696, %v3695
    %v3707 = vpack.c.b16 %v3698, %v3697
    %v3708 = vpack.c.b16 %v3700, %v3699
    %3717 = vmatprep.subr.bf16.mxu0 0
    %3718 = vmatpush1.bf16.msra.mxu0 %v3701
    %3719 = vmatprep.subr.bf16.mxu0 0
    %3720 = vmatpush1.bf16.msra.mxu0 %v3702
    %3721 = vmatprep.subr.bf16.mxu0 0
    %3722 = vmatpush1.bf16.msra.mxu0 %v3703
    %3723 = vmatprep.subr.bf16.mxu0 0
    %3724 = vmatpush1.bf16.msra.mxu0 %v3704
    %3725 = vmatprep.subr.bf16.mxu0 0
    %3726 = vmatpush1.bf16.msra.mxu0 %v3705
    %3727 = vmatprep.subr.bf16.mxu0 0
    %3728 = vmatpush1.bf16.msra.mxu0 %v3706
    %3729 = vmatprep.subr.bf16.mxu0 0
    %3730 = vmatpush1.bf16.msra.mxu0 %v3707
    %3731 = vmatprep.subr.bf16.mxu0 0
    %3732 = vmatpush1.bf16.msra.mxu0 %v3708
    %3733 = vmatprep.subr.bf16.mxu0 0
    %3734 = vmatpush1.bf16.msra.mxu0 0
    %3735 = vmatprep.subr.bf16.mxu0 0
    %3736 = vmatpush1.bf16.msra.mxu0 0
    %3737 = vmatprep.subr.bf16.mxu0 0
    %3738 = vmatpush1.bf16.msra.mxu0 0
    %3739 = vmatprep.subr.bf16.mxu0 0
    %3740 = vmatpush1.bf16.msra.mxu0 0
    %3741 = vmatprep.subr.bf16.mxu0 0
    %3742 = vmatpush1.bf16.msra.mxu0 0
    %3743 = vmatprep.subr.bf16.mxu0 0
    %3744 = vmatpush1.bf16.msra.mxu0 0
    %3745 = vmatprep.subr.bf16.mxu0 0
    %3746 = vmatpush1.bf16.msra.mxu0 0
    %3747 = vmatprep.subr.bf16.mxu0 0
    %3748 = vmatpush1.bf16.msra.mxu0 0
    %3749 = vmatprep.mubr.bf16.mxu0 0
    %3750 = vmatmul.mubr.bf16.gmra.mrb[0].mxu0 %v3644
    %v3751 = vpop.f32.mrb[0].mxu0
    %v3752 = vadd.f32 0.0, %v3751
    %v3753 = vpop.f32.mrb[0].mxu0
    %v3754 = vpop.f32.mrb[0].mxu0
    %v3755 = vadd.f32 0.0, %v3754
    %v3756 = vpop.f32.mrb[0].mxu0
    %3757 = vmatprep.mubr.bf16.mxu0 0
    %3758 = vmatmul.mubr.bf16.gmra.mrb[0].mxu0 %v3645
    %v3759 = vpop.f32.mrb[0].mxu0
    %v3760 = vadd.f32 0.0, %v3759
    %v3761 = vpop.f32.mrb[0].mxu0
    %v3762 = vpop.f32.mrb[0].mxu0
    %v3763 = vadd.f32 0.0, %v3762
    %v3764 = vpop.f32.mrb[0].mxu0
    %3765 = vmatprep.mubr.bf16.mxu0 0
    %3766 = vmatmul.mubr.bf16.gmra.mrb[0].mxu0 %v3646
    %v3767 = vpop.f32.mrb[0].mxu0
    %v3768 = vadd.f32 0.0, %v3767
    %v3769 = vpop.f32.mrb[0].mxu0
    %v3770 = vpop.f32.mrb[0].mxu0
    %v3771 = vadd.f32 0.0, %v3770
    %v3772 = vpop.f32.mrb[0].mxu0
    %3773 = vmatprep.mubr.bf16.mxu0 0
    %3774 = vmatmul.mubr.bf16.gmra.mrb[0].mxu0 %v3647
    %v3775 = vpop.f32.mrb[0].mxu0
    %v3776 = vadd.f32 0.0, %v3775
    %v3777 = vpop.f32.mrb[0].mxu0
    %v3778 = vpop.f32.mrb[0].mxu0
    %v3779 = vadd.f32 0.0, %v3778
    %v3780 = vpop.f32.mrb[0].mxu0
    %3781 = vmatprep.mubr.bf16.mxu0 0
    %3782 = vmatmul.mubr.bf16.gmra.mrb[0].mxu0 %v3648
    %v3783 = vpop.f32.mrb[0].mxu0
    %v3784 = vadd.f32 0.0, %v3783
    %v3785 = vpop.f32.mrb[0].mxu0
    %v3786 = vpop.f32.mrb[0].mxu0
    %v3787 = vadd.f32 0.0, %v3786
    %v3788 = vpop.f32.mrb[0].mxu0
    %3789 = vmatprep.mubr.bf16.mxu0 0
    %3790 = vmatmul.mubr.bf16.gmra.mrb[0].mxu0 %v3649
    %v3791 = vpop.f32.mrb[0].mxu0
    %v3792 = vadd.f32 0.0, %v3791
    %v3793 = vpop.f32.mrb[0].mxu0
    %v3794 = vpop.f32.mrb[0].mxu0
    %v3795 = vadd.f32 0.0, %v3794
    %v3796 = vpop.f32.mrb[0].mxu0
    %3797 = vmatprep.mubr.bf16.mxu0 0
    %3798 = vmatmul.mubr.bf16.gmra.mrb[0].mxu0 %v3650
    %v3799 = vpop.f32.mrb[0].mxu0
    %v3800 = vadd.f32 0.0, %v3799
    %v3801 = vpop.f32.mrb[0].mxu0
    %v3802 = vpop.f32.mrb[0].mxu0
    %v3803 = vadd.f32 0.0, %v3802
    %v3804 = vpop.f32.mrb[0].mxu0
    %3805 = vmatprep.mubr.bf16.mxu0 0
    %3806 = vmatmul.mubr.bf16.gmra.mrb[0].mxu0 %v3651
    %v3807 = vpop.f32.mrb[0].mxu0
    %v3808 = vadd.f32 0.0, %v3807
    %v3809 = vpop.f32.mrb[0].mxu0
    %v3810 = vpop.f32.mrb[0].mxu0
    %v3811 = vadd.f32 0.0, %v3810
    %v3812 = vpop.f32.mrb[0].mxu0
    %3813 = vdwg.mxu0
    %v3814 = vadd.f32 %v3611, %v3752
    %v3815 = vadd.f32 %v3612, %v3755
    %v3816 = vadd.f32 %v3613, %v3760
    %v3817 = vadd.f32 %v3614, %v3763
    %v3818 = vadd.f32 %v3615, %v3768
    %v3819 = vadd.f32 %v3616, %v3771
    %v3820 = vadd.f32 %v3617, %v3776
    %v3821 = vadd.f32 %v3618, %v3779
    %v3822 = vadd.f32 %v3619, %v3784
    %v3823 = vadd.f32 %v3620, %v3787
    %v3824 = vadd.f32 %v3621, %v3792
    %v3825 = vadd.f32 %v3622, %v3795
    %v3826 = vadd.f32 %v3623, %v3800
    %v3827 = vadd.f32 %v3624, %v3803
    %v3828 = vadd.f32 %v3625, %v3808
    %v3829 = vadd.f32 %v3626, %v3811
    %v3830 = vld [vmem:[%s3627 + $0x1] sm:$0xff]
    %v3831 = vld [vmem:[%s3627 + $0x11] sm:$0xff]
    %v3832 = vld [vmem:[%s3627 + $0x21] sm:$0xff]
    %v3833 = vld [vmem:[%s3627 + $0x31] sm:$0xff]
    %v3834 = vld [vmem:[%s3627 + $0x41] sm:$0xff]
    %v3835 = vld [vmem:[%s3627 + $0x51] sm:$0xff]
    %v3836 = vld [vmem:[%s3627 + $0x61] sm:$0xff]
    %v3837 = vld [vmem:[%s3627 + $0x71] sm:$0xff]
    %v3838 = vld [vmem:[%s3627 + $0xc1] sm:$0xff]
    %v3839 = vld [vmem:[%s3627 + $0xd1] sm:$0xff]
    %v3840 = vld [vmem:[%s3627 + $0xe1] sm:$0xff]
    %v3841 = vld [vmem:[%s3627 + $0xf1] sm:$0xff]
    %v3842 = vld [vmem:[%s3627 + $0x101] sm:$0xff]
    %v3843 = vld [vmem:[%s3627 + $0x111] sm:$0xff]
    %v3844 = vld [vmem:[%s3627 + $0x121] sm:$0xff]
    %v3845 = vld [vmem:[%s3627 + $0x131] sm:$0xff]
    %v3846 = vpack.c.bf16 %v3831, %v3830
    %v3847 = vpack.c.bf16 %v3833, %v3832
    %v3848 = vpack.c.bf16 %v3835, %v3834
    %v3849 = vpack.c.bf16 %v3837, %v3836
    %v3850 = vpack.c.bf16 %v3839, %v3838
    %v3851 = vpack.c.bf16 %v3841, %v3840
    %v3852 = vpack.c.bf16 %v3843, %v3842
    %v3853 = vpack.c.bf16 %v3845, %v3844
    %s3854 = scalar_lea.vmem %s3, 384
    %v3855 = vld [vmem:[%s3854] sm:$0xf]
    %v3856 = vld [vmem:[%s3854 + $0x4] sm:$0xf]
    %v3857 = vld [vmem:[%s3854 + $0x8] sm:$0xf]
    %v3858 = vld [vmem:[%s3854 + $0xc] sm:$0xf]
    %v3859 = vld [vmem:[%s3854 + $0x10] sm:$0xf]
    %v3860 = vld [vmem:[%s3854 + $0x14] sm:$0xf]
    %v3861 = vld [vmem:[%s3854 + $0x18] sm:$0xf]
    %v3862 = vld [vmem:[%s3854 + $0x1c] sm:$0xf]
    %v3863 = vld [vmem:[%s3854 + $0x20] sm:$0xf]
    %v3864 = vld [vmem:[%s3854 + $0x24] sm:$0xf]
    %v3865 = vld [vmem:[%s3854 + $0x28] sm:$0xf]
    %v3866 = vld [vmem:[%s3854 + $0x2c] sm:$0xf]
    %v3867 = vld [vmem:[%s3854 + $0x30] sm:$0xf]
    %v3868 = vld [vmem:[%s3854 + $0x34] sm:$0xf]
    %v3869 = vld [vmem:[%s3854 + $0x38] sm:$0xf]
    %v3870 = vld [vmem:[%s3854 + $0x3c] sm:$0xf]
    %v3887 = vunpack.c.l.b16 %v3855
    %v3888 = vunpack.c.l.b16 %v3856
    %v3889 = vunpack.c.l.b16 %v3857
    %v3890 = vunpack.c.l.b16 %v3858
    %v3891 = vunpack.c.l.b16 %v3859
    %v3892 = vunpack.c.l.b16 %v3860
    %v3893 = vunpack.c.l.b16 %v3861
    %v3894 = vunpack.c.l.b16 %v3862
    %v3895 = vunpack.c.l.b16 %v3863
    %v3896 = vunpack.c.l.b16 %v3864
    %v3897 = vunpack.c.l.b16 %v3865
    %v3898 = vunpack.c.l.b16 %v3866
    %v3899 = vunpack.c.l.b16 %v3867
    %v3900 = vunpack.c.l.b16 %v3868
    %v3901 = vunpack.c.l.b16 %v3869
    %v3902 = vunpack.c.l.b16 %v3870
    %v3903 = vpack.c.b16 %v3888, %v3887
    %v3904 = vpack.c.b16 %v3890, %v3889
    %v3905 = vpack.c.b16 %v3892, %v3891
    %v3906 = vpack.c.b16 %v3894, %v3893
    %v3907 = vpack.c.b16 %v3896, %v3895
    %v3908 = vpack.c.b16 %v3898, %v3897
    %v3909 = vpack.c.b16 %v3900, %v3899
    %v3910 = vpack.c.b16 %v3902, %v3901
    %3919 = vmatprep.subr.bf16.mxu0 0
    %3920 = vmatpush1.bf16.msra.mxu0 %v3903
    %3921 = vmatprep.subr.bf16.mxu0 0
    %3922 = vmatpush1.bf16.msra.mxu0 %v3904
    %3923 = vmatprep.subr.bf16.mxu0 0
    %3924 = vmatpush1.bf16.msra.mxu0 %v3905
    %3925 = vmatprep.subr.bf16.mxu0 0
    %3926 = vmatpush1.bf16.msra.mxu0 %v3906
    %3927 = vmatprep.subr.bf16.mxu0 0
    %3928 = vmatpush1.bf16.msra.mxu0 %v3907
    %3929 = vmatprep.subr.bf16.mxu0 0
    %3930 = vmatpush1.bf16.msra.mxu0 %v3908
    %3931 = vmatprep.subr.bf16.mxu0 0
    %3932 = vmatpush1.bf16.msra.mxu0 %v3909
    %3933 = vmatprep.subr.bf16.mxu0 0
    %3934 = vmatpush1.bf16.msra.mxu0 %v3910
    %3935 = vmatprep.subr.bf16.mxu0 0
    %3936 = vmatpush1.bf16.msra.mxu0 0
    %3937 = vmatprep.subr.bf16.mxu0 0
    %3938 = vmatpush1.bf16.msra.mxu0 0
    %3939 = vmatprep.subr.bf16.mxu0 0
    %3940 = vmatpush1.bf16.msra.mxu0 0
    %3941 = vmatprep.subr.bf16.mxu0 0
    %3942 = vmatpush1.bf16.msra.mxu0 0
    %3943 = vmatprep.subr.bf16.mxu0 0
    %3944 = vmatpush1.bf16.msra.mxu0 0
    %3945 = vmatprep.subr.bf16.mxu0 0
    %3946 = vmatpush1.bf16.msra.mxu0 0
    %3947 = vmatprep.subr.bf16.mxu0 0
    %3948 = vmatpush1.bf16.msra.mxu0 0
    %3949 = vmatprep.subr.bf16.mxu0 0
    %3950 = vmatpush1.bf16.msra.mxu0 0
    %3951 = vmatprep.mubr.bf16.mxu0 0
    %3952 = vmatmul.mubr.bf16.gmra.mrb[0].mxu0 %v3846
    %v3953 = vpop.f32.mrb[0].mxu0
    %v3954 = vadd.f32 0.0, %v3953
    %v3955 = vpop.f32.mrb[0].mxu0
    %v3956 = vpop.f32.mrb[0].mxu0
    %v3957 = vadd.f32 0.0, %v3956
    %v3958 = vpop.f32.mrb[0].mxu0
    %3959 = vmatprep.mubr.bf16.mxu0 0
    %3960 = vmatmul.mubr.bf16.gmra.mrb[0].mxu0 %v3847
    %v3961 = vpop.f32.mrb[0].mxu0
    %v3962 = vadd.f32 0.0, %v3961
    %v3963 = vpop.f32.mrb[0].mxu0
    %v3964 = vpop.f32.mrb[0].mxu0
    %v3965 = vadd.f32 0.0, %v3964
    %v3966 = vpop.f32.mrb[0].mxu0
    %3967 = vmatprep.mubr.bf16.mxu0 0
    %3968 = vmatmul.mubr.bf16.gmra.mrb[0].mxu0 %v3848
    %v3969 = vpop.f32.mrb[0].mxu0
    %v3970 = vadd.f32 0.0, %v3969
    %v3971 = vpop.f32.mrb[0].mxu0
    %v3972 = vpop.f32.mrb[0].mxu0
    %v3973 = vadd.f32 0.0, %v3972
    %v3974 = vpop.f32.mrb[0].mxu0
    %3975 = vmatprep.mubr.bf16.mxu0 0
    %3976 = vmatmul.mubr.bf16.gmra.mrb[0].mxu0 %v3849
    %v3977 = vpop.f32.mrb[0].mxu0
    %v3978 = vadd.f32 0.0, %v3977
    %v3979 = vpop.f32.mrb[0].mxu0
    %v3980 = vpop.f32.mrb[0].mxu0
    %v3981 = vadd.f32 0.0, %v3980
    %v3982 = vpop.f32.mrb[0].mxu0
    %3983 = vmatprep.mubr.bf16.mxu0 0
    %3984 = vmatmul.mubr.bf16.gmra.mrb[0].mxu0 %v3850
    %v3985 = vpop.f32.mrb[0].mxu0
    %v3986 = vadd.f32 0.0, %v3985
    %v3987 = vpop.f32.mrb[0].mxu0
    %v3988 = vpop.f32.mrb[0].mxu0
    %v3989 = vadd.f32 0.0, %v3988
    %v3990 = vpop.f32.mrb[0].mxu0
    %3991 = vmatprep.mubr.bf16.mxu0 0
    %3992 = vmatmul.mubr.bf16.gmra.mrb[0].mxu0 %v3851
    %v3993 = vpop.f32.mrb[0].mxu0
    %v3994 = vadd.f32 0.0, %v3993
    %v3995 = vpop.f32.mrb[0].mxu0
    %v3996 = vpop.f32.mrb[0].mxu0
    %v3997 = vadd.f32 0.0, %v3996
    %v3998 = vpop.f32.mrb[0].mxu0
    %3999 = vmatprep.mubr.bf16.mxu0 0
    %4000 = vmatmul.mubr.bf16.gmra.mrb[0].mxu0 %v3852
    %v4001 = vpop.f32.mrb[0].mxu0
    %v4002 = vadd.f32 0.0, %v4001
    %v4003 = vpop.f32.mrb[0].mxu0
    %v4004 = vpop.f32.mrb[0].mxu0
    %v4005 = vadd.f32 0.0, %v4004
    %v4006 = vpop.f32.mrb[0].mxu0
    %4007 = vmatprep.mubr.bf16.mxu0 0
    %4008 = vmatmul.mubr.bf16.gmra.mrb[0].mxu0 %v3853
    %v4009 = vpop.f32.mrb[0].mxu0
    %v4010 = vadd.f32 0.0, %v4009
    %v4011 = vpop.f32.mrb[0].mxu0
    %v4012 = vpop.f32.mrb[0].mxu0
    %v4013 = vadd.f32 0.0, %v4012
    %v4014 = vpop.f32.mrb[0].mxu0
    %4015 = vdwg.mxu0
    %v4016 = vadd.f32 %v3814, %v3954
    %v4017 = vadd.f32 %v3815, %v3957
    %v4018 = vadd.f32 %v3816, %v3962
    %v4019 = vadd.f32 %v3817, %v3965
    %v4020 = vadd.f32 %v3818, %v3970
    %v4021 = vadd.f32 %v3819, %v3973
    %v4022 = vadd.f32 %v3820, %v3978
    %v4023 = vadd.f32 %v3821, %v3981
    %v4024 = vadd.f32 %v3822, %v3986
    %v4025 = vadd.f32 %v3823, %v3989
    %v4026 = vadd.f32 %v3824, %v3994
    %v4027 = vadd.f32 %v3825, %v3997
    %v4028 = vadd.f32 %v3826, %v4002
    %v4029 = vadd.f32 %v3827, %v4005
    %v4030 = vadd.f32 %v3828, %v4010
    %v4031 = vadd.f32 %v3829, %v4013
    %v4032 = vld [vmem:[%s3627 + $0x2] sm:$0xff]
    %v4033 = vld [vmem:[%s3627 + $0x12] sm:$0xff]
    %v4034 = vld [vmem:[%s3627 + $0x22] sm:$0xff]
    %v4035 = vld [vmem:[%s3627 + $0x32] sm:$0xff]
    %v4036 = vld [vmem:[%s3627 + $0x42] sm:$0xff]
    %v4037 = vld [vmem:[%s3627 + $0x52] sm:$0xff]
    %v4038 = vld [vmem:[%s3627 + $0x62] sm:$0xff]
    %v4039 = vld [vmem:[%s3627 + $0x72] sm:$0xff]
    %v4040 = vld [vmem:[%s3627 + $0xc2] sm:$0xff]
    %v4041 = vld [vmem:[%s3627 + $0xd2] sm:$0xff]
    %v4042 = vld [vmem:[%s3627 + $0xe2] sm:$0xff]
    %v4043 = vld [vmem:[%s3627 + $0xf2] sm:$0xff]
    %v4044 = vld [vmem:[%s3627 + $0x102] sm:$0xff]
    %v4045 = vld [vmem:[%s3627 + $0x112] sm:$0xff]
    %v4046 = vld [vmem:[%s3627 + $0x122] sm:$0xff]
    %v4047 = vld [vmem:[%s3627 + $0x132] sm:$0xff]
    %v4048 = vpack.c.bf16 %v4033, %v4032
    %v4049 = vpack.c.bf16 %v4035, %v4034
    %v4050 = vpack.c.bf16 %v4037, %v4036
    %v4051 = vpack.c.bf16 %v4039, %v4038
    %v4052 = vpack.c.bf16 %v4041, %v4040
    %v4053 = vpack.c.bf16 %v4043, %v4042
    %v4054 = vpack.c.bf16 %v4045, %v4044
    %v4055 = vpack.c.bf16 %v4047, %v4046
    %s4056 = scalar_lea.vmem %s3, 448
    %v4057 = vld [vmem:[%s4056] sm:$0xf]
    %v4058 = vld [vmem:[%s4056 + $0x4] sm:$0xf]
    %v4059 = vld [vmem:[%s4056 + $0x8] sm:$0xf]
    %v4060 = vld [vmem:[%s4056 + $0xc] sm:$0xf]
    %v4061 = vld [vmem:[%s4056 + $0x10] sm:$0xf]
    %v4062 = vld [vmem:[%s4056 + $0x14] sm:$0xf]
    %v4063 = vld [vmem:[%s4056 + $0x18] sm:$0xf]
    %v4064 = vld [vmem:[%s4056 + $0x1c] sm:$0xf]
    %v4065 = vld [vmem:[%s4056 + $0x20] sm:$0xf]
    %v4066 = vld [vmem:[%s4056 + $0x24] sm:$0xf]
    %v4067 = vld [vmem:[%s4056 + $0x28] sm:$0xf]
    %v4068 = vld [vmem:[%s4056 + $0x2c] sm:$0xf]
    %v4069 = vld [vmem:[%s4056 + $0x30] sm:$0xf]
    %v4070 = vld [vmem:[%s4056 + $0x34] sm:$0xf]
    %v4071 = vld [vmem:[%s4056 + $0x38] sm:$0xf]
    %v4072 = vld [vmem:[%s4056 + $0x3c] sm:$0xf]
    %v4089 = vunpack.c.l.b16 %v4057
    %v4090 = vunpack.c.l.b16 %v4058
    %v4091 = vunpack.c.l.b16 %v4059
    %v4092 = vunpack.c.l.b16 %v4060
    %v4093 = vunpack.c.l.b16 %v4061
    %v4094 = vunpack.c.l.b16 %v4062
    %v4095 = vunpack.c.l.b16 %v4063
    %v4096 = vunpack.c.l.b16 %v4064
    %v4097 = vunpack.c.l.b16 %v4065
    %v4098 = vunpack.c.l.b16 %v4066
    %v4099 = vunpack.c.l.b16 %v4067
    %v4100 = vunpack.c.l.b16 %v4068
    %v4101 = vunpack.c.l.b16 %v4069
    %v4102 = vunpack.c.l.b16 %v4070
    %v4103 = vunpack.c.l.b16 %v4071
    %v4104 = vunpack.c.l.b16 %v4072
    %v4105 = vpack.c.b16 %v4090, %v4089
    %v4106 = vpack.c.b16 %v4092, %v4091
    %v4107 = vpack.c.b16 %v4094, %v4093
    %v4108 = vpack.c.b16 %v4096, %v4095
    %v4109 = vpack.c.b16 %v4098, %v4097
    %v4110 = vpack.c.b16 %v4100, %v4099
    %v4111 = vpack.c.b16 %v4102, %v4101
    %v4112 = vpack.c.b16 %v4104, %v4103
    %4121 = vmatprep.subr.bf16.mxu0 0
    %4122 = vmatpush1.bf16.msra.mxu0 %v4105
    %4123 = vmatprep.subr.bf16.mxu0 0
    %4124 = vmatpush1.bf16.msra.mxu0 %v4106
    %4125 = vmatprep.subr.bf16.mxu0 0
    %4126 = vmatpush1.bf16.msra.mxu0 %v4107
    %4127 = vmatprep.subr.bf16.mxu0 0
    %4128 = vmatpush1.bf16.msra.mxu0 %v4108
    %4129 = vmatprep.subr.bf16.mxu0 0
    %4130 = vmatpush1.bf16.msra.mxu0 %v4109
    %4131 = vmatprep.subr.bf16.mxu0 0
    %4132 = vmatpush1.bf16.msra.mxu0 %v4110
    %4133 = vmatprep.subr.bf16.mxu0 0
    %4134 = vmatpush1.bf16.msra.mxu0 %v4111
    %4135 = vmatprep.subr.bf16.mxu0 0
    %4136 = vmatpush1.bf16.msra.mxu0 %v4112
    %4137 = vmatprep.subr.bf16.mxu0 0
    %4138 = vmatpush1.bf16.msra.mxu0 0
    %4139 = vmatprep.subr.bf16.mxu0 0
    %4140 = vmatpush1.bf16.msra.mxu0 0
    %4141 = vmatprep.subr.bf16.mxu0 0
    %4142 = vmatpush1.bf16.msra.mxu0 0
    %4143 = vmatprep.subr.bf16.mxu0 0
    %4144 = vmatpush1.bf16.msra.mxu0 0
    %4145 = vmatprep.subr.bf16.mxu0 0
    %4146 = vmatpush1.bf16.msra.mxu0 0
    %4147 = vmatprep.subr.bf16.mxu0 0
    %4148 = vmatpush1.bf16.msra.mxu0 0
    %4149 = vmatprep.subr.bf16.mxu0 0
    %4150 = vmatpush1.bf16.msra.mxu0 0
    %4151 = vmatprep.subr.bf16.mxu0 0
    %4152 = vmatpush1.bf16.msra.mxu0 0
    %4153 = vmatprep.mubr.bf16.mxu0 0
    %4154 = vmatmul.mubr.bf16.gmra.mrb[0].mxu0 %v4048
    %v4155 = vpop.f32.mrb[0].mxu0
    %v4156 = vadd.f32 0.0, %v4155
    %v4157 = vpop.f32.mrb[0].mxu0
    %v4158 = vpop.f32.mrb[0].mxu0
    %v4159 = vadd.f32 0.0, %v4158
    %v4160 = vpop.f32.mrb[0].mxu0
    %4161 = vmatprep.mubr.bf16.mxu0 0
    %4162 = vmatmul.mubr.bf16.gmra.mrb[0].mxu0 %v4049
    %v4163 = vpop.f32.mrb[0].mxu0
    %v4164 = vadd.f32 0.0, %v4163
    %v4165 = vpop.f32.mrb[0].mxu0
    %v4166 = vpop.f32.mrb[0].mxu0
    %v4167 = vadd.f32 0.0, %v4166
    %v4168 = vpop.f32.mrb[0].mxu0
    %4169 = vmatprep.mubr.bf16.mxu0 0
    %4170 = vmatmul.mubr.bf16.gmra.mrb[0].mxu0 %v4050
    %v4171 = vpop.f32.mrb[0].mxu0
    %v4172 = vadd.f32 0.0, %v4171
    %v4173 = vpop.f32.mrb[0].mxu0
    %v4174 = vpop.f32.mrb[0].mxu0
    %v4175 = vadd.f32 0.0, %v4174
    %v4176 = vpop.f32.mrb[0].mxu0
    %4177 = vmatprep.mubr.bf16.mxu0 0
    %4178 = vmatmul.mubr.bf16.gmra.mrb[0].mxu0 %v4051
    %v4179 = vpop.f32.mrb[0].mxu0
    %v4180 = vadd.f32 0.0, %v4179
    %v4181 = vpop.f32.mrb[0].mxu0
    %v4182 = vpop.f32.mrb[0].mxu0
    %v4183 = vadd.f32 0.0, %v4182
    %v4184 = vpop.f32.mrb[0].mxu0
    %4185 = vmatprep.mubr.bf16.mxu0 0
    %4186 = vmatmul.mubr.bf16.gmra.mrb[0].mxu0 %v4052
    %v4187 = vpop.f32.mrb[0].mxu0
    %v4188 = vadd.f32 0.0, %v4187
    %v4189 = vpop.f32.mrb[0].mxu0
    %v4190 = vpop.f32.mrb[0].mxu0
    %v4191 = vadd.f32 0.0, %v4190
    %v4192 = vpop.f32.mrb[0].mxu0
    %4193 = vmatprep.mubr.bf16.mxu0 0
    %4194 = vmatmul.mubr.bf16.gmra.mrb[0].mxu0 %v4053
    %v4195 = vpop.f32.mrb[0].mxu0
    %v4196 = vadd.f32 0.0, %v4195
    %v4197 = vpop.f32.mrb[0].mxu0
    %v4198 = vpop.f32.mrb[0].mxu0
    %v4199 = vadd.f32 0.0, %v4198
    %v4200 = vpop.f32.mrb[0].mxu0
    %4201 = vmatprep.mubr.bf16.mxu0 0
    %4202 = vmatmul.mubr.bf16.gmra.mrb[0].mxu0 %v4054
    %v4203 = vpop.f32.mrb[0].mxu0
    %v4204 = vadd.f32 0.0, %v4203
    %v4205 = vpop.f32.mrb[0].mxu0
    %v4206 = vpop.f32.mrb[0].mxu0
    %v4207 = vadd.f32 0.0, %v4206
    %v4208 = vpop.f32.mrb[0].mxu0
    %4209 = vmatprep.mubr.bf16.mxu0 0
    %4210 = vmatmul.mubr.bf16.gmra.mrb[0].mxu0 %v4055
    %v4211 = vpop.f32.mrb[0].mxu0
    %v4212 = vadd.f32 0.0, %v4211
    %v4213 = vpop.f32.mrb[0].mxu0
    %v4214 = vpop.f32.mrb[0].mxu0
    %v4215 = vadd.f32 0.0, %v4214
    %v4216 = vpop.f32.mrb[0].mxu0
    %4217 = vdwg.mxu0
    %v4218 = vadd.f32 %v4016, %v4156
    %v4219 = vadd.f32 %v4017, %v4159
    %v4220 = vadd.f32 %v4018, %v4164
    %v4221 = vadd.f32 %v4019, %v4167
    %v4222 = vadd.f32 %v4020, %v4172
    %v4223 = vadd.f32 %v4021, %v4175
    %v4224 = vadd.f32 %v4022, %v4180
    %v4225 = vadd.f32 %v4023, %v4183
    %v4226 = vadd.f32 %v4024, %v4188
    %v4227 = vadd.f32 %v4025, %v4191
    %v4228 = vadd.f32 %v4026, %v4196
    %v4229 = vadd.f32 %v4027, %v4199
    %v4230 = vadd.f32 %v4028, %v4204
    %v4231 = vadd.f32 %v4029, %v4207
    %v4232 = vadd.f32 %v4030, %v4212
    %v4233 = vadd.f32 %v4031, %v4215
    %v4234 = vld [vmem:[%s3627 + $0x3] sm:$0xff]
    %v4235 = vld [vmem:[%s3627 + $0x13] sm:$0xff]
    %v4236 = vld [vmem:[%s3627 + $0x23] sm:$0xff]
    %v4237 = vld [vmem:[%s3627 + $0x33] sm:$0xff]
    %v4238 = vld [vmem:[%s3627 + $0x43] sm:$0xff]
    %v4239 = vld [vmem:[%s3627 + $0x53] sm:$0xff]
    %v4240 = vld [vmem:[%s3627 + $0x63] sm:$0xff]
    %v4241 = vld [vmem:[%s3627 + $0x73] sm:$0xff]
    %v4242 = vld [vmem:[%s3627 + $0xc3] sm:$0xff]
    %v4243 = vld [vmem:[%s3627 + $0xd3] sm:$0xff]
    %v4244 = vld [vmem:[%s3627 + $0xe3] sm:$0xff]
    %v4245 = vld [vmem:[%s3627 + $0xf3] sm:$0xff]
    %v4246 = vld [vmem:[%s3627 + $0x103] sm:$0xff]
    %v4247 = vld [vmem:[%s3627 + $0x113] sm:$0xff]
    %v4248 = vld [vmem:[%s3627 + $0x123] sm:$0xff]
    %v4249 = vld [vmem:[%s3627 + $0x133] sm:$0xff]
    %v4250 = vpack.c.bf16 %v4235, %v4234
    %v4251 = vpack.c.bf16 %v4237, %v4236
    %v4252 = vpack.c.bf16 %v4239, %v4238
    %v4253 = vpack.c.bf16 %v4241, %v4240
    %v4254 = vpack.c.bf16 %v4243, %v4242
    %v4255 = vpack.c.bf16 %v4245, %v4244
    %v4256 = vpack.c.bf16 %v4247, %v4246
    %v4257 = vpack.c.bf16 %v4249, %v4248
    %s4258 = scalar_lea.vmem %s3, 512
    %v4259 = vld [vmem:[%s4258] sm:$0xf]
    %v4260 = vld [vmem:[%s4258 + $0x4] sm:$0xf]
    %v4261 = vld [vmem:[%s4258 + $0x8] sm:$0xf]
    %v4262 = vld [vmem:[%s4258 + $0xc] sm:$0xf]
    %v4263 = vld [vmem:[%s4258 + $0x10] sm:$0xf]
    %v4264 = vld [vmem:[%s4258 + $0x14] sm:$0xf]
    %v4265 = vld [vmem:[%s4258 + $0x18] sm:$0xf]
    %v4266 = vld [vmem:[%s4258 + $0x1c] sm:$0xf]
    %v4267 = vld [vmem:[%s4258 + $0x20] sm:$0xf]
    %v4268 = vld [vmem:[%s4258 + $0x24] sm:$0xf]
    %v4269 = vld [vmem:[%s4258 + $0x28] sm:$0xf]
    %v4270 = vld [vmem:[%s4258 + $0x2c] sm:$0xf]
    %v4271 = vld [vmem:[%s4258 + $0x30] sm:$0xf]
    %v4272 = vld [vmem:[%s4258 + $0x34] sm:$0xf]
    %v4273 = vld [vmem:[%s4258 + $0x38] sm:$0xf]
    %v4274 = vld [vmem:[%s4258 + $0x3c] sm:$0xf]
    %v4291 = vunpack.c.l.b16 %v4259
    %v4292 = vunpack.c.l.b16 %v4260
    %v4293 = vunpack.c.l.b16 %v4261
    %v4294 = vunpack.c.l.b16 %v4262
    %v4295 = vunpack.c.l.b16 %v4263
    %v4296 = vunpack.c.l.b16 %v4264
    %v4297 = vunpack.c.l.b16 %v4265
    %v4298 = vunpack.c.l.b16 %v4266
    %v4299 = vunpack.c.l.b16 %v4267
    %v4300 = vunpack.c.l.b16 %v4268
    %v4301 = vunpack.c.l.b16 %v4269
    %v4302 = vunpack.c.l.b16 %v4270
    %v4303 = vunpack.c.l.b16 %v4271
    %v4304 = vunpack.c.l.b16 %v4272
    %v4305 = vunpack.c.l.b16 %v4273
    %v4306 = vunpack.c.l.b16 %v4274
    %v4307 = vpack.c.b16 %v4292, %v4291
    %v4308 = vpack.c.b16 %v4294, %v4293
    %v4309 = vpack.c.b16 %v4296, %v4295
    %v4310 = vpack.c.b16 %v4298, %v4297
    %v4311 = vpack.c.b16 %v4300, %v4299
    %v4312 = vpack.c.b16 %v4302, %v4301
    %v4313 = vpack.c.b16 %v4304, %v4303
    %v4314 = vpack.c.b16 %v4306, %v4305
    %4323 = vmatprep.subr.bf16.mxu0 0
    %4324 = vmatpush1.bf16.msra.mxu0 %v4307
    %4325 = vmatprep.subr.bf16.mxu0 0
    %4326 = vmatpush1.bf16.msra.mxu0 %v4308
    %4327 = vmatprep.subr.bf16.mxu0 0
    %4328 = vmatpush1.bf16.msra.mxu0 %v4309
    %4329 = vmatprep.subr.bf16.mxu0 0
    %4330 = vmatpush1.bf16.msra.mxu0 %v4310
    %4331 = vmatprep.subr.bf16.mxu0 0
    %4332 = vmatpush1.bf16.msra.mxu0 %v4311
    %4333 = vmatprep.subr.bf16.mxu0 0
    %4334 = vmatpush1.bf16.msra.mxu0 %v4312
    %4335 = vmatprep.subr.bf16.mxu0 0
    %4336 = vmatpush1.bf16.msra.mxu0 %v4313
    %4337 = vmatprep.subr.bf16.mxu0 0
    %4338 = vmatpush1.bf16.msra.mxu0 %v4314
    %4339 = vmatprep.subr.bf16.mxu0 0
    %4340 = vmatpush1.bf16.msra.mxu0 0
    %4341 = vmatprep.subr.bf16.mxu0 0
    %4342 = vmatpush1.bf16.msra.mxu0 0
    %4343 = vmatprep.subr.bf16.mxu0 0
    %4344 = vmatpush1.bf16.msra.mxu0 0
    %4345 = vmatprep.subr.bf16.mxu0 0
    %4346 = vmatpush1.bf16.msra.mxu0 0
    %4347 = vmatprep.subr.bf16.mxu0 0
    %4348 = vmatpush1.bf16.msra.mxu0 0
    %4349 = vmatprep.subr.bf16.mxu0 0
    %4350 = vmatpush1.bf16.msra.mxu0 0
    %4351 = vmatprep.subr.bf16.mxu0 0
    %4352 = vmatpush1.bf16.msra.mxu0 0
    %4353 = vmatprep.subr.bf16.mxu0 0
    %4354 = vmatpush1.bf16.msra.mxu0 0
    %4355 = vmatprep.mubr.bf16.mxu0 0
    %4356 = vmatmul.mubr.bf16.gmra.mrb[0].mxu0 %v4250
    %v4357 = vpop.f32.mrb[0].mxu0
    %v4358 = vadd.f32 0.0, %v4357
    %v4359 = vpop.f32.mrb[0].mxu0
    %v4360 = vpop.f32.mrb[0].mxu0
    %v4361 = vadd.f32 0.0, %v4360
    %v4362 = vpop.f32.mrb[0].mxu0
    %4363 = vmatprep.mubr.bf16.mxu0 0
    %4364 = vmatmul.mubr.bf16.gmra.mrb[0].mxu0 %v4251
    %v4365 = vpop.f32.mrb[0].mxu0
    %v4366 = vadd.f32 0.0, %v4365
    %v4367 = vpop.f32.mrb[0].mxu0
    %v4368 = vpop.f32.mrb[0].mxu0
    %v4369 = vadd.f32 0.0, %v4368
    %v4370 = vpop.f32.mrb[0].mxu0
    %4371 = vmatprep.mubr.bf16.mxu0 0
    %4372 = vmatmul.mubr.bf16.gmra.mrb[0].mxu0 %v4252
    %v4373 = vpop.f32.mrb[0].mxu0
    %v4374 = vadd.f32 0.0, %v4373
    %v4375 = vpop.f32.mrb[0].mxu0
    %v4376 = vpop.f32.mrb[0].mxu0
    %v4377 = vadd.f32 0.0, %v4376
    %v4378 = vpop.f32.mrb[0].mxu0
    %4379 = vmatprep.mubr.bf16.mxu0 0
    %4380 = vmatmul.mubr.bf16.gmra.mrb[0].mxu0 %v4253
    %v4381 = vpop.f32.mrb[0].mxu0
    %v4382 = vadd.f32 0.0, %v4381
    %v4383 = vpop.f32.mrb[0].mxu0
    %v4384 = vpop.f32.mrb[0].mxu0
    %v4385 = vadd.f32 0.0, %v4384
    %v4386 = vpop.f32.mrb[0].mxu0
    %4387 = vmatprep.mubr.bf16.mxu0 0
    %4388 = vmatmul.mubr.bf16.gmra.mrb[0].mxu0 %v4254
    %v4389 = vpop.f32.mrb[0].mxu0
    %v4390 = vadd.f32 0.0, %v4389
    %v4391 = vpop.f32.mrb[0].mxu0
    %v4392 = vpop.f32.mrb[0].mxu0
    %v4393 = vadd.f32 0.0, %v4392
    %v4394 = vpop.f32.mrb[0].mxu0
    %4395 = vmatprep.mubr.bf16.mxu0 0
    %4396 = vmatmul.mubr.bf16.gmra.mrb[0].mxu0 %v4255
    %v4397 = vpop.f32.mrb[0].mxu0
    %v4398 = vadd.f32 0.0, %v4397
    %v4399 = vpop.f32.mrb[0].mxu0
    %v4400 = vpop.f32.mrb[0].mxu0
    %v4401 = vadd.f32 0.0, %v4400
    %v4402 = vpop.f32.mrb[0].mxu0
    %4403 = vmatprep.mubr.bf16.mxu0 0
    %4404 = vmatmul.mubr.bf16.gmra.mrb[0].mxu0 %v4256
    %v4405 = vpop.f32.mrb[0].mxu0
    %v4406 = vadd.f32 0.0, %v4405
    %v4407 = vpop.f32.mrb[0].mxu0
    %v4408 = vpop.f32.mrb[0].mxu0
    %v4409 = vadd.f32 0.0, %v4408
    %v4410 = vpop.f32.mrb[0].mxu0
    %4411 = vmatprep.mubr.bf16.mxu0 0
    %4412 = vmatmul.mubr.bf16.gmra.mrb[0].mxu0 %v4257
    %v4413 = vpop.f32.mrb[0].mxu0
    %v4414 = vadd.f32 0.0, %v4413
    %v4415 = vpop.f32.mrb[0].mxu0
    %v4416 = vpop.f32.mrb[0].mxu0
    %v4417 = vadd.f32 0.0, %v4416
    %v4418 = vpop.f32.mrb[0].mxu0
    %4419 = vdwg.mxu0
    %v4420 = vadd.f32 %v4218, %v4358
    %v4421 = vadd.f32 %v4219, %v4361
    %v4422 = vadd.f32 %v4220, %v4366
    %v4423 = vadd.f32 %v4221, %v4369
    %v4424 = vadd.f32 %v4222, %v4374
    %v4425 = vadd.f32 %v4223, %v4377
    %v4426 = vadd.f32 %v4224, %v4382
    %v4427 = vadd.f32 %v4225, %v4385
    %v4428 = vadd.f32 %v4226, %v4390
    %v4429 = vadd.f32 %v4227, %v4393
    %v4430 = vadd.f32 %v4228, %v4398
    %v4431 = vadd.f32 %v4229, %v4401
    %v4432 = vadd.f32 %v4230, %v4406
    %v4433 = vadd.f32 %v4231, %v4409
    %v4434 = vadd.f32 %v4232, %v4414
    %v4435 = vadd.f32 %v4233, %v4417
    %v4436 = vld [vmem:[%s3627 + $0x4] sm:$0xff]
    %v4437 = vld [vmem:[%s3627 + $0x14] sm:$0xff]
    %v4438 = vld [vmem:[%s3627 + $0x24] sm:$0xff]
    %v4439 = vld [vmem:[%s3627 + $0x34] sm:$0xff]
    %v4440 = vld [vmem:[%s3627 + $0x44] sm:$0xff]
    %v4441 = vld [vmem:[%s3627 + $0x54] sm:$0xff]
    %v4442 = vld [vmem:[%s3627 + $0x64] sm:$0xff]
    %v4443 = vld [vmem:[%s3627 + $0x74] sm:$0xff]
    %v4444 = vld [vmem:[%s3627 + $0xc4] sm:$0xff]
    %v4445 = vld [vmem:[%s3627 + $0xd4] sm:$0xff]
    %v4446 = vld [vmem:[%s3627 + $0xe4] sm:$0xff]
    %v4447 = vld [vmem:[%s3627 + $0xf4] sm:$0xff]
    %v4448 = vld [vmem:[%s3627 + $0x104] sm:$0xff]
    %v4449 = vld [vmem:[%s3627 + $0x114] sm:$0xff]
    %v4450 = vld [vmem:[%s3627 + $0x124] sm:$0xff]
    %v4451 = vld [vmem:[%s3627 + $0x134] sm:$0xff]
    %v4452 = vpack.c.bf16 %v4437, %v4436
    %v4453 = vpack.c.bf16 %v4439, %v4438
    %v4454 = vpack.c.bf16 %v4441, %v4440
    %v4455 = vpack.c.bf16 %v4443, %v4442
    %v4456 = vpack.c.bf16 %v4445, %v4444
    %v4457 = vpack.c.bf16 %v4447, %v4446
    %v4458 = vpack.c.bf16 %v4449, %v4448
    %v4459 = vpack.c.bf16 %v4451, %v4450
    %s4460 = scalar_lea.vmem %s3, 576
    %v4461 = vld [vmem:[%s4460] sm:$0xf]
    %v4462 = vld [vmem:[%s4460 + $0x4] sm:$0xf]
    %v4463 = vld [vmem:[%s4460 + $0x8] sm:$0xf]
    %v4464 = vld [vmem:[%s4460 + $0xc] sm:$0xf]
    %v4465 = vld [vmem:[%s4460 + $0x10] sm:$0xf]
    %v4466 = vld [vmem:[%s4460 + $0x14] sm:$0xf]
    %v4467 = vld [vmem:[%s4460 + $0x18] sm:$0xf]
    %v4468 = vld [vmem:[%s4460 + $0x1c] sm:$0xf]
    %v4469 = vld [vmem:[%s4460 + $0x20] sm:$0xf]
    %v4470 = vld [vmem:[%s4460 + $0x24] sm:$0xf]
    %v4471 = vld [vmem:[%s4460 + $0x28] sm:$0xf]
    %v4472 = vld [vmem:[%s4460 + $0x2c] sm:$0xf]
    %v4473 = vld [vmem:[%s4460 + $0x30] sm:$0xf]
    %v4474 = vld [vmem:[%s4460 + $0x34] sm:$0xf]
    %v4475 = vld [vmem:[%s4460 + $0x38] sm:$0xf]
    %v4476 = vld [vmem:[%s4460 + $0x3c] sm:$0xf]
    %v4493 = vunpack.c.l.b16 %v4461
    %v4494 = vunpack.c.l.b16 %v4462
    %v4495 = vunpack.c.l.b16 %v4463
    %v4496 = vunpack.c.l.b16 %v4464
    %v4497 = vunpack.c.l.b16 %v4465
    %v4498 = vunpack.c.l.b16 %v4466
    %v4499 = vunpack.c.l.b16 %v4467
    %v4500 = vunpack.c.l.b16 %v4468
    %v4501 = vunpack.c.l.b16 %v4469
    %v4502 = vunpack.c.l.b16 %v4470
    %v4503 = vunpack.c.l.b16 %v4471
    %v4504 = vunpack.c.l.b16 %v4472
    %v4505 = vunpack.c.l.b16 %v4473
    %v4506 = vunpack.c.l.b16 %v4474
    %v4507 = vunpack.c.l.b16 %v4475
    %v4508 = vunpack.c.l.b16 %v4476
    %v4509 = vpack.c.b16 %v4494, %v4493
    %v4510 = vpack.c.b16 %v4496, %v4495
    %v4511 = vpack.c.b16 %v4498, %v4497
    %v4512 = vpack.c.b16 %v4500, %v4499
    %v4513 = vpack.c.b16 %v4502, %v4501
    %v4514 = vpack.c.b16 %v4504, %v4503
    %v4515 = vpack.c.b16 %v4506, %v4505
    %v4516 = vpack.c.b16 %v4508, %v4507
    %4525 = vmatprep.subr.bf16.mxu0 0
    %4526 = vmatpush1.bf16.msra.mxu0 %v4509
    %4527 = vmatprep.subr.bf16.mxu0 0
    %4528 = vmatpush1.bf16.msra.mxu0 %v4510
    %4529 = vmatprep.subr.bf16.mxu0 0
    %4530 = vmatpush1.bf16.msra.mxu0 %v4511
    %4531 = vmatprep.subr.bf16.mxu0 0
    %4532 = vmatpush1.bf16.msra.mxu0 %v4512
    %4533 = vmatprep.subr.bf16.mxu0 0
    %4534 = vmatpush1.bf16.msra.mxu0 %v4513
    %4535 = vmatprep.subr.bf16.mxu0 0
    %4536 = vmatpush1.bf16.msra.mxu0 %v4514
    %4537 = vmatprep.subr.bf16.mxu0 0
    %4538 = vmatpush1.bf16.msra.mxu0 %v4515
    %4539 = vmatprep.subr.bf16.mxu0 0
    %4540 = vmatpush1.bf16.msra.mxu0 %v4516
    %4541 = vmatprep.subr.bf16.mxu0 0
    %4542 = vmatpush1.bf16.msra.mxu0 0
    %4543 = vmatprep.subr.bf16.mxu0 0
    %4544 = vmatpush1.bf16.msra.mxu0 0
    %4545 = vmatprep.subr.bf16.mxu0 0
    %4546 = vmatpush1.bf16.msra.mxu0 0
    %4547 = vmatprep.subr.bf16.mxu0 0
    %4548 = vmatpush1.bf16.msra.mxu0 0
    %4549 = vmatprep.subr.bf16.mxu0 0
    %4550 = vmatpush1.bf16.msra.mxu0 0
    %4551 = vmatprep.subr.bf16.mxu0 0
    %4552 = vmatpush1.bf16.msra.mxu0 0
    %4553 = vmatprep.subr.bf16.mxu0 0
    %4554 = vmatpush1.bf16.msra.mxu0 0
    %4555 = vmatprep.subr.bf16.mxu0 0
    %4556 = vmatpush1.bf16.msra.mxu0 0
    %4557 = vmatprep.mubr.bf16.mxu0 0
    %4558 = vmatmul.mubr.bf16.gmra.mrb[0].mxu0 %v4452
    %v4559 = vpop.f32.mrb[0].mxu0
    %v4560 = vadd.f32 0.0, %v4559
    %v4561 = vpop.f32.mrb[0].mxu0
    %v4562 = vpop.f32.mrb[0].mxu0
    %v4563 = vadd.f32 0.0, %v4562
    %v4564 = vpop.f32.mrb[0].mxu0
    %4565 = vmatprep.mubr.bf16.mxu0 0
    %4566 = vmatmul.mubr.bf16.gmra.mrb[0].mxu0 %v4453
    %v4567 = vpop.f32.mrb[0].mxu0
    %v4568 = vadd.f32 0.0, %v4567
    %v4569 = vpop.f32.mrb[0].mxu0
    %v4570 = vpop.f32.mrb[0].mxu0
    %v4571 = vadd.f32 0.0, %v4570
    %v4572 = vpop.f32.mrb[0].mxu0
    %4573 = vmatprep.mubr.bf16.mxu0 0
    %4574 = vmatmul.mubr.bf16.gmra.mrb[0].mxu0 %v4454
    %v4575 = vpop.f32.mrb[0].mxu0
    %v4576 = vadd.f32 0.0, %v4575
    %v4577 = vpop.f32.mrb[0].mxu0
    %v4578 = vpop.f32.mrb[0].mxu0
    %v4579 = vadd.f32 0.0, %v4578
    %v4580 = vpop.f32.mrb[0].mxu0
    %4581 = vmatprep.mubr.bf16.mxu0 0
    %4582 = vmatmul.mubr.bf16.gmra.mrb[0].mxu0 %v4455
    %v4583 = vpop.f32.mrb[0].mxu0
    %v4584 = vadd.f32 0.0, %v4583
    %v4585 = vpop.f32.mrb[0].mxu0
    %v4586 = vpop.f32.mrb[0].mxu0
    %v4587 = vadd.f32 0.0, %v4586
    %v4588 = vpop.f32.mrb[0].mxu0
    %4589 = vmatprep.mubr.bf16.mxu0 0
    %4590 = vmatmul.mubr.bf16.gmra.mrb[0].mxu0 %v4456
    %v4591 = vpop.f32.mrb[0].mxu0
    %v4592 = vadd.f32 0.0, %v4591
    %v4593 = vpop.f32.mrb[0].mxu0
    %v4594 = vpop.f32.mrb[0].mxu0
    %v4595 = vadd.f32 0.0, %v4594
    %v4596 = vpop.f32.mrb[0].mxu0
    %4597 = vmatprep.mubr.bf16.mxu0 0
    %4598 = vmatmul.mubr.bf16.gmra.mrb[0].mxu0 %v4457
    %v4599 = vpop.f32.mrb[0].mxu0
    %v4600 = vadd.f32 0.0, %v4599
    %v4601 = vpop.f32.mrb[0].mxu0
    %v4602 = vpop.f32.mrb[0].mxu0
    %v4603 = vadd.f32 0.0, %v4602
    %v4604 = vpop.f32.mrb[0].mxu0
    %4605 = vmatprep.mubr.bf16.mxu0 0
    %4606 = vmatmul.mubr.bf16.gmra.mrb[0].mxu0 %v4458
    %v4607 = vpop.f32.mrb[0].mxu0
    %v4608 = vadd.f32 0.0, %v4607
    %v4609 = vpop.f32.mrb[0].mxu0
    %v4610 = vpop.f32.mrb[0].mxu0
    %v4611 = vadd.f32 0.0, %v4610
    %v4612 = vpop.f32.mrb[0].mxu0
    %4613 = vmatprep.mubr.bf16.mxu0 0
    %4614 = vmatmul.mubr.bf16.gmra.mrb[0].mxu0 %v4459
    %v4615 = vpop.f32.mrb[0].mxu0
    %v4616 = vadd.f32 0.0, %v4615
    %v4617 = vpop.f32.mrb[0].mxu0
    %v4618 = vpop.f32.mrb[0].mxu0
    %v4619 = vadd.f32 0.0, %v4618
    %v4620 = vpop.f32.mrb[0].mxu0
    %4621 = vdwg.mxu0
    %v4622 = vadd.f32 %v4420, %v4560
    %v4623 = vadd.f32 %v4421, %v4563
    %v4624 = vadd.f32 %v4422, %v4568
    %v4625 = vadd.f32 %v4423, %v4571
    %v4626 = vadd.f32 %v4424, %v4576
    %v4627 = vadd.f32 %v4425, %v4579
    %v4628 = vadd.f32 %v4426, %v4584
    %v4629 = vadd.f32 %v4427, %v4587
    %v4630 = vadd.f32 %v4428, %v4592
    %v4631 = vadd.f32 %v4429, %v4595
    %v4632 = vadd.f32 %v4430, %v4600
    %v4633 = vadd.f32 %v4431, %v4603
    %v4634 = vadd.f32 %v4432, %v4608
    %v4635 = vadd.f32 %v4433, %v4611
    %v4636 = vadd.f32 %v4434, %v4616
    %v4637 = vadd.f32 %v4435, %v4619
    %s4638 = scalar_lea.vmem [#allocation2], 32
    %v4639 = vld [vmem:[%s4638] sm:$0xff]
    %v4640 = vld [vmem:[%s4638 + $0x10] sm:$0xff]
    %v4641 = vld [vmem:[%s4638 + $0x20] sm:$0xff]
    %v4642 = vld [vmem:[%s4638 + $0x30] sm:$0xff]
    %v4643 = vld [vmem:[%s4638 + $0x40] sm:$0xff]
    %v4644 = vld [vmem:[%s4638 + $0x50] sm:$0xff]
    %v4645 = vld [vmem:[%s4638 + $0x60] sm:$0xff]
    %v4646 = vld [vmem:[%s4638 + $0x70] sm:$0xff]
    %v4647 = vld [vmem:[%s4638 + $0xc0] sm:$0xff]
    %v4648 = vld [vmem:[%s4638 + $0xd0] sm:$0xff]
    %v4649 = vld [vmem:[%s4638 + $0xe0] sm:$0xff]
    %v4650 = vld [vmem:[%s4638 + $0xf0] sm:$0xff]
    %v4651 = vld [vmem:[%s4638 + $0x100] sm:$0xff]
    %v4652 = vld [vmem:[%s4638 + $0x110] sm:$0xff]
    %v4653 = vld [vmem:[%s4638 + $0x120] sm:$0xff]
    %v4654 = vld [vmem:[%s4638 + $0x130] sm:$0xff]
    %v4655 = vpack.c.bf16 %v4640, %v4639
    %v4656 = vpack.c.bf16 %v4642, %v4641
    %v4657 = vpack.c.bf16 %v4644, %v4643
    %v4658 = vpack.c.bf16 %v4646, %v4645
    %v4659 = vpack.c.bf16 %v4648, %v4647
    %v4660 = vpack.c.bf16 %v4650, %v4649
    %v4661 = vpack.c.bf16 %v4652, %v4651
    %v4662 = vpack.c.bf16 %v4654, %v4653
    %s4663 = scalar_lea.vmem %s3, 640
    %v4664 = vld [vmem:[%s4663] sm:$0xf]
    %v4665 = vld [vmem:[%s4663 + $0x4] sm:$0xf]
    %v4666 = vld [vmem:[%s4663 + $0x8] sm:$0xf]
    %v4667 = vld [vmem:[%s4663 + $0xc] sm:$0xf]
    %v4668 = vld [vmem:[%s4663 + $0x10] sm:$0xf]
    %v4669 = vld [vmem:[%s4663 + $0x14] sm:$0xf]
    %v4670 = vld [vmem:[%s4663 + $0x18] sm:$0xf]
    %v4671 = vld [vmem:[%s4663 + $0x1c] sm:$0xf]
    %v4672 = vld [vmem:[%s4663 + $0x20] sm:$0xf]
    %v4673 = vld [vmem:[%s4663 + $0x24] sm:$0xf]
    %v4674 = vld [vmem:[%s4663 + $0x28] sm:$0xf]
    %v4675 = vld [vmem:[%s4663 + $0x2c] sm:$0xf]
    %v4676 = vld [vmem:[%s4663 + $0x30] sm:$0xf]
    %v4677 = vld [vmem:[%s4663 + $0x34] sm:$0xf]
    %v4678 = vld [vmem:[%s4663 + $0x38] sm:$0xf]
    %v4679 = vld [vmem:[%s4663 + $0x3c] sm:$0xf]
    %v4696 = vunpack.c.l.b16 %v4664
    %v4697 = vunpack.c.l.b16 %v4665
    %v4698 = vunpack.c.l.b16 %v4666
    %v4699 = vunpack.c.l.b16 %v4667
    %v4700 = vunpack.c.l.b16 %v4668
    %v4701 = vunpack.c.l.b16 %v4669
    %v4702 = vunpack.c.l.b16 %v4670
    %v4703 = vunpack.c.l.b16 %v4671
    %v4704 = vunpack.c.l.b16 %v4672
    %v4705 = vunpack.c.l.b16 %v4673
    %v4706 = vunpack.c.l.b16 %v4674
    %v4707 = vunpack.c.l.b16 %v4675
    %v4708 = vunpack.c.l.b16 %v4676
    %v4709 = vunpack.c.l.b16 %v4677
    %v4710 = vunpack.c.l.b16 %v4678
    %v4711 = vunpack.c.l.b16 %v4679
    %v4712 = vpack.c.b16 %v4697, %v4696
    %v4713 = vpack.c.b16 %v4699, %v4698
    %v4714 = vpack.c.b16 %v4701, %v4700
    %v4715 = vpack.c.b16 %v4703, %v4702
    %v4716 = vpack.c.b16 %v4705, %v4704
    %v4717 = vpack.c.b16 %v4707, %v4706
    %v4718 = vpack.c.b16 %v4709, %v4708
    %v4719 = vpack.c.b16 %v4711, %v4710
    %4728 = vmatprep.subr.bf16.mxu0 0
    %4729 = vmatpush1.bf16.msra.mxu0 %v4712
    %4730 = vmatprep.subr.bf16.mxu0 0
    %4731 = vmatpush1.bf16.msra.mxu0 %v4713
    %4732 = vmatprep.subr.bf16.mxu0 0
    %4733 = vmatpush1.bf16.msra.mxu0 %v4714
    %4734 = vmatprep.subr.bf16.mxu0 0
    %4735 = vmatpush1.bf16.msra.mxu0 %v4715
    %4736 = vmatprep.subr.bf16.mxu0 0
    %4737 = vmatpush1.bf16.msra.mxu0 %v4716
    %4738 = vmatprep.subr.bf16.mxu0 0
    %4739 = vmatpush1.bf16.msra.mxu0 %v4717
    %4740 = vmatprep.subr.bf16.mxu0 0
    %4741 = vmatpush1.bf16.msra.mxu0 %v4718
    %4742 = vmatprep.subr.bf16.mxu0 0
    %4743 = vmatpush1.bf16.msra.mxu0 %v4719
    %4744 = vmatprep.subr.bf16.mxu0 0
    %4745 = vmatpush1.bf16.msra.mxu0 0
    %4746 = vmatprep.subr.bf16.mxu0 0
    %4747 = vmatpush1.bf16.msra.mxu0 0
    %4748 = vmatprep.subr.bf16.mxu0 0
    %4749 = vmatpush1.bf16.msra.mxu0 0
    %4750 = vmatprep.subr.bf16.mxu0 0
    %4751 = vmatpush1.bf16.msra.mxu0 0
    %4752 = vmatprep.subr.bf16.mxu0 0
    %4753 = vmatpush1.bf16.msra.mxu0 0
    %4754 = vmatprep.subr.bf16.mxu0 0
    %4755 = vmatpush1.bf16.msra.mxu0 0
    %4756 = vmatprep.subr.bf16.mxu0 0
    %4757 = vmatpush1.bf16.msra.mxu0 0
    %4758 = vmatprep.subr.bf16.mxu0 0
    %4759 = vmatpush1.bf16.msra.mxu0 0
    %4760 = vmatprep.mubr.bf16.mxu0 0
    %4761 = vmatmul.mubr.bf16.gmra.mrb[0].mxu0 %v4655
    %v4762 = vpop.f32.mrb[0].mxu0
    %v4763 = vadd.f32 0.0, %v4762
    %v4764 = vpop.f32.mrb[0].mxu0
    %v4765 = vpop.f32.mrb[0].mxu0
    %v4766 = vadd.f32 0.0, %v4765
    %v4767 = vpop.f32.mrb[0].mxu0
    %4768 = vmatprep.mubr.bf16.mxu0 0
    %4769 = vmatmul.mubr.bf16.gmra.mrb[0].mxu0 %v4656
    %v4770 = vpop.f32.mrb[0].mxu0
    %v4771 = vadd.f32 0.0, %v4770
    %v4772 = vpop.f32.mrb[0].mxu0
    %v4773 = vpop.f32.mrb[0].mxu0
    %v4774 = vadd.f32 0.0, %v4773
    %v4775 = vpop.f32.mrb[0].mxu0
    %4776 = vmatprep.mubr.bf16.mxu0 0
    %4777 = vmatmul.mubr.bf16.gmra.mrb[0].mxu0 %v4657
    %v4778 = vpop.f32.mrb[0].mxu0
    %v4779 = vadd.f32 0.0, %v4778
    %v4780 = vpop.f32.mrb[0].mxu0
    %v4781 = vpop.f32.mrb[0].mxu0
    %v4782 = vadd.f32 0.0, %v4781
    %v4783 = vpop.f32.mrb[0].mxu0
    %4784 = vmatprep.mubr.bf16.mxu0 0
    %4785 = vmatmul.mubr.bf16.gmra.mrb[0].mxu0 %v4658
    %v4786 = vpop.f32.mrb[0].mxu0
    %v4787 = vadd.f32 0.0, %v4786
    %v4788 = vpop.f32.mrb[0].mxu0
    %v4789 = vpop.f32.mrb[0].mxu0
    %v4790 = vadd.f32 0.0, %v4789
    %v4791 = vpop.f32.mrb[0].mxu0
    %4792 = vmatprep.mubr.bf16.mxu0 0
    %4793 = vmatmul.mubr.bf16.gmra.mrb[0].mxu0 %v4659
    %v4794 = vpop.f32.mrb[0].mxu0
    %v4795 = vadd.f32 0.0, %v4794
    %v4796 = vpop.f32.mrb[0].mxu0
    %v4797 = vpop.f32.mrb[0].mxu0
    %v4798 = vadd.f32 0.0, %v4797
    %v4799 = vpop.f32.mrb[0].mxu0
    %4800 = vmatprep.mubr.bf16.mxu0 0
    %4801 = vmatmul.mubr.bf16.gmra.mrb[0].mxu0 %v4660
    %v4802 = vpop.f32.mrb[0].mxu0
    %v4803 = vadd.f32 0.0, %v4802
    %v4804 = vpop.f32.mrb[0].mxu0
    %v4805 = vpop.f32.mrb[0].mxu0
    %v4806 = vadd.f32 0.0, %v4805
    %v4807 = vpop.f32.mrb[0].mxu0
    %4808 = vmatprep.mubr.bf16.mxu0 0
    %4809 = vmatmul.mubr.bf16.gmra.mrb[0].mxu0 %v4661
    %v4810 = vpop.f32.mrb[0].mxu0
    %v4811 = vadd.f32 0.0, %v4810
    %v4812 = vpop.f32.mrb[0].mxu0
    %v4813 = vpop.f32.mrb[0].mxu0
    %v4814 = vadd.f32 0.0, %v4813
    %v4815 = vpop.f32.mrb[0].mxu0
    %4816 = vmatprep.mubr.bf16.mxu0 0
    %4817 = vmatmul.mubr.bf16.gmra.mrb[0].mxu0 %v4662
    %v4818 = vpop.f32.mrb[0].mxu0
    %v4819 = vadd.f32 0.0, %v4818
    %v4820 = vpop.f32.mrb[0].mxu0
    %v4821 = vpop.f32.mrb[0].mxu0
    %v4822 = vadd.f32 0.0, %v4821
    %v4823 = vpop.f32.mrb[0].mxu0
    %4824 = vdwg.mxu0
    %v4825 = vadd.f32 %v4622, %v4763
    %v4826 = vadd.f32 %v4623, %v4766
    %v4827 = vadd.f32 %v4624, %v4771
    %v4828 = vadd.f32 %v4625, %v4774
    %v4829 = vadd.f32 %v4626, %v4779
    %v4830 = vadd.f32 %v4627, %v4782
    %v4831 = vadd.f32 %v4628, %v4787
    %v4832 = vadd.f32 %v4629, %v4790
    %v4833 = vadd.f32 %v4630, %v4795
    %v4834 = vadd.f32 %v4631, %v4798
    %v4835 = vadd.f32 %v4632, %v4803
    %v4836 = vadd.f32 %v4633, %v4806
    %v4837 = vadd.f32 %v4634, %v4811
    %v4838 = vadd.f32 %v4635, %v4814
    %v4839 = vadd.f32 %v4636, %v4819
    %v4840 = vadd.f32 %v4637, %v4822
    %v4841 = vld [vmem:[%s4638 + $0x1] sm:$0xff]
    %v4842 = vld [vmem:[%s4638 + $0x11] sm:$0xff]
    %v4843 = vld [vmem:[%s4638 + $0x21] sm:$0xff]
    %v4844 = vld [vmem:[%s4638 + $0x31] sm:$0xff]
    %v4845 = vld [vmem:[%s4638 + $0x41] sm:$0xff]
    %v4846 = vld [vmem:[%s4638 + $0x51] sm:$0xff]
    %v4847 = vld [vmem:[%s4638 + $0x61] sm:$0xff]
    %v4848 = vld [vmem:[%s4638 + $0x71] sm:$0xff]
    %v4849 = vld [vmem:[%s4638 + $0xc1] sm:$0xff]
    %v4850 = vld [vmem:[%s4638 + $0xd1] sm:$0xff]
    %v4851 = vld [vmem:[%s4638 + $0xe1] sm:$0xff]
    %v4852 = vld [vmem:[%s4638 + $0xf1] sm:$0xff]
    %v4853 = vld [vmem:[%s4638 + $0x101] sm:$0xff]
    %v4854 = vld [vmem:[%s4638 + $0x111] sm:$0xff]
    %v4855 = vld [vmem:[%s4638 + $0x121] sm:$0xff]
    %v4856 = vld [vmem:[%s4638 + $0x131] sm:$0xff]
    %v4857 = vpack.c.bf16 %v4842, %v4841
    %v4858 = vpack.c.bf16 %v4844, %v4843
    %v4859 = vpack.c.bf16 %v4846, %v4845
    %v4860 = vpack.c.bf16 %v4848, %v4847
    %v4861 = vpack.c.bf16 %v4850, %v4849
    %v4862 = vpack.c.bf16 %v4852, %v4851
    %v4863 = vpack.c.bf16 %v4854, %v4853
    %v4864 = vpack.c.bf16 %v4856, %v4855
    %s4865 = scalar_lea.vmem %s3, 704
    %v4866 = vld [vmem:[%s4865] sm:$0xf]
    %v4867 = vld [vmem:[%s4865 + $0x4] sm:$0xf]
    %v4868 = vld [vmem:[%s4865 + $0x8] sm:$0xf]
    %v4869 = vld [vmem:[%s4865 + $0xc] sm:$0xf]
    %v4870 = vld [vmem:[%s4865 + $0x10] sm:$0xf]
    %v4871 = vld [vmem:[%s4865 + $0x14] sm:$0xf]
    %v4872 = vld [vmem:[%s4865 + $0x18] sm:$0xf]
    %v4873 = vld [vmem:[%s4865 + $0x1c] sm:$0xf]
    %v4874 = vld [vmem:[%s4865 + $0x20] sm:$0xf]
    %v4875 = vld [vmem:[%s4865 + $0x24] sm:$0xf]
    %v4876 = vld [vmem:[%s4865 + $0x28] sm:$0xf]
    %v4877 = vld [vmem:[%s4865 + $0x2c] sm:$0xf]
    %v4878 = vld [vmem:[%s4865 + $0x30] sm:$0xf]
    %v4879 = vld [vmem:[%s4865 + $0x34] sm:$0xf]
    %v4880 = vld [vmem:[%s4865 + $0x38] sm:$0xf]
    %v4881 = vld [vmem:[%s4865 + $0x3c] sm:$0xf]
    %v4898 = vunpack.c.l.b16 %v4866
    %v4899 = vunpack.c.l.b16 %v4867
    %v4900 = vunpack.c.l.b16 %v4868
    %v4901 = vunpack.c.l.b16 %v4869
    %v4902 = vunpack.c.l.b16 %v4870
    %v4903 = vunpack.c.l.b16 %v4871
    %v4904 = vunpack.c.l.b16 %v4872
    %v4905 = vunpack.c.l.b16 %v4873
    %v4906 = vunpack.c.l.b16 %v4874
    %v4907 = vunpack.c.l.b16 %v4875
    %v4908 = vunpack.c.l.b16 %v4876
    %v4909 = vunpack.c.l.b16 %v4877
    %v4910 = vunpack.c.l.b16 %v4878
    %v4911 = vunpack.c.l.b16 %v4879
    %v4912 = vunpack.c.l.b16 %v4880
    %v4913 = vunpack.c.l.b16 %v4881
    %v4914 = vpack.c.b16 %v4899, %v4898
    %v4915 = vpack.c.b16 %v4901, %v4900
    %v4916 = vpack.c.b16 %v4903, %v4902
    %v4917 = vpack.c.b16 %v4905, %v4904
    %v4918 = vpack.c.b16 %v4907, %v4906
    %v4919 = vpack.c.b16 %v4909, %v4908
    %v4920 = vpack.c.b16 %v4911, %v4910
    %v4921 = vpack.c.b16 %v4913, %v4912
    %4930 = vmatprep.subr.bf16.mxu0 0
    %4931 = vmatpush1.bf16.msra.mxu0 %v4914
    %4932 = vmatprep.subr.bf16.mxu0 0
    %4933 = vmatpush1.bf16.msra.mxu0 %v4915
    %4934 = vmatprep.subr.bf16.mxu0 0
    %4935 = vmatpush1.bf16.msra.mxu0 %v4916
    %4936 = vmatprep.subr.bf16.mxu0 0
    %4937 = vmatpush1.bf16.msra.mxu0 %v4917
    %4938 = vmatprep.subr.bf16.mxu0 0
    %4939 = vmatpush1.bf16.msra.mxu0 %v4918
    %4940 = vmatprep.subr.bf16.mxu0 0
    %4941 = vmatpush1.bf16.msra.mxu0 %v4919
    %4942 = vmatprep.subr.bf16.mxu0 0
    %4943 = vmatpush1.bf16.msra.mxu0 %v4920
    %4944 = vmatprep.subr.bf16.mxu0 0
    %4945 = vmatpush1.bf16.msra.mxu0 %v4921
    %4946 = vmatprep.subr.bf16.mxu0 0
    %4947 = vmatpush1.bf16.msra.mxu0 0
    %4948 = vmatprep.subr.bf16.mxu0 0
    %4949 = vmatpush1.bf16.msra.mxu0 0
    %4950 = vmatprep.subr.bf16.mxu0 0
    %4951 = vmatpush1.bf16.msra.mxu0 0
    %4952 = vmatprep.subr.bf16.mxu0 0
    %4953 = vmatpush1.bf16.msra.mxu0 0
    %4954 = vmatprep.subr.bf16.mxu0 0
    %4955 = vmatpush1.bf16.msra.mxu0 0
    %4956 = vmatprep.subr.bf16.mxu0 0
    %4957 = vmatpush1.bf16.msra.mxu0 0
    %4958 = vmatprep.subr.bf16.mxu0 0
    %4959 = vmatpush1.bf16.msra.mxu0 0
    %4960 = vmatprep.subr.bf16.mxu0 0
    %4961 = vmatpush1.bf16.msra.mxu0 0
    %4962 = vmatprep.mubr.bf16.mxu0 0
    %4963 = vmatmul.mubr.bf16.gmra.mrb[0].mxu0 %v4857
    %v4964 = vpop.f32.mrb[0].mxu0
    %v4965 = vadd.f32 0.0, %v4964
    %v4966 = vpop.f32.mrb[0].mxu0
    %v4967 = vpop.f32.mrb[0].mxu0
    %v4968 = vadd.f32 0.0, %v4967
    %v4969 = vpop.f32.mrb[0].mxu0
    %4970 = vmatprep.mubr.bf16.mxu0 0
    %4971 = vmatmul.mubr.bf16.gmra.mrb[0].mxu0 %v4858
    %v4972 = vpop.f32.mrb[0].mxu0
    %v4973 = vadd.f32 0.0, %v4972
    %v4974 = vpop.f32.mrb[0].mxu0
    %v4975 = vpop.f32.mrb[0].mxu0
    %v4976 = vadd.f32 0.0, %v4975
    %v4977 = vpop.f32.mrb[0].mxu0
    %4978 = vmatprep.mubr.bf16.mxu0 0
    %4979 = vmatmul.mubr.bf16.gmra.mrb[0].mxu0 %v4859
    %v4980 = vpop.f32.mrb[0].mxu0
    %v4981 = vadd.f32 0.0, %v4980
    %v4982 = vpop.f32.mrb[0].mxu0
    %v4983 = vpop.f32.mrb[0].mxu0
    %v4984 = vadd.f32 0.0, %v4983
    %v4985 = vpop.f32.mrb[0].mxu0
    %4986 = vmatprep.mubr.bf16.mxu0 0
    %4987 = vmatmul.mubr.bf16.gmra.mrb[0].mxu0 %v4860
    %v4988 = vpop.f32.mrb[0].mxu0
    %v4989 = vadd.f32 0.0, %v4988
    %v4990 = vpop.f32.mrb[0].mxu0
    %v4991 = vpop.f32.mrb[0].mxu0
    %v4992 = vadd.f32 0.0, %v4991
    %v4993 = vpop.f32.mrb[0].mxu0
    %4994 = vmatprep.mubr.bf16.mxu0 0
    %4995 = vmatmul.mubr.bf16.gmra.mrb[0].mxu0 %v4861
    %v4996 = vpop.f32.mrb[0].mxu0
    %v4997 = vadd.f32 0.0, %v4996
    %v4998 = vpop.f32.mrb[0].mxu0
    %v4999 = vpop.f32.mrb[0].mxu0
    %v5000 = vadd.f32 0.0, %v4999
    %v5001 = vpop.f32.mrb[0].mxu0
    %5002 = vmatprep.mubr.bf16.mxu0 0
    %5003 = vmatmul.mubr.bf16.gmra.mrb[0].mxu0 %v4862
    %v5004 = vpop.f32.mrb[0].mxu0
    %v5005 = vadd.f32 0.0, %v5004
    %v5006 = vpop.f32.mrb[0].mxu0
    %v5007 = vpop.f32.mrb[0].mxu0
    %v5008 = vadd.f32 0.0, %v5007
    %v5009 = vpop.f32.mrb[0].mxu0
    %5010 = vmatprep.mubr.bf16.mxu0 0
    %5011 = vmatmul.mubr.bf16.gmra.mrb[0].mxu0 %v4863
    %v5012 = vpop.f32.mrb[0].mxu0
    %v5013 = vadd.f32 0.0, %v5012
    %v5014 = vpop.f32.mrb[0].mxu0
    %v5015 = vpop.f32.mrb[0].mxu0
    %v5016 = vadd.f32 0.0, %v5015
    %v5017 = vpop.f32.mrb[0].mxu0
    %5018 = vmatprep.mubr.bf16.mxu0 0
    %5019 = vmatmul.mubr.bf16.gmra.mrb[0].mxu0 %v4864
    %v5020 = vpop.f32.mrb[0].mxu0
    %v5021 = vadd.f32 0.0, %v5020
    %v5022 = vpop.f32.mrb[0].mxu0
    %v5023 = vpop.f32.mrb[0].mxu0
    %v5024 = vadd.f32 0.0, %v5023
    %v5025 = vpop.f32.mrb[0].mxu0
    %5026 = vdwg.mxu0
    %v5027 = vadd.f32 %v4825, %v4965
    %v5028 = vadd.f32 %v4826, %v4968
    %v5029 = vadd.f32 %v4827, %v4973
    %v5030 = vadd.f32 %v4828, %v4976
    %v5031 = vadd.f32 %v4829, %v4981
    %v5032 = vadd.f32 %v4830, %v4984
    %v5033 = vadd.f32 %v4831, %v4989
    %v5034 = vadd.f32 %v4832, %v4992
    %v5035 = vadd.f32 %v4833, %v4997
    %v5036 = vadd.f32 %v4834, %v5000
    %v5037 = vadd.f32 %v4835, %v5005
    %v5038 = vadd.f32 %v4836, %v5008
    %v5039 = vadd.f32 %v4837, %v5013
    %v5040 = vadd.f32 %v4838, %v5016
    %v5041 = vadd.f32 %v4839, %v5021
    %v5042 = vadd.f32 %v4840, %v5024
    %v5043 = vld [vmem:[%s4638 + $0x2] sm:$0xff]
    %v5044 = vld [vmem:[%s4638 + $0x12] sm:$0xff]
    %v5045 = vld [vmem:[%s4638 + $0x22] sm:$0xff]
    %v5046 = vld [vmem:[%s4638 + $0x32] sm:$0xff]
    %v5047 = vld [vmem:[%s4638 + $0x42] sm:$0xff]
    %v5048 = vld [vmem:[%s4638 + $0x52] sm:$0xff]
    %v5049 = vld [vmem:[%s4638 + $0x62] sm:$0xff]
    %v5050 = vld [vmem:[%s4638 + $0x72] sm:$0xff]
    %v5051 = vld [vmem:[%s4638 + $0xc2] sm:$0xff]
    %v5052 = vld [vmem:[%s4638 + $0xd2] sm:$0xff]
    %v5053 = vld [vmem:[%s4638 + $0xe2] sm:$0xff]
    %v5054 = vld [vmem:[%s4638 + $0xf2] sm:$0xff]
    %v5055 = vld [vmem:[%s4638 + $0x102] sm:$0xff]
    %v5056 = vld [vmem:[%s4638 + $0x112] sm:$0xff]
    %v5057 = vld [vmem:[%s4638 + $0x122] sm:$0xff]
    %v5058 = vld [vmem:[%s4638 + $0x132] sm:$0xff]
    %v5059 = vpack.c.bf16 %v5044, %v5043
    %v5060 = vpack.c.bf16 %v5046, %v5045
    %v5061 = vpack.c.bf16 %v5048, %v5047
    %v5062 = vpack.c.bf16 %v5050, %v5049
    %v5063 = vpack.c.bf16 %v5052, %v5051
    %v5064 = vpack.c.bf16 %v5054, %v5053
    %v5065 = vpack.c.bf16 %v5056, %v5055
    %v5066 = vpack.c.bf16 %v5058, %v5057
    %s5067 = scalar_lea.vmem %s3, 768
    %v5068 = vld [vmem:[%s5067] sm:$0xf]
    %v5069 = vld [vmem:[%s5067 + $0x4] sm:$0xf]
    %v5070 = vld [vmem:[%s5067 + $0x8] sm:$0xf]
    %v5071 = vld [vmem:[%s5067 + $0xc] sm:$0xf]
    %v5072 = vld [vmem:[%s5067 + $0x10] sm:$0xf]
    %v5073 = vld [vmem:[%s5067 + $0x14] sm:$0xf]
    %v5074 = vld [vmem:[%s5067 + $0x18] sm:$0xf]
    %v5075 = vld [vmem:[%s5067 + $0x1c] sm:$0xf]
    %v5076 = vld [vmem:[%s5067 + $0x20] sm:$0xf]
    %v5077 = vld [vmem:[%s5067 + $0x24] sm:$0xf]
    %v5078 = vld [vmem:[%s5067 + $0x28] sm:$0xf]
    %v5079 = vld [vmem:[%s5067 + $0x2c] sm:$0xf]
    %v5080 = vld [vmem:[%s5067 + $0x30] sm:$0xf]
    %v5081 = vld [vmem:[%s5067 + $0x34] sm:$0xf]
    %v5082 = vld [vmem:[%s5067 + $0x38] sm:$0xf]
    %v5083 = vld [vmem:[%s5067 + $0x3c] sm:$0xf]
    %v5100 = vunpack.c.l.b16 %v5068
    %v5101 = vunpack.c.l.b16 %v5069
    %v5102 = vunpack.c.l.b16 %v5070
    %v5103 = vunpack.c.l.b16 %v5071
    %v5104 = vunpack.c.l.b16 %v5072
    %v5105 = vunpack.c.l.b16 %v5073
    %v5106 = vunpack.c.l.b16 %v5074
    %v5107 = vunpack.c.l.b16 %v5075
    %v5108 = vunpack.c.l.b16 %v5076
    %v5109 = vunpack.c.l.b16 %v5077
    %v5110 = vunpack.c.l.b16 %v5078
    %v5111 = vunpack.c.l.b16 %v5079
    %v5112 = vunpack.c.l.b16 %v5080
    %v5113 = vunpack.c.l.b16 %v5081
    %v5114 = vunpack.c.l.b16 %v5082
    %v5115 = vunpack.c.l.b16 %v5083
    %v5116 = vpack.c.b16 %v5101, %v5100
    %v5117 = vpack.c.b16 %v5103, %v5102
    %v5118 = vpack.c.b16 %v5105, %v5104
    %v5119 = vpack.c.b16 %v5107, %v5106
    %v5120 = vpack.c.b16 %v5109, %v5108
    %v5121 = vpack.c.b16 %v5111, %v5110
    %v5122 = vpack.c.b16 %v5113, %v5112
    %v5123 = vpack.c.b16 %v5115, %v5114
    %5132 = vmatprep.subr.bf16.mxu0 0
    %5133 = vmatpush1.bf16.msra.mxu0 %v5116
    %5134 = vmatprep.subr.bf16.mxu0 0
    %5135 = vmatpush1.bf16.msra.mxu0 %v5117
    %5136 = vmatprep.subr.bf16.mxu0 0
    %5137 = vmatpush1.bf16.msra.mxu0 %v5118
    %5138 = vmatprep.subr.bf16.mxu0 0
    %5139 = vmatpush1.bf16.msra.mxu0 %v5119
    %5140 = vmatprep.subr.bf16.mxu0 0
    %5141 = vmatpush1.bf16.msra.mxu0 %v5120
    %5142 = vmatprep.subr.bf16.mxu0 0
    %5143 = vmatpush1.bf16.msra.mxu0 %v5121
    %5144 = vmatprep.subr.bf16.mxu0 0
    %5145 = vmatpush1.bf16.msra.mxu0 %v5122
    %5146 = vmatprep.subr.bf16.mxu0 0
    %5147 = vmatpush1.bf16.msra.mxu0 %v5123
    %5148 = vmatprep.subr.bf16.mxu0 0
    %5149 = vmatpush1.bf16.msra.mxu0 0
    %5150 = vmatprep.subr.bf16.mxu0 0
    %5151 = vmatpush1.bf16.msra.mxu0 0
    %5152 = vmatprep.subr.bf16.mxu0 0
    %5153 = vmatpush1.bf16.msra.mxu0 0
    %5154 = vmatprep.subr.bf16.mxu0 0
    %5155 = vmatpush1.bf16.msra.mxu0 0
    %5156 = vmatprep.subr.bf16.mxu0 0
    %5157 = vmatpush1.bf16.msra.mxu0 0
    %5158 = vmatprep.subr.bf16.mxu0 0
    %5159 = vmatpush1.bf16.msra.mxu0 0
    %5160 = vmatprep.subr.bf16.mxu0 0
    %5161 = vmatpush1.bf16.msra.mxu0 0
    %5162 = vmatprep.subr.bf16.mxu0 0
    %5163 = vmatpush1.bf16.msra.mxu0 0
    %5164 = vmatprep.mubr.bf16.mxu0 0
    %5165 = vmatmul.mubr.bf16.gmra.mrb[0].mxu0 %v5059
    %v5166 = vpop.f32.mrb[0].mxu0
    %v5167 = vadd.f32 0.0, %v5166
    %v5168 = vpop.f32.mrb[0].mxu0
    %v5169 = vpop.f32.mrb[0].mxu0
    %v5170 = vadd.f32 0.0, %v5169
    %v5171 = vpop.f32.mrb[0].mxu0
    %5172 = vmatprep.mubr.bf16.mxu0 0
    %5173 = vmatmul.mubr.bf16.gmra.mrb[0].mxu0 %v5060
    %v5174 = vpop.f32.mrb[0].mxu0
    %v5175 = vadd.f32 0.0, %v5174
    %v5176 = vpop.f32.mrb[0].mxu0
    %v5177 = vpop.f32.mrb[0].mxu0
    %v5178 = vadd.f32 0.0, %v5177
    %v5179 = vpop.f32.mrb[0].mxu0
    %5180 = vmatprep.mubr.bf16.mxu0 0
    %5181 = vmatmul.mubr.bf16.gmra.mrb[0].mxu0 %v5061
    %v5182 = vpop.f32.mrb[0].mxu0
    %v5183 = vadd.f32 0.0, %v5182
    %v5184 = vpop.f32.mrb[0].mxu0
    %v5185 = vpop.f32.mrb[0].mxu0
    %v5186 = vadd.f32 0.0, %v5185
    %v5187 = vpop.f32.mrb[0].mxu0
    %5188 = vmatprep.mubr.bf16.mxu0 0
    %5189 = vmatmul.mubr.bf16.gmra.mrb[0].mxu0 %v5062
    %v5190 = vpop.f32.mrb[0].mxu0
    %v5191 = vadd.f32 0.0, %v5190
    %v5192 = vpop.f32.mrb[0].mxu0
    %v5193 = vpop.f32.mrb[0].mxu0
    %v5194 = vadd.f32 0.0, %v5193
    %v5195 = vpop.f32.mrb[0].mxu0
    %5196 = vmatprep.mubr.bf16.mxu0 0
    %5197 = vmatmul.mubr.bf16.gmra.mrb[0].mxu0 %v5063
    %v5198 = vpop.f32.mrb[0].mxu0
    %v5199 = vadd.f32 0.0, %v5198
    %v5200 = vpop.f32.mrb[0].mxu0
    %v5201 = vpop.f32.mrb[0].mxu0
    %v5202 = vadd.f32 0.0, %v5201
    %v5203 = vpop.f32.mrb[0].mxu0
    %5204 = vmatprep.mubr.bf16.mxu0 0
    %5205 = vmatmul.mubr.bf16.gmra.mrb[0].mxu0 %v5064
    %v5206 = vpop.f32.mrb[0].mxu0
    %v5207 = vadd.f32 0.0, %v5206
    %v5208 = vpop.f32.mrb[0].mxu0
    %v5209 = vpop.f32.mrb[0].mxu0
    %v5210 = vadd.f32 0.0, %v5209
    %v5211 = vpop.f32.mrb[0].mxu0
    %5212 = vmatprep.mubr.bf16.mxu0 0
    %5213 = vmatmul.mubr.bf16.gmra.mrb[0].mxu0 %v5065
    %v5214 = vpop.f32.mrb[0].mxu0
    %v5215 = vadd.f32 0.0, %v5214
    %v5216 = vpop.f32.mrb[0].mxu0
    %v5217 = vpop.f32.mrb[0].mxu0
    %v5218 = vadd.f32 0.0, %v5217
    %v5219 = vpop.f32.mrb[0].mxu0
    %5220 = vmatprep.mubr.bf16.mxu0 0
    %5221 = vmatmul.mubr.bf16.gmra.mrb[0].mxu0 %v5066
    %v5222 = vpop.f32.mrb[0].mxu0
    %v5223 = vadd.f32 0.0, %v5222
    %v5224 = vpop.f32.mrb[0].mxu0
    %v5225 = vpop.f32.mrb[0].mxu0
    %v5226 = vadd.f32 0.0, %v5225
    %v5227 = vpop.f32.mrb[0].mxu0
    %5228 = vdwg.mxu0
    %v5229 = vadd.f32 %v5027, %v5167
    %v5230 = vadd.f32 %v5028, %v5170
    %v5231 = vadd.f32 %v5029, %v5175
    %v5232 = vadd.f32 %v5030, %v5178
    %v5233 = vadd.f32 %v5031, %v5183
    %v5234 = vadd.f32 %v5032, %v5186
    %v5235 = vadd.f32 %v5033, %v5191
    %v5236 = vadd.f32 %v5034, %v5194
    %v5237 = vadd.f32 %v5035, %v5199
    %v5238 = vadd.f32 %v5036, %v5202
    %v5239 = vadd.f32 %v5037, %v5207
    %v5240 = vadd.f32 %v5038, %v5210
    %v5241 = vadd.f32 %v5039, %v5215
    %v5242 = vadd.f32 %v5040, %v5218
    %v5243 = vadd.f32 %v5041, %v5223
    %v5244 = vadd.f32 %v5042, %v5226
    %v5245 = vld [vmem:[%s4638 + $0x3] sm:$0xff]
    %v5246 = vld [vmem:[%s4638 + $0x13] sm:$0xff]
    %v5247 = vld [vmem:[%s4638 + $0x23] sm:$0xff]
    %v5248 = vld [vmem:[%s4638 + $0x33] sm:$0xff]
    %v5249 = vld [vmem:[%s4638 + $0x43] sm:$0xff]
    %v5250 = vld [vmem:[%s4638 + $0x53] sm:$0xff]
    %v5251 = vld [vmem:[%s4638 + $0x63] sm:$0xff]
    %v5252 = vld [vmem:[%s4638 + $0x73] sm:$0xff]
    %v5253 = vld [vmem:[%s4638 + $0xc3] sm:$0xff]
    %v5254 = vld [vmem:[%s4638 + $0xd3] sm:$0xff]
    %v5255 = vld [vmem:[%s4638 + $0xe3] sm:$0xff]
    %v5256 = vld [vmem:[%s4638 + $0xf3] sm:$0xff]
    %v5257 = vld [vmem:[%s4638 + $0x103] sm:$0xff]
    %v5258 = vld [vmem:[%s4638 + $0x113] sm:$0xff]
    %v5259 = vld [vmem:[%s4638 + $0x123] sm:$0xff]
    %v5260 = vld [vmem:[%s4638 + $0x133] sm:$0xff]
    %v5261 = vpack.c.bf16 %v5246, %v5245
    %v5262 = vpack.c.bf16 %v5248, %v5247
    %v5263 = vpack.c.bf16 %v5250, %v5249
    %v5264 = vpack.c.bf16 %v5252, %v5251
    %v5265 = vpack.c.bf16 %v5254, %v5253
    %v5266 = vpack.c.bf16 %v5256, %v5255
    %v5267 = vpack.c.bf16 %v5258, %v5257
    %v5268 = vpack.c.bf16 %v5260, %v5259
    %s5269 = scalar_lea.vmem %s3, 832
    %v5270 = vld [vmem:[%s5269] sm:$0xf]
    %v5271 = vld [vmem:[%s5269 + $0x4] sm:$0xf]
    %v5272 = vld [vmem:[%s5269 + $0x8] sm:$0xf]
    %v5273 = vld [vmem:[%s5269 + $0xc] sm:$0xf]
    %v5274 = vld [vmem:[%s5269 + $0x10] sm:$0xf]
    %v5275 = vld [vmem:[%s5269 + $0x14] sm:$0xf]
    %v5276 = vld [vmem:[%s5269 + $0x18] sm:$0xf]
    %v5277 = vld [vmem:[%s5269 + $0x1c] sm:$0xf]
    %v5278 = vld [vmem:[%s5269 + $0x20] sm:$0xf]
    %v5279 = vld [vmem:[%s5269 + $0x24] sm:$0xf]
    %v5280 = vld [vmem:[%s5269 + $0x28] sm:$0xf]
    %v5281 = vld [vmem:[%s5269 + $0x2c] sm:$0xf]
    %v5282 = vld [vmem:[%s5269 + $0x30] sm:$0xf]
    %v5283 = vld [vmem:[%s5269 + $0x34] sm:$0xf]
    %v5284 = vld [vmem:[%s5269 + $0x38] sm:$0xf]
    %v5285 = vld [vmem:[%s5269 + $0x3c] sm:$0xf]
    %v5302 = vunpack.c.l.b16 %v5270
    %v5303 = vunpack.c.l.b16 %v5271
    %v5304 = vunpack.c.l.b16 %v5272
    %v5305 = vunpack.c.l.b16 %v5273
    %v5306 = vunpack.c.l.b16 %v5274
    %v5307 = vunpack.c.l.b16 %v5275
    %v5308 = vunpack.c.l.b16 %v5276
    %v5309 = vunpack.c.l.b16 %v5277
    %v5310 = vunpack.c.l.b16 %v5278
    %v5311 = vunpack.c.l.b16 %v5279
    %v5312 = vunpack.c.l.b16 %v5280
    %v5313 = vunpack.c.l.b16 %v5281
    %v5314 = vunpack.c.l.b16 %v5282
    %v5315 = vunpack.c.l.b16 %v5283
    %v5316 = vunpack.c.l.b16 %v5284
    %v5317 = vunpack.c.l.b16 %v5285
    %v5318 = vpack.c.b16 %v5303, %v5302
    %v5319 = vpack.c.b16 %v5305, %v5304
    %v5320 = vpack.c.b16 %v5307, %v5306
    %v5321 = vpack.c.b16 %v5309, %v5308
    %v5322 = vpack.c.b16 %v5311, %v5310
    %v5323 = vpack.c.b16 %v5313, %v5312
    %v5324 = vpack.c.b16 %v5315, %v5314
    %v5325 = vpack.c.b16 %v5317, %v5316
    %5334 = vmatprep.subr.bf16.mxu0 0
    %5335 = vmatpush1.bf16.msra.mxu0 %v5318
    %5336 = vmatprep.subr.bf16.mxu0 0
    %5337 = vmatpush1.bf16.msra.mxu0 %v5319
    %5338 = vmatprep.subr.bf16.mxu0 0
    %5339 = vmatpush1.bf16.msra.mxu0 %v5320
    %5340 = vmatprep.subr.bf16.mxu0 0
    %5341 = vmatpush1.bf16.msra.mxu0 %v5321
    %5342 = vmatprep.subr.bf16.mxu0 0
    %5343 = vmatpush1.bf16.msra.mxu0 %v5322
    %5344 = vmatprep.subr.bf16.mxu0 0
    %5345 = vmatpush1.bf16.msra.mxu0 %v5323
    %5346 = vmatprep.subr.bf16.mxu0 0
    %5347 = vmatpush1.bf16.msra.mxu0 %v5324
    %5348 = vmatprep.subr.bf16.mxu0 0
    %5349 = vmatpush1.bf16.msra.mxu0 %v5325
    %5350 = vmatprep.subr.bf16.mxu0 0
    %5351 = vmatpush1.bf16.msra.mxu0 0
    %5352 = vmatprep.subr.bf16.mxu0 0
    %5353 = vmatpush1.bf16.msra.mxu0 0
    %5354 = vmatprep.subr.bf16.mxu0 0
    %5355 = vmatpush1.bf16.msra.mxu0 0
    %5356 = vmatprep.subr.bf16.mxu0 0
    %5357 = vmatpush1.bf16.msra.mxu0 0
    %5358 = vmatprep.subr.bf16.mxu0 0
    %5359 = vmatpush1.bf16.msra.mxu0 0
    %5360 = vmatprep.subr.bf16.mxu0 0
    %5361 = vmatpush1.bf16.msra.mxu0 0
    %5362 = vmatprep.subr.bf16.mxu0 0
    %5363 = vmatpush1.bf16.msra.mxu0 0
    %5364 = vmatprep.subr.bf16.mxu0 0
    %5365 = vmatpush1.bf16.msra.mxu0 0
    %5366 = vmatprep.mubr.bf16.mxu0 0
    %5367 = vmatmul.mubr.bf16.gmra.mrb[0].mxu0 %v5261
    %v5368 = vpop.f32.mrb[0].mxu0
    %v5369 = vadd.f32 0.0, %v5368
    %v5370 = vpop.f32.mrb[0].mxu0
    %v5371 = vpop.f32.mrb[0].mxu0
    %v5372 = vadd.f32 0.0, %v5371
    %v5373 = vpop.f32.mrb[0].mxu0
    %5374 = vmatprep.mubr.bf16.mxu0 0
    %5375 = vmatmul.mubr.bf16.gmra.mrb[0].mxu0 %v5262
    %v5376 = vpop.f32.mrb[0].mxu0
    %v5377 = vadd.f32 0.0, %v5376
    %v5378 = vpop.f32.mrb[0].mxu0
    %v5379 = vpop.f32.mrb[0].mxu0
    %v5380 = vadd.f32 0.0, %v5379
    %v5381 = vpop.f32.mrb[0].mxu0
    %5382 = vmatprep.mubr.bf16.mxu0 0
    %5383 = vmatmul.mubr.bf16.gmra.mrb[0].mxu0 %v5263
    %v5384 = vpop.f32.mrb[0].mxu0
    %v5385 = vadd.f32 0.0, %v5384
    %v5386 = vpop.f32.mrb[0].mxu0
    %v5387 = vpop.f32.mrb[0].mxu0
    %v5388 = vadd.f32 0.0, %v5387
    %v5389 = vpop.f32.mrb[0].mxu0
    %5390 = vmatprep.mubr.bf16.mxu0 0
    %5391 = vmatmul.mubr.bf16.gmra.mrb[0].mxu0 %v5264
    %v5392 = vpop.f32.mrb[0].mxu0
    %v5393 = vadd.f32 0.0, %v5392
    %v5394 = vpop.f32.mrb[0].mxu0
    %v5395 = vpop.f32.mrb[0].mxu0
    %v5396 = vadd.f32 0.0, %v5395
    %v5397 = vpop.f32.mrb[0].mxu0
    %5398 = vmatprep.mubr.bf16.mxu0 0
    %5399 = vmatmul.mubr.bf16.gmra.mrb[0].mxu0 %v5265
    %v5400 = vpop.f32.mrb[0].mxu0
    %v5401 = vadd.f32 0.0, %v5400
    %v5402 = vpop.f32.mrb[0].mxu0
    %v5403 = vpop.f32.mrb[0].mxu0
    %v5404 = vadd.f32 0.0, %v5403
    %v5405 = vpop.f32.mrb[0].mxu0
    %5406 = vmatprep.mubr.bf16.mxu0 0
    %5407 = vmatmul.mubr.bf16.gmra.mrb[0].mxu0 %v5266
    %v5408 = vpop.f32.mrb[0].mxu0
    %v5409 = vadd.f32 0.0, %v5408
    %v5410 = vpop.f32.mrb[0].mxu0
    %v5411 = vpop.f32.mrb[0].mxu0
    %v5412 = vadd.f32 0.0, %v5411
    %v5413 = vpop.f32.mrb[0].mxu0
    %5414 = vmatprep.mubr.bf16.mxu0 0
    %5415 = vmatmul.mubr.bf16.gmra.mrb[0].mxu0 %v5267
    %v5416 = vpop.f32.mrb[0].mxu0
    %v5417 = vadd.f32 0.0, %v5416
    %v5418 = vpop.f32.mrb[0].mxu0
    %v5419 = vpop.f32.mrb[0].mxu0
    %v5420 = vadd.f32 0.0, %v5419
    %v5421 = vpop.f32.mrb[0].mxu0
    %5422 = vmatprep.mubr.bf16.mxu0 0
    %5423 = vmatmul.mubr.bf16.gmra.mrb[0].mxu0 %v5268
    %v5424 = vpop.f32.mrb[0].mxu0
    %v5425 = vadd.f32 0.0, %v5424
    %v5426 = vpop.f32.mrb[0].mxu0
    %v5427 = vpop.f32.mrb[0].mxu0
    %v5428 = vadd.f32 0.0, %v5427
    %v5429 = vpop.f32.mrb[0].mxu0
    %5430 = vdwg.mxu0
    %v5431 = vadd.f32 %v5229, %v5369
    %v5432 = vadd.f32 %v5230, %v5372
    %v5433 = vadd.f32 %v5231, %v5377
    %v5434 = vadd.f32 %v5232, %v5380
    %v5435 = vadd.f32 %v5233, %v5385
    %v5436 = vadd.f32 %v5234, %v5388
    %v5437 = vadd.f32 %v5235, %v5393
    %v5438 = vadd.f32 %v5236, %v5396
    %v5439 = vadd.f32 %v5237, %v5401
    %v5440 = vadd.f32 %v5238, %v5404
    %v5441 = vadd.f32 %v5239, %v5409
    %v5442 = vadd.f32 %v5240, %v5412
    %v5443 = vadd.f32 %v5241, %v5417
    %v5444 = vadd.f32 %v5242, %v5420
    %v5445 = vadd.f32 %v5243, %v5425
    %v5446 = vadd.f32 %v5244, %v5428
    %v5447 = vld [vmem:[%s4638 + $0x4] sm:$0xff]
    %v5448 = vld [vmem:[%s4638 + $0x14] sm:$0xff]
    %v5449 = vld [vmem:[%s4638 + $0x24] sm:$0xff]
    %v5450 = vld [vmem:[%s4638 + $0x34] sm:$0xff]
    %v5451 = vld [vmem:[%s4638 + $0x44] sm:$0xff]
    %v5452 = vld [vmem:[%s4638 + $0x54] sm:$0xff]
    %v5453 = vld [vmem:[%s4638 + $0x64] sm:$0xff]
    %v5454 = vld [vmem:[%s4638 + $0x74] sm:$0xff]
    %v5455 = vld [vmem:[%s4638 + $0xc4] sm:$0xff]
    %v5456 = vld [vmem:[%s4638 + $0xd4] sm:$0xff]
    %v5457 = vld [vmem:[%s4638 + $0xe4] sm:$0xff]
    %v5458 = vld [vmem:[%s4638 + $0xf4] sm:$0xff]
    %v5459 = vld [vmem:[%s4638 + $0x104] sm:$0xff]
    %v5460 = vld [vmem:[%s4638 + $0x114] sm:$0xff]
    %v5461 = vld [vmem:[%s4638 + $0x124] sm:$0xff]
    %v5462 = vld [vmem:[%s4638 + $0x134] sm:$0xff]
    %v5463 = vpack.c.bf16 %v5448, %v5447
    %v5464 = vpack.c.bf16 %v5450, %v5449
    %v5465 = vpack.c.bf16 %v5452, %v5451
    %v5466 = vpack.c.bf16 %v5454, %v5453
    %v5467 = vpack.c.bf16 %v5456, %v5455
    %v5468 = vpack.c.bf16 %v5458, %v5457
    %v5469 = vpack.c.bf16 %v5460, %v5459
    %v5470 = vpack.c.bf16 %v5462, %v5461
    %s5471 = scalar_lea.vmem %s3, 896
    %v5472 = vld [vmem:[%s5471] sm:$0xf]
    %v5473 = vld [vmem:[%s5471 + $0x4] sm:$0xf]
    %v5474 = vld [vmem:[%s5471 + $0x8] sm:$0xf]
    %v5475 = vld [vmem:[%s5471 + $0xc] sm:$0xf]
    %v5476 = vld [vmem:[%s5471 + $0x10] sm:$0xf]
    %v5477 = vld [vmem:[%s5471 + $0x14] sm:$0xf]
    %v5478 = vld [vmem:[%s5471 + $0x18] sm:$0xf]
    %v5479 = vld [vmem:[%s5471 + $0x1c] sm:$0xf]
    %v5480 = vld [vmem:[%s5471 + $0x20] sm:$0xf]
    %v5481 = vld [vmem:[%s5471 + $0x24] sm:$0xf]
    %v5482 = vld [vmem:[%s5471 + $0x28] sm:$0xf]
    %v5483 = vld [vmem:[%s5471 + $0x2c] sm:$0xf]
    %v5484 = vld [vmem:[%s5471 + $0x30] sm:$0xf]
    %v5485 = vld [vmem:[%s5471 + $0x34] sm:$0xf]
    %v5486 = vld [vmem:[%s5471 + $0x38] sm:$0xf]
    %v5487 = vld [vmem:[%s5471 + $0x3c] sm:$0xf]
    %v5504 = vunpack.c.l.b16 %v5472
    %v5505 = vunpack.c.l.b16 %v5473
    %v5506 = vunpack.c.l.b16 %v5474
    %v5507 = vunpack.c.l.b16 %v5475
    %v5508 = vunpack.c.l.b16 %v5476
    %v5509 = vunpack.c.l.b16 %v5477
    %v5510 = vunpack.c.l.b16 %v5478
    %v5511 = vunpack.c.l.b16 %v5479
    %v5512 = vunpack.c.l.b16 %v5480
    %v5513 = vunpack.c.l.b16 %v5481
    %v5514 = vunpack.c.l.b16 %v5482
    %v5515 = vunpack.c.l.b16 %v5483
    %v5516 = vunpack.c.l.b16 %v5484
    %v5517 = vunpack.c.l.b16 %v5485
    %v5518 = vunpack.c.l.b16 %v5486
    %v5519 = vunpack.c.l.b16 %v5487
    %v5520 = vpack.c.b16 %v5505, %v5504
    %v5521 = vpack.c.b16 %v5507, %v5506
    %v5522 = vpack.c.b16 %v5509, %v5508
    %v5523 = vpack.c.b16 %v5511, %v5510
    %v5524 = vpack.c.b16 %v5513, %v5512
    %v5525 = vpack.c.b16 %v5515, %v5514
    %v5526 = vpack.c.b16 %v5517, %v5516
    %v5527 = vpack.c.b16 %v5519, %v5518
    %5536 = vmatprep.subr.bf16.mxu0 0
    %5537 = vmatpush1.bf16.msra.mxu0 %v5520
    %5538 = vmatprep.subr.bf16.mxu0 0
    %5539 = vmatpush1.bf16.msra.mxu0 %v5521
    %5540 = vmatprep.subr.bf16.mxu0 0
    %5541 = vmatpush1.bf16.msra.mxu0 %v5522
    %5542 = vmatprep.subr.bf16.mxu0 0
    %5543 = vmatpush1.bf16.msra.mxu0 %v5523
    %5544 = vmatprep.subr.bf16.mxu0 0
    %5545 = vmatpush1.bf16.msra.mxu0 %v5524
    %5546 = vmatprep.subr.bf16.mxu0 0
    %5547 = vmatpush1.bf16.msra.mxu0 %v5525
    %5548 = vmatprep.subr.bf16.mxu0 0
    %5549 = vmatpush1.bf16.msra.mxu0 %v5526
    %5550 = vmatprep.subr.bf16.mxu0 0
    %5551 = vmatpush1.bf16.msra.mxu0 %v5527
    %5552 = vmatprep.subr.bf16.mxu0 0
    %5553 = vmatpush1.bf16.msra.mxu0 0
    %5554 = vmatprep.subr.bf16.mxu0 0
    %5555 = vmatpush1.bf16.msra.mxu0 0
    %5556 = vmatprep.subr.bf16.mxu0 0
    %5557 = vmatpush1.bf16.msra.mxu0 0
    %5558 = vmatprep.subr.bf16.mxu0 0
    %5559 = vmatpush1.bf16.msra.mxu0 0
    %5560 = vmatprep.subr.bf16.mxu0 0
    %5561 = vmatpush1.bf16.msra.mxu0 0
    %5562 = vmatprep.subr.bf16.mxu0 0
    %5563 = vmatpush1.bf16.msra.mxu0 0
    %5564 = vmatprep.subr.bf16.mxu0 0
    %5565 = vmatpush1.bf16.msra.mxu0 0
    %5566 = vmatprep.subr.bf16.mxu0 0
    %5567 = vmatpush1.bf16.msra.mxu0 0
    %5568 = vmatprep.mubr.bf16.mxu0 0
    %5569 = vmatmul.mubr.bf16.gmra.mrb[0].mxu0 %v5463
    %v5570 = vpop.f32.mrb[0].mxu0
    %v5571 = vadd.f32 0.0, %v5570
    %v5572 = vpop.f32.mrb[0].mxu0
    %v5573 = vpop.f32.mrb[0].mxu0
    %v5574 = vadd.f32 0.0, %v5573
    %v5575 = vpop.f32.mrb[0].mxu0
    %5576 = vmatprep.mubr.bf16.mxu0 0
    %5577 = vmatmul.mubr.bf16.gmra.mrb[0].mxu0 %v5464
    %v5578 = vpop.f32.mrb[0].mxu0
    %v5579 = vadd.f32 0.0, %v5578
    %v5580 = vpop.f32.mrb[0].mxu0
    %v5581 = vpop.f32.mrb[0].mxu0
    %v5582 = vadd.f32 0.0, %v5581
    %v5583 = vpop.f32.mrb[0].mxu0
    %5584 = vmatprep.mubr.bf16.mxu0 0
    %5585 = vmatmul.mubr.bf16.gmra.mrb[0].mxu0 %v5465
    %v5586 = vpop.f32.mrb[0].mxu0
    %v5587 = vadd.f32 0.0, %v5586
    %v5588 = vpop.f32.mrb[0].mxu0
    %v5589 = vpop.f32.mrb[0].mxu0
    %v5590 = vadd.f32 0.0, %v5589
    %v5591 = vpop.f32.mrb[0].mxu0
    %5592 = vmatprep.mubr.bf16.mxu0 0
    %5593 = vmatmul.mubr.bf16.gmra.mrb[0].mxu0 %v5466
    %v5594 = vpop.f32.mrb[0].mxu0
    %v5595 = vadd.f32 0.0, %v5594
    %v5596 = vpop.f32.mrb[0].mxu0
    %v5597 = vpop.f32.mrb[0].mxu0
    %v5598 = vadd.f32 0.0, %v5597
    %v5599 = vpop.f32.mrb[0].mxu0
    %5600 = vmatprep.mubr.bf16.mxu0 0
    %5601 = vmatmul.mubr.bf16.gmra.mrb[0].mxu0 %v5467
    %v5602 = vpop.f32.mrb[0].mxu0
    %v5603 = vadd.f32 0.0, %v5602
    %v5604 = vpop.f32.mrb[0].mxu0
    %v5605 = vpop.f32.mrb[0].mxu0
    %v5606 = vadd.f32 0.0, %v5605
    %v5607 = vpop.f32.mrb[0].mxu0
    %5608 = vmatprep.mubr.bf16.mxu0 0
    %5609 = vmatmul.mubr.bf16.gmra.mrb[0].mxu0 %v5468
    %v5610 = vpop.f32.mrb[0].mxu0
    %v5611 = vadd.f32 0.0, %v5610
    %v5612 = vpop.f32.mrb[0].mxu0
    %v5613 = vpop.f32.mrb[0].mxu0
    %v5614 = vadd.f32 0.0, %v5613
    %v5615 = vpop.f32.mrb[0].mxu0
    %5616 = vmatprep.mubr.bf16.mxu0 0
    %5617 = vmatmul.mubr.bf16.gmra.mrb[0].mxu0 %v5469
    %v5618 = vpop.f32.mrb[0].mxu0
    %v5619 = vadd.f32 0.0, %v5618
    %v5620 = vpop.f32.mrb[0].mxu0
    %v5621 = vpop.f32.mrb[0].mxu0
    %v5622 = vadd.f32 0.0, %v5621
    %v5623 = vpop.f32.mrb[0].mxu0
    %5624 = vmatprep.mubr.bf16.mxu0 0
    %5625 = vmatmul.mubr.bf16.gmra.mrb[0].mxu0 %v5470
    %v5626 = vpop.f32.mrb[0].mxu0
    %v5627 = vadd.f32 0.0, %v5626
    %v5628 = vpop.f32.mrb[0].mxu0
    %v5629 = vpop.f32.mrb[0].mxu0
    %v5630 = vadd.f32 0.0, %v5629
    %v5631 = vpop.f32.mrb[0].mxu0
    %5632 = vdwg.mxu0
    %v5633 = vadd.f32 %v5431, %v5571
    %v5634 = vadd.f32 %v5432, %v5574
    %v5635 = vadd.f32 %v5433, %v5579
    %v5636 = vadd.f32 %v5434, %v5582
    %v5637 = vadd.f32 %v5435, %v5587
    %v5638 = vadd.f32 %v5436, %v5590
    %v5639 = vadd.f32 %v5437, %v5595
    %v5640 = vadd.f32 %v5438, %v5598
    %v5641 = vadd.f32 %v5439, %v5603
    %v5642 = vadd.f32 %v5440, %v5606
    %v5643 = vadd.f32 %v5441, %v5611
    %v5644 = vadd.f32 %v5442, %v5614
    %v5645 = vadd.f32 %v5443, %v5619
    %v5646 = vadd.f32 %v5444, %v5622
    %v5647 = vadd.f32 %v5445, %v5627
    %v5648 = vadd.f32 %v5446, %v5630
    %s5649 = scalar_lea.vmem [#allocation2], 48
    %v5650 = vld [vmem:[%s5649] sm:$0xff]
    %v5651 = vld [vmem:[%s5649 + $0x10] sm:$0xff]
    %v5652 = vld [vmem:[%s5649 + $0x20] sm:$0xff]
    %v5653 = vld [vmem:[%s5649 + $0x30] sm:$0xff]
    %v5654 = vld [vmem:[%s5649 + $0x40] sm:$0xff]
    %v5655 = vld [vmem:[%s5649 + $0x50] sm:$0xff]
    %v5656 = vld [vmem:[%s5649 + $0x60] sm:$0xff]
    %v5657 = vld [vmem:[%s5649 + $0x70] sm:$0xff]
    %v5658 = vld [vmem:[%s5649 + $0xc0] sm:$0xff]
    %v5659 = vld [vmem:[%s5649 + $0xd0] sm:$0xff]
    %v5660 = vld [vmem:[%s5649 + $0xe0] sm:$0xff]
    %v5661 = vld [vmem:[%s5649 + $0xf0] sm:$0xff]
    %v5662 = vld [vmem:[%s5649 + $0x100] sm:$0xff]
    %v5663 = vld [vmem:[%s5649 + $0x110] sm:$0xff]
    %v5664 = vld [vmem:[%s5649 + $0x120] sm:$0xff]
    %v5665 = vld [vmem:[%s5649 + $0x130] sm:$0xff]
    %v5666 = vpack.c.bf16 %v5651, %v5650
    %v5667 = vpack.c.bf16 %v5653, %v5652
    %v5668 = vpack.c.bf16 %v5655, %v5654
    %v5669 = vpack.c.bf16 %v5657, %v5656
    %v5670 = vpack.c.bf16 %v5659, %v5658
    %v5671 = vpack.c.bf16 %v5661, %v5660
    %v5672 = vpack.c.bf16 %v5663, %v5662
    %v5673 = vpack.c.bf16 %v5665, %v5664
    %s5674 = scalar_lea.vmem %s3, 960
    %v5675 = vld [vmem:[%s5674] sm:$0xf]
    %v5676 = vld [vmem:[%s5674 + $0x4] sm:$0xf]
    %v5677 = vld [vmem:[%s5674 + $0x8] sm:$0xf]
    %v5678 = vld [vmem:[%s5674 + $0xc] sm:$0xf]
    %v5679 = vld [vmem:[%s5674 + $0x10] sm:$0xf]
    %v5680 = vld [vmem:[%s5674 + $0x14] sm:$0xf]
    %v5681 = vld [vmem:[%s5674 + $0x18] sm:$0xf]
    %v5682 = vld [vmem:[%s5674 + $0x1c] sm:$0xf]
    %v5683 = vld [vmem:[%s5674 + $0x20] sm:$0xf]
    %v5684 = vld [vmem:[%s5674 + $0x24] sm:$0xf]
    %v5685 = vld [vmem:[%s5674 + $0x28] sm:$0xf]
    %v5686 = vld [vmem:[%s5674 + $0x2c] sm:$0xf]
    %v5687 = vld [vmem:[%s5674 + $0x30] sm:$0xf]
    %v5688 = vld [vmem:[%s5674 + $0x34] sm:$0xf]
    %v5689 = vld [vmem:[%s5674 + $0x38] sm:$0xf]
    %v5690 = vld [vmem:[%s5674 + $0x3c] sm:$0xf]
    %v5707 = vunpack.c.l.b16 %v5675
    %v5708 = vunpack.c.l.b16 %v5676
    %v5709 = vunpack.c.l.b16 %v5677
    %v5710 = vunpack.c.l.b16 %v5678
    %v5711 = vunpack.c.l.b16 %v5679
    %v5712 = vunpack.c.l.b16 %v5680
    %v5713 = vunpack.c.l.b16 %v5681
    %v5714 = vunpack.c.l.b16 %v5682
    %v5715 = vunpack.c.l.b16 %v5683
    %v5716 = vunpack.c.l.b16 %v5684
    %v5717 = vunpack.c.l.b16 %v5685
    %v5718 = vunpack.c.l.b16 %v5686
    %v5719 = vunpack.c.l.b16 %v5687
    %v5720 = vunpack.c.l.b16 %v5688
    %v5721 = vunpack.c.l.b16 %v5689
    %v5722 = vunpack.c.l.b16 %v5690
    %v5723 = vpack.c.b16 %v5708, %v5707
    %v5724 = vpack.c.b16 %v5710, %v5709
    %v5725 = vpack.c.b16 %v5712, %v5711
    %v5726 = vpack.c.b16 %v5714, %v5713
    %v5727 = vpack.c.b16 %v5716, %v5715
    %v5728 = vpack.c.b16 %v5718, %v5717
    %v5729 = vpack.c.b16 %v5720, %v5719
    %v5730 = vpack.c.b16 %v5722, %v5721
    %5739 = vmatprep.subr.bf16.mxu0 0
    %5740 = vmatpush1.bf16.msra.mxu0 %v5723
    %5741 = vmatprep.subr.bf16.mxu0 0
    %5742 = vmatpush1.bf16.msra.mxu0 %v5724
    %5743 = vmatprep.subr.bf16.mxu0 0
    %5744 = vmatpush1.bf16.msra.mxu0 %v5725
    %5745 = vmatprep.subr.bf16.mxu0 0
    %5746 = vmatpush1.bf16.msra.mxu0 %v5726
    %5747 = vmatprep.subr.bf16.mxu0 0
    %5748 = vmatpush1.bf16.msra.mxu0 %v5727
    %5749 = vmatprep.subr.bf16.mxu0 0
    %5750 = vmatpush1.bf16.msra.mxu0 %v5728
    %5751 = vmatprep.subr.bf16.mxu0 0
    %5752 = vmatpush1.bf16.msra.mxu0 %v5729
    %5753 = vmatprep.subr.bf16.mxu0 0
    %5754 = vmatpush1.bf16.msra.mxu0 %v5730
    %5755 = vmatprep.subr.bf16.mxu0 0
    %5756 = vmatpush1.bf16.msra.mxu0 0
    %5757 = vmatprep.subr.bf16.mxu0 0
    %5758 = vmatpush1.bf16.msra.mxu0 0
    %5759 = vmatprep.subr.bf16.mxu0 0
    %5760 = vmatpush1.bf16.msra.mxu0 0
    %5761 = vmatprep.subr.bf16.mxu0 0
    %5762 = vmatpush1.bf16.msra.mxu0 0
    %5763 = vmatprep.subr.bf16.mxu0 0
    %5764 = vmatpush1.bf16.msra.mxu0 0
    %5765 = vmatprep.subr.bf16.mxu0 0
    %5766 = vmatpush1.bf16.msra.mxu0 0
    %5767 = vmatprep.subr.bf16.mxu0 0
    %5768 = vmatpush1.bf16.msra.mxu0 0
    %5769 = vmatprep.subr.bf16.mxu0 0
    %5770 = vmatpush1.bf16.msra.mxu0 0
    %5771 = vmatprep.mubr.bf16.mxu0 0
    %5772 = vmatmul.mubr.bf16.gmra.mrb[0].mxu0 %v5666
    %v5773 = vpop.f32.mrb[0].mxu0
    %v5774 = vadd.f32 0.0, %v5773
    %v5775 = vpop.f32.mrb[0].mxu0
    %v5776 = vpop.f32.mrb[0].mxu0
    %v5777 = vadd.f32 0.0, %v5776
    %v5778 = vpop.f32.mrb[0].mxu0
    %5779 = vmatprep.mubr.bf16.mxu0 0
    %5780 = vmatmul.mubr.bf16.gmra.mrb[0].mxu0 %v5667
    %v5781 = vpop.f32.mrb[0].mxu0
    %v5782 = vadd.f32 0.0, %v5781
    %v5783 = vpop.f32.mrb[0].mxu0
    %v5784 = vpop.f32.mrb[0].mxu0
    %v5785 = vadd.f32 0.0, %v5784
    %v5786 = vpop.f32.mrb[0].mxu0
    %5787 = vmatprep.mubr.bf16.mxu0 0
    %5788 = vmatmul.mubr.bf16.gmra.mrb[0].mxu0 %v5668
    %v5789 = vpop.f32.mrb[0].mxu0
    %v5790 = vadd.f32 0.0, %v5789
    %v5791 = vpop.f32.mrb[0].mxu0
    %v5792 = vpop.f32.mrb[0].mxu0
    %v5793 = vadd.f32 0.0, %v5792
    %v5794 = vpop.f32.mrb[0].mxu0
    %5795 = vmatprep.mubr.bf16.mxu0 0
    %5796 = vmatmul.mubr.bf16.gmra.mrb[0].mxu0 %v5669
    %v5797 = vpop.f32.mrb[0].mxu0
    %v5798 = vadd.f32 0.0, %v5797
    %v5799 = vpop.f32.mrb[0].mxu0
    %v5800 = vpop.f32.mrb[0].mxu0
    %v5801 = vadd.f32 0.0, %v5800
    %v5802 = vpop.f32.mrb[0].mxu0
    %5803 = vmatprep.mubr.bf16.mxu0 0
    %5804 = vmatmul.mubr.bf16.gmra.mrb[0].mxu0 %v5670
    %v5805 = vpop.f32.mrb[0].mxu0
    %v5806 = vadd.f32 0.0, %v5805
    %v5807 = vpop.f32.mrb[0].mxu0
    %v5808 = vpop.f32.mrb[0].mxu0
    %v5809 = vadd.f32 0.0, %v5808
    %v5810 = vpop.f32.mrb[0].mxu0
    %5811 = vmatprep.mubr.bf16.mxu0 0
    %5812 = vmatmul.mubr.bf16.gmra.mrb[0].mxu0 %v5671
    %v5813 = vpop.f32.mrb[0].mxu0
    %v5814 = vadd.f32 0.0, %v5813
    %v5815 = vpop.f32.mrb[0].mxu0
    %v5816 = vpop.f32.mrb[0].mxu0
    %v5817 = vadd.f32 0.0, %v5816
    %v5818 = vpop.f32.mrb[0].mxu0
    %5819 = vmatprep.mubr.bf16.mxu0 0
    %5820 = vmatmul.mubr.bf16.gmra.mrb[0].mxu0 %v5672
    %v5821 = vpop.f32.mrb[0].mxu0
    %v5822 = vadd.f32 0.0, %v5821
    %v5823 = vpop.f32.mrb[0].mxu0
    %v5824 = vpop.f32.mrb[0].mxu0
    %v5825 = vadd.f32 0.0, %v5824
    %v5826 = vpop.f32.mrb[0].mxu0
    %5827 = vmatprep.mubr.bf16.mxu0 0
    %5828 = vmatmul.mubr.bf16.gmra.mrb[0].mxu0 %v5673
    %v5829 = vpop.f32.mrb[0].mxu0
    %v5830 = vadd.f32 0.0, %v5829
    %v5831 = vpop.f32.mrb[0].mxu0
    %v5832 = vpop.f32.mrb[0].mxu0
    %v5833 = vadd.f32 0.0, %v5832
    %v5834 = vpop.f32.mrb[0].mxu0
    %5835 = vdwg.mxu0
    %v5836 = vadd.f32 %v5633, %v5774
    %v5837 = vadd.f32 %v5634, %v5777
    %v5838 = vadd.f32 %v5635, %v5782
    %v5839 = vadd.f32 %v5636, %v5785
    %v5840 = vadd.f32 %v5637, %v5790
    %v5841 = vadd.f32 %v5638, %v5793
    %v5842 = vadd.f32 %v5639, %v5798
    %v5843 = vadd.f32 %v5640, %v5801
    %v5844 = vadd.f32 %v5641, %v5806
    %v5845 = vadd.f32 %v5642, %v5809
    %v5846 = vadd.f32 %v5643, %v5814
    %v5847 = vadd.f32 %v5644, %v5817
    %v5848 = vadd.f32 %v5645, %v5822
    %v5849 = vadd.f32 %v5646, %v5825
    %v5850 = vadd.f32 %v5647, %v5830
    %v5851 = vadd.f32 %v5648, %v5833
    %v5852 = vld [vmem:[%s5649 + $0x1] sm:$0xff]
    %v5853 = vld [vmem:[%s5649 + $0x11] sm:$0xff]
    %v5854 = vld [vmem:[%s5649 + $0x21] sm:$0xff]
    %v5855 = vld [vmem:[%s5649 + $0x31] sm:$0xff]
    %v5856 = vld [vmem:[%s5649 + $0x41] sm:$0xff]
    %v5857 = vld [vmem:[%s5649 + $0x51] sm:$0xff]
    %v5858 = vld [vmem:[%s5649 + $0x61] sm:$0xff]
    %v5859 = vld [vmem:[%s5649 + $0x71] sm:$0xff]
    %v5860 = vld [vmem:[%s5649 + $0xc1] sm:$0xff]
    %v5861 = vld [vmem:[%s5649 + $0xd1] sm:$0xff]
    %v5862 = vld [vmem:[%s5649 + $0xe1] sm:$0xff]
    %v5863 = vld [vmem:[%s5649 + $0xf1] sm:$0xff]
    %v5864 = vld [vmem:[%s5649 + $0x101] sm:$0xff]
    %v5865 = vld [vmem:[%s5649 + $0x111] sm:$0xff]
    %v5866 = vld [vmem:[%s5649 + $0x121] sm:$0xff]
    %v5867 = vld [vmem:[%s5649 + $0x131] sm:$0xff]
    %v5868 = vpack.c.bf16 %v5853, %v5852
    %v5869 = vpack.c.bf16 %v5855, %v5854
    %v5870 = vpack.c.bf16 %v5857, %v5856
    %v5871 = vpack.c.bf16 %v5859, %v5858
    %v5872 = vpack.c.bf16 %v5861, %v5860
    %v5873 = vpack.c.bf16 %v5863, %v5862
    %v5874 = vpack.c.bf16 %v5865, %v5864
    %v5875 = vpack.c.bf16 %v5867, %v5866
    %s5876 = scalar_lea.vmem %s3, 1024
    %v5877 = vld [vmem:[%s5876] sm:$0xf]
    %v5878 = vld [vmem:[%s5876 + $0x4] sm:$0xf]
    %v5879 = vld [vmem:[%s5876 + $0x8] sm:$0xf]
    %v5880 = vld [vmem:[%s5876 + $0xc] sm:$0xf]
    %v5881 = vld [vmem:[%s5876 + $0x10] sm:$0xf]
    %v5882 = vld [vmem:[%s5876 + $0x14] sm:$0xf]
    %v5883 = vld [vmem:[%s5876 + $0x18] sm:$0xf]
    %v5884 = vld [vmem:[%s5876 + $0x1c] sm:$0xf]
    %v5885 = vld [vmem:[%s5876 + $0x20] sm:$0xf]
    %v5886 = vld [vmem:[%s5876 + $0x24] sm:$0xf]
    %v5887 = vld [vmem:[%s5876 + $0x28] sm:$0xf]
    %v5888 = vld [vmem:[%s5876 + $0x2c] sm:$0xf]
    %v5889 = vld [vmem:[%s5876 + $0x30] sm:$0xf]
    %v5890 = vld [vmem:[%s5876 + $0x34] sm:$0xf]
    %v5891 = vld [vmem:[%s5876 + $0x38] sm:$0xf]
    %v5892 = vld [vmem:[%s5876 + $0x3c] sm:$0xf]
    %v5909 = vunpack.c.l.b16 %v5877
    %v5910 = vunpack.c.l.b16 %v5878
    %v5911 = vunpack.c.l.b16 %v5879
    %v5912 = vunpack.c.l.b16 %v5880
    %v5913 = vunpack.c.l.b16 %v5881
    %v5914 = vunpack.c.l.b16 %v5882
    %v5915 = vunpack.c.l.b16 %v5883
    %v5916 = vunpack.c.l.b16 %v5884
    %v5917 = vunpack.c.l.b16 %v5885
    %v5918 = vunpack.c.l.b16 %v5886
    %v5919 = vunpack.c.l.b16 %v5887
    %v5920 = vunpack.c.l.b16 %v5888
    %v5921 = vunpack.c.l.b16 %v5889
    %v5922 = vunpack.c.l.b16 %v5890
    %v5923 = vunpack.c.l.b16 %v5891
    %v5924 = vunpack.c.l.b16 %v5892
    %v5925 = vpack.c.b16 %v5910, %v5909
    %v5926 = vpack.c.b16 %v5912, %v5911
    %v5927 = vpack.c.b16 %v5914, %v5913
    %v5928 = vpack.c.b16 %v5916, %v5915
    %v5929 = vpack.c.b16 %v5918, %v5917
    %v5930 = vpack.c.b16 %v5920, %v5919
    %v5931 = vpack.c.b16 %v5922, %v5921
    %v5932 = vpack.c.b16 %v5924, %v5923
    %5941 = vmatprep.subr.bf16.mxu0 0
    %5942 = vmatpush1.bf16.msra.mxu0 %v5925
    %5943 = vmatprep.subr.bf16.mxu0 0
    %5944 = vmatpush1.bf16.msra.mxu0 %v5926
    %5945 = vmatprep.subr.bf16.mxu0 0
    %5946 = vmatpush1.bf16.msra.mxu0 %v5927
    %5947 = vmatprep.subr.bf16.mxu0 0
    %5948 = vmatpush1.bf16.msra.mxu0 %v5928
    %5949 = vmatprep.subr.bf16.mxu0 0
    %5950 = vmatpush1.bf16.msra.mxu0 %v5929
    %5951 = vmatprep.subr.bf16.mxu0 0
    %5952 = vmatpush1.bf16.msra.mxu0 %v5930
    %5953 = vmatprep.subr.bf16.mxu0 0
    %5954 = vmatpush1.bf16.msra.mxu0 %v5931
    %5955 = vmatprep.subr.bf16.mxu0 0
    %5956 = vmatpush1.bf16.msra.mxu0 %v5932
    %5957 = vmatprep.subr.bf16.mxu0 0
    %5958 = vmatpush1.bf16.msra.mxu0 0
    %5959 = vmatprep.subr.bf16.mxu0 0
    %5960 = vmatpush1.bf16.msra.mxu0 0
    %5961 = vmatprep.subr.bf16.mxu0 0
    %5962 = vmatpush1.bf16.msra.mxu0 0
    %5963 = vmatprep.subr.bf16.mxu0 0
    %5964 = vmatpush1.bf16.msra.mxu0 0
    %5965 = vmatprep.subr.bf16.mxu0 0
    %5966 = vmatpush1.bf16.msra.mxu0 0
    %5967 = vmatprep.subr.bf16.mxu0 0
    %5968 = vmatpush1.bf16.msra.mxu0 0
    %5969 = vmatprep.subr.bf16.mxu0 0
    %5970 = vmatpush1.bf16.msra.mxu0 0
    %5971 = vmatprep.subr.bf16.mxu0 0
    %5972 = vmatpush1.bf16.msra.mxu0 0
    %5973 = vmatprep.mubr.bf16.mxu0 0
    %5974 = vmatmul.mubr.bf16.gmra.mrb[0].mxu0 %v5868
    %v5975 = vpop.f32.mrb[0].mxu0
    %v5976 = vadd.f32 0.0, %v5975
    %v5977 = vpop.f32.mrb[0].mxu0
    %v5978 = vpop.f32.mrb[0].mxu0
    %v5979 = vadd.f32 0.0, %v5978
    %v5980 = vpop.f32.mrb[0].mxu0
    %5981 = vmatprep.mubr.bf16.mxu0 0
    %5982 = vmatmul.mubr.bf16.gmra.mrb[0].mxu0 %v5869
    %v5983 = vpop.f32.mrb[0].mxu0
    %v5984 = vadd.f32 0.0, %v5983
    %v5985 = vpop.f32.mrb[0].mxu0
    %v5986 = vpop.f32.mrb[0].mxu0
    %v5987 = vadd.f32 0.0, %v5986
    %v5988 = vpop.f32.mrb[0].mxu0
    %5989 = vmatprep.mubr.bf16.mxu0 0
    %5990 = vmatmul.mubr.bf16.gmra.mrb[0].mxu0 %v5870
    %v5991 = vpop.f32.mrb[0].mxu0
    %v5992 = vadd.f32 0.0, %v5991
    %v5993 = vpop.f32.mrb[0].mxu0
    %v5994 = vpop.f32.mrb[0].mxu0
    %v5995 = vadd.f32 0.0, %v5994
    %v5996 = vpop.f32.mrb[0].mxu0
    %5997 = vmatprep.mubr.bf16.mxu0 0
    %5998 = vmatmul.mubr.bf16.gmra.mrb[0].mxu0 %v5871
    %v5999 = vpop.f32.mrb[0].mxu0
    %v6000 = vadd.f32 0.0, %v5999
    %v6001 = vpop.f32.mrb[0].mxu0
    %v6002 = vpop.f32.mrb[0].mxu0
    %v6003 = vadd.f32 0.0, %v6002
    %v6004 = vpop.f32.mrb[0].mxu0
    %6005 = vmatprep.mubr.bf16.mxu0 0
    %6006 = vmatmul.mubr.bf16.gmra.mrb[0].mxu0 %v5872
    %v6007 = vpop.f32.mrb[0].mxu0
    %v6008 = vadd.f32 0.0, %v6007
    %v6009 = vpop.f32.mrb[0].mxu0
    %v6010 = vpop.f32.mrb[0].mxu0
    %v6011 = vadd.f32 0.0, %v6010
    %v6012 = vpop.f32.mrb[0].mxu0
    %6013 = vmatprep.mubr.bf16.mxu0 0
    %6014 = vmatmul.mubr.bf16.gmra.mrb[0].mxu0 %v5873
    %v6015 = vpop.f32.mrb[0].mxu0
    %v6016 = vadd.f32 0.0, %v6015
    %v6017 = vpop.f32.mrb[0].mxu0
    %v6018 = vpop.f32.mrb[0].mxu0
    %v6019 = vadd.f32 0.0, %v6018
    %v6020 = vpop.f32.mrb[0].mxu0
    %6021 = vmatprep.mubr.bf16.mxu0 0
    %6022 = vmatmul.mubr.bf16.gmra.mrb[0].mxu0 %v5874
    %v6023 = vpop.f32.mrb[0].mxu0
    %v6024 = vadd.f32 0.0, %v6023
    %v6025 = vpop.f32.mrb[0].mxu0
    %v6026 = vpop.f32.mrb[0].mxu0
    %v6027 = vadd.f32 0.0, %v6026
    %v6028 = vpop.f32.mrb[0].mxu0
    %6029 = vmatprep.mubr.bf16.mxu0 0
    %6030 = vmatmul.mubr.bf16.gmra.mrb[0].mxu0 %v5875
    %v6031 = vpop.f32.mrb[0].mxu0
    %v6032 = vadd.f32 0.0, %v6031
    %v6033 = vpop.f32.mrb[0].mxu0
    %v6034 = vpop.f32.mrb[0].mxu0
    %v6035 = vadd.f32 0.0, %v6034
    %v6036 = vpop.f32.mrb[0].mxu0
    %6037 = vdwg.mxu0
    %v6038 = vadd.f32 %v5836, %v5976
    %v6039 = vadd.f32 %v5837, %v5979
    %v6040 = vadd.f32 %v5838, %v5984
    %v6041 = vadd.f32 %v5839, %v5987
    %v6042 = vadd.f32 %v5840, %v5992
    %v6043 = vadd.f32 %v5841, %v5995
    %v6044 = vadd.f32 %v5842, %v6000
    %v6045 = vadd.f32 %v5843, %v6003
    %v6046 = vadd.f32 %v5844, %v6008
    %v6047 = vadd.f32 %v5845, %v6011
    %v6048 = vadd.f32 %v5846, %v6016
    %v6049 = vadd.f32 %v5847, %v6019
    %v6050 = vadd.f32 %v5848, %v6024
    %v6051 = vadd.f32 %v5849, %v6027
    %v6052 = vadd.f32 %v5850, %v6032
    %v6053 = vadd.f32 %v5851, %v6035
    %v6054 = vld [vmem:[%s5649 + $0x2] sm:$0xff]
    %v6055 = vld [vmem:[%s5649 + $0x12] sm:$0xff]
    %v6056 = vld [vmem:[%s5649 + $0x22] sm:$0xff]
    %v6057 = vld [vmem:[%s5649 + $0x32] sm:$0xff]
    %v6058 = vld [vmem:[%s5649 + $0x42] sm:$0xff]
    %v6059 = vld [vmem:[%s5649 + $0x52] sm:$0xff]
    %v6060 = vld [vmem:[%s5649 + $0x62] sm:$0xff]
    %v6061 = vld [vmem:[%s5649 + $0x72] sm:$0xff]
    %v6062 = vld [vmem:[%s5649 + $0xc2] sm:$0xff]
    %v6063 = vld [vmem:[%s5649 + $0xd2] sm:$0xff]
    %v6064 = vld [vmem:[%s5649 + $0xe2] sm:$0xff]
    %v6065 = vld [vmem:[%s5649 + $0xf2] sm:$0xff]
    %v6066 = vld [vmem:[%s5649 + $0x102] sm:$0xff]
    %v6067 = vld [vmem:[%s5649 + $0x112] sm:$0xff]
    %v6068 = vld [vmem:[%s5649 + $0x122] sm:$0xff]
    %v6069 = vld [vmem:[%s5649 + $0x132] sm:$0xff]
    %v6070 = vpack.c.bf16 %v6055, %v6054
    %v6071 = vpack.c.bf16 %v6057, %v6056
    %v6072 = vpack.c.bf16 %v6059, %v6058
    %v6073 = vpack.c.bf16 %v6061, %v6060
    %v6074 = vpack.c.bf16 %v6063, %v6062
    %v6075 = vpack.c.bf16 %v6065, %v6064
    %v6076 = vpack.c.bf16 %v6067, %v6066
    %v6077 = vpack.c.bf16 %v6069, %v6068
    %s6078 = scalar_lea.vmem %s3, 1088
    %v6079 = vld [vmem:[%s6078] sm:$0xf]
    %v6080 = vld [vmem:[%s6078 + $0x4] sm:$0xf]
    %v6081 = vld [vmem:[%s6078 + $0x8] sm:$0xf]
    %v6082 = vld [vmem:[%s6078 + $0xc] sm:$0xf]
    %v6083 = vld [vmem:[%s6078 + $0x10] sm:$0xf]
    %v6084 = vld [vmem:[%s6078 + $0x14] sm:$0xf]
    %v6085 = vld [vmem:[%s6078 + $0x18] sm:$0xf]
    %v6086 = vld [vmem:[%s6078 + $0x1c] sm:$0xf]
    %v6087 = vld [vmem:[%s6078 + $0x20] sm:$0xf]
    %v6088 = vld [vmem:[%s6078 + $0x24] sm:$0xf]
    %v6089 = vld [vmem:[%s6078 + $0x28] sm:$0xf]
    %v6090 = vld [vmem:[%s6078 + $0x2c] sm:$0xf]
    %v6091 = vld [vmem:[%s6078 + $0x30] sm:$0xf]
    %v6092 = vld [vmem:[%s6078 + $0x34] sm:$0xf]
    %v6093 = vld [vmem:[%s6078 + $0x38] sm:$0xf]
    %v6094 = vld [vmem:[%s6078 + $0x3c] sm:$0xf]
    %v6111 = vunpack.c.l.b16 %v6079
    %v6112 = vunpack.c.l.b16 %v6080
    %v6113 = vunpack.c.l.b16 %v6081
    %v6114 = vunpack.c.l.b16 %v6082
    %v6115 = vunpack.c.l.b16 %v6083
    %v6116 = vunpack.c.l.b16 %v6084
    %v6117 = vunpack.c.l.b16 %v6085
    %v6118 = vunpack.c.l.b16 %v6086
    %v6119 = vunpack.c.l.b16 %v6087
    %v6120 = vunpack.c.l.b16 %v6088
    %v6121 = vunpack.c.l.b16 %v6089
    %v6122 = vunpack.c.l.b16 %v6090
    %v6123 = vunpack.c.l.b16 %v6091
    %v6124 = vunpack.c.l.b16 %v6092
    %v6125 = vunpack.c.l.b16 %v6093
    %v6126 = vunpack.c.l.b16 %v6094
    %v6127 = vpack.c.b16 %v6112, %v6111
    %v6128 = vpack.c.b16 %v6114, %v6113
    %v6129 = vpack.c.b16 %v6116, %v6115
    %v6130 = vpack.c.b16 %v6118, %v6117
    %v6131 = vpack.c.b16 %v6120, %v6119
    %v6132 = vpack.c.b16 %v6122, %v6121
    %v6133 = vpack.c.b16 %v6124, %v6123
    %v6134 = vpack.c.b16 %v6126, %v6125
    %6143 = vmatprep.subr.bf16.mxu0 0
    %6144 = vmatpush1.bf16.msra.mxu0 %v6127
    %6145 = vmatprep.subr.bf16.mxu0 0
    %6146 = vmatpush1.bf16.msra.mxu0 %v6128
    %6147 = vmatprep.subr.bf16.mxu0 0
    %6148 = vmatpush1.bf16.msra.mxu0 %v6129
    %6149 = vmatprep.subr.bf16.mxu0 0
    %6150 = vmatpush1.bf16.msra.mxu0 %v6130
    %6151 = vmatprep.subr.bf16.mxu0 0
    %6152 = vmatpush1.bf16.msra.mxu0 %v6131
    %6153 = vmatprep.subr.bf16.mxu0 0
    %6154 = vmatpush1.bf16.msra.mxu0 %v6132
    %6155 = vmatprep.subr.bf16.mxu0 0
    %6156 = vmatpush1.bf16.msra.mxu0 %v6133
    %6157 = vmatprep.subr.bf16.mxu0 0
    %6158 = vmatpush1.bf16.msra.mxu0 %v6134
    %6159 = vmatprep.subr.bf16.mxu0 0
    %6160 = vmatpush1.bf16.msra.mxu0 0
    %6161 = vmatprep.subr.bf16.mxu0 0
    %6162 = vmatpush1.bf16.msra.mxu0 0
    %6163 = vmatprep.subr.bf16.mxu0 0
    %6164 = vmatpush1.bf16.msra.mxu0 0
    %6165 = vmatprep.subr.bf16.mxu0 0
    %6166 = vmatpush1.bf16.msra.mxu0 0
    %6167 = vmatprep.subr.bf16.mxu0 0
    %6168 = vmatpush1.bf16.msra.mxu0 0
    %6169 = vmatprep.subr.bf16.mxu0 0
    %6170 = vmatpush1.bf16.msra.mxu0 0
    %6171 = vmatprep.subr.bf16.mxu0 0
    %6172 = vmatpush1.bf16.msra.mxu0 0
    %6173 = vmatprep.subr.bf16.mxu0 0
    %6174 = vmatpush1.bf16.msra.mxu0 0
    %6175 = vmatprep.mubr.bf16.mxu0 0
    %6176 = vmatmul.mubr.bf16.gmra.mrb[0].mxu0 %v6070
    %v6177 = vpop.f32.mrb[0].mxu0
    %v6178 = vadd.f32 0.0, %v6177
    %v6179 = vpop.f32.mrb[0].mxu0
    %v6180 = vpop.f32.mrb[0].mxu0
    %v6181 = vadd.f32 0.0, %v6180
    %v6182 = vpop.f32.mrb[0].mxu0
    %6183 = vmatprep.mubr.bf16.mxu0 0
    %6184 = vmatmul.mubr.bf16.gmra.mrb[0].mxu0 %v6071
    %v6185 = vpop.f32.mrb[0].mxu0
    %v6186 = vadd.f32 0.0, %v6185
    %v6187 = vpop.f32.mrb[0].mxu0
    %v6188 = vpop.f32.mrb[0].mxu0
    %v6189 = vadd.f32 0.0, %v6188
    %v6190 = vpop.f32.mrb[0].mxu0
    %6191 = vmatprep.mubr.bf16.mxu0 0
    %6192 = vmatmul.mubr.bf16.gmra.mrb[0].mxu0 %v6072
    %v6193 = vpop.f32.mrb[0].mxu0
    %v6194 = vadd.f32 0.0, %v6193
    %v6195 = vpop.f32.mrb[0].mxu0
    %v6196 = vpop.f32.mrb[0].mxu0
    %v6197 = vadd.f32 0.0, %v6196
    %v6198 = vpop.f32.mrb[0].mxu0
    %6199 = vmatprep.mubr.bf16.mxu0 0
    %6200 = vmatmul.mubr.bf16.gmra.mrb[0].mxu0 %v6073
    %v6201 = vpop.f32.mrb[0].mxu0
    %v6202 = vadd.f32 0.0, %v6201
    %v6203 = vpop.f32.mrb[0].mxu0
    %v6204 = vpop.f32.mrb[0].mxu0
    %v6205 = vadd.f32 0.0, %v6204
    %v6206 = vpop.f32.mrb[0].mxu0
    %6207 = vmatprep.mubr.bf16.mxu0 0
    %6208 = vmatmul.mubr.bf16.gmra.mrb[0].mxu0 %v6074
    %v6209 = vpop.f32.mrb[0].mxu0
    %v6210 = vadd.f32 0.0, %v6209
    %v6211 = vpop.f32.mrb[0].mxu0
    %v6212 = vpop.f32.mrb[0].mxu0
    %v6213 = vadd.f32 0.0, %v6212
    %v6214 = vpop.f32.mrb[0].mxu0
    %6215 = vmatprep.mubr.bf16.mxu0 0
    %6216 = vmatmul.mubr.bf16.gmra.mrb[0].mxu0 %v6075
    %v6217 = vpop.f32.mrb[0].mxu0
    %v6218 = vadd.f32 0.0, %v6217
    %v6219 = vpop.f32.mrb[0].mxu0
    %v6220 = vpop.f32.mrb[0].mxu0
    %v6221 = vadd.f32 0.0, %v6220
    %v6222 = vpop.f32.mrb[0].mxu0
    %6223 = vmatprep.mubr.bf16.mxu0 0
    %6224 = vmatmul.mubr.bf16.gmra.mrb[0].mxu0 %v6076
    %v6225 = vpop.f32.mrb[0].mxu0
    %v6226 = vadd.f32 0.0, %v6225
    %v6227 = vpop.f32.mrb[0].mxu0
    %v6228 = vpop.f32.mrb[0].mxu0
    %v6229 = vadd.f32 0.0, %v6228
    %v6230 = vpop.f32.mrb[0].mxu0
    %6231 = vmatprep.mubr.bf16.mxu0 0
    %6232 = vmatmul.mubr.bf16.gmra.mrb[0].mxu0 %v6077
    %v6233 = vpop.f32.mrb[0].mxu0
    %v6234 = vadd.f32 0.0, %v6233
    %v6235 = vpop.f32.mrb[0].mxu0
    %v6236 = vpop.f32.mrb[0].mxu0
    %v6237 = vadd.f32 0.0, %v6236
    %v6238 = vpop.f32.mrb[0].mxu0
    %6239 = vdwg.mxu0
    %v6240 = vadd.f32 %v6038, %v6178
    %v6241 = vadd.f32 %v6039, %v6181
    %v6242 = vadd.f32 %v6040, %v6186
    %v6243 = vadd.f32 %v6041, %v6189
    %v6244 = vadd.f32 %v6042, %v6194
    %v6245 = vadd.f32 %v6043, %v6197
    %v6246 = vadd.f32 %v6044, %v6202
    %v6247 = vadd.f32 %v6045, %v6205
    %v6248 = vadd.f32 %v6046, %v6210
    %v6249 = vadd.f32 %v6047, %v6213
    %v6250 = vadd.f32 %v6048, %v6218
    %v6251 = vadd.f32 %v6049, %v6221
    %v6252 = vadd.f32 %v6050, %v6226
    %v6253 = vadd.f32 %v6051, %v6229
    %v6254 = vadd.f32 %v6052, %v6234
    %v6255 = vadd.f32 %v6053, %v6237
    %v6256 = vld [vmem:[%s5649 + $0x3] sm:$0xff]
    %v6257 = vld [vmem:[%s5649 + $0x13] sm:$0xff]
    %v6258 = vld [vmem:[%s5649 + $0x23] sm:$0xff]
    %v6259 = vld [vmem:[%s5649 + $0x33] sm:$0xff]
    %v6260 = vld [vmem:[%s5649 + $0x43] sm:$0xff]
    %v6261 = vld [vmem:[%s5649 + $0x53] sm:$0xff]
    %v6262 = vld [vmem:[%s5649 + $0x63] sm:$0xff]
    %v6263 = vld [vmem:[%s5649 + $0x73] sm:$0xff]
    %v6264 = vld [vmem:[%s5649 + $0xc3] sm:$0xff]
    %v6265 = vld [vmem:[%s5649 + $0xd3] sm:$0xff]
    %v6266 = vld [vmem:[%s5649 + $0xe3] sm:$0xff]
    %v6267 = vld [vmem:[%s5649 + $0xf3] sm:$0xff]
    %v6268 = vld [vmem:[%s5649 + $0x103] sm:$0xff]
    %v6269 = vld [vmem:[%s5649 + $0x113] sm:$0xff]
    %v6270 = vld [vmem:[%s5649 + $0x123] sm:$0xff]
    %v6271 = vld [vmem:[%s5649 + $0x133] sm:$0xff]
    %v6272 = vpack.c.bf16 %v6257, %v6256
    %v6273 = vpack.c.bf16 %v6259, %v6258
    %v6274 = vpack.c.bf16 %v6261, %v6260
    %v6275 = vpack.c.bf16 %v6263, %v6262
    %v6276 = vpack.c.bf16 %v6265, %v6264
    %v6277 = vpack.c.bf16 %v6267, %v6266
    %v6278 = vpack.c.bf16 %v6269, %v6268
    %v6279 = vpack.c.bf16 %v6271, %v6270
    %s6280 = scalar_lea.vmem %s3, 1152
    %v6281 = vld [vmem:[%s6280] sm:$0xf]
    %v6282 = vld [vmem:[%s6280 + $0x4] sm:$0xf]
    %v6283 = vld [vmem:[%s6280 + $0x8] sm:$0xf]
    %v6284 = vld [vmem:[%s6280 + $0xc] sm:$0xf]
    %v6285 = vld [vmem:[%s6280 + $0x10] sm:$0xf]
    %v6286 = vld [vmem:[%s6280 + $0x14] sm:$0xf]
    %v6287 = vld [vmem:[%s6280 + $0x18] sm:$0xf]
    %v6288 = vld [vmem:[%s6280 + $0x1c] sm:$0xf]
    %v6289 = vld [vmem:[%s6280 + $0x20] sm:$0xf]
    %v6290 = vld [vmem:[%s6280 + $0x24] sm:$0xf]
    %v6291 = vld [vmem:[%s6280 + $0x28] sm:$0xf]
    %v6292 = vld [vmem:[%s6280 + $0x2c] sm:$0xf]
    %v6293 = vld [vmem:[%s6280 + $0x30] sm:$0xf]
    %v6294 = vld [vmem:[%s6280 + $0x34] sm:$0xf]
    %v6295 = vld [vmem:[%s6280 + $0x38] sm:$0xf]
    %v6296 = vld [vmem:[%s6280 + $0x3c] sm:$0xf]
    %v6313 = vunpack.c.l.b16 %v6281
    %v6314 = vunpack.c.l.b16 %v6282
    %v6315 = vunpack.c.l.b16 %v6283
    %v6316 = vunpack.c.l.b16 %v6284
    %v6317 = vunpack.c.l.b16 %v6285
    %v6318 = vunpack.c.l.b16 %v6286
    %v6319 = vunpack.c.l.b16 %v6287
    %v6320 = vunpack.c.l.b16 %v6288
    %v6321 = vunpack.c.l.b16 %v6289
    %v6322 = vunpack.c.l.b16 %v6290
    %v6323 = vunpack.c.l.b16 %v6291
    %v6324 = vunpack.c.l.b16 %v6292
    %v6325 = vunpack.c.l.b16 %v6293
    %v6326 = vunpack.c.l.b16 %v6294
    %v6327 = vunpack.c.l.b16 %v6295
    %v6328 = vunpack.c.l.b16 %v6296
    %v6329 = vpack.c.b16 %v6314, %v6313
    %v6330 = vpack.c.b16 %v6316, %v6315
    %v6331 = vpack.c.b16 %v6318, %v6317
    %v6332 = vpack.c.b16 %v6320, %v6319
    %v6333 = vpack.c.b16 %v6322, %v6321
    %v6334 = vpack.c.b16 %v6324, %v6323
    %v6335 = vpack.c.b16 %v6326, %v6325
    %v6336 = vpack.c.b16 %v6328, %v6327
    %6345 = vmatprep.subr.bf16.mxu0 0
    %6346 = vmatpush1.bf16.msra.mxu0 %v6329
    %6347 = vmatprep.subr.bf16.mxu0 0
    %6348 = vmatpush1.bf16.msra.mxu0 %v6330
    %6349 = vmatprep.subr.bf16.mxu0 0
    %6350 = vmatpush1.bf16.msra.mxu0 %v6331
    %6351 = vmatprep.subr.bf16.mxu0 0
    %6352 = vmatpush1.bf16.msra.mxu0 %v6332
    %6353 = vmatprep.subr.bf16.mxu0 0
    %6354 = vmatpush1.bf16.msra.mxu0 %v6333
    %6355 = vmatprep.subr.bf16.mxu0 0
    %6356 = vmatpush1.bf16.msra.mxu0 %v6334
    %6357 = vmatprep.subr.bf16.mxu0 0
    %6358 = vmatpush1.bf16.msra.mxu0 %v6335
    %6359 = vmatprep.subr.bf16.mxu0 0
    %6360 = vmatpush1.bf16.msra.mxu0 %v6336
    %6361 = vmatprep.subr.bf16.mxu0 0
    %6362 = vmatpush1.bf16.msra.mxu0 0
    %6363 = vmatprep.subr.bf16.mxu0 0
    %6364 = vmatpush1.bf16.msra.mxu0 0
    %6365 = vmatprep.subr.bf16.mxu0 0
    %6366 = vmatpush1.bf16.msra.mxu0 0
    %6367 = vmatprep.subr.bf16.mxu0 0
    %6368 = vmatpush1.bf16.msra.mxu0 0
    %6369 = vmatprep.subr.bf16.mxu0 0
    %6370 = vmatpush1.bf16.msra.mxu0 0
    %6371 = vmatprep.subr.bf16.mxu0 0
    %6372 = vmatpush1.bf16.msra.mxu0 0
    %6373 = vmatprep.subr.bf16.mxu0 0
    %6374 = vmatpush1.bf16.msra.mxu0 0
    %6375 = vmatprep.subr.bf16.mxu0 0
    %6376 = vmatpush1.bf16.msra.mxu0 0
    %6377 = vmatprep.mubr.bf16.mxu0 0
    %6378 = vmatmul.mubr.bf16.gmra.mrb[0].mxu0 %v6272
    %v6379 = vpop.f32.mrb[0].mxu0
    %v6380 = vadd.f32 0.0, %v6379
    %v6381 = vpop.f32.mrb[0].mxu0
    %v6382 = vpop.f32.mrb[0].mxu0
    %v6383 = vadd.f32 0.0, %v6382
    %v6384 = vpop.f32.mrb[0].mxu0
    %6385 = vmatprep.mubr.bf16.mxu0 0
    %6386 = vmatmul.mubr.bf16.gmra.mrb[0].mxu0 %v6273
    %v6387 = vpop.f32.mrb[0].mxu0
    %v6388 = vadd.f32 0.0, %v6387
    %v6389 = vpop.f32.mrb[0].mxu0
    %v6390 = vpop.f32.mrb[0].mxu0
    %v6391 = vadd.f32 0.0, %v6390
    %v6392 = vpop.f32.mrb[0].mxu0
    %6393 = vmatprep.mubr.bf16.mxu0 0
    %6394 = vmatmul.mubr.bf16.gmra.mrb[0].mxu0 %v6274
    %v6395 = vpop.f32.mrb[0].mxu0
    %v6396 = vadd.f32 0.0, %v6395
    %v6397 = vpop.f32.mrb[0].mxu0
    %v6398 = vpop.f32.mrb[0].mxu0
    %v6399 = vadd.f32 0.0, %v6398
    %v6400 = vpop.f32.mrb[0].mxu0
    %6401 = vmatprep.mubr.bf16.mxu0 0
    %6402 = vmatmul.mubr.bf16.gmra.mrb[0].mxu0 %v6275
    %v6403 = vpop.f32.mrb[0].mxu0
    %v6404 = vadd.f32 0.0, %v6403
    %v6405 = vpop.f32.mrb[0].mxu0
    %v6406 = vpop.f32.mrb[0].mxu0
    %v6407 = vadd.f32 0.0, %v6406
    %v6408 = vpop.f32.mrb[0].mxu0
    %6409 = vmatprep.mubr.bf16.mxu0 0
    %6410 = vmatmul.mubr.bf16.gmra.mrb[0].mxu0 %v6276
    %v6411 = vpop.f32.mrb[0].mxu0
    %v6412 = vadd.f32 0.0, %v6411
    %v6413 = vpop.f32.mrb[0].mxu0
    %v6414 = vpop.f32.mrb[0].mxu0
    %v6415 = vadd.f32 0.0, %v6414
    %v6416 = vpop.f32.mrb[0].mxu0
    %6417 = vmatprep.mubr.bf16.mxu0 0
    %6418 = vmatmul.mubr.bf16.gmra.mrb[0].mxu0 %v6277
    %v6419 = vpop.f32.mrb[0].mxu0
    %v6420 = vadd.f32 0.0, %v6419
    %v6421 = vpop.f32.mrb[0].mxu0
    %v6422 = vpop.f32.mrb[0].mxu0
    %v6423 = vadd.f32 0.0, %v6422
    %v6424 = vpop.f32.mrb[0].mxu0
    %6425 = vmatprep.mubr.bf16.mxu0 0
    %6426 = vmatmul.mubr.bf16.gmra.mrb[0].mxu0 %v6278
    %v6427 = vpop.f32.mrb[0].mxu0
    %v6428 = vadd.f32 0.0, %v6427
    %v6429 = vpop.f32.mrb[0].mxu0
    %v6430 = vpop.f32.mrb[0].mxu0
    %v6431 = vadd.f32 0.0, %v6430
    %v6432 = vpop.f32.mrb[0].mxu0
    %6433 = vmatprep.mubr.bf16.mxu0 0
    %6434 = vmatmul.mubr.bf16.gmra.mrb[0].mxu0 %v6279
    %v6435 = vpop.f32.mrb[0].mxu0
    %v6436 = vadd.f32 0.0, %v6435
    %v6437 = vpop.f32.mrb[0].mxu0
    %v6438 = vpop.f32.mrb[0].mxu0
    %v6439 = vadd.f32 0.0, %v6438
    %v6440 = vpop.f32.mrb[0].mxu0
    %6441 = vdwg.mxu0
    %v6442 = vadd.f32 %v6240, %v6380
    %v6443 = vadd.f32 %v6241, %v6383
    %v6444 = vadd.f32 %v6242, %v6388
    %v6445 = vadd.f32 %v6243, %v6391
    %v6446 = vadd.f32 %v6244, %v6396
    %v6447 = vadd.f32 %v6245, %v6399
    %v6448 = vadd.f32 %v6246, %v6404
    %v6449 = vadd.f32 %v6247, %v6407
    %v6450 = vadd.f32 %v6248, %v6412
    %v6451 = vadd.f32 %v6249, %v6415
    %v6452 = vadd.f32 %v6250, %v6420
    %v6453 = vadd.f32 %v6251, %v6423
    %v6454 = vadd.f32 %v6252, %v6428
    %v6455 = vadd.f32 %v6253, %v6431
    %v6456 = vadd.f32 %v6254, %v6436
    %v6457 = vadd.f32 %v6255, %v6439
    %v6458 = vld [vmem:[%s5649 + $0x4] sm:$0xff]
    %v6459 = vld [vmem:[%s5649 + $0x14] sm:$0xff]
    %v6460 = vld [vmem:[%s5649 + $0x24] sm:$0xff]
    %v6461 = vld [vmem:[%s5649 + $0x34] sm:$0xff]
    %v6462 = vld [vmem:[%s5649 + $0x44] sm:$0xff]
    %v6463 = vld [vmem:[%s5649 + $0x54] sm:$0xff]
    %v6464 = vld [vmem:[%s5649 + $0x64] sm:$0xff]
    %v6465 = vld [vmem:[%s5649 + $0x74] sm:$0xff]
    %v6466 = vld [vmem:[%s5649 + $0xc4] sm:$0xff]
    %v6467 = vld [vmem:[%s5649 + $0xd4] sm:$0xff]
    %v6468 = vld [vmem:[%s5649 + $0xe4] sm:$0xff]
    %v6469 = vld [vmem:[%s5649 + $0xf4] sm:$0xff]
    %v6470 = vld [vmem:[%s5649 + $0x104] sm:$0xff]
    %v6471 = vld [vmem:[%s5649 + $0x114] sm:$0xff]
    %v6472 = vld [vmem:[%s5649 + $0x124] sm:$0xff]
    %v6473 = vld [vmem:[%s5649 + $0x134] sm:$0xff]
    %v6474 = vpack.c.bf16 %v6459, %v6458
    %v6475 = vpack.c.bf16 %v6461, %v6460
    %v6476 = vpack.c.bf16 %v6463, %v6462
    %v6477 = vpack.c.bf16 %v6465, %v6464
    %v6478 = vpack.c.bf16 %v6467, %v6466
    %v6479 = vpack.c.bf16 %v6469, %v6468
    %v6480 = vpack.c.bf16 %v6471, %v6470
    %v6481 = vpack.c.bf16 %v6473, %v6472
    %s6482 = scalar_lea.vmem %s3, 1216
    %v6483 = vld [vmem:[%s6482] sm:$0xf]
    %v6484 = vld [vmem:[%s6482 + $0x4] sm:$0xf]
    %v6485 = vld [vmem:[%s6482 + $0x8] sm:$0xf]
    %v6486 = vld [vmem:[%s6482 + $0xc] sm:$0xf]
    %v6487 = vld [vmem:[%s6482 + $0x10] sm:$0xf]
    %v6488 = vld [vmem:[%s6482 + $0x14] sm:$0xf]
    %v6489 = vld [vmem:[%s6482 + $0x18] sm:$0xf]
    %v6490 = vld [vmem:[%s6482 + $0x1c] sm:$0xf]
    %v6491 = vld [vmem:[%s6482 + $0x20] sm:$0xf]
    %v6492 = vld [vmem:[%s6482 + $0x24] sm:$0xf]
    %v6493 = vld [vmem:[%s6482 + $0x28] sm:$0xf]
    %v6494 = vld [vmem:[%s6482 + $0x2c] sm:$0xf]
    %v6495 = vld [vmem:[%s6482 + $0x30] sm:$0xf]
    %v6496 = vld [vmem:[%s6482 + $0x34] sm:$0xf]
    %v6497 = vld [vmem:[%s6482 + $0x38] sm:$0xf]
    %v6498 = vld [vmem:[%s6482 + $0x3c] sm:$0xf]
    %v6515 = vunpack.c.l.b16 %v6483
    %v6516 = vunpack.c.l.b16 %v6484
    %v6517 = vunpack.c.l.b16 %v6485
    %v6518 = vunpack.c.l.b16 %v6486
    %v6519 = vunpack.c.l.b16 %v6487
    %v6520 = vunpack.c.l.b16 %v6488
    %v6521 = vunpack.c.l.b16 %v6489
    %v6522 = vunpack.c.l.b16 %v6490
    %v6523 = vunpack.c.l.b16 %v6491
    %v6524 = vunpack.c.l.b16 %v6492
    %v6525 = vunpack.c.l.b16 %v6493
    %v6526 = vunpack.c.l.b16 %v6494
    %v6527 = vunpack.c.l.b16 %v6495
    %v6528 = vunpack.c.l.b16 %v6496
    %v6529 = vunpack.c.l.b16 %v6497
    %v6530 = vunpack.c.l.b16 %v6498
    %v6531 = vpack.c.b16 %v6516, %v6515
    %v6532 = vpack.c.b16 %v6518, %v6517
    %v6533 = vpack.c.b16 %v6520, %v6519
    %v6534 = vpack.c.b16 %v6522, %v6521
    %v6535 = vpack.c.b16 %v6524, %v6523
    %v6536 = vpack.c.b16 %v6526, %v6525
    %v6537 = vpack.c.b16 %v6528, %v6527
    %v6538 = vpack.c.b16 %v6530, %v6529
    %6547 = vmatprep.subr.bf16.mxu0 0
    %6548 = vmatpush1.bf16.msra.mxu0 %v6531
    %6549 = vmatprep.subr.bf16.mxu0 0
    %6550 = vmatpush1.bf16.msra.mxu0 %v6532
    %6551 = vmatprep.subr.bf16.mxu0 0
    %6552 = vmatpush1.bf16.msra.mxu0 %v6533
    %6553 = vmatprep.subr.bf16.mxu0 0
    %6554 = vmatpush1.bf16.msra.mxu0 %v6534
    %6555 = vmatprep.subr.bf16.mxu0 0
    %6556 = vmatpush1.bf16.msra.mxu0 %v6535
    %6557 = vmatprep.subr.bf16.mxu0 0
    %6558 = vmatpush1.bf16.msra.mxu0 %v6536
    %6559 = vmatprep.subr.bf16.mxu0 0
    %6560 = vmatpush1.bf16.msra.mxu0 %v6537
    %6561 = vmatprep.subr.bf16.mxu0 0
    %6562 = vmatpush1.bf16.msra.mxu0 %v6538
    %6563 = vmatprep.subr.bf16.mxu0 0
    %6564 = vmatpush1.bf16.msra.mxu0 0
    %6565 = vmatprep.subr.bf16.mxu0 0
    %6566 = vmatpush1.bf16.msra.mxu0 0
    %6567 = vmatprep.subr.bf16.mxu0 0
    %6568 = vmatpush1.bf16.msra.mxu0 0
    %6569 = vmatprep.subr.bf16.mxu0 0
    %6570 = vmatpush1.bf16.msra.mxu0 0
    %6571 = vmatprep.subr.bf16.mxu0 0
    %6572 = vmatpush1.bf16.msra.mxu0 0
    %6573 = vmatprep.subr.bf16.mxu0 0
    %6574 = vmatpush1.bf16.msra.mxu0 0
    %6575 = vmatprep.subr.bf16.mxu0 0
    %6576 = vmatpush1.bf16.msra.mxu0 0
    %6577 = vmatprep.subr.bf16.mxu0 0
    %6578 = vmatpush1.bf16.msra.mxu0 0
    %6579 = vmatprep.mubr.bf16.mxu0 0
    %6580 = vmatmul.mubr.bf16.gmra.mrb[0].mxu0 %v6474
    %v6581 = vpop.f32.mrb[0].mxu0
    %v6582 = vadd.f32 0.0, %v6581
    %v6583 = vpop.f32.mrb[0].mxu0
    %v6584 = vpop.f32.mrb[0].mxu0
    %v6585 = vadd.f32 0.0, %v6584
    %v6586 = vpop.f32.mrb[0].mxu0
    %6587 = vmatprep.mubr.bf16.mxu0 0
    %6588 = vmatmul.mubr.bf16.gmra.mrb[0].mxu0 %v6475
    %v6589 = vpop.f32.mrb[0].mxu0
    %v6590 = vadd.f32 0.0, %v6589
    %v6591 = vpop.f32.mrb[0].mxu0
    %v6592 = vpop.f32.mrb[0].mxu0
    %v6593 = vadd.f32 0.0, %v6592
    %v6594 = vpop.f32.mrb[0].mxu0
    %6595 = vmatprep.mubr.bf16.mxu0 0
    %6596 = vmatmul.mubr.bf16.gmra.mrb[0].mxu0 %v6476
    %v6597 = vpop.f32.mrb[0].mxu0
    %v6598 = vadd.f32 0.0, %v6597
    %v6599 = vpop.f32.mrb[0].mxu0
    %v6600 = vpop.f32.mrb[0].mxu0
    %v6601 = vadd.f32 0.0, %v6600
    %v6602 = vpop.f32.mrb[0].mxu0
    %6603 = vmatprep.mubr.bf16.mxu0 0
    %6604 = vmatmul.mubr.bf16.gmra.mrb[0].mxu0 %v6477
    %v6605 = vpop.f32.mrb[0].mxu0
    %v6606 = vadd.f32 0.0, %v6605
    %v6607 = vpop.f32.mrb[0].mxu0
    %v6608 = vpop.f32.mrb[0].mxu0
    %v6609 = vadd.f32 0.0, %v6608
    %v6610 = vpop.f32.mrb[0].mxu0
    %6611 = vmatprep.mubr.bf16.mxu0 0
    %6612 = vmatmul.mubr.bf16.gmra.mrb[0].mxu0 %v6478
    %v6613 = vpop.f32.mrb[0].mxu0
    %v6614 = vadd.f32 0.0, %v6613
    %v6615 = vpop.f32.mrb[0].mxu0
    %v6616 = vpop.f32.mrb[0].mxu0
    %v6617 = vadd.f32 0.0, %v6616
    %v6618 = vpop.f32.mrb[0].mxu0
    %6619 = vmatprep.mubr.bf16.mxu0 0
    %6620 = vmatmul.mubr.bf16.gmra.mrb[0].mxu0 %v6479
    %v6621 = vpop.f32.mrb[0].mxu0
    %v6622 = vadd.f32 0.0, %v6621
    %v6623 = vpop.f32.mrb[0].mxu0
    %v6624 = vpop.f32.mrb[0].mxu0
    %v6625 = vadd.f32 0.0, %v6624
    %v6626 = vpop.f32.mrb[0].mxu0
    %6627 = vmatprep.mubr.bf16.mxu0 0
    %6628 = vmatmul.mubr.bf16.gmra.mrb[0].mxu0 %v6480
    %v6629 = vpop.f32.mrb[0].mxu0
    %v6630 = vadd.f32 0.0, %v6629
    %v6631 = vpop.f32.mrb[0].mxu0
    %v6632 = vpop.f32.mrb[0].mxu0
    %v6633 = vadd.f32 0.0, %v6632
    %v6634 = vpop.f32.mrb[0].mxu0
    %6635 = vmatprep.mubr.bf16.mxu0 0
    %6636 = vmatmul.mubr.bf16.gmra.mrb[0].mxu0 %v6481
    %v6637 = vpop.f32.mrb[0].mxu0
    %v6638 = vadd.f32 0.0, %v6637
    %v6639 = vpop.f32.mrb[0].mxu0
    %v6640 = vpop.f32.mrb[0].mxu0
    %v6641 = vadd.f32 0.0, %v6640
    %v6642 = vpop.f32.mrb[0].mxu0
    %6643 = vdwg.mxu0
    %v6644 = vadd.f32 %v6442, %v6582
    %v6645 = vadd.f32 %v6443, %v6585
    %v6646 = vadd.f32 %v6444, %v6590
    %v6647 = vadd.f32 %v6445, %v6593
    %v6648 = vadd.f32 %v6446, %v6598
    %v6649 = vadd.f32 %v6447, %v6601
    %v6650 = vadd.f32 %v6448, %v6606
    %v6651 = vadd.f32 %v6449, %v6609
    %v6652 = vadd.f32 %v6450, %v6614
    %v6653 = vadd.f32 %v6451, %v6617
    %v6654 = vadd.f32 %v6452, %v6622
    %v6655 = vadd.f32 %v6453, %v6625
    %v6656 = vadd.f32 %v6454, %v6630
    %v6657 = vadd.f32 %v6455, %v6633
    %v6658 = vadd.f32 %v6456, %v6638
    %v6659 = vadd.f32 %v6457, %v6641
    %s6660 = scalar_lea.vmem [#allocation2], 64
    %v6661 = vld [vmem:[%s6660] sm:$0xff]
    %v6662 = vld [vmem:[%s6660 + $0x10] sm:$0xff]
    %v6663 = vld [vmem:[%s6660 + $0x20] sm:$0xff]
    %v6664 = vld [vmem:[%s6660 + $0x30] sm:$0xff]
    %v6665 = vld [vmem:[%s6660 + $0x40] sm:$0xff]
    %v6666 = vld [vmem:[%s6660 + $0x50] sm:$0xff]
    %v6667 = vld [vmem:[%s6660 + $0x60] sm:$0xff]
    %v6668 = vld [vmem:[%s6660 + $0x70] sm:$0xff]
    %v6669 = vld [vmem:[%s6660 + $0xc0] sm:$0xff]
    %v6670 = vld [vmem:[%s6660 + $0xd0] sm:$0xff]
    %v6671 = vld [vmem:[%s6660 + $0xe0] sm:$0xff]
    %v6672 = vld [vmem:[%s6660 + $0xf0] sm:$0xff]
    %v6673 = vld [vmem:[%s6660 + $0x100] sm:$0xff]
    %v6674 = vld [vmem:[%s6660 + $0x110] sm:$0xff]
    %v6675 = vld [vmem:[%s6660 + $0x120] sm:$0xff]
    %v6676 = vld [vmem:[%s6660 + $0x130] sm:$0xff]
    %v6677 = vpack.c.bf16 %v6662, %v6661
    %v6678 = vpack.c.bf16 %v6664, %v6663
    %v6679 = vpack.c.bf16 %v6666, %v6665
    %v6680 = vpack.c.bf16 %v6668, %v6667
    %v6681 = vpack.c.bf16 %v6670, %v6669
    %v6682 = vpack.c.bf16 %v6672, %v6671
    %v6683 = vpack.c.bf16 %v6674, %v6673
    %v6684 = vpack.c.bf16 %v6676, %v6675
    %s6685 = scalar_lea.vmem %s3, 1280
    %v6686 = vld [vmem:[%s6685] sm:$0xf]
    %v6687 = vld [vmem:[%s6685 + $0x4] sm:$0xf]
    %v6688 = vld [vmem:[%s6685 + $0x8] sm:$0xf]
    %v6689 = vld [vmem:[%s6685 + $0xc] sm:$0xf]
    %v6690 = vld [vmem:[%s6685 + $0x10] sm:$0xf]
    %v6691 = vld [vmem:[%s6685 + $0x14] sm:$0xf]
    %v6692 = vld [vmem:[%s6685 + $0x18] sm:$0xf]
    %v6693 = vld [vmem:[%s6685 + $0x1c] sm:$0xf]
    %v6694 = vld [vmem:[%s6685 + $0x20] sm:$0xf]
    %v6695 = vld [vmem:[%s6685 + $0x24] sm:$0xf]
    %v6696 = vld [vmem:[%s6685 + $0x28] sm:$0xf]
    %v6697 = vld [vmem:[%s6685 + $0x2c] sm:$0xf]
    %v6698 = vld [vmem:[%s6685 + $0x30] sm:$0xf]
    %v6699 = vld [vmem:[%s6685 + $0x34] sm:$0xf]
    %v6700 = vld [vmem:[%s6685 + $0x38] sm:$0xf]
    %v6701 = vld [vmem:[%s6685 + $0x3c] sm:$0xf]
    %v6718 = vunpack.c.l.b16 %v6686
    %v6719 = vunpack.c.l.b16 %v6687
    %v6720 = vunpack.c.l.b16 %v6688
    %v6721 = vunpack.c.l.b16 %v6689
    %v6722 = vunpack.c.l.b16 %v6690
    %v6723 = vunpack.c.l.b16 %v6691
    %v6724 = vunpack.c.l.b16 %v6692
    %v6725 = vunpack.c.l.b16 %v6693
    %v6726 = vunpack.c.l.b16 %v6694
    %v6727 = vunpack.c.l.b16 %v6695
    %v6728 = vunpack.c.l.b16 %v6696
    %v6729 = vunpack.c.l.b16 %v6697
    %v6730 = vunpack.c.l.b16 %v6698
    %v6731 = vunpack.c.l.b16 %v6699
    %v6732 = vunpack.c.l.b16 %v6700
    %v6733 = vunpack.c.l.b16 %v6701
    %v6734 = vpack.c.b16 %v6719, %v6718
    %v6735 = vpack.c.b16 %v6721, %v6720
    %v6736 = vpack.c.b16 %v6723, %v6722
    %v6737 = vpack.c.b16 %v6725, %v6724
    %v6738 = vpack.c.b16 %v6727, %v6726
    %v6739 = vpack.c.b16 %v6729, %v6728
    %v6740 = vpack.c.b16 %v6731, %v6730
    %v6741 = vpack.c.b16 %v6733, %v6732
    %6750 = vmatprep.subr.bf16.mxu0 0
    %6751 = vmatpush1.bf16.msra.mxu0 %v6734
    %6752 = vmatprep.subr.bf16.mxu0 0
    %6753 = vmatpush1.bf16.msra.mxu0 %v6735
    %6754 = vmatprep.subr.bf16.mxu0 0
    %6755 = vmatpush1.bf16.msra.mxu0 %v6736
    %6756 = vmatprep.subr.bf16.mxu0 0
    %6757 = vmatpush1.bf16.msra.mxu0 %v6737
    %6758 = vmatprep.subr.bf16.mxu0 0
    %6759 = vmatpush1.bf16.msra.mxu0 %v6738
    %6760 = vmatprep.subr.bf16.mxu0 0
    %6761 = vmatpush1.bf16.msra.mxu0 %v6739
    %6762 = vmatprep.subr.bf16.mxu0 0
    %6763 = vmatpush1.bf16.msra.mxu0 %v6740
    %6764 = vmatprep.subr.bf16.mxu0 0
    %6765 = vmatpush1.bf16.msra.mxu0 %v6741
    %6766 = vmatprep.subr.bf16.mxu0 0
    %6767 = vmatpush1.bf16.msra.mxu0 0
    %6768 = vmatprep.subr.bf16.mxu0 0
    %6769 = vmatpush1.bf16.msra.mxu0 0
    %6770 = vmatprep.subr.bf16.mxu0 0
    %6771 = vmatpush1.bf16.msra.mxu0 0
    %6772 = vmatprep.subr.bf16.mxu0 0
    %6773 = vmatpush1.bf16.msra.mxu0 0
    %6774 = vmatprep.subr.bf16.mxu0 0
    %6775 = vmatpush1.bf16.msra.mxu0 0
    %6776 = vmatprep.subr.bf16.mxu0 0
    %6777 = vmatpush1.bf16.msra.mxu0 0
    %6778 = vmatprep.subr.bf16.mxu0 0
    %6779 = vmatpush1.bf16.msra.mxu0 0
    %6780 = vmatprep.subr.bf16.mxu0 0
    %6781 = vmatpush1.bf16.msra.mxu0 0
    %6782 = vmatprep.mubr.bf16.mxu0 0
    %6783 = vmatmul.mubr.bf16.gmra.mrb[0].mxu0 %v6677
    %v6784 = vpop.f32.mrb[0].mxu0
    %v6785 = vadd.f32 0.0, %v6784
    %v6786 = vpop.f32.mrb[0].mxu0
    %v6787 = vpop.f32.mrb[0].mxu0
    %v6788 = vadd.f32 0.0, %v6787
    %v6789 = vpop.f32.mrb[0].mxu0
    %6790 = vmatprep.mubr.bf16.mxu0 0
    %6791 = vmatmul.mubr.bf16.gmra.mrb[0].mxu0 %v6678
    %v6792 = vpop.f32.mrb[0].mxu0
    %v6793 = vadd.f32 0.0, %v6792
    %v6794 = vpop.f32.mrb[0].mxu0
    %v6795 = vpop.f32.mrb[0].mxu0
    %v6796 = vadd.f32 0.0, %v6795
    %v6797 = vpop.f32.mrb[0].mxu0
    %6798 = vmatprep.mubr.bf16.mxu0 0
    %6799 = vmatmul.mubr.bf16.gmra.mrb[0].mxu0 %v6679
    %v6800 = vpop.f32.mrb[0].mxu0
    %v6801 = vadd.f32 0.0, %v6800
    %v6802 = vpop.f32.mrb[0].mxu0
    %v6803 = vpop.f32.mrb[0].mxu0
    %v6804 = vadd.f32 0.0, %v6803
    %v6805 = vpop.f32.mrb[0].mxu0
    %6806 = vmatprep.mubr.bf16.mxu0 0
    %6807 = vmatmul.mubr.bf16.gmra.mrb[0].mxu0 %v6680
    %v6808 = vpop.f32.mrb[0].mxu0
    %v6809 = vadd.f32 0.0, %v6808
    %v6810 = vpop.f32.mrb[0].mxu0
    %v6811 = vpop.f32.mrb[0].mxu0
    %v6812 = vadd.f32 0.0, %v6811
    %v6813 = vpop.f32.mrb[0].mxu0
    %6814 = vmatprep.mubr.bf16.mxu0 0
    %6815 = vmatmul.mubr.bf16.gmra.mrb[0].mxu0 %v6681
    %v6816 = vpop.f32.mrb[0].mxu0
    %v6817 = vadd.f32 0.0, %v6816
    %v6818 = vpop.f32.mrb[0].mxu0
    %v6819 = vpop.f32.mrb[0].mxu0
    %v6820 = vadd.f32 0.0, %v6819
    %v6821 = vpop.f32.mrb[0].mxu0
    %6822 = vmatprep.mubr.bf16.mxu0 0
    %6823 = vmatmul.mubr.bf16.gmra.mrb[0].mxu0 %v6682
    %v6824 = vpop.f32.mrb[0].mxu0
    %v6825 = vadd.f32 0.0, %v6824
    %v6826 = vpop.f32.mrb[0].mxu0
    %v6827 = vpop.f32.mrb[0].mxu0
    %v6828 = vadd.f32 0.0, %v6827
    %v6829 = vpop.f32.mrb[0].mxu0
    %6830 = vmatprep.mubr.bf16.mxu0 0
    %6831 = vmatmul.mubr.bf16.gmra.mrb[0].mxu0 %v6683
    %v6832 = vpop.f32.mrb[0].mxu0
    %v6833 = vadd.f32 0.0, %v6832
    %v6834 = vpop.f32.mrb[0].mxu0
    %v6835 = vpop.f32.mrb[0].mxu0
    %v6836 = vadd.f32 0.0, %v6835
    %v6837 = vpop.f32.mrb[0].mxu0
    %6838 = vmatprep.mubr.bf16.mxu0 0
    %6839 = vmatmul.mubr.bf16.gmra.mrb[0].mxu0 %v6684
    %v6840 = vpop.f32.mrb[0].mxu0
    %v6841 = vadd.f32 0.0, %v6840
    %v6842 = vpop.f32.mrb[0].mxu0
    %v6843 = vpop.f32.mrb[0].mxu0
    %v6844 = vadd.f32 0.0, %v6843
    %v6845 = vpop.f32.mrb[0].mxu0
    %6846 = vdwg.mxu0
    %v6847 = vadd.f32 %v6644, %v6785
    %v6848 = vadd.f32 %v6645, %v6788
    %v6849 = vadd.f32 %v6646, %v6793
    %v6850 = vadd.f32 %v6647, %v6796
    %v6851 = vadd.f32 %v6648, %v6801
    %v6852 = vadd.f32 %v6649, %v6804
    %v6853 = vadd.f32 %v6650, %v6809
    %v6854 = vadd.f32 %v6651, %v6812
    %v6855 = vadd.f32 %v6652, %v6817
    %v6856 = vadd.f32 %v6653, %v6820
    %v6857 = vadd.f32 %v6654, %v6825
    %v6858 = vadd.f32 %v6655, %v6828
    %v6859 = vadd.f32 %v6656, %v6833
    %v6860 = vadd.f32 %v6657, %v6836
    %v6861 = vadd.f32 %v6658, %v6841
    %v6862 = vadd.f32 %v6659, %v6844
    %v6863 = vld [vmem:[%s6660 + $0x1] sm:$0xff]
    %v6864 = vld [vmem:[%s6660 + $0x11] sm:$0xff]
    %v6865 = vld [vmem:[%s6660 + $0x21] sm:$0xff]
    %v6866 = vld [vmem:[%s6660 + $0x31] sm:$0xff]
    %v6867 = vld [vmem:[%s6660 + $0x41] sm:$0xff]
    %v6868 = vld [vmem:[%s6660 + $0x51] sm:$0xff]
    %v6869 = vld [vmem:[%s6660 + $0x61] sm:$0xff]
    %v6870 = vld [vmem:[%s6660 + $0x71] sm:$0xff]
    %v6871 = vld [vmem:[%s6660 + $0xc1] sm:$0xff]
    %v6872 = vld [vmem:[%s6660 + $0xd1] sm:$0xff]
    %v6873 = vld [vmem:[%s6660 + $0xe1] sm:$0xff]
    %v6874 = vld [vmem:[%s6660 + $0xf1] sm:$0xff]
    %v6875 = vld [vmem:[%s6660 + $0x101] sm:$0xff]
    %v6876 = vld [vmem:[%s6660 + $0x111] sm:$0xff]
    %v6877 = vld [vmem:[%s6660 + $0x121] sm:$0xff]
    %v6878 = vld [vmem:[%s6660 + $0x131] sm:$0xff]
    %v6879 = vpack.c.bf16 %v6864, %v6863
    %v6880 = vpack.c.bf16 %v6866, %v6865
    %v6881 = vpack.c.bf16 %v6868, %v6867
    %v6882 = vpack.c.bf16 %v6870, %v6869
    %v6883 = vpack.c.bf16 %v6872, %v6871
    %v6884 = vpack.c.bf16 %v6874, %v6873
    %v6885 = vpack.c.bf16 %v6876, %v6875
    %v6886 = vpack.c.bf16 %v6878, %v6877
    %s6887 = scalar_lea.vmem %s3, 1344
    %v6888 = vld [vmem:[%s6887] sm:$0xf]
    %v6889 = vld [vmem:[%s6887 + $0x4] sm:$0xf]
    %v6890 = vld [vmem:[%s6887 + $0x8] sm:$0xf]
    %v6891 = vld [vmem:[%s6887 + $0xc] sm:$0xf]
    %v6892 = vld [vmem:[%s6887 + $0x10] sm:$0xf]
    %v6893 = vld [vmem:[%s6887 + $0x14] sm:$0xf]
    %v6894 = vld [vmem:[%s6887 + $0x18] sm:$0xf]
    %v6895 = vld [vmem:[%s6887 + $0x1c] sm:$0xf]
    %v6896 = vld [vmem:[%s6887 + $0x20] sm:$0xf]
    %v6897 = vld [vmem:[%s6887 + $0x24] sm:$0xf]
    %v6898 = vld [vmem:[%s6887 + $0x28] sm:$0xf]
    %v6899 = vld [vmem:[%s6887 + $0x2c] sm:$0xf]
    %v6900 = vld [vmem:[%s6887 + $0x30] sm:$0xf]
    %v6901 = vld [vmem:[%s6887 + $0x34] sm:$0xf]
    %v6902 = vld [vmem:[%s6887 + $0x38] sm:$0xf]
    %v6903 = vld [vmem:[%s6887 + $0x3c] sm:$0xf]
    %v6920 = vunpack.c.l.b16 %v6888
    %v6921 = vunpack.c.l.b16 %v6889
    %v6922 = vunpack.c.l.b16 %v6890
    %v6923 = vunpack.c.l.b16 %v6891
    %v6924 = vunpack.c.l.b16 %v6892
    %v6925 = vunpack.c.l.b16 %v6893
    %v6926 = vunpack.c.l.b16 %v6894
    %v6927 = vunpack.c.l.b16 %v6895
    %v6928 = vunpack.c.l.b16 %v6896
    %v6929 = vunpack.c.l.b16 %v6897
    %v6930 = vunpack.c.l.b16 %v6898
    %v6931 = vunpack.c.l.b16 %v6899
    %v6932 = vunpack.c.l.b16 %v6900
    %v6933 = vunpack.c.l.b16 %v6901
    %v6934 = vunpack.c.l.b16 %v6902
    %v6935 = vunpack.c.l.b16 %v6903
    %v6936 = vpack.c.b16 %v6921, %v6920
    %v6937 = vpack.c.b16 %v6923, %v6922
    %v6938 = vpack.c.b16 %v6925, %v6924
    %v6939 = vpack.c.b16 %v6927, %v6926
    %v6940 = vpack.c.b16 %v6929, %v6928
    %v6941 = vpack.c.b16 %v6931, %v6930
    %v6942 = vpack.c.b16 %v6933, %v6932
    %v6943 = vpack.c.b16 %v6935, %v6934
    %6952 = vmatprep.subr.bf16.mxu0 0
    %6953 = vmatpush1.bf16.msra.mxu0 %v6936
    %6954 = vmatprep.subr.bf16.mxu0 0
    %6955 = vmatpush1.bf16.msra.mxu0 %v6937
    %6956 = vmatprep.subr.bf16.mxu0 0
    %6957 = vmatpush1.bf16.msra.mxu0 %v6938
    %6958 = vmatprep.subr.bf16.mxu0 0
    %6959 = vmatpush1.bf16.msra.mxu0 %v6939
    %6960 = vmatprep.subr.bf16.mxu0 0
    %6961 = vmatpush1.bf16.msra.mxu0 %v6940
    %6962 = vmatprep.subr.bf16.mxu0 0
    %6963 = vmatpush1.bf16.msra.mxu0 %v6941
    %6964 = vmatprep.subr.bf16.mxu0 0
    %6965 = vmatpush1.bf16.msra.mxu0 %v6942
    %6966 = vmatprep.subr.bf16.mxu0 0
    %6967 = vmatpush1.bf16.msra.mxu0 %v6943
    %6968 = vmatprep.subr.bf16.mxu0 0
    %6969 = vmatpush1.bf16.msra.mxu0 0
    %6970 = vmatprep.subr.bf16.mxu0 0
    %6971 = vmatpush1.bf16.msra.mxu0 0
    %6972 = vmatprep.subr.bf16.mxu0 0
    %6973 = vmatpush1.bf16.msra.mxu0 0
    %6974 = vmatprep.subr.bf16.mxu0 0
    %6975 = vmatpush1.bf16.msra.mxu0 0
    %6976 = vmatprep.subr.bf16.mxu0 0
    %6977 = vmatpush1.bf16.msra.mxu0 0
    %6978 = vmatprep.subr.bf16.mxu0 0
    %6979 = vmatpush1.bf16.msra.mxu0 0
    %6980 = vmatprep.subr.bf16.mxu0 0
    %6981 = vmatpush1.bf16.msra.mxu0 0
    %6982 = vmatprep.subr.bf16.mxu0 0
    %6983 = vmatpush1.bf16.msra.mxu0 0
    %6984 = vmatprep.mubr.bf16.mxu0 0
    %6985 = vmatmul.mubr.bf16.gmra.mrb[0].mxu0 %v6879
    %v6986 = vpop.f32.mrb[0].mxu0
    %v6987 = vadd.f32 0.0, %v6986
    %v6988 = vpop.f32.mrb[0].mxu0
    %v6989 = vpop.f32.mrb[0].mxu0
    %v6990 = vadd.f32 0.0, %v6989
    %v6991 = vpop.f32.mrb[0].mxu0
    %6992 = vmatprep.mubr.bf16.mxu0 0
    %6993 = vmatmul.mubr.bf16.gmra.mrb[0].mxu0 %v6880
    %v6994 = vpop.f32.mrb[0].mxu0
    %v6995 = vadd.f32 0.0, %v6994
    %v6996 = vpop.f32.mrb[0].mxu0
    %v6997 = vpop.f32.mrb[0].mxu0
    %v6998 = vadd.f32 0.0, %v6997
    %v6999 = vpop.f32.mrb[0].mxu0
    %7000 = vmatprep.mubr.bf16.mxu0 0
    %7001 = vmatmul.mubr.bf16.gmra.mrb[0].mxu0 %v6881
    %v7002 = vpop.f32.mrb[0].mxu0
    %v7003 = vadd.f32 0.0, %v7002
    %v7004 = vpop.f32.mrb[0].mxu0
    %v7005 = vpop.f32.mrb[0].mxu0
    %v7006 = vadd.f32 0.0, %v7005
    %v7007 = vpop.f32.mrb[0].mxu0
    %7008 = vmatprep.mubr.bf16.mxu0 0
    %7009 = vmatmul.mubr.bf16.gmra.mrb[0].mxu0 %v6882
    %v7010 = vpop.f32.mrb[0].mxu0
    %v7011 = vadd.f32 0.0, %v7010
    %v7012 = vpop.f32.mrb[0].mxu0
    %v7013 = vpop.f32.mrb[0].mxu0
    %v7014 = vadd.f32 0.0, %v7013
    %v7015 = vpop.f32.mrb[0].mxu0
    %7016 = vmatprep.mubr.bf16.mxu0 0
    %7017 = vmatmul.mubr.bf16.gmra.mrb[0].mxu0 %v6883
    %v7018 = vpop.f32.mrb[0].mxu0
    %v7019 = vadd.f32 0.0, %v7018
    %v7020 = vpop.f32.mrb[0].mxu0
    %v7021 = vpop.f32.mrb[0].mxu0
    %v7022 = vadd.f32 0.0, %v7021
    %v7023 = vpop.f32.mrb[0].mxu0
    %7024 = vmatprep.mubr.bf16.mxu0 0
    %7025 = vmatmul.mubr.bf16.gmra.mrb[0].mxu0 %v6884
    %v7026 = vpop.f32.mrb[0].mxu0
    %v7027 = vadd.f32 0.0, %v7026
    %v7028 = vpop.f32.mrb[0].mxu0
    %v7029 = vpop.f32.mrb[0].mxu0
    %v7030 = vadd.f32 0.0, %v7029
    %v7031 = vpop.f32.mrb[0].mxu0
    %7032 = vmatprep.mubr.bf16.mxu0 0
    %7033 = vmatmul.mubr.bf16.gmra.mrb[0].mxu0 %v6885
    %v7034 = vpop.f32.mrb[0].mxu0
    %v7035 = vadd.f32 0.0, %v7034
    %v7036 = vpop.f32.mrb[0].mxu0
    %v7037 = vpop.f32.mrb[0].mxu0
    %v7038 = vadd.f32 0.0, %v7037
    %v7039 = vpop.f32.mrb[0].mxu0
    %7040 = vmatprep.mubr.bf16.mxu0 0
    %7041 = vmatmul.mubr.bf16.gmra.mrb[0].mxu0 %v6886
    %v7042 = vpop.f32.mrb[0].mxu0
    %v7043 = vadd.f32 0.0, %v7042
    %v7044 = vpop.f32.mrb[0].mxu0
    %v7045 = vpop.f32.mrb[0].mxu0
    %v7046 = vadd.f32 0.0, %v7045
    %v7047 = vpop.f32.mrb[0].mxu0
    %7048 = vdwg.mxu0
    %v7049 = vadd.f32 %v6847, %v6987
    %v7050 = vadd.f32 %v6848, %v6990
    %v7051 = vadd.f32 %v6849, %v6995
    %v7052 = vadd.f32 %v6850, %v6998
    %v7053 = vadd.f32 %v6851, %v7003
    %v7054 = vadd.f32 %v6852, %v7006
    %v7055 = vadd.f32 %v6853, %v7011
    %v7056 = vadd.f32 %v6854, %v7014
    %v7057 = vadd.f32 %v6855, %v7019
    %v7058 = vadd.f32 %v6856, %v7022
    %v7059 = vadd.f32 %v6857, %v7027
    %v7060 = vadd.f32 %v6858, %v7030
    %v7061 = vadd.f32 %v6859, %v7035
    %v7062 = vadd.f32 %v6860, %v7038
    %v7063 = vadd.f32 %v6861, %v7043
    %v7064 = vadd.f32 %v6862, %v7046
    %v7065 = vld [vmem:[%s6660 + $0x2] sm:$0xff]
    %v7066 = vld [vmem:[%s6660 + $0x12] sm:$0xff]
    %v7067 = vld [vmem:[%s6660 + $0x22] sm:$0xff]
    %v7068 = vld [vmem:[%s6660 + $0x32] sm:$0xff]
    %v7069 = vld [vmem:[%s6660 + $0x42] sm:$0xff]
    %v7070 = vld [vmem:[%s6660 + $0x52] sm:$0xff]
    %v7071 = vld [vmem:[%s6660 + $0x62] sm:$0xff]
    %v7072 = vld [vmem:[%s6660 + $0x72] sm:$0xff]
    %v7073 = vld [vmem:[%s6660 + $0xc2] sm:$0xff]
    %v7074 = vld [vmem:[%s6660 + $0xd2] sm:$0xff]
    %v7075 = vld [vmem:[%s6660 + $0xe2] sm:$0xff]
    %v7076 = vld [vmem:[%s6660 + $0xf2] sm:$0xff]
    %v7077 = vld [vmem:[%s6660 + $0x102] sm:$0xff]
    %v7078 = vld [vmem:[%s6660 + $0x112] sm:$0xff]
    %v7079 = vld [vmem:[%s6660 + $0x122] sm:$0xff]
    %v7080 = vld [vmem:[%s6660 + $0x132] sm:$0xff]
    %v7081 = vpack.c.bf16 %v7066, %v7065
    %v7082 = vpack.c.bf16 %v7068, %v7067
    %v7083 = vpack.c.bf16 %v7070, %v7069
    %v7084 = vpack.c.bf16 %v7072, %v7071
    %v7085 = vpack.c.bf16 %v7074, %v7073
    %v7086 = vpack.c.bf16 %v7076, %v7075
    %v7087 = vpack.c.bf16 %v7078, %v7077
    %v7088 = vpack.c.bf16 %v7080, %v7079
    %s7089 = scalar_lea.vmem %s3, 1408
    %v7090 = vld [vmem:[%s7089] sm:$0xf]
    %v7091 = vld [vmem:[%s7089 + $0x4] sm:$0xf]
    %v7092 = vld [vmem:[%s7089 + $0x8] sm:$0xf]
    %v7093 = vld [vmem:[%s7089 + $0xc] sm:$0xf]
    %v7094 = vld [vmem:[%s7089 + $0x10] sm:$0xf]
    %v7095 = vld [vmem:[%s7089 + $0x14] sm:$0xf]
    %v7096 = vld [vmem:[%s7089 + $0x18] sm:$0xf]
    %v7097 = vld [vmem:[%s7089 + $0x1c] sm:$0xf]
    %v7098 = vld [vmem:[%s7089 + $0x20] sm:$0xf]
    %v7099 = vld [vmem:[%s7089 + $0x24] sm:$0xf]
    %v7100 = vld [vmem:[%s7089 + $0x28] sm:$0xf]
    %v7101 = vld [vmem:[%s7089 + $0x2c] sm:$0xf]
    %v7102 = vld [vmem:[%s7089 + $0x30] sm:$0xf]
    %v7103 = vld [vmem:[%s7089 + $0x34] sm:$0xf]
    %v7104 = vld [vmem:[%s7089 + $0x38] sm:$0xf]
    %v7105 = vld [vmem:[%s7089 + $0x3c] sm:$0xf]
    %v7122 = vunpack.c.l.b16 %v7090
    %v7123 = vunpack.c.l.b16 %v7091
    %v7124 = vunpack.c.l.b16 %v7092
    %v7125 = vunpack.c.l.b16 %v7093
    %v7126 = vunpack.c.l.b16 %v7094
    %v7127 = vunpack.c.l.b16 %v7095
    %v7128 = vunpack.c.l.b16 %v7096
    %v7129 = vunpack.c.l.b16 %v7097
    %v7130 = vunpack.c.l.b16 %v7098
    %v7131 = vunpack.c.l.b16 %v7099
    %v7132 = vunpack.c.l.b16 %v7100
    %v7133 = vunpack.c.l.b16 %v7101
    %v7134 = vunpack.c.l.b16 %v7102
    %v7135 = vunpack.c.l.b16 %v7103
    %v7136 = vunpack.c.l.b16 %v7104
    %v7137 = vunpack.c.l.b16 %v7105
    %v7138 = vpack.c.b16 %v7123, %v7122
    %v7139 = vpack.c.b16 %v7125, %v7124
    %v7140 = vpack.c.b16 %v7127, %v7126
    %v7141 = vpack.c.b16 %v7129, %v7128
    %v7142 = vpack.c.b16 %v7131, %v7130
    %v7143 = vpack.c.b16 %v7133, %v7132
    %v7144 = vpack.c.b16 %v7135, %v7134
    %v7145 = vpack.c.b16 %v7137, %v7136
    %7154 = vmatprep.subr.bf16.mxu0 0
    %7155 = vmatpush1.bf16.msra.mxu0 %v7138
    %7156 = vmatprep.subr.bf16.mxu0 0
    %7157 = vmatpush1.bf16.msra.mxu0 %v7139
    %7158 = vmatprep.subr.bf16.mxu0 0
    %7159 = vmatpush1.bf16.msra.mxu0 %v7140
    %7160 = vmatprep.subr.bf16.mxu0 0
    %7161 = vmatpush1.bf16.msra.mxu0 %v7141
    %7162 = vmatprep.subr.bf16.mxu0 0
    %7163 = vmatpush1.bf16.msra.mxu0 %v7142
    %7164 = vmatprep.subr.bf16.mxu0 0
    %7165 = vmatpush1.bf16.msra.mxu0 %v7143
    %7166 = vmatprep.subr.bf16.mxu0 0
    %7167 = vmatpush1.bf16.msra.mxu0 %v7144
    %7168 = vmatprep.subr.bf16.mxu0 0
    %7169 = vmatpush1.bf16.msra.mxu0 %v7145
    %7170 = vmatprep.subr.bf16.mxu0 0
    %7171 = vmatpush1.bf16.msra.mxu0 0
    %7172 = vmatprep.subr.bf16.mxu0 0
    %7173 = vmatpush1.bf16.msra.mxu0 0
    %7174 = vmatprep.subr.bf16.mxu0 0
    %7175 = vmatpush1.bf16.msra.mxu0 0
    %7176 = vmatprep.subr.bf16.mxu0 0
    %7177 = vmatpush1.bf16.msra.mxu0 0
    %7178 = vmatprep.subr.bf16.mxu0 0
    %7179 = vmatpush1.bf16.msra.mxu0 0
    %7180 = vmatprep.subr.bf16.mxu0 0
    %7181 = vmatpush1.bf16.msra.mxu0 0
    %7182 = vmatprep.subr.bf16.mxu0 0
    %7183 = vmatpush1.bf16.msra.mxu0 0
    %7184 = vmatprep.subr.bf16.mxu0 0
    %7185 = vmatpush1.bf16.msra.mxu0 0
    %7186 = vmatprep.mubr.bf16.mxu0 0
    %7187 = vmatmul.mubr.bf16.gmra.mrb[0].mxu0 %v7081
    %v7188 = vpop.f32.mrb[0].mxu0
    %v7189 = vadd.f32 0.0, %v7188
    %v7190 = vpop.f32.mrb[0].mxu0
    %v7191 = vpop.f32.mrb[0].mxu0
    %v7192 = vadd.f32 0.0, %v7191
    %v7193 = vpop.f32.mrb[0].mxu0
    %7194 = vmatprep.mubr.bf16.mxu0 0
    %7195 = vmatmul.mubr.bf16.gmra.mrb[0].mxu0 %v7082
    %v7196 = vpop.f32.mrb[0].mxu0
    %v7197 = vadd.f32 0.0, %v7196
    %v7198 = vpop.f32.mrb[0].mxu0
    %v7199 = vpop.f32.mrb[0].mxu0
    %v7200 = vadd.f32 0.0, %v7199
    %v7201 = vpop.f32.mrb[0].mxu0
    %7202 = vmatprep.mubr.bf16.mxu0 0
    %7203 = vmatmul.mubr.bf16.gmra.mrb[0].mxu0 %v7083
    %v7204 = vpop.f32.mrb[0].mxu0
    %v7205 = vadd.f32 0.0, %v7204
    %v7206 = vpop.f32.mrb[0].mxu0
    %v7207 = vpop.f32.mrb[0].mxu0
    %v7208 = vadd.f32 0.0, %v7207
    %v7209 = vpop.f32.mrb[0].mxu0
    %7210 = vmatprep.mubr.bf16.mxu0 0
    %7211 = vmatmul.mubr.bf16.gmra.mrb[0].mxu0 %v7084
    %v7212 = vpop.f32.mrb[0].mxu0
    %v7213 = vadd.f32 0.0, %v7212
    %v7214 = vpop.f32.mrb[0].mxu0
    %v7215 = vpop.f32.mrb[0].mxu0
    %v7216 = vadd.f32 0.0, %v7215
    %v7217 = vpop.f32.mrb[0].mxu0
    %7218 = vmatprep.mubr.bf16.mxu0 0
    %7219 = vmatmul.mubr.bf16.gmra.mrb[0].mxu0 %v7085
    %v7220 = vpop.f32.mrb[0].mxu0
    %v7221 = vadd.f32 0.0, %v7220
    %v7222 = vpop.f32.mrb[0].mxu0
    %v7223 = vpop.f32.mrb[0].mxu0
    %v7224 = vadd.f32 0.0, %v7223
    %v7225 = vpop.f32.mrb[0].mxu0
    %7226 = vmatprep.mubr.bf16.mxu0 0
    %7227 = vmatmul.mubr.bf16.gmra.mrb[0].mxu0 %v7086
    %v7228 = vpop.f32.mrb[0].mxu0
    %v7229 = vadd.f32 0.0, %v7228
    %v7230 = vpop.f32.mrb[0].mxu0
    %v7231 = vpop.f32.mrb[0].mxu0
    %v7232 = vadd.f32 0.0, %v7231
    %v7233 = vpop.f32.mrb[0].mxu0
    %7234 = vmatprep.mubr.bf16.mxu0 0
    %7235 = vmatmul.mubr.bf16.gmra.mrb[0].mxu0 %v7087
    %v7236 = vpop.f32.mrb[0].mxu0
    %v7237 = vadd.f32 0.0, %v7236
    %v7238 = vpop.f32.mrb[0].mxu0
    %v7239 = vpop.f32.mrb[0].mxu0
    %v7240 = vadd.f32 0.0, %v7239
    %v7241 = vpop.f32.mrb[0].mxu0
    %7242 = vmatprep.mubr.bf16.mxu0 0
    %7243 = vmatmul.mubr.bf16.gmra.mrb[0].mxu0 %v7088
    %v7244 = vpop.f32.mrb[0].mxu0
    %v7245 = vadd.f32 0.0, %v7244
    %v7246 = vpop.f32.mrb[0].mxu0
    %v7247 = vpop.f32.mrb[0].mxu0
    %v7248 = vadd.f32 0.0, %v7247
    %v7249 = vpop.f32.mrb[0].mxu0
    %7250 = vdwg.mxu0
    %v7251 = vadd.f32 %v7049, %v7189
    %v7252 = vadd.f32 %v7050, %v7192
    %v7253 = vadd.f32 %v7051, %v7197
    %v7254 = vadd.f32 %v7052, %v7200
    %v7255 = vadd.f32 %v7053, %v7205
    %v7256 = vadd.f32 %v7054, %v7208
    %v7257 = vadd.f32 %v7055, %v7213
    %v7258 = vadd.f32 %v7056, %v7216
    %v7259 = vadd.f32 %v7057, %v7221
    %v7260 = vadd.f32 %v7058, %v7224
    %v7261 = vadd.f32 %v7059, %v7229
    %v7262 = vadd.f32 %v7060, %v7232
    %v7263 = vadd.f32 %v7061, %v7237
    %v7264 = vadd.f32 %v7062, %v7240
    %v7265 = vadd.f32 %v7063, %v7245
    %v7266 = vadd.f32 %v7064, %v7248
    %v7267 = vld [vmem:[%s6660 + $0x3] sm:$0xff]
    %v7268 = vld [vmem:[%s6660 + $0x13] sm:$0xff]
    %v7269 = vld [vmem:[%s6660 + $0x23] sm:$0xff]
    %v7270 = vld [vmem:[%s6660 + $0x33] sm:$0xff]
    %v7271 = vld [vmem:[%s6660 + $0x43] sm:$0xff]
    %v7272 = vld [vmem:[%s6660 + $0x53] sm:$0xff]
    %v7273 = vld [vmem:[%s6660 + $0x63] sm:$0xff]
    %v7274 = vld [vmem:[%s6660 + $0x73] sm:$0xff]
    %v7275 = vld [vmem:[%s6660 + $0xc3] sm:$0xff]
    %v7276 = vld [vmem:[%s6660 + $0xd3] sm:$0xff]
    %v7277 = vld [vmem:[%s6660 + $0xe3] sm:$0xff]
    %v7278 = vld [vmem:[%s6660 + $0xf3] sm:$0xff]
    %v7279 = vld [vmem:[%s6660 + $0x103] sm:$0xff]
    %v7280 = vld [vmem:[%s6660 + $0x113] sm:$0xff]
    %v7281 = vld [vmem:[%s6660 + $0x123] sm:$0xff]
    %v7282 = vld [vmem:[%s6660 + $0x133] sm:$0xff]
    %v7283 = vpack.c.bf16 %v7268, %v7267
    %v7284 = vpack.c.bf16 %v7270, %v7269
    %v7285 = vpack.c.bf16 %v7272, %v7271
    %v7286 = vpack.c.bf16 %v7274, %v7273
    %v7287 = vpack.c.bf16 %v7276, %v7275
    %v7288 = vpack.c.bf16 %v7278, %v7277
    %v7289 = vpack.c.bf16 %v7280, %v7279
    %v7290 = vpack.c.bf16 %v7282, %v7281
    %s7291 = scalar_lea.vmem %s3, 1472
    %v7292 = vld [vmem:[%s7291] sm:$0xf]
    %v7293 = vld [vmem:[%s7291 + $0x4] sm:$0xf]
    %v7294 = vld [vmem:[%s7291 + $0x8] sm:$0xf]
    %v7295 = vld [vmem:[%s7291 + $0xc] sm:$0xf]
    %v7296 = vld [vmem:[%s7291 + $0x10] sm:$0xf]
    %v7297 = vld [vmem:[%s7291 + $0x14] sm:$0xf]
    %v7298 = vld [vmem:[%s7291 + $0x18] sm:$0xf]
    %v7299 = vld [vmem:[%s7291 + $0x1c] sm:$0xf]
    %v7300 = vld [vmem:[%s7291 + $0x20] sm:$0xf]
    %v7301 = vld [vmem:[%s7291 + $0x24] sm:$0xf]
    %v7302 = vld [vmem:[%s7291 + $0x28] sm:$0xf]
    %v7303 = vld [vmem:[%s7291 + $0x2c] sm:$0xf]
    %v7304 = vld [vmem:[%s7291 + $0x30] sm:$0xf]
    %v7305 = vld [vmem:[%s7291 + $0x34] sm:$0xf]
    %v7306 = vld [vmem:[%s7291 + $0x38] sm:$0xf]
    %v7307 = vld [vmem:[%s7291 + $0x3c] sm:$0xf]
    %v7324 = vunpack.c.l.b16 %v7292
    %v7325 = vunpack.c.l.b16 %v7293
    %v7326 = vunpack.c.l.b16 %v7294
    %v7327 = vunpack.c.l.b16 %v7295
    %v7328 = vunpack.c.l.b16 %v7296
    %v7329 = vunpack.c.l.b16 %v7297
    %v7330 = vunpack.c.l.b16 %v7298
    %v7331 = vunpack.c.l.b16 %v7299
    %v7332 = vunpack.c.l.b16 %v7300
    %v7333 = vunpack.c.l.b16 %v7301
    %v7334 = vunpack.c.l.b16 %v7302
    %v7335 = vunpack.c.l.b16 %v7303
    %v7336 = vunpack.c.l.b16 %v7304
    %v7337 = vunpack.c.l.b16 %v7305
    %v7338 = vunpack.c.l.b16 %v7306
    %v7339 = vunpack.c.l.b16 %v7307
    %v7340 = vpack.c.b16 %v7325, %v7324
    %v7341 = vpack.c.b16 %v7327, %v7326
    %v7342 = vpack.c.b16 %v7329, %v7328
    %v7343 = vpack.c.b16 %v7331, %v7330
    %v7344 = vpack.c.b16 %v7333, %v7332
    %v7345 = vpack.c.b16 %v7335, %v7334
    %v7346 = vpack.c.b16 %v7337, %v7336
    %v7347 = vpack.c.b16 %v7339, %v7338
    %7356 = vmatprep.subr.bf16.mxu0 0
    %7357 = vmatpush1.bf16.msra.mxu0 %v7340
    %7358 = vmatprep.subr.bf16.mxu0 0
    %7359 = vmatpush1.bf16.msra.mxu0 %v7341
    %7360 = vmatprep.subr.bf16.mxu0 0
    %7361 = vmatpush1.bf16.msra.mxu0 %v7342
    %7362 = vmatprep.subr.bf16.mxu0 0
    %7363 = vmatpush1.bf16.msra.mxu0 %v7343
    %7364 = vmatprep.subr.bf16.mxu0 0
    %7365 = vmatpush1.bf16.msra.mxu0 %v7344
    %7366 = vmatprep.subr.bf16.mxu0 0
    %7367 = vmatpush1.bf16.msra.mxu0 %v7345
    %7368 = vmatprep.subr.bf16.mxu0 0
    %7369 = vmatpush1.bf16.msra.mxu0 %v7346
    %7370 = vmatprep.subr.bf16.mxu0 0
    %7371 = vmatpush1.bf16.msra.mxu0 %v7347
    %7372 = vmatprep.subr.bf16.mxu0 0
    %7373 = vmatpush1.bf16.msra.mxu0 0
    %7374 = vmatprep.subr.bf16.mxu0 0
    %7375 = vmatpush1.bf16.msra.mxu0 0
    %7376 = vmatprep.subr.bf16.mxu0 0
    %7377 = vmatpush1.bf16.msra.mxu0 0
    %7378 = vmatprep.subr.bf16.mxu0 0
    %7379 = vmatpush1.bf16.msra.mxu0 0
    %7380 = vmatprep.subr.bf16.mxu0 0
    %7381 = vmatpush1.bf16.msra.mxu0 0
    %7382 = vmatprep.subr.bf16.mxu0 0
    %7383 = vmatpush1.bf16.msra.mxu0 0
    %7384 = vmatprep.subr.bf16.mxu0 0
    %7385 = vmatpush1.bf16.msra.mxu0 0
    %7386 = vmatprep.subr.bf16.mxu0 0
    %7387 = vmatpush1.bf16.msra.mxu0 0
    %7388 = vmatprep.mubr.bf16.mxu0 0
    %7389 = vmatmul.mubr.bf16.gmra.mrb[0].mxu0 %v7283
    %v7390 = vpop.f32.mrb[0].mxu0
    %v7391 = vadd.f32 0.0, %v7390
    %v7392 = vpop.f32.mrb[0].mxu0
    %v7393 = vpop.f32.mrb[0].mxu0
    %v7394 = vadd.f32 0.0, %v7393
    %v7395 = vpop.f32.mrb[0].mxu0
    %7396 = vmatprep.mubr.bf16.mxu0 0
    %7397 = vmatmul.mubr.bf16.gmra.mrb[0].mxu0 %v7284
    %v7398 = vpop.f32.mrb[0].mxu0
    %v7399 = vadd.f32 0.0, %v7398
    %v7400 = vpop.f32.mrb[0].mxu0
    %v7401 = vpop.f32.mrb[0].mxu0
    %v7402 = vadd.f32 0.0, %v7401
    %v7403 = vpop.f32.mrb[0].mxu0
    %7404 = vmatprep.mubr.bf16.mxu0 0
    %7405 = vmatmul.mubr.bf16.gmra.mrb[0].mxu0 %v7285
    %v7406 = vpop.f32.mrb[0].mxu0
    %v7407 = vadd.f32 0.0, %v7406
    %v7408 = vpop.f32.mrb[0].mxu0
    %v7409 = vpop.f32.mrb[0].mxu0
    %v7410 = vadd.f32 0.0, %v7409
    %v7411 = vpop.f32.mrb[0].mxu0
    %7412 = vmatprep.mubr.bf16.mxu0 0
    %7413 = vmatmul.mubr.bf16.gmra.mrb[0].mxu0 %v7286
    %v7414 = vpop.f32.mrb[0].mxu0
    %v7415 = vadd.f32 0.0, %v7414
    %v7416 = vpop.f32.mrb[0].mxu0
    %v7417 = vpop.f32.mrb[0].mxu0
    %v7418 = vadd.f32 0.0, %v7417
    %v7419 = vpop.f32.mrb[0].mxu0
    %7420 = vmatprep.mubr.bf16.mxu0 0
    %7421 = vmatmul.mubr.bf16.gmra.mrb[0].mxu0 %v7287
    %v7422 = vpop.f32.mrb[0].mxu0
    %v7423 = vadd.f32 0.0, %v7422
    %v7424 = vpop.f32.mrb[0].mxu0
    %v7425 = vpop.f32.mrb[0].mxu0
    %v7426 = vadd.f32 0.0, %v7425
    %v7427 = vpop.f32.mrb[0].mxu0
    %7428 = vmatprep.mubr.bf16.mxu0 0
    %7429 = vmatmul.mubr.bf16.gmra.mrb[0].mxu0 %v7288
    %v7430 = vpop.f32.mrb[0].mxu0
    %v7431 = vadd.f32 0.0, %v7430
    %v7432 = vpop.f32.mrb[0].mxu0
    %v7433 = vpop.f32.mrb[0].mxu0
    %v7434 = vadd.f32 0.0, %v7433
    %v7435 = vpop.f32.mrb[0].mxu0
    %7436 = vmatprep.mubr.bf16.mxu0 0
    %7437 = vmatmul.mubr.bf16.gmra.mrb[0].mxu0 %v7289
    %v7438 = vpop.f32.mrb[0].mxu0
    %v7439 = vadd.f32 0.0, %v7438
    %v7440 = vpop.f32.mrb[0].mxu0
    %v7441 = vpop.f32.mrb[0].mxu0
    %v7442 = vadd.f32 0.0, %v7441
    %v7443 = vpop.f32.mrb[0].mxu0
    %7444 = vmatprep.mubr.bf16.mxu0 0
    %7445 = vmatmul.mubr.bf16.gmra.mrb[0].mxu0 %v7290
    %v7446 = vpop.f32.mrb[0].mxu0
    %v7447 = vadd.f32 0.0, %v7446
    %v7448 = vpop.f32.mrb[0].mxu0
    %v7449 = vpop.f32.mrb[0].mxu0
    %v7450 = vadd.f32 0.0, %v7449
    %v7451 = vpop.f32.mrb[0].mxu0
    %7452 = vdwg.mxu0
    %v7453 = vadd.f32 %v7251, %v7391
    %v7454 = vadd.f32 %v7252, %v7394
    %v7455 = vadd.f32 %v7253, %v7399
    %v7456 = vadd.f32 %v7254, %v7402
    %v7457 = vadd.f32 %v7255, %v7407
    %v7458 = vadd.f32 %v7256, %v7410
    %v7459 = vadd.f32 %v7257, %v7415
    %v7460 = vadd.f32 %v7258, %v7418
    %v7461 = vadd.f32 %v7259, %v7423
    %v7462 = vadd.f32 %v7260, %v7426
    %v7463 = vadd.f32 %v7261, %v7431
    %v7464 = vadd.f32 %v7262, %v7434
    %v7465 = vadd.f32 %v7263, %v7439
    %v7466 = vadd.f32 %v7264, %v7442
    %v7467 = vadd.f32 %v7265, %v7447
    %v7468 = vadd.f32 %v7266, %v7450
    %v7469 = vld [vmem:[%s6660 + $0x4] sm:$0xff]
    %v7470 = vld [vmem:[%s6660 + $0x14] sm:$0xff]
    %v7471 = vld [vmem:[%s6660 + $0x24] sm:$0xff]
    %v7472 = vld [vmem:[%s6660 + $0x34] sm:$0xff]
    %v7473 = vld [vmem:[%s6660 + $0x44] sm:$0xff]
    %v7474 = vld [vmem:[%s6660 + $0x54] sm:$0xff]
    %v7475 = vld [vmem:[%s6660 + $0x64] sm:$0xff]
    %v7476 = vld [vmem:[%s6660 + $0x74] sm:$0xff]
    %v7477 = vld [vmem:[%s6660 + $0xc4] sm:$0xff]
    %v7478 = vld [vmem:[%s6660 + $0xd4] sm:$0xff]
    %v7479 = vld [vmem:[%s6660 + $0xe4] sm:$0xff]
    %v7480 = vld [vmem:[%s6660 + $0xf4] sm:$0xff]
    %v7481 = vld [vmem:[%s6660 + $0x104] sm:$0xff]
    %v7482 = vld [vmem:[%s6660 + $0x114] sm:$0xff]
    %v7483 = vld [vmem:[%s6660 + $0x124] sm:$0xff]
    %v7484 = vld [vmem:[%s6660 + $0x134] sm:$0xff]
    %v7485 = vpack.c.bf16 %v7470, %v7469
    %v7486 = vpack.c.bf16 %v7472, %v7471
    %v7487 = vpack.c.bf16 %v7474, %v7473
    %v7488 = vpack.c.bf16 %v7476, %v7475
    %v7489 = vpack.c.bf16 %v7478, %v7477
    %v7490 = vpack.c.bf16 %v7480, %v7479
    %v7491 = vpack.c.bf16 %v7482, %v7481
    %v7492 = vpack.c.bf16 %v7484, %v7483
    %s7493 = scalar_lea.vmem %s3, 1536
    %v7494 = vld [vmem:[%s7493] sm:$0xf]
    %v7495 = vld [vmem:[%s7493 + $0x4] sm:$0xf]
    %v7496 = vld [vmem:[%s7493 + $0x8] sm:$0xf]
    %v7497 = vld [vmem:[%s7493 + $0xc] sm:$0xf]
    %v7498 = vld [vmem:[%s7493 + $0x10] sm:$0xf]
    %v7499 = vld [vmem:[%s7493 + $0x14] sm:$0xf]
    %v7500 = vld [vmem:[%s7493 + $0x18] sm:$0xf]
    %v7501 = vld [vmem:[%s7493 + $0x1c] sm:$0xf]
    %v7502 = vld [vmem:[%s7493 + $0x20] sm:$0xf]
    %v7503 = vld [vmem:[%s7493 + $0x24] sm:$0xf]
    %v7504 = vld [vmem:[%s7493 + $0x28] sm:$0xf]
    %v7505 = vld [vmem:[%s7493 + $0x2c] sm:$0xf]
    %v7506 = vld [vmem:[%s7493 + $0x30] sm:$0xf]
    %v7507 = vld [vmem:[%s7493 + $0x34] sm:$0xf]
    %v7508 = vld [vmem:[%s7493 + $0x38] sm:$0xf]
    %v7509 = vld [vmem:[%s7493 + $0x3c] sm:$0xf]
    %v7526 = vunpack.c.l.b16 %v7494
    %v7527 = vunpack.c.l.b16 %v7495
    %v7528 = vunpack.c.l.b16 %v7496
    %v7529 = vunpack.c.l.b16 %v7497
    %v7530 = vunpack.c.l.b16 %v7498
    %v7531 = vunpack.c.l.b16 %v7499
    %v7532 = vunpack.c.l.b16 %v7500
    %v7533 = vunpack.c.l.b16 %v7501
    %v7534 = vunpack.c.l.b16 %v7502
    %v7535 = vunpack.c.l.b16 %v7503
    %v7536 = vunpack.c.l.b16 %v7504
    %v7537 = vunpack.c.l.b16 %v7505
    %v7538 = vunpack.c.l.b16 %v7506
    %v7539 = vunpack.c.l.b16 %v7507
    %v7540 = vunpack.c.l.b16 %v7508
    %v7541 = vunpack.c.l.b16 %v7509
    %v7542 = vpack.c.b16 %v7527, %v7526
    %v7543 = vpack.c.b16 %v7529, %v7528
    %v7544 = vpack.c.b16 %v7531, %v7530
    %v7545 = vpack.c.b16 %v7533, %v7532
    %v7546 = vpack.c.b16 %v7535, %v7534
    %v7547 = vpack.c.b16 %v7537, %v7536
    %v7548 = vpack.c.b16 %v7539, %v7538
    %v7549 = vpack.c.b16 %v7541, %v7540
    %7558 = vmatprep.subr.bf16.mxu0 0
    %7559 = vmatpush1.bf16.msra.mxu0 %v7542
    %7560 = vmatprep.subr.bf16.mxu0 0
    %7561 = vmatpush1.bf16.msra.mxu0 %v7543
    %7562 = vmatprep.subr.bf16.mxu0 0
    %7563 = vmatpush1.bf16.msra.mxu0 %v7544
    %7564 = vmatprep.subr.bf16.mxu0 0
    %7565 = vmatpush1.bf16.msra.mxu0 %v7545
    %7566 = vmatprep.subr.bf16.mxu0 0
    %7567 = vmatpush1.bf16.msra.mxu0 %v7546
    %7568 = vmatprep.subr.bf16.mxu0 0
    %7569 = vmatpush1.bf16.msra.mxu0 %v7547
    %7570 = vmatprep.subr.bf16.mxu0 0
    %7571 = vmatpush1.bf16.msra.mxu0 %v7548
    %7572 = vmatprep.subr.bf16.mxu0 0
    %7573 = vmatpush1.bf16.msra.mxu0 %v7549
    %7574 = vmatprep.subr.bf16.mxu0 0
    %7575 = vmatpush1.bf16.msra.mxu0 0
    %7576 = vmatprep.subr.bf16.mxu0 0
    %7577 = vmatpush1.bf16.msra.mxu0 0
    %7578 = vmatprep.subr.bf16.mxu0 0
    %7579 = vmatpush1.bf16.msra.mxu0 0
    %7580 = vmatprep.subr.bf16.mxu0 0
    %7581 = vmatpush1.bf16.msra.mxu0 0
    %7582 = vmatprep.subr.bf16.mxu0 0
    %7583 = vmatpush1.bf16.msra.mxu0 0
    %7584 = vmatprep.subr.bf16.mxu0 0
    %7585 = vmatpush1.bf16.msra.mxu0 0
    %7586 = vmatprep.subr.bf16.mxu0 0
    %7587 = vmatpush1.bf16.msra.mxu0 0
    %7588 = vmatprep.subr.bf16.mxu0 0
    %7589 = vmatpush1.bf16.msra.mxu0 0
    %7590 = vmatprep.mubr.bf16.mxu0 0
    %7591 = vmatmul.mubr.bf16.gmra.mrb[0].mxu0 %v7485
    %v7592 = vpop.f32.mrb[0].mxu0
    %v7593 = vadd.f32 0.0, %v7592
    %v7594 = vpop.f32.mrb[0].mxu0
    %v7595 = vpop.f32.mrb[0].mxu0
    %v7596 = vadd.f32 0.0, %v7595
    %v7597 = vpop.f32.mrb[0].mxu0
    %7598 = vmatprep.mubr.bf16.mxu0 0
    %7599 = vmatmul.mubr.bf16.gmra.mrb[0].mxu0 %v7486
    %v7600 = vpop.f32.mrb[0].mxu0
    %v7601 = vadd.f32 0.0, %v7600
    %v7602 = vpop.f32.mrb[0].mxu0
    %v7603 = vpop.f32.mrb[0].mxu0
    %v7604 = vadd.f32 0.0, %v7603
    %v7605 = vpop.f32.mrb[0].mxu0
    %7606 = vmatprep.mubr.bf16.mxu0 0
    %7607 = vmatmul.mubr.bf16.gmra.mrb[0].mxu0 %v7487
    %v7608 = vpop.f32.mrb[0].mxu0
    %v7609 = vadd.f32 0.0, %v7608
    %v7610 = vpop.f32.mrb[0].mxu0
    %v7611 = vpop.f32.mrb[0].mxu0
    %v7612 = vadd.f32 0.0, %v7611
    %v7613 = vpop.f32.mrb[0].mxu0
    %7614 = vmatprep.mubr.bf16.mxu0 0
    %7615 = vmatmul.mubr.bf16.gmra.mrb[0].mxu0 %v7488
    %v7616 = vpop.f32.mrb[0].mxu0
    %v7617 = vadd.f32 0.0, %v7616
    %v7618 = vpop.f32.mrb[0].mxu0
    %v7619 = vpop.f32.mrb[0].mxu0
    %v7620 = vadd.f32 0.0, %v7619
    %v7621 = vpop.f32.mrb[0].mxu0
    %7622 = vmatprep.mubr.bf16.mxu0 0
    %7623 = vmatmul.mubr.bf16.gmra.mrb[0].mxu0 %v7489
    %v7624 = vpop.f32.mrb[0].mxu0
    %v7625 = vadd.f32 0.0, %v7624
    %v7626 = vpop.f32.mrb[0].mxu0
    %v7627 = vpop.f32.mrb[0].mxu0
    %v7628 = vadd.f32 0.0, %v7627
    %v7629 = vpop.f32.mrb[0].mxu0
    %7630 = vmatprep.mubr.bf16.mxu0 0
    %7631 = vmatmul.mubr.bf16.gmra.mrb[0].mxu0 %v7490
    %v7632 = vpop.f32.mrb[0].mxu0
    %v7633 = vadd.f32 0.0, %v7632
    %v7634 = vpop.f32.mrb[0].mxu0
    %v7635 = vpop.f32.mrb[0].mxu0
    %v7636 = vadd.f32 0.0, %v7635
    %v7637 = vpop.f32.mrb[0].mxu0
    %7638 = vmatprep.mubr.bf16.mxu0 0
    %7639 = vmatmul.mubr.bf16.gmra.mrb[0].mxu0 %v7491
    %v7640 = vpop.f32.mrb[0].mxu0
    %v7641 = vadd.f32 0.0, %v7640
    %v7642 = vpop.f32.mrb[0].mxu0
    %v7643 = vpop.f32.mrb[0].mxu0
    %v7644 = vadd.f32 0.0, %v7643
    %v7645 = vpop.f32.mrb[0].mxu0
    %7646 = vmatprep.mubr.bf16.mxu0 0
    %7647 = vmatmul.mubr.bf16.gmra.mrb[0].mxu0 %v7492
    %v7648 = vpop.f32.mrb[0].mxu0
    %v7649 = vadd.f32 0.0, %v7648
    %v7650 = vpop.f32.mrb[0].mxu0
    %v7651 = vpop.f32.mrb[0].mxu0
    %v7652 = vadd.f32 0.0, %v7651
    %v7653 = vpop.f32.mrb[0].mxu0
    %7654 = vdwg.mxu0
    %v7655 = vadd.f32 %v7453, %v7593
    %v7656 = vadd.f32 %v7454, %v7596
    %v7657 = vadd.f32 %v7455, %v7601
    %v7658 = vadd.f32 %v7456, %v7604
    %v7659 = vadd.f32 %v7457, %v7609
    %v7660 = vadd.f32 %v7458, %v7612
    %v7661 = vadd.f32 %v7459, %v7617
    %v7662 = vadd.f32 %v7460, %v7620
    %v7663 = vadd.f32 %v7461, %v7625
    %v7664 = vadd.f32 %v7462, %v7628
    %v7665 = vadd.f32 %v7463, %v7633
    %v7666 = vadd.f32 %v7464, %v7636
    %v7667 = vadd.f32 %v7465, %v7641
    %v7668 = vadd.f32 %v7466, %v7644
    %v7669 = vadd.f32 %v7467, %v7649
    %v7670 = vadd.f32 %v7468, %v7652
    %7671 = vst [vmem:[#allocation3] sm:$0xff] %v7655
    %7672 = vst [vmem:[#allocation3 + $0x8] sm:$0xff] %v7656
    %7673 = vst [vmem:[#allocation3 + $0x10] sm:$0xff] %v7657
    %7674 = vst [vmem:[#allocation3 + $0x18] sm:$0xff] %v7658
    %7675 = vst [vmem:[#allocation3 + $0x20] sm:$0xff] %v7659
    %7676 = vst [vmem:[#allocation3 + $0x28] sm:$0xff] %v7660
    %7677 = vst [vmem:[#allocation3 + $0x30] sm:$0xff] %v7661
    %7678 = vst [vmem:[#allocation3 + $0x38] sm:$0xff] %v7662
    %7679 = vst [vmem:[#allocation3 + $0x40] sm:$0xff] %v7663
    %7680 = vst [vmem:[#allocation3 + $0x48] sm:$0xff] %v7664
    %7681 = vst [vmem:[#allocation3 + $0x50] sm:$0xff] %v7665
    %7682 = vst [vmem:[#allocation3 + $0x58] sm:$0xff] %v7666
    %7683 = vst [vmem:[#allocation3 + $0x60] sm:$0xff] %v7667
    %7684 = vst [vmem:[#allocation3 + $0x68] sm:$0xff] %v7668
    %7685 = vst [vmem:[#allocation3 + $0x70] sm:$0xff] %v7669
    %7686 = vst [vmem:[#allocation3 + $0x78] sm:$0xff] %v7670
    %v7687 = vld [vmem:[%s4] sm:$0x1]
    %v7688 = vld [vmem:[#allocation3] sm:$0xff]
    %v7689 = vld [vmem:[#allocation3 + $0x8] sm:$0xff]
    %v7690 = vmax.f32 %v7688, %v7689
    %7691 = vst [vmem:[#allocation6] sm:$0xff] %v7690
    %v7692 = vld [vmem:[#allocation6] ss:$2 sm:$0xf]
    %s7693 = scalar_lea.vmem [#allocation6], 1
    %v7694 = vld [vmem:[%s7693] ss:$2 sm:$0xf]
    %v7695 = vmax.f32 %v7692, %v7694
    %v7697 = vlaneseq
    %v7698 = vshrl.u32 %v7697, 7
    %v7699 = vsub.s32 0, %v7698
    %v7700 = vrot.slane %v7687, %v7699
    %v7702 = vadd.f32 %v7695, %v7700
    %v7703 = vmax.f32 %v7702, 0.0
    %7704 = vst [vmem:[#allocation4] sm:$0xf] %v7703
    %v7705 = vld [vmem:[#allocation3 + $0x10] sm:$0xff]
    %v7706 = vld [vmem:[#allocation3 + $0x18] sm:$0xff]
    %v7707 = vmax.f32 %v7705, %v7706
    %7708 = vst [vmem:[#allocation6] sm:$0xff] %v7707
    %v7709 = vld [vmem:[#allocation6] ss:$2 sm:$0xf]
    %v7710 = vld [vmem:[%s7693] ss:$2 sm:$0xf]
    %v7711 = vmax.f32 %v7709, %v7710
    %v7712 = vadd.f32 %v7711, %v7700
    %v7713 = vmax.f32 %v7712, 0.0
    %s7714 = scalar_lea.vmem [#allocation4], 4
    %7715 = vst [vmem:[%s7714] sm:$0xf] %v7713
    %v7716 = vld [vmem:[#allocation3 + $0x20] sm:$0xff]
    %v7717 = vld [vmem:[#allocation3 + $0x28] sm:$0xff]
    %v7718 = vmax.f32 %v7716, %v7717
    %7719 = vst [vmem:[#allocation6] sm:$0xff] %v7718
    %v7720 = vld [vmem:[#allocation6] ss:$2 sm:$0xf]
    %v7721 = vld [vmem:[%s7693] ss:$2 sm:$0xf]
    %v7722 = vmax.f32 %v7720, %v7721
    %v7723 = vadd.f32 %v7722, %v7700
    %v7724 = vmax.f32 %v7723, 0.0
    %s7725 = scalar_lea.vmem [#allocation4], 8
    %7726 = vst [vmem:[%s7725] sm:$0xf] %v7724
    %v7727 = vld [vmem:[#allocation3 + $0x30] sm:$0xff]
    %v7728 = vld [vmem:[#allocation3 + $0x38] sm:$0xff]
    %v7729 = vmax.f32 %v7727, %v7728
    %7730 = vst [vmem:[#allocation6] sm:$0xff] %v7729
    %v7731 = vld [vmem:[#allocation6] ss:$2 sm:$0xf]
    %v7732 = vld [vmem:[%s7693] ss:$2 sm:$0xf]
    %v7733 = vmax.f32 %v7731, %v7732
    %v7734 = vadd.f32 %v7733, %v7700
    %v7735 = vmax.f32 %v7734, 0.0
    %s7736 = scalar_lea.vmem [#allocation4], 12
    %7737 = vst [vmem:[%s7736] sm:$0xf] %v7735
    %v7738 = vld [vmem:[#allocation3 + $0x40] sm:$0xff]
    %v7739 = vld [vmem:[#allocation3 + $0x48] sm:$0xff]
    %v7740 = vmax.f32 %v7738, %v7739
    %7741 = vst [vmem:[#allocation6] sm:$0xff] %v7740
    %v7742 = vld [vmem:[#allocation6] ss:$2 sm:$0xf]
    %v7743 = vld [vmem:[%s7693] ss:$2 sm:$0xf]
    %v7744 = vmax.f32 %v7742, %v7743
    %v7745 = vadd.f32 %v7744, %v7700
    %v7746 = vmax.f32 %v7745, 0.0
    %s7747 = scalar_lea.vmem [#allocation4], 16
    %7748 = vst [vmem:[%s7747] sm:$0xf] %v7746
    %v7749 = vld [vmem:[#allocation3 + $0x50] sm:$0xff]
    %v7750 = vld [vmem:[#allocation3 + $0x58] sm:$0xff]
    %v7751 = vmax.f32 %v7749, %v7750
    %7752 = vst [vmem:[#allocation6] sm:$0xff] %v7751
    %v7753 = vld [vmem:[#allocation6] ss:$2 sm:$0xf]
    %v7754 = vld [vmem:[%s7693] ss:$2 sm:$0xf]
    %v7755 = vmax.f32 %v7753, %v7754
    %v7756 = vadd.f32 %v7755, %v7700
    %v7757 = vmax.f32 %v7756, 0.0
    %s7758 = scalar_lea.vmem [#allocation4], 20
    %7759 = vst [vmem:[%s7758] sm:$0xf] %v7757
    %v7760 = vld [vmem:[#allocation3 + $0x60] sm:$0xff]
    %v7761 = vld [vmem:[#allocation3 + $0x68] sm:$0xff]
    %v7762 = vmax.f32 %v7760, %v7761
    %7763 = vst [vmem:[#allocation6] sm:$0xff] %v7762
    %v7764 = vld [vmem:[#allocation6] ss:$2 sm:$0xf]
    %v7765 = vld [vmem:[%s7693] ss:$2 sm:$0xf]
    %v7766 = vmax.f32 %v7764, %v7765
    %v7767 = vadd.f32 %v7766, %v7700
    %v7768 = vmax.f32 %v7767, 0.0
    %s7769 = scalar_lea.vmem [#allocation4], 24
    %7770 = vst [vmem:[%s7769] sm:$0xf] %v7768
    %v7771 = vld [vmem:[#allocation3 + $0x70] sm:$0xff]
    %v7772 = vld [vmem:[#allocation3 + $0x78] sm:$0xff]
    %v7773 = vmax.f32 %v7771, %v7772
    %7774 = vst [vmem:[#allocation6] sm:$0xff] %v7773
    %v7775 = vld [vmem:[#allocation6] ss:$2 sm:$0xf]
    %v7776 = vld [vmem:[%s7693] ss:$2 sm:$0xf]
    %v7777 = vmax.f32 %v7775, %v7776
    %v7778 = vadd.f32 %v7777, %v7700
    %v7779 = vmax.f32 %v7778, 0.0
    %s7780 = scalar_lea.vmem [#allocation4], 28
    %7781 = vst [vmem:[%s7780] sm:$0xf] %v7779
    %v7782 = vld [vmem:[#allocation4] sm:$0x1]
    %v7783 = vld [vmem:[#allocation4 + $0x10] sm:$0x1]
    %v7784 = vpack.c.bf16 %v7782, %v7782
    %v7785 = vpack.c.bf16 %v7783, %v7783
    %v7786 = vld [vmem:[#allocation7] sm:$0xf]
    %v7787 = vld [vmem:[#allocation7 + $0x4] sm:$0xf]
    %v7788 = vld [vmem:[#allocation7 + $0x8] sm:$0xf]
    %v7789 = vld [vmem:[#allocation7 + $0xc] sm:$0xf]
    %v7790 = vld [vmem:[#allocation7 + $0x10] sm:$0xf]
    %v7791 = vld [vmem:[#allocation7 + $0x14] sm:$0xf]
    %v7792 = vld [vmem:[#allocation7 + $0x18] sm:$0xf]
    %v7793 = vld [vmem:[#allocation7 + $0x1c] sm:$0xf]
    %v7794 = vld [vmem:[#allocation7 + $0x20] sm:$0xf]
    %v7795 = vld [vmem:[#allocation7 + $0x24] sm:$0xf]
    %v7796 = vld [vmem:[#allocation7 + $0x28] sm:$0xf]
    %v7797 = vld [vmem:[#allocation7 + $0x2c] sm:$0xf]
    %v7798 = vld [vmem:[#allocation7 + $0x30] sm:$0xf]
    %v7799 = vld [vmem:[#allocation7 + $0x34] sm:$0xf]
    %v7800 = vld [vmem:[#allocation7 + $0x38] sm:$0xf]
    %v7801 = vld [vmem:[#allocation7 + $0x3c] sm:$0xf]
    %v7802 = vld [vmem:[#allocation4 + $0x1] sm:$0x1]
    %v7803 = vld [vmem:[#allocation4 + $0x11] sm:$0x1]
    %v7804 = vpack.c.bf16 %v7802, %v7802
    %v7805 = vpack.c.bf16 %v7803, %v7803
    %s7806 = scalar_lea.vmem [#allocation7], 64
    %v7807 = vld [vmem:[%s7806] sm:$0xf]
    %v7808 = vld [vmem:[%s7806 + $0x4] sm:$0xf]
    %v7809 = vld [vmem:[%s7806 + $0x8] sm:$0xf]
    %v7810 = vld [vmem:[%s7806 + $0xc] sm:$0xf]
    %v7811 = vld [vmem:[%s7806 + $0x10] sm:$0xf]
    %v7812 = vld [vmem:[%s7806 + $0x14] sm:$0xf]
    %v7813 = vld [vmem:[%s7806 + $0x18] sm:$0xf]
    %v7814 = vld [vmem:[%s7806 + $0x1c] sm:$0xf]
    %v7815 = vld [vmem:[%s7806 + $0x20] sm:$0xf]
    %v7816 = vld [vmem:[%s7806 + $0x24] sm:$0xf]
    %v7817 = vld [vmem:[%s7806 + $0x28] sm:$0xf]
    %v7818 = vld [vmem:[%s7806 + $0x2c] sm:$0xf]
    %v7819 = vld [vmem:[%s7806 + $0x30] sm:$0xf]
    %v7820 = vld [vmem:[%s7806 + $0x34] sm:$0xf]
    %v7821 = vld [vmem:[%s7806 + $0x38] sm:$0xf]
    %v7822 = vld [vmem:[%s7806 + $0x3c] sm:$0xf]
    %v7825 = vunpack.c.l.b16 %v7804
    %v7826 = vunpack.c.l.b16 %v7805
    %v7827 = vrot.slane %v7826, 7
    %vm7828 = vcmask 1041409
    %v7829 = vsel %vm7828, %v7827, %v7825
    %v7830 = vpack.c.b16 %v7829, %v7829
    %v7848 = vunpack.c.l.b16 %v7807
    %v7849 = vunpack.c.l.b16 %v7808
    %v7850 = vunpack.c.l.b16 %v7809
    %v7851 = vunpack.c.l.b16 %v7810
    %v7852 = vunpack.c.l.b16 %v7811
    %v7853 = vunpack.c.l.b16 %v7812
    %v7854 = vunpack.c.l.b16 %v7813
    %v7855 = vunpack.c.l.b16 %v7814
    %v7856 = vunpack.c.l.b16 %v7815
    %v7857 = vunpack.c.l.b16 %v7816
    %v7858 = vunpack.c.l.b16 %v7817
    %v7859 = vunpack.c.l.b16 %v7818
    %v7860 = vunpack.c.l.b16 %v7819
    %v7861 = vunpack.c.l.b16 %v7820
    %v7862 = vunpack.c.l.b16 %v7821
    %v7863 = vunpack.c.l.b16 %v7822
    %v7864 = vpack.c.b16 %v7849, %v7848
    %v7865 = vpack.c.b16 %v7851, %v7850
    %v7866 = vpack.c.b16 %v7853, %v7852
    %v7867 = vpack.c.b16 %v7855, %v7854
    %v7868 = vpack.c.b16 %v7857, %v7856
    %v7869 = vpack.c.b16 %v7859, %v7858
    %v7870 = vpack.c.b16 %v7861, %v7860
    %v7871 = vpack.c.b16 %v7863, %v7862
    %7880 = vmatprep.subr.bf16.mxu0 0
    %7881 = vmatpush1.bf16.msra.mxu0 %v7864
    %7882 = vmatprep.subr.bf16.mxu0 0
    %7883 = vmatpush1.bf16.msra.mxu0 %v7865
    %7884 = vmatprep.subr.bf16.mxu0 0
    %7885 = vmatpush1.bf16.msra.mxu0 %v7866
    %7886 = vmatprep.subr.bf16.mxu0 0
    %7887 = vmatpush1.bf16.msra.mxu0 %v7867
    %7888 = vmatprep.subr.bf16.mxu0 0
    %7889 = vmatpush1.bf16.msra.mxu0 %v7868
    %7890 = vmatprep.subr.bf16.mxu0 0
    %7891 = vmatpush1.bf16.msra.mxu0 %v7869
    %7892 = vmatprep.subr.bf16.mxu0 0
    %7893 = vmatpush1.bf16.msra.mxu0 %v7870
    %7894 = vmatprep.subr.bf16.mxu0 0
    %7895 = vmatpush1.bf16.msra.mxu0 %v7871
    %7896 = vmatprep.subr.bf16.mxu0 0
    %7897 = vmatpush1.bf16.msra.mxu0 0
    %7898 = vmatprep.subr.bf16.mxu0 0
    %7899 = vmatpush1.bf16.msra.mxu0 0
    %7900 = vmatprep.subr.bf16.mxu0 0
    %7901 = vmatpush1.bf16.msra.mxu0 0
    %7902 = vmatprep.subr.bf16.mxu0 0
    %7903 = vmatpush1.bf16.msra.mxu0 0
    %7904 = vmatprep.subr.bf16.mxu0 0
    %7905 = vmatpush1.bf16.msra.mxu0 0
    %7906 = vmatprep.subr.bf16.mxu0 0
    %7907 = vmatpush1.bf16.msra.mxu0 0
    %7908 = vmatprep.subr.bf16.mxu0 0
    %7909 = vmatpush1.bf16.msra.mxu0 0
    %7910 = vmatprep.subr.bf16.mxu0 0
    %7911 = vmatpush1.bf16.msra.mxu0 0
    %7912 = vmatprep.mubr.bf16.mxu0 0
    %7913 = vmatmul.mubr.bf16.gmra.mrb[0].mxu0 %v7830
    %v7914 = vpop.f32.mrb[0].mxu0
    %v7915 = vadd.f32 0.0, %v7914
    %v7916 = vpop.f32.mrb[0].mxu0
    %v7917 = vpop.f32.mrb[0].mxu0
    %v7918 = vpop.f32.mrb[0].mxu0
    %7919 = vdwg.mxu0
    %v7922 = vunpack.c.l.b16 %v7784
    %v7923 = vunpack.c.l.b16 %v7785
    %v7924 = vrot.slane %v7923, 7
    %v7925 = vsel %vm7828, %v7924, %v7922
    %v7926 = vpack.c.b16 %v7925, %v7925
    %v7944 = vunpack.c.l.b16 %v7786
    %v7945 = vunpack.c.l.b16 %v7787
    %v7946 = vunpack.c.l.b16 %v7788
    %v7947 = vunpack.c.l.b16 %v7789
    %v7948 = vunpack.c.l.b16 %v7790
    %v7949 = vunpack.c.l.b16 %v7791
    %v7950 = vunpack.c.l.b16 %v7792
    %v7951 = vunpack.c.l.b16 %v7793
    %v7952 = vunpack.c.l.b16 %v7794
    %v7953 = vunpack.c.l.b16 %v7795
    %v7954 = vunpack.c.l.b16 %v7796
    %v7955 = vunpack.c.l.b16 %v7797
    %v7956 = vunpack.c.l.b16 %v7798
    %v7957 = vunpack.c.l.b16 %v7799
    %v7958 = vunpack.c.l.b16 %v7800
    %v7959 = vunpack.c.l.b16 %v7801
    %v7960 = vpack.c.b16 %v7945, %v7944
    %v7961 = vpack.c.b16 %v7947, %v7946
    %v7962 = vpack.c.b16 %v7949, %v7948
    %v7963 = vpack.c.b16 %v7951, %v7950
    %v7964 = vpack.c.b16 %v7953, %v7952
    %v7965 = vpack.c.b16 %v7955, %v7954
    %v7966 = vpack.c.b16 %v7957, %v7956
    %v7967 = vpack.c.b16 %v7959, %v7958
    %7976 = vmatprep.subr.bf16.mxu0 0
    %7977 = vmatpush1.bf16.msra.mxu0 %v7960
    %7978 = vmatprep.subr.bf16.mxu0 0
    %7979 = vmatpush1.bf16.msra.mxu0 %v7961
    %7980 = vmatprep.subr.bf16.mxu0 0
    %7981 = vmatpush1.bf16.msra.mxu0 %v7962
    %7982 = vmatprep.subr.bf16.mxu0 0
    %7983 = vmatpush1.bf16.msra.mxu0 %v7963
    %7984 = vmatprep.subr.bf16.mxu0 0
    %7985 = vmatpush1.bf16.msra.mxu0 %v7964
    %7986 = vmatprep.subr.bf16.mxu0 0
    %7987 = vmatpush1.bf16.msra.mxu0 %v7965
    %7988 = vmatprep.subr.bf16.mxu0 0
    %7989 = vmatpush1.bf16.msra.mxu0 %v7966
    %7990 = vmatprep.subr.bf16.mxu0 0
    %7991 = vmatpush1.bf16.msra.mxu0 %v7967
    %7992 = vmatprep.subr.bf16.mxu0 0
    %7993 = vmatpush1.bf16.msra.mxu0 0
    %7994 = vmatprep.subr.bf16.mxu0 0
    %7995 = vmatpush1.bf16.msra.mxu0 0
    %7996 = vmatprep.subr.bf16.mxu0 0
    %7997 = vmatpush1.bf16.msra.mxu0 0
    %7998 = vmatprep.subr.bf16.mxu0 0
    %7999 = vmatpush1.bf16.msra.mxu0 0
    %8000 = vmatprep.subr.bf16.mxu0 0
    %8001 = vmatpush1.bf16.msra.mxu0 0
    %8002 = vmatprep.subr.bf16.mxu0 0
    %8003 = vmatpush1.bf16.msra.mxu0 0
    %8004 = vmatprep.subr.bf16.mxu0 0
    %8005 = vmatpush1.bf16.msra.mxu0 0
    %8006 = vmatprep.subr.bf16.mxu0 0
    %8007 = vmatpush1.bf16.msra.mxu0 0
    %8008 = vmatprep.mubr.bf16.mxu0 0
    %8009 = vmatmul.mubr.bf16.gmra.mrb[0].mxu0 %v7926
    %v8010 = vpop.f32.mrb[0].mxu0
    %v8011 = vadd.f32 %v7915, %v8010
    %v8012 = vpop.f32.mrb[0].mxu0
    %v8013 = vpop.f32.mrb[0].mxu0
    %v8014 = vpop.f32.mrb[0].mxu0
    %8015 = vdwg.mxu0
    %v8016 = vld [vmem:[#allocation4 + $0x2] sm:$0x1]
    %v8017 = vld [vmem:[#allocation4 + $0x12] sm:$0x1]
    %v8018 = vpack.c.bf16 %v8016, %v8016
    %v8019 = vpack.c.bf16 %v8017, %v8017
    %s8020 = scalar_lea.vmem [#allocation7], 128
    %v8021 = vld [vmem:[%s8020] sm:$0xf]
    %v8022 = vld [vmem:[%s8020 + $0x4] sm:$0xf]
    %v8023 = vld [vmem:[%s8020 + $0x8] sm:$0xf]
    %v8024 = vld [vmem:[%s8020 + $0xc] sm:$0xf]
    %v8025 = vld [vmem:[%s8020 + $0x10] sm:$0xf]
    %v8026 = vld [vmem:[%s8020 + $0x14] sm:$0xf]
    %v8027 = vld [vmem:[%s8020 + $0x18] sm:$0xf]
    %v8028 = vld [vmem:[%s8020 + $0x1c] sm:$0xf]
    %v8029 = vld [vmem:[%s8020 + $0x20] sm:$0xf]
    %v8030 = vld [vmem:[%s8020 + $0x24] sm:$0xf]
    %v8031 = vld [vmem:[%s8020 + $0x28] sm:$0xf]
    %v8032 = vld [vmem:[%s8020 + $0x2c] sm:$0xf]
    %v8033 = vld [vmem:[%s8020 + $0x30] sm:$0xf]
    %v8034 = vld [vmem:[%s8020 + $0x34] sm:$0xf]
    %v8035 = vld [vmem:[%s8020 + $0x38] sm:$0xf]
    %v8036 = vld [vmem:[%s8020 + $0x3c] sm:$0xf]
    %v8039 = vunpack.c.l.b16 %v8018
    %v8040 = vunpack.c.l.b16 %v8019
    %v8041 = vrot.slane %v8040, 7
    %v8042 = vsel %vm7828, %v8041, %v8039
    %v8043 = vpack.c.b16 %v8042, %v8042
    %v8061 = vunpack.c.l.b16 %v8021
    %v8062 = vunpack.c.l.b16 %v8022
    %v8063 = vunpack.c.l.b16 %v8023
    %v8064 = vunpack.c.l.b16 %v8024
    %v8065 = vunpack.c.l.b16 %v8025
    %v8066 = vunpack.c.l.b16 %v8026
    %v8067 = vunpack.c.l.b16 %v8027
    %v8068 = vunpack.c.l.b16 %v8028
    %v8069 = vunpack.c.l.b16 %v8029
    %v8070 = vunpack.c.l.b16 %v8030
    %v8071 = vunpack.c.l.b16 %v8031
    %v8072 = vunpack.c.l.b16 %v8032
    %v8073 = vunpack.c.l.b16 %v8033
    %v8074 = vunpack.c.l.b16 %v8034
    %v8075 = vunpack.c.l.b16 %v8035
    %v8076 = vunpack.c.l.b16 %v8036
    %v8077 = vpack.c.b16 %v8062, %v8061
    %v8078 = vpack.c.b16 %v8064, %v8063
    %v8079 = vpack.c.b16 %v8066, %v8065
    %v8080 = vpack.c.b16 %v8068, %v8067
    %v8081 = vpack.c.b16 %v8070, %v8069
    %v8082 = vpack.c.b16 %v8072, %v8071
    %v8083 = vpack.c.b16 %v8074, %v8073
    %v8084 = vpack.c.b16 %v8076, %v8075
    %8093 = vmatprep.subr.bf16.mxu0 0
    %8094 = vmatpush1.bf16.msra.mxu0 %v8077
    %8095 = vmatprep.subr.bf16.mxu0 0
    %8096 = vmatpush1.bf16.msra.mxu0 %v8078
    %8097 = vmatprep.subr.bf16.mxu0 0
    %8098 = vmatpush1.bf16.msra.mxu0 %v8079
    %8099 = vmatprep.subr.bf16.mxu0 0
    %8100 = vmatpush1.bf16.msra.mxu0 %v8080
    %8101 = vmatprep.subr.bf16.mxu0 0
    %8102 = vmatpush1.bf16.msra.mxu0 %v8081
    %8103 = vmatprep.subr.bf16.mxu0 0
    %8104 = vmatpush1.bf16.msra.mxu0 %v8082
    %8105 = vmatprep.subr.bf16.mxu0 0
    %8106 = vmatpush1.bf16.msra.mxu0 %v8083
    %8107 = vmatprep.subr.bf16.mxu0 0
    %8108 = vmatpush1.bf16.msra.mxu0 %v8084
    %8109 = vmatprep.subr.bf16.mxu0 0
    %8110 = vmatpush1.bf16.msra.mxu0 0
    %8111 = vmatprep.subr.bf16.mxu0 0
    %8112 = vmatpush1.bf16.msra.mxu0 0
    %8113 = vmatprep.subr.bf16.mxu0 0
    %8114 = vmatpush1.bf16.msra.mxu0 0
    %8115 = vmatprep.subr.bf16.mxu0 0
    %8116 = vmatpush1.bf16.msra.mxu0 0
    %8117 = vmatprep.subr.bf16.mxu0 0
    %8118 = vmatpush1.bf16.msra.mxu0 0
    %8119 = vmatprep.subr.bf16.mxu0 0
    %8120 = vmatpush1.bf16.msra.mxu0 0
    %8121 = vmatprep.subr.bf16.mxu0 0
    %8122 = vmatpush1.bf16.msra.mxu0 0
    %8123 = vmatprep.subr.bf16.mxu0 0
    %8124 = vmatpush1.bf16.msra.mxu0 0
    %8125 = vmatprep.mubr.bf16.mxu0 0
    %8126 = vmatmul.mubr.bf16.gmra.mrb[0].mxu0 %v8043
    %v8127 = vpop.f32.mrb[0].mxu0
    %v8128 = vadd.f32 0.0, %v8127
    %v8129 = vpop.f32.mrb[0].mxu0
    %v8130 = vpop.f32.mrb[0].mxu0
    %v8131 = vpop.f32.mrb[0].mxu0
    %8132 = vdwg.mxu0
    %v8133 = vadd.f32 %v8011, %v8128
    %v8134 = vld [vmem:[#allocation4 + $0x3] sm:$0x1]
    %v8135 = vld [vmem:[#allocation4 + $0x13] sm:$0x1]
    %v8136 = vpack.c.bf16 %v8134, %v8134
    %v8137 = vpack.c.bf16 %v8135, %v8135
    %s8138 = scalar_lea.vmem [#allocation7], 192
    %v8139 = vld [vmem:[%s8138] sm:$0xf]
    %v8140 = vld [vmem:[%s8138 + $0x4] sm:$0xf]
    %v8141 = vld [vmem:[%s8138 + $0x8] sm:$0xf]
    %v8142 = vld [vmem:[%s8138 + $0xc] sm:$0xf]
    %v8143 = vld [vmem:[%s8138 + $0x10] sm:$0xf]
    %v8144 = vld [vmem:[%s8138 + $0x14] sm:$0xf]
    %v8145 = vld [vmem:[%s8138 + $0x18] sm:$0xf]
    %v8146 = vld [vmem:[%s8138 + $0x1c] sm:$0xf]
    %v8147 = vld [vmem:[%s8138 + $0x20] sm:$0xf]
    %v8148 = vld [vmem:[%s8138 + $0x24] sm:$0xf]
    %v8149 = vld [vmem:[%s8138 + $0x28] sm:$0xf]
    %v8150 = vld [vmem:[%s8138 + $0x2c] sm:$0xf]
    %v8151 = vld [vmem:[%s8138 + $0x30] sm:$0xf]
    %v8152 = vld [vmem:[%s8138 + $0x34] sm:$0xf]
    %v8153 = vld [vmem:[%s8138 + $0x38] sm:$0xf]
    %v8154 = vld [vmem:[%s8138 + $0x3c] sm:$0xf]
    %v8157 = vunpack.c.l.b16 %v8136
    %v8158 = vunpack.c.l.b16 %v8137
    %v8159 = vrot.slane %v8158, 7
    %v8160 = vsel %vm7828, %v8159, %v8157
    %v8161 = vpack.c.b16 %v8160, %v8160
    %v8179 = vunpack.c.l.b16 %v8139
    %v8180 = vunpack.c.l.b16 %v8140
    %v8181 = vunpack.c.l.b16 %v8141
    %v8182 = vunpack.c.l.b16 %v8142
    %v8183 = vunpack.c.l.b16 %v8143
    %v8184 = vunpack.c.l.b16 %v8144
    %v8185 = vunpack.c.l.b16 %v8145
    %v8186 = vunpack.c.l.b16 %v8146
    %v8187 = vunpack.c.l.b16 %v8147
    %v8188 = vunpack.c.l.b16 %v8148
    %v8189 = vunpack.c.l.b16 %v8149
    %v8190 = vunpack.c.l.b16 %v8150
    %v8191 = vunpack.c.l.b16 %v8151
    %v8192 = vunpack.c.l.b16 %v8152
    %v8193 = vunpack.c.l.b16 %v8153
    %v8194 = vunpack.c.l.b16 %v8154
    %v8195 = vpack.c.b16 %v8180, %v8179
    %v8196 = vpack.c.b16 %v8182, %v8181
    %v8197 = vpack.c.b16 %v8184, %v8183
    %v8198 = vpack.c.b16 %v8186, %v8185
    %v8199 = vpack.c.b16 %v8188, %v8187
    %v8200 = vpack.c.b16 %v8190, %v8189
    %v8201 = vpack.c.b16 %v8192, %v8191
    %v8202 = vpack.c.b16 %v8194, %v8193
    %8211 = vmatprep.subr.bf16.mxu0 0
    %8212 = vmatpush1.bf16.msra.mxu0 %v8195
    %8213 = vmatprep.subr.bf16.mxu0 0
    %8214 = vmatpush1.bf16.msra.mxu0 %v8196
    %8215 = vmatprep.subr.bf16.mxu0 0
    %8216 = vmatpush1.bf16.msra.mxu0 %v8197
    %8217 = vmatprep.subr.bf16.mxu0 0
    %8218 = vmatpush1.bf16.msra.mxu0 %v8198
    %8219 = vmatprep.subr.bf16.mxu0 0
    %8220 = vmatpush1.bf16.msra.mxu0 %v8199
    %8221 = vmatprep.subr.bf16.mxu0 0
    %8222 = vmatpush1.bf16.msra.mxu0 %v8200
    %8223 = vmatprep.subr.bf16.mxu0 0
    %8224 = vmatpush1.bf16.msra.mxu0 %v8201
    %8225 = vmatprep.subr.bf16.mxu0 0
    %8226 = vmatpush1.bf16.msra.mxu0 %v8202
    %8227 = vmatprep.subr.bf16.mxu0 0
    %8228 = vmatpush1.bf16.msra.mxu0 0
    %8229 = vmatprep.subr.bf16.mxu0 0
    %8230 = vmatpush1.bf16.msra.mxu0 0
    %8231 = vmatprep.subr.bf16.mxu0 0
    %8232 = vmatpush1.bf16.msra.mxu0 0
    %8233 = vmatprep.subr.bf16.mxu0 0
    %8234 = vmatpush1.bf16.msra.mxu0 0
    %8235 = vmatprep.subr.bf16.mxu0 0
    %8236 = vmatpush1.bf16.msra.mxu0 0
    %8237 = vmatprep.subr.bf16.mxu0 0
    %8238 = vmatpush1.bf16.msra.mxu0 0
    %8239 = vmatprep.subr.bf16.mxu0 0
    %8240 = vmatpush1.bf16.msra.mxu0 0
    %8241 = vmatprep.subr.bf16.mxu0 0
    %8242 = vmatpush1.bf16.msra.mxu0 0
    %8243 = vmatprep.mubr.bf16.mxu0 0
    %8244 = vmatmul.mubr.bf16.gmra.mrb[0].mxu0 %v8161
    %v8245 = vpop.f32.mrb[0].mxu0
    %v8246 = vadd.f32 0.0, %v8245
    %v8247 = vpop.f32.mrb[0].mxu0
    %v8248 = vpop.f32.mrb[0].mxu0
    %v8249 = vpop.f32.mrb[0].mxu0
    %8250 = vdwg.mxu0
    %v8251 = vadd.f32 %v8133, %v8246
    %v8252 = vld [vmem:[%s7714] sm:$0x1]
    %v8253 = vld [vmem:[%s7714 + $0x10] sm:$0x1]
    %v8254 = vpack.c.bf16 %v8252, %v8252
    %v8255 = vpack.c.bf16 %v8253, %v8253
    %s8256 = scalar_lea.vmem [#allocation7], 256
    %v8257 = vld [vmem:[%s8256] sm:$0xf]
    %v8258 = vld [vmem:[%s8256 + $0x4] sm:$0xf]
    %v8259 = vld [vmem:[%s8256 + $0x8] sm:$0xf]
    %v8260 = vld [vmem:[%s8256 + $0xc] sm:$0xf]
    %v8261 = vld [vmem:[%s8256 + $0x10] sm:$0xf]
    %v8262 = vld [vmem:[%s8256 + $0x14] sm:$0xf]
    %v8263 = vld [vmem:[%s8256 + $0x18] sm:$0xf]
    %v8264 = vld [vmem:[%s8256 + $0x1c] sm:$0xf]
    %v8265 = vld [vmem:[%s8256 + $0x20] sm:$0xf]
    %v8266 = vld [vmem:[%s8256 + $0x24] sm:$0xf]
    %v8267 = vld [vmem:[%s8256 + $0x28] sm:$0xf]
    %v8268 = vld [vmem:[%s8256 + $0x2c] sm:$0xf]
    %v8269 = vld [vmem:[%s8256 + $0x30] sm:$0xf]
    %v8270 = vld [vmem:[%s8256 + $0x34] sm:$0xf]
    %v8271 = vld [vmem:[%s8256 + $0x38] sm:$0xf]
    %v8272 = vld [vmem:[%s8256 + $0x3c] sm:$0xf]
    %v8275 = vunpack.c.l.b16 %v8254
    %v8276 = vunpack.c.l.b16 %v8255
    %v8277 = vrot.slane %v8276, 7
    %v8278 = vsel %vm7828, %v8277, %v8275
    %v8279 = vpack.c.b16 %v8278, %v8278
    %v8297 = vunpack.c.l.b16 %v8257
    %v8298 = vunpack.c.l.b16 %v8258
    %v8299 = vunpack.c.l.b16 %v8259
    %v8300 = vunpack.c.l.b16 %v8260
    %v8301 = vunpack.c.l.b16 %v8261
    %v8302 = vunpack.c.l.b16 %v8262
    %v8303 = vunpack.c.l.b16 %v8263
    %v8304 = vunpack.c.l.b16 %v8264
    %v8305 = vunpack.c.l.b16 %v8265
    %v8306 = vunpack.c.l.b16 %v8266
    %v8307 = vunpack.c.l.b16 %v8267
    %v8308 = vunpack.c.l.b16 %v8268
    %v8309 = vunpack.c.l.b16 %v8269
    %v8310 = vunpack.c.l.b16 %v8270
    %v8311 = vunpack.c.l.b16 %v8271
    %v8312 = vunpack.c.l.b16 %v8272
    %v8313 = vpack.c.b16 %v8298, %v8297
    %v8314 = vpack.c.b16 %v8300, %v8299
    %v8315 = vpack.c.b16 %v8302, %v8301
    %v8316 = vpack.c.b16 %v8304, %v8303
    %v8317 = vpack.c.b16 %v8306, %v8305
    %v8318 = vpack.c.b16 %v8308, %v8307
    %v8319 = vpack.c.b16 %v8310, %v8309
    %v8320 = vpack.c.b16 %v8312, %v8311
    %8329 = vmatprep.subr.bf16.mxu0 0
    %8330 = vmatpush1.bf16.msra.mxu0 %v8313
    %8331 = vmatprep.subr.bf16.mxu0 0
    %8332 = vmatpush1.bf16.msra.mxu0 %v8314
    %8333 = vmatprep.subr.bf16.mxu0 0
    %8334 = vmatpush1.bf16.msra.mxu0 %v8315
    %8335 = vmatprep.subr.bf16.mxu0 0
    %8336 = vmatpush1.bf16.msra.mxu0 %v8316
    %8337 = vmatprep.subr.bf16.mxu0 0
    %8338 = vmatpush1.bf16.msra.mxu0 %v8317
    %8339 = vmatprep.subr.bf16.mxu0 0
    %8340 = vmatpush1.bf16.msra.mxu0 %v8318
    %8341 = vmatprep.subr.bf16.mxu0 0
    %8342 = vmatpush1.bf16.msra.mxu0 %v8319
    %8343 = vmatprep.subr.bf16.mxu0 0
    %8344 = vmatpush1.bf16.msra.mxu0 %v8320
    %8345 = vmatprep.subr.bf16.mxu0 0
    %8346 = vmatpush1.bf16.msra.mxu0 0
    %8347 = vmatprep.subr.bf16.mxu0 0
    %8348 = vmatpush1.bf16.msra.mxu0 0
    %8349 = vmatprep.subr.bf16.mxu0 0
    %8350 = vmatpush1.bf16.msra.mxu0 0
    %8351 = vmatprep.subr.bf16.mxu0 0
    %8352 = vmatpush1.bf16.msra.mxu0 0
    %8353 = vmatprep.subr.bf16.mxu0 0
    %8354 = vmatpush1.bf16.msra.mxu0 0
    %8355 = vmatprep.subr.bf16.mxu0 0
    %8356 = vmatpush1.bf16.msra.mxu0 0
    %8357 = vmatprep.subr.bf16.mxu0 0
    %8358 = vmatpush1.bf16.msra.mxu0 0
    %8359 = vmatprep.subr.bf16.mxu0 0
    %8360 = vmatpush1.bf16.msra.mxu0 0
    %8361 = vmatprep.mubr.bf16.mxu0 0
    %8362 = vmatmul.mubr.bf16.gmra.mrb[0].mxu0 %v8279
    %v8363 = vpop.f32.mrb[0].mxu0
    %v8364 = vadd.f32 0.0, %v8363
    %v8365 = vpop.f32.mrb[0].mxu0
    %v8366 = vpop.f32.mrb[0].mxu0
    %v8367 = vpop.f32.mrb[0].mxu0
    %8368 = vdwg.mxu0
    %v8369 = vadd.f32 %v8251, %v8364
    %v8370 = vld [vmem:[%s7714 + $0x1] sm:$0x1]
    %v8371 = vld [vmem:[%s7714 + $0x11] sm:$0x1]
    %v8372 = vpack.c.bf16 %v8370, %v8370
    %v8373 = vpack.c.bf16 %v8371, %v8371
    %s8374 = scalar_lea.vmem [#allocation7], 320
    %v8375 = vld [vmem:[%s8374] sm:$0xf]
    %v8376 = vld [vmem:[%s8374 + $0x4] sm:$0xf]
    %v8377 = vld [vmem:[%s8374 + $0x8] sm:$0xf]
    %v8378 = vld [vmem:[%s8374 + $0xc] sm:$0xf]
    %v8379 = vld [vmem:[%s8374 + $0x10] sm:$0xf]
    %v8380 = vld [vmem:[%s8374 + $0x14] sm:$0xf]
    %v8381 = vld [vmem:[%s8374 + $0x18] sm:$0xf]
    %v8382 = vld [vmem:[%s8374 + $0x1c] sm:$0xf]
    %v8383 = vld [vmem:[%s8374 + $0x20] sm:$0xf]
    %v8384 = vld [vmem:[%s8374 + $0x24] sm:$0xf]
    %v8385 = vld [vmem:[%s8374 + $0x28] sm:$0xf]
    %v8386 = vld [vmem:[%s8374 + $0x2c] sm:$0xf]
    %v8387 = vld [vmem:[%s8374 + $0x30] sm:$0xf]
    %v8388 = vld [vmem:[%s8374 + $0x34] sm:$0xf]
    %v8389 = vld [vmem:[%s8374 + $0x38] sm:$0xf]
    %v8390 = vld [vmem:[%s8374 + $0x3c] sm:$0xf]
    %v8393 = vunpack.c.l.b16 %v8372
    %v8394 = vunpack.c.l.b16 %v8373
    %v8395 = vrot.slane %v8394, 7
    %v8396 = vsel %vm7828, %v8395, %v8393
    %v8397 = vpack.c.b16 %v8396, %v8396
    %v8415 = vunpack.c.l.b16 %v8375
    %v8416 = vunpack.c.l.b16 %v8376
    %v8417 = vunpack.c.l.b16 %v8377
    %v8418 = vunpack.c.l.b16 %v8378
    %v8419 = vunpack.c.l.b16 %v8379
    %v8420 = vunpack.c.l.b16 %v8380
    %v8421 = vunpack.c.l.b16 %v8381
    %v8422 = vunpack.c.l.b16 %v8382
    %v8423 = vunpack.c.l.b16 %v8383
    %v8424 = vunpack.c.l.b16 %v8384
    %v8425 = vunpack.c.l.b16 %v8385
    %v8426 = vunpack.c.l.b16 %v8386
    %v8427 = vunpack.c.l.b16 %v8387
    %v8428 = vunpack.c.l.b16 %v8388
    %v8429 = vunpack.c.l.b16 %v8389
    %v8430 = vunpack.c.l.b16 %v8390
    %v8431 = vpack.c.b16 %v8416, %v8415
    %v8432 = vpack.c.b16 %v8418, %v8417
    %v8433 = vpack.c.b16 %v8420, %v8419
    %v8434 = vpack.c.b16 %v8422, %v8421
    %v8435 = vpack.c.b16 %v8424, %v8423
    %v8436 = vpack.c.b16 %v8426, %v8425
    %v8437 = vpack.c.b16 %v8428, %v8427
    %v8438 = vpack.c.b16 %v8430, %v8429
    %8447 = vmatprep.subr.bf16.mxu0 0
    %8448 = vmatpush1.bf16.msra.mxu0 %v8431
    %8449 = vmatprep.subr.bf16.mxu0 0
    %8450 = vmatpush1.bf16.msra.mxu0 %v8432
    %8451 = vmatprep.subr.bf16.mxu0 0
    %8452 = vmatpush1.bf16.msra.mxu0 %v8433
    %8453 = vmatprep.subr.bf16.mxu0 0
    %8454 = vmatpush1.bf16.msra.mxu0 %v8434
    %8455 = vmatprep.subr.bf16.mxu0 0
    %8456 = vmatpush1.bf16.msra.mxu0 %v8435
    %8457 = vmatprep.subr.bf16.mxu0 0
    %8458 = vmatpush1.bf16.msra.mxu0 %v8436
    %8459 = vmatprep.subr.bf16.mxu0 0
    %8460 = vmatpush1.bf16.msra.mxu0 %v8437
    %8461 = vmatprep.subr.bf16.mxu0 0
    %8462 = vmatpush1.bf16.msra.mxu0 %v8438
    %8463 = vmatprep.subr.bf16.mxu0 0
    %8464 = vmatpush1.bf16.msra.mxu0 0
    %8465 = vmatprep.subr.bf16.mxu0 0
    %8466 = vmatpush1.bf16.msra.mxu0 0
    %8467 = vmatprep.subr.bf16.mxu0 0
    %8468 = vmatpush1.bf16.msra.mxu0 0
    %8469 = vmatprep.subr.bf16.mxu0 0
    %8470 = vmatpush1.bf16.msra.mxu0 0
    %8471 = vmatprep.subr.bf16.mxu0 0
    %8472 = vmatpush1.bf16.msra.mxu0 0
    %8473 = vmatprep.subr.bf16.mxu0 0
    %8474 = vmatpush1.bf16.msra.mxu0 0
    %8475 = vmatprep.subr.bf16.mxu0 0
    %8476 = vmatpush1.bf16.msra.mxu0 0
    %8477 = vmatprep.subr.bf16.mxu0 0
    %8478 = vmatpush1.bf16.msra.mxu0 0
    %8479 = vmatprep.mubr.bf16.mxu0 0
    %8480 = vmatmul.mubr.bf16.gmra.mrb[0].mxu0 %v8397
    %v8481 = vpop.f32.mrb[0].mxu0
    %v8482 = vadd.f32 0.0, %v8481
    %v8483 = vpop.f32.mrb[0].mxu0
    %v8484 = vpop.f32.mrb[0].mxu0
    %v8485 = vpop.f32.mrb[0].mxu0
    %8486 = vdwg.mxu0
    %v8487 = vadd.f32 %v8369, %v8482
    %v8488 = vld [vmem:[%s7714 + $0x2] sm:$0x1]
    %v8489 = vld [vmem:[%s7714 + $0x12] sm:$0x1]
    %v8490 = vpack.c.bf16 %v8488, %v8488
    %v8491 = vpack.c.bf16 %v8489, %v8489
    %s8492 = scalar_lea.vmem [#allocation7], 384
    %v8493 = vld [vmem:[%s8492] sm:$0xf]
    %v8494 = vld [vmem:[%s8492 + $0x4] sm:$0xf]
    %v8495 = vld [vmem:[%s8492 + $0x8] sm:$0xf]
    %v8496 = vld [vmem:[%s8492 + $0xc] sm:$0xf]
    %v8497 = vld [vmem:[%s8492 + $0x10] sm:$0xf]
    %v8498 = vld [vmem:[%s8492 + $0x14] sm:$0xf]
    %v8499 = vld [vmem:[%s8492 + $0x18] sm:$0xf]
    %v8500 = vld [vmem:[%s8492 + $0x1c] sm:$0xf]
    %v8501 = vld [vmem:[%s8492 + $0x20] sm:$0xf]
    %v8502 = vld [vmem:[%s8492 + $0x24] sm:$0xf]
    %v8503 = vld [vmem:[%s8492 + $0x28] sm:$0xf]
    %v8504 = vld [vmem:[%s8492 + $0x2c] sm:$0xf]
    %v8505 = vld [vmem:[%s8492 + $0x30] sm:$0xf]
    %v8506 = vld [vmem:[%s8492 + $0x34] sm:$0xf]
    %v8507 = vld [vmem:[%s8492 + $0x38] sm:$0xf]
    %v8508 = vld [vmem:[%s8492 + $0x3c] sm:$0xf]
    %v8511 = vunpack.c.l.b16 %v8490
    %v8512 = vunpack.c.l.b16 %v8491
    %v8513 = vrot.slane %v8512, 7
    %v8514 = vsel %vm7828, %v8513, %v8511
    %v8515 = vpack.c.b16 %v8514, %v8514
    %v8533 = vunpack.c.l.b16 %v8493
    %v8534 = vunpack.c.l.b16 %v8494
    %v8535 = vunpack.c.l.b16 %v8495
    %v8536 = vunpack.c.l.b16 %v8496
    %v8537 = vunpack.c.l.b16 %v8497
    %v8538 = vunpack.c.l.b16 %v8498
    %v8539 = vunpack.c.l.b16 %v8499
    %v8540 = vunpack.c.l.b16 %v8500
    %v8541 = vunpack.c.l.b16 %v8501
    %v8542 = vunpack.c.l.b16 %v8502
    %v8543 = vunpack.c.l.b16 %v8503
    %v8544 = vunpack.c.l.b16 %v8504
    %v8545 = vunpack.c.l.b16 %v8505
    %v8546 = vunpack.c.l.b16 %v8506
    %v8547 = vunpack.c.l.b16 %v8507
    %v8548 = vunpack.c.l.b16 %v8508
    %v8549 = vpack.c.b16 %v8534, %v8533
    %v8550 = vpack.c.b16 %v8536, %v8535
    %v8551 = vpack.c.b16 %v8538, %v8537
    %v8552 = vpack.c.b16 %v8540, %v8539
    %v8553 = vpack.c.b16 %v8542, %v8541
    %v8554 = vpack.c.b16 %v8544, %v8543
    %v8555 = vpack.c.b16 %v8546, %v8545
    %v8556 = vpack.c.b16 %v8548, %v8547
    %8565 = vmatprep.subr.bf16.mxu0 0
    %8566 = vmatpush1.bf16.msra.mxu0 %v8549
    %8567 = vmatprep.subr.bf16.mxu0 0
    %8568 = vmatpush1.bf16.msra.mxu0 %v8550
    %8569 = vmatprep.subr.bf16.mxu0 0
    %8570 = vmatpush1.bf16.msra.mxu0 %v8551
    %8571 = vmatprep.subr.bf16.mxu0 0
    %8572 = vmatpush1.bf16.msra.mxu0 %v8552
    %8573 = vmatprep.subr.bf16.mxu0 0
    %8574 = vmatpush1.bf16.msra.mxu0 %v8553
    %8575 = vmatprep.subr.bf16.mxu0 0
    %8576 = vmatpush1.bf16.msra.mxu0 %v8554
    %8577 = vmatprep.subr.bf16.mxu0 0
    %8578 = vmatpush1.bf16.msra.mxu0 %v8555
    %8579 = vmatprep.subr.bf16.mxu0 0
    %8580 = vmatpush1.bf16.msra.mxu0 %v8556
    %8581 = vmatprep.subr.bf16.mxu0 0
    %8582 = vmatpush1.bf16.msra.mxu0 0
    %8583 = vmatprep.subr.bf16.mxu0 0
    %8584 = vmatpush1.bf16.msra.mxu0 0
    %8585 = vmatprep.subr.bf16.mxu0 0
    %8586 = vmatpush1.bf16.msra.mxu0 0
    %8587 = vmatprep.subr.bf16.mxu0 0
    %8588 = vmatpush1.bf16.msra.mxu0 0
    %8589 = vmatprep.subr.bf16.mxu0 0
    %8590 = vmatpush1.bf16.msra.mxu0 0
    %8591 = vmatprep.subr.bf16.mxu0 0
    %8592 = vmatpush1.bf16.msra.mxu0 0
    %8593 = vmatprep.subr.bf16.mxu0 0
    %8594 = vmatpush1.bf16.msra.mxu0 0
    %8595 = vmatprep.subr.bf16.mxu0 0
    %8596 = vmatpush1.bf16.msra.mxu0 0
    %8597 = vmatprep.mubr.bf16.mxu0 0
    %8598 = vmatmul.mubr.bf16.gmra.mrb[0].mxu0 %v8515
    %v8599 = vpop.f32.mrb[0].mxu0
    %v8600 = vadd.f32 0.0, %v8599
    %v8601 = vpop.f32.mrb[0].mxu0
    %v8602 = vpop.f32.mrb[0].mxu0
    %v8603 = vpop.f32.mrb[0].mxu0
    %8604 = vdwg.mxu0
    %v8605 = vadd.f32 %v8487, %v8600
    %v8606 = vld [vmem:[%s7714 + $0x3] sm:$0x1]
    %v8607 = vld [vmem:[%s7714 + $0x13] sm:$0x1]
    %v8608 = vpack.c.bf16 %v8606, %v8606
    %v8609 = vpack.c.bf16 %v8607, %v8607
    %s8610 = scalar_lea.vmem [#allocation7], 448
    %v8611 = vld [vmem:[%s8610] sm:$0xf]
    %v8612 = vld [vmem:[%s8610 + $0x4] sm:$0xf]
    %v8613 = vld [vmem:[%s8610 + $0x8] sm:$0xf]
    %v8614 = vld [vmem:[%s8610 + $0xc] sm:$0xf]
    %v8615 = vld [vmem:[%s8610 + $0x10] sm:$0xf]
    %v8616 = vld [vmem:[%s8610 + $0x14] sm:$0xf]
    %v8617 = vld [vmem:[%s8610 + $0x18] sm:$0xf]
    %v8618 = vld [vmem:[%s8610 + $0x1c] sm:$0xf]
    %v8619 = vld [vmem:[%s8610 + $0x20] sm:$0xf]
    %v8620 = vld [vmem:[%s8610 + $0x24] sm:$0xf]
    %v8621 = vld [vmem:[%s8610 + $0x28] sm:$0xf]
    %v8622 = vld [vmem:[%s8610 + $0x2c] sm:$0xf]
    %v8623 = vld [vmem:[%s8610 + $0x30] sm:$0xf]
    %v8624 = vld [vmem:[%s8610 + $0x34] sm:$0xf]
    %v8625 = vld [vmem:[%s8610 + $0x38] sm:$0xf]
    %v8626 = vld [vmem:[%s8610 + $0x3c] sm:$0xf]
    %v8629 = vunpack.c.l.b16 %v8608
    %v8630 = vunpack.c.l.b16 %v8609
    %v8631 = vrot.slane %v8630, 7
    %v8632 = vsel %vm7828, %v8631, %v8629
    %v8633 = vpack.c.b16 %v8632, %v8632
    %v8651 = vunpack.c.l.b16 %v8611
    %v8652 = vunpack.c.l.b16 %v8612
    %v8653 = vunpack.c.l.b16 %v8613
    %v8654 = vunpack.c.l.b16 %v8614
    %v8655 = vunpack.c.l.b16 %v8615
    %v8656 = vunpack.c.l.b16 %v8616
    %v8657 = vunpack.c.l.b16 %v8617
    %v8658 = vunpack.c.l.b16 %v8618
    %v8659 = vunpack.c.l.b16 %v8619
    %v8660 = vunpack.c.l.b16 %v8620
    %v8661 = vunpack.c.l.b16 %v8621
    %v8662 = vunpack.c.l.b16 %v8622
    %v8663 = vunpack.c.l.b16 %v8623
    %v8664 = vunpack.c.l.b16 %v8624
    %v8665 = vunpack.c.l.b16 %v8625
    %v8666 = vunpack.c.l.b16 %v8626
    %v8667 = vpack.c.b16 %v8652, %v8651
    %v8668 = vpack.c.b16 %v8654, %v8653
    %v8669 = vpack.c.b16 %v8656, %v8655
    %v8670 = vpack.c.b16 %v8658, %v8657
    %v8671 = vpack.c.b16 %v8660, %v8659
    %v8672 = vpack.c.b16 %v8662, %v8661
    %v8673 = vpack.c.b16 %v8664, %v8663
    %v8674 = vpack.c.b16 %v8666, %v8665
    %8683 = vmatprep.subr.bf16.mxu0 0
    %8684 = vmatpush1.bf16.msra.mxu0 %v8667
    %8685 = vmatprep.subr.bf16.mxu0 0
    %8686 = vmatpush1.bf16.msra.mxu0 %v8668
    %8687 = vmatprep.subr.bf16.mxu0 0
    %8688 = vmatpush1.bf16.msra.mxu0 %v8669
    %8689 = vmatprep.subr.bf16.mxu0 0
    %8690 = vmatpush1.bf16.msra.mxu0 %v8670
    %8691 = vmatprep.subr.bf16.mxu0 0
    %8692 = vmatpush1.bf16.msra.mxu0 %v8671
    %8693 = vmatprep.subr.bf16.mxu0 0
    %8694 = vmatpush1.bf16.msra.mxu0 %v8672
    %8695 = vmatprep.subr.bf16.mxu0 0
    %8696 = vmatpush1.bf16.msra.mxu0 %v8673
    %8697 = vmatprep.subr.bf16.mxu0 0
    %8698 = vmatpush1.bf16.msra.mxu0 %v8674
    %8699 = vmatprep.subr.bf16.mxu0 0
    %8700 = vmatpush1.bf16.msra.mxu0 0
    %8701 = vmatprep.subr.bf16.mxu0 0
    %8702 = vmatpush1.bf16.msra.mxu0 0
    %8703 = vmatprep.subr.bf16.mxu0 0
    %8704 = vmatpush1.bf16.msra.mxu0 0
    %8705 = vmatprep.subr.bf16.mxu0 0
    %8706 = vmatpush1.bf16.msra.mxu0 0
    %8707 = vmatprep.subr.bf16.mxu0 0
    %8708 = vmatpush1.bf16.msra.mxu0 0
    %8709 = vmatprep.subr.bf16.mxu0 0
    %8710 = vmatpush1.bf16.msra.mxu0 0
    %8711 = vmatprep.subr.bf16.mxu0 0
    %8712 = vmatpush1.bf16.msra.mxu0 0
    %8713 = vmatprep.subr.bf16.mxu0 0
    %8714 = vmatpush1.bf16.msra.mxu0 0
    %8715 = vmatprep.mubr.bf16.mxu0 0
    %8716 = vmatmul.mubr.bf16.gmra.mrb[0].mxu0 %v8633
    %v8717 = vpop.f32.mrb[0].mxu0
    %v8718 = vadd.f32 0.0, %v8717
    %v8719 = vpop.f32.mrb[0].mxu0
    %v8720 = vpop.f32.mrb[0].mxu0
    %v8721 = vpop.f32.mrb[0].mxu0
    %8722 = vdwg.mxu0
    %v8723 = vadd.f32 %v8605, %v8718
    %v8724 = vld [vmem:[%s7725] sm:$0x1]
    %v8725 = vld [vmem:[%s7725 + $0x10] sm:$0x1]
    %v8726 = vpack.c.bf16 %v8724, %v8724
    %v8727 = vpack.c.bf16 %v8725, %v8725
    %s8728 = scalar_lea.vmem [#allocation7], 512
    %v8729 = vld [vmem:[%s8728] sm:$0xf]
    %v8730 = vld [vmem:[%s8728 + $0x4] sm:$0xf]
    %v8731 = vld [vmem:[%s8728 + $0x8] sm:$0xf]
    %v8732 = vld [vmem:[%s8728 + $0xc] sm:$0xf]
    %v8733 = vld [vmem:[%s8728 + $0x10] sm:$0xf]
    %v8734 = vld [vmem:[%s8728 + $0x14] sm:$0xf]
    %v8735 = vld [vmem:[%s8728 + $0x18] sm:$0xf]
    %v8736 = vld [vmem:[%s8728 + $0x1c] sm:$0xf]
    %v8737 = vld [vmem:[%s8728 + $0x20] sm:$0xf]
    %v8738 = vld [vmem:[%s8728 + $0x24] sm:$0xf]
    %v8739 = vld [vmem:[%s8728 + $0x28] sm:$0xf]
    %v8740 = vld [vmem:[%s8728 + $0x2c] sm:$0xf]
    %v8741 = vld [vmem:[%s8728 + $0x30] sm:$0xf]
    %v8742 = vld [vmem:[%s8728 + $0x34] sm:$0xf]
    %v8743 = vld [vmem:[%s8728 + $0x38] sm:$0xf]
    %v8744 = vld [vmem:[%s8728 + $0x3c] sm:$0xf]
    %v8747 = vunpack.c.l.b16 %v8726
    %v8748 = vunpack.c.l.b16 %v8727
    %v8749 = vrot.slane %v8748, 7
    %v8750 = vsel %vm7828, %v8749, %v8747
    %v8751 = vpack.c.b16 %v8750, %v8750
    %v8769 = vunpack.c.l.b16 %v8729
    %v8770 = vunpack.c.l.b16 %v8730
    %v8771 = vunpack.c.l.b16 %v8731
    %v8772 = vunpack.c.l.b16 %v8732
    %v8773 = vunpack.c.l.b16 %v8733
    %v8774 = vunpack.c.l.b16 %v8734
    %v8775 = vunpack.c.l.b16 %v8735
    %v8776 = vunpack.c.l.b16 %v8736
    %v8777 = vunpack.c.l.b16 %v8737
    %v8778 = vunpack.c.l.b16 %v8738
    %v8779 = vunpack.c.l.b16 %v8739
    %v8780 = vunpack.c.l.b16 %v8740
    %v8781 = vunpack.c.l.b16 %v8741
    %v8782 = vunpack.c.l.b16 %v8742
    %v8783 = vunpack.c.l.b16 %v8743
    %v8784 = vunpack.c.l.b16 %v8744
    %v8785 = vpack.c.b16 %v8770, %v8769
    %v8786 = vpack.c.b16 %v8772, %v8771
    %v8787 = vpack.c.b16 %v8774, %v8773
    %v8788 = vpack.c.b16 %v8776, %v8775
    %v8789 = vpack.c.b16 %v8778, %v8777
    %v8790 = vpack.c.b16 %v8780, %v8779
    %v8791 = vpack.c.b16 %v8782, %v8781
    %v8792 = vpack.c.b16 %v8784, %v8783
    %8801 = vmatprep.subr.bf16.mxu0 0
    %8802 = vmatpush1.bf16.msra.mxu0 %v8785
    %8803 = vmatprep.subr.bf16.mxu0 0
    %8804 = vmatpush1.bf16.msra.mxu0 %v8786
    %8805 = vmatprep.subr.bf16.mxu0 0
    %8806 = vmatpush1.bf16.msra.mxu0 %v8787
    %8807 = vmatprep.subr.bf16.mxu0 0
    %8808 = vmatpush1.bf16.msra.mxu0 %v8788
    %8809 = vmatprep.subr.bf16.mxu0 0
    %8810 = vmatpush1.bf16.msra.mxu0 %v8789
    %8811 = vmatprep.subr.bf16.mxu0 0
    %8812 = vmatpush1.bf16.msra.mxu0 %v8790
    %8813 = vmatprep.subr.bf16.mxu0 0
    %8814 = vmatpush1.bf16.msra.mxu0 %v8791
    %8815 = vmatprep.subr.bf16.mxu0 0
    %8816 = vmatpush1.bf16.msra.mxu0 %v8792
    %8817 = vmatprep.subr.bf16.mxu0 0
    %8818 = vmatpush1.bf16.msra.mxu0 0
    %8819 = vmatprep.subr.bf16.mxu0 0
    %8820 = vmatpush1.bf16.msra.mxu0 0
    %8821 = vmatprep.subr.bf16.mxu0 0
    %8822 = vmatpush1.bf16.msra.mxu0 0
    %8823 = vmatprep.subr.bf16.mxu0 0
    %8824 = vmatpush1.bf16.msra.mxu0 0
    %8825 = vmatprep.subr.bf16.mxu0 0
    %8826 = vmatpush1.bf16.msra.mxu0 0
    %8827 = vmatprep.subr.bf16.mxu0 0
    %8828 = vmatpush1.bf16.msra.mxu0 0
    %8829 = vmatprep.subr.bf16.mxu0 0
    %8830 = vmatpush1.bf16.msra.mxu0 0
    %8831 = vmatprep.subr.bf16.mxu0 0
    %8832 = vmatpush1.bf16.msra.mxu0 0
    %8833 = vmatprep.mubr.bf16.mxu0 0
    %8834 = vmatmul.mubr.bf16.gmra.mrb[0].mxu0 %v8751
    %v8835 = vpop.f32.mrb[0].mxu0
    %v8836 = vadd.f32 0.0, %v8835
    %v8837 = vpop.f32.mrb[0].mxu0
    %v8838 = vpop.f32.mrb[0].mxu0
    %v8839 = vpop.f32.mrb[0].mxu0
    %8840 = vdwg.mxu0
    %v8841 = vadd.f32 %v8723, %v8836
    %v8842 = vld [vmem:[%s7725 + $0x1] sm:$0x1]
    %v8843 = vld [vmem:[%s7725 + $0x11] sm:$0x1]
    %v8844 = vpack.c.bf16 %v8842, %v8842
    %v8845 = vpack.c.bf16 %v8843, %v8843
    %s8846 = scalar_lea.vmem [#allocation7], 576
    %v8847 = vld [vmem:[%s8846] sm:$0xf]
    %v8848 = vld [vmem:[%s8846 + $0x4] sm:$0xf]
    %v8849 = vld [vmem:[%s8846 + $0x8] sm:$0xf]
    %v8850 = vld [vmem:[%s8846 + $0xc] sm:$0xf]
    %v8851 = vld [vmem:[%s8846 + $0x10] sm:$0xf]
    %v8852 = vld [vmem:[%s8846 + $0x14] sm:$0xf]
    %v8853 = vld [vmem:[%s8846 + $0x18] sm:$0xf]
    %v8854 = vld [vmem:[%s8846 + $0x1c] sm:$0xf]
    %v8855 = vld [vmem:[%s8846 + $0x20] sm:$0xf]
    %v8856 = vld [vmem:[%s8846 + $0x24] sm:$0xf]
    %v8857 = vld [vmem:[%s8846 + $0x28] sm:$0xf]
    %v8858 = vld [vmem:[%s8846 + $0x2c] sm:$0xf]
    %v8859 = vld [vmem:[%s8846 + $0x30] sm:$0xf]
    %v8860 = vld [vmem:[%s8846 + $0x34] sm:$0xf]
    %v8861 = vld [vmem:[%s8846 + $0x38] sm:$0xf]
    %v8862 = vld [vmem:[%s8846 + $0x3c] sm:$0xf]
    %v8865 = vunpack.c.l.b16 %v8844
    %v8866 = vunpack.c.l.b16 %v8845
    %v8867 = vrot.slane %v8866, 7
    %v8868 = vsel %vm7828, %v8867, %v8865
    %v8869 = vpack.c.b16 %v8868, %v8868
    %v8887 = vunpack.c.l.b16 %v8847
    %v8888 = vunpack.c.l.b16 %v8848
    %v8889 = vunpack.c.l.b16 %v8849
    %v8890 = vunpack.c.l.b16 %v8850
    %v8891 = vunpack.c.l.b16 %v8851
    %v8892 = vunpack.c.l.b16 %v8852
    %v8893 = vunpack.c.l.b16 %v8853
    %v8894 = vunpack.c.l.b16 %v8854
    %v8895 = vunpack.c.l.b16 %v8855
    %v8896 = vunpack.c.l.b16 %v8856
    %v8897 = vunpack.c.l.b16 %v8857
    %v8898 = vunpack.c.l.b16 %v8858
    %v8899 = vunpack.c.l.b16 %v8859
    %v8900 = vunpack.c.l.b16 %v8860
    %v8901 = vunpack.c.l.b16 %v8861
    %v8902 = vunpack.c.l.b16 %v8862
    %v8903 = vpack.c.b16 %v8888, %v8887
    %v8904 = vpack.c.b16 %v8890, %v8889
    %v8905 = vpack.c.b16 %v8892, %v8891
    %v8906 = vpack.c.b16 %v8894, %v8893
    %v8907 = vpack.c.b16 %v8896, %v8895
    %v8908 = vpack.c.b16 %v8898, %v8897
    %v8909 = vpack.c.b16 %v8900, %v8899
    %v8910 = vpack.c.b16 %v8902, %v8901
    %8919 = vmatprep.subr.bf16.mxu0 0
    %8920 = vmatpush1.bf16.msra.mxu0 %v8903
    %8921 = vmatprep.subr.bf16.mxu0 0
    %8922 = vmatpush1.bf16.msra.mxu0 %v8904
    %8923 = vmatprep.subr.bf16.mxu0 0
    %8924 = vmatpush1.bf16.msra.mxu0 %v8905
    %8925 = vmatprep.subr.bf16.mxu0 0
    %8926 = vmatpush1.bf16.msra.mxu0 %v8906
    %8927 = vmatprep.subr.bf16.mxu0 0
    %8928 = vmatpush1.bf16.msra.mxu0 %v8907
    %8929 = vmatprep.subr.bf16.mxu0 0
    %8930 = vmatpush1.bf16.msra.mxu0 %v8908
    %8931 = vmatprep.subr.bf16.mxu0 0
    %8932 = vmatpush1.bf16.msra.mxu0 %v8909
    %8933 = vmatprep.subr.bf16.mxu0 0
    %8934 = vmatpush1.bf16.msra.mxu0 %v8910
    %8935 = vmatprep.subr.bf16.mxu0 0
    %8936 = vmatpush1.bf16.msra.mxu0 0
    %8937 = vmatprep.subr.bf16.mxu0 0
    %8938 = vmatpush1.bf16.msra.mxu0 0
    %8939 = vmatprep.subr.bf16.mxu0 0
    %8940 = vmatpush1.bf16.msra.mxu0 0
    %8941 = vmatprep.subr.bf16.mxu0 0
    %8942 = vmatpush1.bf16.msra.mxu0 0
    %8943 = vmatprep.subr.bf16.mxu0 0
    %8944 = vmatpush1.bf16.msra.mxu0 0
    %8945 = vmatprep.subr.bf16.mxu0 0
    %8946 = vmatpush1.bf16.msra.mxu0 0
    %8947 = vmatprep.subr.bf16.mxu0 0
    %8948 = vmatpush1.bf16.msra.mxu0 0
    %8949 = vmatprep.subr.bf16.mxu0 0
    %8950 = vmatpush1.bf16.msra.mxu0 0
    %8951 = vmatprep.mubr.bf16.mxu0 0
    %8952 = vmatmul.mubr.bf16.gmra.mrb[0].mxu0 %v8869
    %v8953 = vpop.f32.mrb[0].mxu0
    %v8954 = vadd.f32 0.0, %v8953
    %v8955 = vpop.f32.mrb[0].mxu0
    %v8956 = vpop.f32.mrb[0].mxu0
    %v8957 = vpop.f32.mrb[0].mxu0
    %8958 = vdwg.mxu0
    %v8959 = vadd.f32 %v8841, %v8954
    %v8960 = vld [vmem:[%s7725 + $0x2] sm:$0x1]
    %v8961 = vld [vmem:[%s7725 + $0x12] sm:$0x1]
    %v8962 = vpack.c.bf16 %v8960, %v8960
    %v8963 = vpack.c.bf16 %v8961, %v8961
    %s8964 = scalar_lea.vmem [#allocation7], 640
    %v8965 = vld [vmem:[%s8964] sm:$0xf]
    %v8966 = vld [vmem:[%s8964 + $0x4] sm:$0xf]
    %v8967 = vld [vmem:[%s8964 + $0x8] sm:$0xf]
    %v8968 = vld [vmem:[%s8964 + $0xc] sm:$0xf]
    %v8969 = vld [vmem:[%s8964 + $0x10] sm:$0xf]
    %v8970 = vld [vmem:[%s8964 + $0x14] sm:$0xf]
    %v8971 = vld [vmem:[%s8964 + $0x18] sm:$0xf]
    %v8972 = vld [vmem:[%s8964 + $0x1c] sm:$0xf]
    %v8973 = vld [vmem:[%s8964 + $0x20] sm:$0xf]
    %v8974 = vld [vmem:[%s8964 + $0x24] sm:$0xf]
    %v8975 = vld [vmem:[%s8964 + $0x28] sm:$0xf]
    %v8976 = vld [vmem:[%s8964 + $0x2c] sm:$0xf]
    %v8977 = vld [vmem:[%s8964 + $0x30] sm:$0xf]
    %v8978 = vld [vmem:[%s8964 + $0x34] sm:$0xf]
    %v8979 = vld [vmem:[%s8964 + $0x38] sm:$0xf]
    %v8980 = vld [vmem:[%s8964 + $0x3c] sm:$0xf]
    %v8983 = vunpack.c.l.b16 %v8962
    %v8984 = vunpack.c.l.b16 %v8963
    %v8985 = vrot.slane %v8984, 7
    %v8986 = vsel %vm7828, %v8985, %v8983
    %v8987 = vpack.c.b16 %v8986, %v8986
    %v9005 = vunpack.c.l.b16 %v8965
    %v9006 = vunpack.c.l.b16 %v8966
    %v9007 = vunpack.c.l.b16 %v8967
    %v9008 = vunpack.c.l.b16 %v8968
    %v9009 = vunpack.c.l.b16 %v8969
    %v9010 = vunpack.c.l.b16 %v8970
    %v9011 = vunpack.c.l.b16 %v8971
    %v9012 = vunpack.c.l.b16 %v8972
    %v9013 = vunpack.c.l.b16 %v8973
    %v9014 = vunpack.c.l.b16 %v8974
    %v9015 = vunpack.c.l.b16 %v8975
    %v9016 = vunpack.c.l.b16 %v8976
    %v9017 = vunpack.c.l.b16 %v8977
    %v9018 = vunpack.c.l.b16 %v8978
    %v9019 = vunpack.c.l.b16 %v8979
    %v9020 = vunpack.c.l.b16 %v8980
    %v9021 = vpack.c.b16 %v9006, %v9005
    %v9022 = vpack.c.b16 %v9008, %v9007
    %v9023 = vpack.c.b16 %v9010, %v9009
    %v9024 = vpack.c.b16 %v9012, %v9011
    %v9025 = vpack.c.b16 %v9014, %v9013
    %v9026 = vpack.c.b16 %v9016, %v9015
    %v9027 = vpack.c.b16 %v9018, %v9017
    %v9028 = vpack.c.b16 %v9020, %v9019
    %9037 = vmatprep.subr.bf16.mxu0 0
    %9038 = vmatpush1.bf16.msra.mxu0 %v9021
    %9039 = vmatprep.subr.bf16.mxu0 0
    %9040 = vmatpush1.bf16.msra.mxu0 %v9022
    %9041 = vmatprep.subr.bf16.mxu0 0
    %9042 = vmatpush1.bf16.msra.mxu0 %v9023
    %9043 = vmatprep.subr.bf16.mxu0 0
    %9044 = vmatpush1.bf16.msra.mxu0 %v9024
    %9045 = vmatprep.subr.bf16.mxu0 0
    %9046 = vmatpush1.bf16.msra.mxu0 %v9025
    %9047 = vmatprep.subr.bf16.mxu0 0
    %9048 = vmatpush1.bf16.msra.mxu0 %v9026
    %9049 = vmatprep.subr.bf16.mxu0 0
    %9050 = vmatpush1.bf16.msra.mxu0 %v9027
    %9051 = vmatprep.subr.bf16.mxu0 0
    %9052 = vmatpush1.bf16.msra.mxu0 %v9028
    %9053 = vmatprep.subr.bf16.mxu0 0
    %9054 = vmatpush1.bf16.msra.mxu0 0
    %9055 = vmatprep.subr.bf16.mxu0 0
    %9056 = vmatpush1.bf16.msra.mxu0 0
    %9057 = vmatprep.subr.bf16.mxu0 0
    %9058 = vmatpush1.bf16.msra.mxu0 0
    %9059 = vmatprep.subr.bf16.mxu0 0
    %9060 = vmatpush1.bf16.msra.mxu0 0
    %9061 = vmatprep.subr.bf16.mxu0 0
    %9062 = vmatpush1.bf16.msra.mxu0 0
    %9063 = vmatprep.subr.bf16.mxu0 0
    %9064 = vmatpush1.bf16.msra.mxu0 0
    %9065 = vmatprep.subr.bf16.mxu0 0
    %9066 = vmatpush1.bf16.msra.mxu0 0
    %9067 = vmatprep.subr.bf16.mxu0 0
    %9068 = vmatpush1.bf16.msra.mxu0 0
    %9069 = vmatprep.mubr.bf16.mxu0 0
    %9070 = vmatmul.mubr.bf16.gmra.mrb[0].mxu0 %v8987
    %v9071 = vpop.f32.mrb[0].mxu0
    %v9072 = vadd.f32 0.0, %v9071
    %v9073 = vpop.f32.mrb[0].mxu0
    %v9074 = vpop.f32.mrb[0].mxu0
    %v9075 = vpop.f32.mrb[0].mxu0
    %9076 = vdwg.mxu0
    %v9077 = vadd.f32 %v8959, %v9072
    %v9078 = vld [vmem:[%s7725 + $0x3] sm:$0x1]
    %v9079 = vld [vmem:[%s7725 + $0x13] sm:$0x1]
    %v9080 = vpack.c.bf16 %v9078, %v9078
    %v9081 = vpack.c.bf16 %v9079, %v9079
    %s9082 = scalar_lea.vmem [#allocation7], 704
    %v9083 = vld [vmem:[%s9082] sm:$0xf]
    %v9084 = vld [vmem:[%s9082 + $0x4] sm:$0xf]
    %v9085 = vld [vmem:[%s9082 + $0x8] sm:$0xf]
    %v9086 = vld [vmem:[%s9082 + $0xc] sm:$0xf]
    %v9087 = vld [vmem:[%s9082 + $0x10] sm:$0xf]
    %v9088 = vld [vmem:[%s9082 + $0x14] sm:$0xf]
    %v9089 = vld [vmem:[%s9082 + $0x18] sm:$0xf]
    %v9090 = vld [vmem:[%s9082 + $0x1c] sm:$0xf]
    %v9091 = vld [vmem:[%s9082 + $0x20] sm:$0xf]
    %v9092 = vld [vmem:[%s9082 + $0x24] sm:$0xf]
    %v9093 = vld [vmem:[%s9082 + $0x28] sm:$0xf]
    %v9094 = vld [vmem:[%s9082 + $0x2c] sm:$0xf]
    %v9095 = vld [vmem:[%s9082 + $0x30] sm:$0xf]
    %v9096 = vld [vmem:[%s9082 + $0x34] sm:$0xf]
    %v9097 = vld [vmem:[%s9082 + $0x38] sm:$0xf]
    %v9098 = vld [vmem:[%s9082 + $0x3c] sm:$0xf]
    %v9101 = vunpack.c.l.b16 %v9080
    %v9102 = vunpack.c.l.b16 %v9081
    %v9103 = vrot.slane %v9102, 7
    %v9104 = vsel %vm7828, %v9103, %v9101
    %v9105 = vpack.c.b16 %v9104, %v9104
    %v9123 = vunpack.c.l.b16 %v9083
    %v9124 = vunpack.c.l.b16 %v9084
    %v9125 = vunpack.c.l.b16 %v9085
    %v9126 = vunpack.c.l.b16 %v9086
    %v9127 = vunpack.c.l.b16 %v9087
    %v9128 = vunpack.c.l.b16 %v9088
    %v9129 = vunpack.c.l.b16 %v9089
    %v9130 = vunpack.c.l.b16 %v9090
    %v9131 = vunpack.c.l.b16 %v9091
    %v9132 = vunpack.c.l.b16 %v9092
    %v9133 = vunpack.c.l.b16 %v9093
    %v9134 = vunpack.c.l.b16 %v9094
    %v9135 = vunpack.c.l.b16 %v9095
    %v9136 = vunpack.c.l.b16 %v9096
    %v9137 = vunpack.c.l.b16 %v9097
    %v9138 = vunpack.c.l.b16 %v9098
    %v9139 = vpack.c.b16 %v9124, %v9123
    %v9140 = vpack.c.b16 %v9126, %v9125
    %v9141 = vpack.c.b16 %v9128, %v9127
    %v9142 = vpack.c.b16 %v9130, %v9129
    %v9143 = vpack.c.b16 %v9132, %v9131
    %v9144 = vpack.c.b16 %v9134, %v9133
    %v9145 = vpack.c.b16 %v9136, %v9135
    %v9146 = vpack.c.b16 %v9138, %v9137
    %9155 = vmatprep.subr.bf16.mxu0 0
    %9156 = vmatpush1.bf16.msra.mxu0 %v9139
    %9157 = vmatprep.subr.bf16.mxu0 0
    %9158 = vmatpush1.bf16.msra.mxu0 %v9140
    %9159 = vmatprep.subr.bf16.mxu0 0
    %9160 = vmatpush1.bf16.msra.mxu0 %v9141
    %9161 = vmatprep.subr.bf16.mxu0 0
    %9162 = vmatpush1.bf16.msra.mxu0 %v9142
    %9163 = vmatprep.subr.bf16.mxu0 0
    %9164 = vmatpush1.bf16.msra.mxu0 %v9143
    %9165 = vmatprep.subr.bf16.mxu0 0
    %9166 = vmatpush1.bf16.msra.mxu0 %v9144
    %9167 = vmatprep.subr.bf16.mxu0 0
    %9168 = vmatpush1.bf16.msra.mxu0 %v9145
    %9169 = vmatprep.subr.bf16.mxu0 0
    %9170 = vmatpush1.bf16.msra.mxu0 %v9146
    %9171 = vmatprep.subr.bf16.mxu0 0
    %9172 = vmatpush1.bf16.msra.mxu0 0
    %9173 = vmatprep.subr.bf16.mxu0 0
    %9174 = vmatpush1.bf16.msra.mxu0 0
    %9175 = vmatprep.subr.bf16.mxu0 0
    %9176 = vmatpush1.bf16.msra.mxu0 0
    %9177 = vmatprep.subr.bf16.mxu0 0
    %9178 = vmatpush1.bf16.msra.mxu0 0
    %9179 = vmatprep.subr.bf16.mxu0 0
    %9180 = vmatpush1.bf16.msra.mxu0 0
    %9181 = vmatprep.subr.bf16.mxu0 0
    %9182 = vmatpush1.bf16.msra.mxu0 0
    %9183 = vmatprep.subr.bf16.mxu0 0
    %9184 = vmatpush1.bf16.msra.mxu0 0
    %9185 = vmatprep.subr.bf16.mxu0 0
    %9186 = vmatpush1.bf16.msra.mxu0 0
    %9187 = vmatprep.mubr.bf16.mxu0 0
    %9188 = vmatmul.mubr.bf16.gmra.mrb[0].mxu0 %v9105
    %v9189 = vpop.f32.mrb[0].mxu0
    %v9190 = vadd.f32 0.0, %v9189
    %v9191 = vpop.f32.mrb[0].mxu0
    %v9192 = vpop.f32.mrb[0].mxu0
    %v9193 = vpop.f32.mrb[0].mxu0
    %9194 = vdwg.mxu0
    %v9195 = vadd.f32 %v9077, %v9190
    %v9196 = vld [vmem:[%s7736] sm:$0x1]
    %v9197 = vld [vmem:[%s7736 + $0x10] sm:$0x1]
    %v9198 = vpack.c.bf16 %v9196, %v9196
    %v9199 = vpack.c.bf16 %v9197, %v9197
    %s9200 = scalar_lea.vmem [#allocation7], 768
    %v9201 = vld [vmem:[%s9200] sm:$0xf]
    %v9202 = vld [vmem:[%s9200 + $0x4] sm:$0xf]
    %v9203 = vld [vmem:[%s9200 + $0x8] sm:$0xf]
    %v9204 = vld [vmem:[%s9200 + $0xc] sm:$0xf]
    %v9205 = vld [vmem:[%s9200 + $0x10] sm:$0xf]
    %v9206 = vld [vmem:[%s9200 + $0x14] sm:$0xf]
    %v9207 = vld [vmem:[%s9200 + $0x18] sm:$0xf]
    %v9208 = vld [vmem:[%s9200 + $0x1c] sm:$0xf]
    %v9209 = vld [vmem:[%s9200 + $0x20] sm:$0xf]
    %v9210 = vld [vmem:[%s9200 + $0x24] sm:$0xf]
    %v9211 = vld [vmem:[%s9200 + $0x28] sm:$0xf]
    %v9212 = vld [vmem:[%s9200 + $0x2c] sm:$0xf]
    %v9213 = vld [vmem:[%s9200 + $0x30] sm:$0xf]
    %v9214 = vld [vmem:[%s9200 + $0x34] sm:$0xf]
    %v9215 = vld [vmem:[%s9200 + $0x38] sm:$0xf]
    %v9216 = vld [vmem:[%s9200 + $0x3c] sm:$0xf]
    %v9219 = vunpack.c.l.b16 %v9198
    %v9220 = vunpack.c.l.b16 %v9199
    %v9221 = vrot.slane %v9220, 7
    %v9222 = vsel %vm7828, %v9221, %v9219
    %v9223 = vpack.c.b16 %v9222, %v9222
    %v9241 = vunpack.c.l.b16 %v9201
    %v9242 = vunpack.c.l.b16 %v9202
    %v9243 = vunpack.c.l.b16 %v9203
    %v9244 = vunpack.c.l.b16 %v9204
    %v9245 = vunpack.c.l.b16 %v9205
    %v9246 = vunpack.c.l.b16 %v9206
    %v9247 = vunpack.c.l.b16 %v9207
    %v9248 = vunpack.c.l.b16 %v9208
    %v9249 = vunpack.c.l.b16 %v9209
    %v9250 = vunpack.c.l.b16 %v9210
    %v9251 = vunpack.c.l.b16 %v9211
    %v9252 = vunpack.c.l.b16 %v9212
    %v9253 = vunpack.c.l.b16 %v9213
    %v9254 = vunpack.c.l.b16 %v9214
    %v9255 = vunpack.c.l.b16 %v9215
    %v9256 = vunpack.c.l.b16 %v9216
    %v9257 = vpack.c.b16 %v9242, %v9241
    %v9258 = vpack.c.b16 %v9244, %v9243
    %v9259 = vpack.c.b16 %v9246, %v9245
    %v9260 = vpack.c.b16 %v9248, %v9247
    %v9261 = vpack.c.b16 %v9250, %v9249
    %v9262 = vpack.c.b16 %v9252, %v9251
    %v9263 = vpack.c.b16 %v9254, %v9253
    %v9264 = vpack.c.b16 %v9256, %v9255
    %9273 = vmatprep.subr.bf16.mxu0 0
    %9274 = vmatpush1.bf16.msra.mxu0 %v9257
    %9275 = vmatprep.subr.bf16.mxu0 0
    %9276 = vmatpush1.bf16.msra.mxu0 %v9258
    %9277 = vmatprep.subr.bf16.mxu0 0
    %9278 = vmatpush1.bf16.msra.mxu0 %v9259
    %9279 = vmatprep.subr.bf16.mxu0 0
    %9280 = vmatpush1.bf16.msra.mxu0 %v9260
    %9281 = vmatprep.subr.bf16.mxu0 0
    %9282 = vmatpush1.bf16.msra.mxu0 %v9261
    %9283 = vmatprep.subr.bf16.mxu0 0
    %9284 = vmatpush1.bf16.msra.mxu0 %v9262
    %9285 = vmatprep.subr.bf16.mxu0 0
    %9286 = vmatpush1.bf16.msra.mxu0 %v9263
    %9287 = vmatprep.subr.bf16.mxu0 0
    %9288 = vmatpush1.bf16.msra.mxu0 %v9264
    %9289 = vmatprep.subr.bf16.mxu0 0
    %9290 = vmatpush1.bf16.msra.mxu0 0
    %9291 = vmatprep.subr.bf16.mxu0 0
    %9292 = vmatpush1.bf16.msra.mxu0 0
    %9293 = vmatprep.subr.bf16.mxu0 0
    %9294 = vmatpush1.bf16.msra.mxu0 0
    %9295 = vmatprep.subr.bf16.mxu0 0
    %9296 = vmatpush1.bf16.msra.mxu0 0
    %9297 = vmatprep.subr.bf16.mxu0 0
    %9298 = vmatpush1.bf16.msra.mxu0 0
    %9299 = vmatprep.subr.bf16.mxu0 0
    %9300 = vmatpush1.bf16.msra.mxu0 0
    %9301 = vmatprep.subr.bf16.mxu0 0
    %9302 = vmatpush1.bf16.msra.mxu0 0
    %9303 = vmatprep.subr.bf16.mxu0 0
    %9304 = vmatpush1.bf16.msra.mxu0 0
    %9305 = vmatprep.mubr.bf16.mxu0 0
    %9306 = vmatmul.mubr.bf16.gmra.mrb[0].mxu0 %v9223
    %v9307 = vpop.f32.mrb[0].mxu0
    %v9308 = vadd.f32 0.0, %v9307
    %v9309 = vpop.f32.mrb[0].mxu0
    %v9310 = vpop.f32.mrb[0].mxu0
    %v9311 = vpop.f32.mrb[0].mxu0
    %9312 = vdwg.mxu0
    %v9313 = vadd.f32 %v9195, %v9308
    %v9314 = vld [vmem:[%s7736 + $0x1] sm:$0x1]
    %v9315 = vld [vmem:[%s7736 + $0x11] sm:$0x1]
    %v9316 = vpack.c.bf16 %v9314, %v9314
    %v9317 = vpack.c.bf16 %v9315, %v9315
    %s9318 = scalar_lea.vmem [#allocation7], 832
    %v9319 = vld [vmem:[%s9318] sm:$0xf]
    %v9320 = vld [vmem:[%s9318 + $0x4] sm:$0xf]
    %v9321 = vld [vmem:[%s9318 + $0x8] sm:$0xf]
    %v9322 = vld [vmem:[%s9318 + $0xc] sm:$0xf]
    %v9323 = vld [vmem:[%s9318 + $0x10] sm:$0xf]
    %v9324 = vld [vmem:[%s9318 + $0x14] sm:$0xf]
    %v9325 = vld [vmem:[%s9318 + $0x18] sm:$0xf]
    %v9326 = vld [vmem:[%s9318 + $0x1c] sm:$0xf]
    %v9327 = vld [vmem:[%s9318 + $0x20] sm:$0xf]
    %v9328 = vld [vmem:[%s9318 + $0x24] sm:$0xf]
    %v9329 = vld [vmem:[%s9318 + $0x28] sm:$0xf]
    %v9330 = vld [vmem:[%s9318 + $0x2c] sm:$0xf]
    %v9331 = vld [vmem:[%s9318 + $0x30] sm:$0xf]
    %v9332 = vld [vmem:[%s9318 + $0x34] sm:$0xf]
    %v9333 = vld [vmem:[%s9318 + $0x38] sm:$0xf]
    %v9334 = vld [vmem:[%s9318 + $0x3c] sm:$0xf]
    %v9337 = vunpack.c.l.b16 %v9316
    %v9338 = vunpack.c.l.b16 %v9317
    %v9339 = vrot.slane %v9338, 7
    %v9340 = vsel %vm7828, %v9339, %v9337
    %v9341 = vpack.c.b16 %v9340, %v9340
    %v9359 = vunpack.c.l.b16 %v9319
    %v9360 = vunpack.c.l.b16 %v9320
    %v9361 = vunpack.c.l.b16 %v9321
    %v9362 = vunpack.c.l.b16 %v9322
    %v9363 = vunpack.c.l.b16 %v9323
    %v9364 = vunpack.c.l.b16 %v9324
    %v9365 = vunpack.c.l.b16 %v9325
    %v9366 = vunpack.c.l.b16 %v9326
    %v9367 = vunpack.c.l.b16 %v9327
    %v9368 = vunpack.c.l.b16 %v9328
    %v9369 = vunpack.c.l.b16 %v9329
    %v9370 = vunpack.c.l.b16 %v9330
    %v9371 = vunpack.c.l.b16 %v9331
    %v9372 = vunpack.c.l.b16 %v9332
    %v9373 = vunpack.c.l.b16 %v9333
    %v9374 = vunpack.c.l.b16 %v9334
    %v9375 = vpack.c.b16 %v9360, %v9359
    %v9376 = vpack.c.b16 %v9362, %v9361
    %v9377 = vpack.c.b16 %v9364, %v9363
    %v9378 = vpack.c.b16 %v9366, %v9365
    %v9379 = vpack.c.b16 %v9368, %v9367
    %v9380 = vpack.c.b16 %v9370, %v9369
    %v9381 = vpack.c.b16 %v9372, %v9371
    %v9382 = vpack.c.b16 %v9374, %v9373
    %9391 = vmatprep.subr.bf16.mxu0 0
    %9392 = vmatpush1.bf16.msra.mxu0 %v9375
    %9393 = vmatprep.subr.bf16.mxu0 0
    %9394 = vmatpush1.bf16.msra.mxu0 %v9376
    %9395 = vmatprep.subr.bf16.mxu0 0
    %9396 = vmatpush1.bf16.msra.mxu0 %v9377
    %9397 = vmatprep.subr.bf16.mxu0 0
    %9398 = vmatpush1.bf16.msra.mxu0 %v9378
    %9399 = vmatprep.subr.bf16.mxu0 0
    %9400 = vmatpush1.bf16.msra.mxu0 %v9379
    %9401 = vmatprep.subr.bf16.mxu0 0
    %9402 = vmatpush1.bf16.msra.mxu0 %v9380
    %9403 = vmatprep.subr.bf16.mxu0 0
    %9404 = vmatpush1.bf16.msra.mxu0 %v9381
    %9405 = vmatprep.subr.bf16.mxu0 0
    %9406 = vmatpush1.bf16.msra.mxu0 %v9382
    %9407 = vmatprep.subr.bf16.mxu0 0
    %9408 = vmatpush1.bf16.msra.mxu0 0
    %9409 = vmatprep.subr.bf16.mxu0 0
    %9410 = vmatpush1.bf16.msra.mxu0 0
    %9411 = vmatprep.subr.bf16.mxu0 0
    %9412 = vmatpush1.bf16.msra.mxu0 0
    %9413 = vmatprep.subr.bf16.mxu0 0
    %9414 = vmatpush1.bf16.msra.mxu0 0
    %9415 = vmatprep.subr.bf16.mxu0 0
    %9416 = vmatpush1.bf16.msra.mxu0 0
    %9417 = vmatprep.subr.bf16.mxu0 0
    %9418 = vmatpush1.bf16.msra.mxu0 0
    %9419 = vmatprep.subr.bf16.mxu0 0
    %9420 = vmatpush1.bf16.msra.mxu0 0
    %9421 = vmatprep.subr.bf16.mxu0 0
    %9422 = vmatpush1.bf16.msra.mxu0 0
    %9423 = vmatprep.mubr.bf16.mxu0 0
    %9424 = vmatmul.mubr.bf16.gmra.mrb[0].mxu0 %v9341
    %v9425 = vpop.f32.mrb[0].mxu0
    %v9426 = vadd.f32 0.0, %v9425
    %v9427 = vpop.f32.mrb[0].mxu0
    %v9428 = vpop.f32.mrb[0].mxu0
    %v9429 = vpop.f32.mrb[0].mxu0
    %9430 = vdwg.mxu0
    %v9431 = vadd.f32 %v9313, %v9426
    %v9432 = vld [vmem:[%s7736 + $0x2] sm:$0x1]
    %v9433 = vld [vmem:[%s7736 + $0x12] sm:$0x1]
    %v9434 = vpack.c.bf16 %v9432, %v9432
    %v9435 = vpack.c.bf16 %v9433, %v9433
    %s9436 = scalar_lea.vmem [#allocation7], 896
    %v9437 = vld [vmem:[%s9436] sm:$0xf]
    %v9438 = vld [vmem:[%s9436 + $0x4] sm:$0xf]
    %v9439 = vld [vmem:[%s9436 + $0x8] sm:$0xf]
    %v9440 = vld [vmem:[%s9436 + $0xc] sm:$0xf]
    %v9441 = vld [vmem:[%s9436 + $0x10] sm:$0xf]
    %v9442 = vld [vmem:[%s9436 + $0x14] sm:$0xf]
    %v9443 = vld [vmem:[%s9436 + $0x18] sm:$0xf]
    %v9444 = vld [vmem:[%s9436 + $0x1c] sm:$0xf]
    %v9445 = vld [vmem:[%s9436 + $0x20] sm:$0xf]
    %v9446 = vld [vmem:[%s9436 + $0x24] sm:$0xf]
    %v9447 = vld [vmem:[%s9436 + $0x28] sm:$0xf]
    %v9448 = vld [vmem:[%s9436 + $0x2c] sm:$0xf]
    %v9449 = vld [vmem:[%s9436 + $0x30] sm:$0xf]
    %v9450 = vld [vmem:[%s9436 + $0x34] sm:$0xf]
    %v9451 = vld [vmem:[%s9436 + $0x38] sm:$0xf]
    %v9452 = vld [vmem:[%s9436 + $0x3c] sm:$0xf]
    %v9455 = vunpack.c.l.b16 %v9434
    %v9456 = vunpack.c.l.b16 %v9435
    %v9457 = vrot.slane %v9456, 7
    %v9458 = vsel %vm7828, %v9457, %v9455
    %v9459 = vpack.c.b16 %v9458, %v9458
    %v9477 = vunpack.c.l.b16 %v9437
    %v9478 = vunpack.c.l.b16 %v9438
    %v9479 = vunpack.c.l.b16 %v9439
    %v9480 = vunpack.c.l.b16 %v9440
    %v9481 = vunpack.c.l.b16 %v9441
    %v9482 = vunpack.c.l.b16 %v9442
    %v9483 = vunpack.c.l.b16 %v9443
    %v9484 = vunpack.c.l.b16 %v9444
    %v9485 = vunpack.c.l.b16 %v9445
    %v9486 = vunpack.c.l.b16 %v9446
    %v9487 = vunpack.c.l.b16 %v9447
    %v9488 = vunpack.c.l.b16 %v9448
    %v9489 = vunpack.c.l.b16 %v9449
    %v9490 = vunpack.c.l.b16 %v9450
    %v9491 = vunpack.c.l.b16 %v9451
    %v9492 = vunpack.c.l.b16 %v9452
    %v9493 = vpack.c.b16 %v9478, %v9477
    %v9494 = vpack.c.b16 %v9480, %v9479
    %v9495 = vpack.c.b16 %v9482, %v9481
    %v9496 = vpack.c.b16 %v9484, %v9483
    %v9497 = vpack.c.b16 %v9486, %v9485
    %v9498 = vpack.c.b16 %v9488, %v9487
    %v9499 = vpack.c.b16 %v9490, %v9489
    %v9500 = vpack.c.b16 %v9492, %v9491
    %9509 = vmatprep.subr.bf16.mxu0 0
    %9510 = vmatpush1.bf16.msra.mxu0 %v9493
    %9511 = vmatprep.subr.bf16.mxu0 0
    %9512 = vmatpush1.bf16.msra.mxu0 %v9494
    %9513 = vmatprep.subr.bf16.mxu0 0
    %9514 = vmatpush1.bf16.msra.mxu0 %v9495
    %9515 = vmatprep.subr.bf16.mxu0 0
    %9516 = vmatpush1.bf16.msra.mxu0 %v9496
    %9517 = vmatprep.subr.bf16.mxu0 0
    %9518 = vmatpush1.bf16.msra.mxu0 %v9497
    %9519 = vmatprep.subr.bf16.mxu0 0
    %9520 = vmatpush1.bf16.msra.mxu0 %v9498
    %9521 = vmatprep.subr.bf16.mxu0 0
    %9522 = vmatpush1.bf16.msra.mxu0 %v9499
    %9523 = vmatprep.subr.bf16.mxu0 0
    %9524 = vmatpush1.bf16.msra.mxu0 %v9500
    %9525 = vmatprep.subr.bf16.mxu0 0
    %9526 = vmatpush1.bf16.msra.mxu0 0
    %9527 = vmatprep.subr.bf16.mxu0 0
    %9528 = vmatpush1.bf16.msra.mxu0 0
    %9529 = vmatprep.subr.bf16.mxu0 0
    %9530 = vmatpush1.bf16.msra.mxu0 0
    %9531 = vmatprep.subr.bf16.mxu0 0
    %9532 = vmatpush1.bf16.msra.mxu0 0
    %9533 = vmatprep.subr.bf16.mxu0 0
    %9534 = vmatpush1.bf16.msra.mxu0 0
    %9535 = vmatprep.subr.bf16.mxu0 0
    %9536 = vmatpush1.bf16.msra.mxu0 0
    %9537 = vmatprep.subr.bf16.mxu0 0
    %9538 = vmatpush1.bf16.msra.mxu0 0
    %9539 = vmatprep.subr.bf16.mxu0 0
    %9540 = vmatpush1.bf16.msra.mxu0 0
    %9541 = vmatprep.mubr.bf16.mxu0 0
    %9542 = vmatmul.mubr.bf16.gmra.mrb[0].mxu0 %v9459
    %v9543 = vpop.f32.mrb[0].mxu0
    %v9544 = vadd.f32 0.0, %v9543
    %v9545 = vpop.f32.mrb[0].mxu0
    %v9546 = vpop.f32.mrb[0].mxu0
    %v9547 = vpop.f32.mrb[0].mxu0
    %9548 = vdwg.mxu0
    %v9549 = vadd.f32 %v9431, %v9544
    %v9550 = vld [vmem:[%s7736 + $0x3] sm:$0x1]
    %v9551 = vld [vmem:[%s7736 + $0x13] sm:$0x1]
    %v9552 = vpack.c.bf16 %v9550, %v9550
    %v9553 = vpack.c.bf16 %v9551, %v9551
    %s9554 = scalar_lea.vmem [#allocation7], 960
    %v9555 = vld [vmem:[%s9554] sm:$0xf]
    %v9556 = vld [vmem:[%s9554 + $0x4] sm:$0xf]
    %v9557 = vld [vmem:[%s9554 + $0x8] sm:$0xf]
    %v9558 = vld [vmem:[%s9554 + $0xc] sm:$0xf]
    %v9559 = vld [vmem:[%s9554 + $0x10] sm:$0xf]
    %v9560 = vld [vmem:[%s9554 + $0x14] sm:$0xf]
    %v9561 = vld [vmem:[%s9554 + $0x18] sm:$0xf]
    %v9562 = vld [vmem:[%s9554 + $0x1c] sm:$0xf]
    %v9563 = vld [vmem:[%s9554 + $0x20] sm:$0xf]
    %v9564 = vld [vmem:[%s9554 + $0x24] sm:$0xf]
    %v9565 = vld [vmem:[%s9554 + $0x28] sm:$0xf]
    %v9566 = vld [vmem:[%s9554 + $0x2c] sm:$0xf]
    %v9567 = vld [vmem:[%s9554 + $0x30] sm:$0xf]
    %v9568 = vld [vmem:[%s9554 + $0x34] sm:$0xf]
    %v9569 = vld [vmem:[%s9554 + $0x38] sm:$0xf]
    %v9570 = vld [vmem:[%s9554 + $0x3c] sm:$0xf]
    %v9573 = vunpack.c.l.b16 %v9552
    %v9574 = vunpack.c.l.b16 %v9553
    %v9575 = vrot.slane %v9574, 7
    %v9576 = vsel %vm7828, %v9575, %v9573
    %v9577 = vpack.c.b16 %v9576, %v9576
    %v9595 = vunpack.c.l.b16 %v9555
    %v9596 = vunpack.c.l.b16 %v9556
    %v9597 = vunpack.c.l.b16 %v9557
    %v9598 = vunpack.c.l.b16 %v9558
    %v9599 = vunpack.c.l.b16 %v9559
    %v9600 = vunpack.c.l.b16 %v9560
    %v9601 = vunpack.c.l.b16 %v9561
    %v9602 = vunpack.c.l.b16 %v9562
    %v9603 = vunpack.c.l.b16 %v9563
    %v9604 = vunpack.c.l.b16 %v9564
    %v9605 = vunpack.c.l.b16 %v9565
    %v9606 = vunpack.c.l.b16 %v9566
    %v9607 = vunpack.c.l.b16 %v9567
    %v9608 = vunpack.c.l.b16 %v9568
    %v9609 = vunpack.c.l.b16 %v9569
    %v9610 = vunpack.c.l.b16 %v9570
    %v9611 = vpack.c.b16 %v9596, %v9595
    %v9612 = vpack.c.b16 %v9598, %v9597
    %v9613 = vpack.c.b16 %v9600, %v9599
    %v9614 = vpack.c.b16 %v9602, %v9601
    %v9615 = vpack.c.b16 %v9604, %v9603
    %v9616 = vpack.c.b16 %v9606, %v9605
    %v9617 = vpack.c.b16 %v9608, %v9607
    %v9618 = vpack.c.b16 %v9610, %v9609
    %9627 = vmatprep.subr.bf16.mxu0 0
    %9628 = vmatpush1.bf16.msra.mxu0 %v9611
    %9629 = vmatprep.subr.bf16.mxu0 0
    %9630 = vmatpush1.bf16.msra.mxu0 %v9612
    %9631 = vmatprep.subr.bf16.mxu0 0
    %9632 = vmatpush1.bf16.msra.mxu0 %v9613
    %9633 = vmatprep.subr.bf16.mxu0 0
    %9634 = vmatpush1.bf16.msra.mxu0 %v9614
    %9635 = vmatprep.subr.bf16.mxu0 0
    %9636 = vmatpush1.bf16.msra.mxu0 %v9615
    %9637 = vmatprep.subr.bf16.mxu0 0
    %9638 = vmatpush1.bf16.msra.mxu0 %v9616
    %9639 = vmatprep.subr.bf16.mxu0 0
    %9640 = vmatpush1.bf16.msra.mxu0 %v9617
    %9641 = vmatprep.subr.bf16.mxu0 0
    %9642 = vmatpush1.bf16.msra.mxu0 %v9618
    %9643 = vmatprep.subr.bf16.mxu0 0
    %9644 = vmatpush1.bf16.msra.mxu0 0
    %9645 = vmatprep.subr.bf16.mxu0 0
    %9646 = vmatpush1.bf16.msra.mxu0 0
    %9647 = vmatprep.subr.bf16.mxu0 0
    %9648 = vmatpush1.bf16.msra.mxu0 0
    %9649 = vmatprep.subr.bf16.mxu0 0
    %9650 = vmatpush1.bf16.msra.mxu0 0
    %9651 = vmatprep.subr.bf16.mxu0 0
    %9652 = vmatpush1.bf16.msra.mxu0 0
    %9653 = vmatprep.subr.bf16.mxu0 0
    %9654 = vmatpush1.bf16.msra.mxu0 0
    %9655 = vmatprep.subr.bf16.mxu0 0
    %9656 = vmatpush1.bf16.msra.mxu0 0
    %9657 = vmatprep.subr.bf16.mxu0 0
    %9658 = vmatpush1.bf16.msra.mxu0 0
    %9659 = vmatprep.mubr.bf16.mxu0 0
    %9660 = vmatmul.mubr.bf16.gmra.mrb[0].mxu0 %v9577
    %v9661 = vpop.f32.mrb[0].mxu0
    %v9662 = vadd.f32 0.0, %v9661
    %v9663 = vpop.f32.mrb[0].mxu0
    %v9664 = vpop.f32.mrb[0].mxu0
    %v9665 = vpop.f32.mrb[0].mxu0
    %9666 = vdwg.mxu0
    %v9667 = vadd.f32 %v9549, %v9662
    %v9668 = vld [vmem:[%s6] sm:$0x1]
    %v9670 = vlaneseq
    %v9671 = vshrl.u32 %v9670, 7
    %v9672 = vsub.s32 0, %v9671
    %v9673 = vrot.slane %v9668, %v9672
    %v9675 = vadd.f32 %v9667, %v9673
    %v9676 = vmax.f32 %v9675, 0.0
    %v9677 = vpack.c.bf16 %v9676, %v9676
    %v9678 = vld [vmem:[%s7] sm:$0xf]
    %v9679 = vld [vmem:[%s7 + $0x4] sm:$0xf]
    %v9680 = vld [vmem:[%s7 + $0x8] sm:$0xf]
    %v9681 = vld [vmem:[%s7 + $0xc] sm:$0xf]
    %v9682 = vld [vmem:[%s7 + $0x10] sm:$0xf]
    %v9683 = vld [vmem:[%s7 + $0x14] sm:$0xf]
    %v9684 = vld [vmem:[%s7 + $0x18] sm:$0xf]
    %v9685 = vld [vmem:[%s7 + $0x1c] sm:$0xf]
    %v9686 = vld [vmem:[%s7 + $0x20] sm:$0xf]
    %v9687 = vld [vmem:[%s7 + $0x24] sm:$0xf]
    %v9688 = vld [vmem:[%s7 + $0x28] sm:$0xf]
    %v9689 = vld [vmem:[%s7 + $0x2c] sm:$0xf]
    %v9690 = vld [vmem:[%s7 + $0x30] sm:$0xf]
    %v9691 = vld [vmem:[%s7 + $0x34] sm:$0xf]
    %v9692 = vld [vmem:[%s7 + $0x38] sm:$0xf]
    %v9693 = vld [vmem:[%s7 + $0x3c] sm:$0xf]
    %v9694 = vld [vmem:[%s8] sm:$0x1]
    %v9696 = vlaneseq
    %v9697 = vshrl.u32 %v9696, 7
    %v9698 = vsub.s32 0, %v9697
    %v9699 = vrot.slane %v9694, %v9698
    %v9717 = vunpack.c.l.b16 %v9678
    %v9718 = vunpack.c.l.b16 %v9679
    %v9719 = vunpack.c.l.b16 %v9680
    %v9720 = vunpack.c.l.b16 %v9681
    %v9721 = vunpack.c.l.b16 %v9682
    %v9722 = vunpack.c.l.b16 %v9683
    %v9723 = vunpack.c.l.b16 %v9684
    %v9724 = vunpack.c.l.b16 %v9685
    %v9725 = vunpack.c.l.b16 %v9686
    %v9726 = vunpack.c.l.b16 %v9687
    %v9727 = vunpack.c.l.b16 %v9688
    %v9728 = vunpack.c.l.b16 %v9689
    %v9729 = vunpack.c.l.b16 %v9690
    %v9730 = vunpack.c.l.b16 %v9691
    %v9731 = vunpack.c.l.b16 %v9692
    %v9732 = vunpack.c.l.b16 %v9693
    %v9733 = vpack.c.b16 %v9718, %v9717
    %v9734 = vpack.c.b16 %v9720, %v9719
    %v9735 = vpack.c.b16 %v9722, %v9721
    %v9736 = vpack.c.b16 %v9724, %v9723
    %v9737 = vpack.c.b16 %v9726, %v9725
    %v9738 = vpack.c.b16 %v9728, %v9727
    %v9739 = vpack.c.b16 %v9730, %v9729
    %v9740 = vpack.c.b16 %v9732, %v9731
    %9749 = vmatprep.subr.bf16.mxu0 0
    %9750 = vmatpush1.bf16.msra.mxu0 %v9733
    %9751 = vmatprep.subr.bf16.mxu0 0
    %9752 = vmatpush1.bf16.msra.mxu0 %v9734
    %9753 = vmatprep.subr.bf16.mxu0 0
    %9754 = vmatpush1.bf16.msra.mxu0 %v9735
    %9755 = vmatprep.subr.bf16.mxu0 0
    %9756 = vmatpush1.bf16.msra.mxu0 %v9736
    %9757 = vmatprep.subr.bf16.mxu0 0
    %9758 = vmatpush1.bf16.msra.mxu0 %v9737
    %9759 = vmatprep.subr.bf16.mxu0 0
    %9760 = vmatpush1.bf16.msra.mxu0 %v9738
    %9761 = vmatprep.subr.bf16.mxu0 0
    %9762 = vmatpush1.bf16.msra.mxu0 %v9739
    %9763 = vmatprep.subr.bf16.mxu0 0
    %9764 = vmatpush1.bf16.msra.mxu0 %v9740
    %9765 = vmatprep.subr.bf16.mxu0 0
    %9766 = vmatpush1.bf16.msra.mxu0 0
    %9767 = vmatprep.subr.bf16.mxu0 0
    %9768 = vmatpush1.bf16.msra.mxu0 0
    %9769 = vmatprep.subr.bf16.mxu0 0
    %9770 = vmatpush1.bf16.msra.mxu0 0
    %9771 = vmatprep.subr.bf16.mxu0 0
    %9772 = vmatpush1.bf16.msra.mxu0 0
    %9773 = vmatprep.subr.bf16.mxu0 0
    %9774 = vmatpush1.bf16.msra.mxu0 0
    %9775 = vmatprep.subr.bf16.mxu0 0
    %9776 = vmatpush1.bf16.msra.mxu0 0
    %9777 = vmatprep.subr.bf16.mxu0 0
    %9778 = vmatpush1.bf16.msra.mxu0 0
    %9779 = vmatprep.subr.bf16.mxu0 0
    %9780 = vmatpush1.bf16.msra.mxu0 0
    %9781 = vmatprep.mubr.bf16.mxu0 0
    %9782 = vmatmul.mubr.bf16.gmra.mrb[0].mxu0 %v9677
    %v9783 = vpop.f32.mrb[0].mxu0
    %v9784 = vadd.f32 %v9699, %v9783
    %v9785 = vpop.f32.mrb[0].mxu0
    %v9786 = vpop.f32.mrb[0].mxu0
    %v9787 = vpop.f32.mrb[0].mxu0
    %9788 = vdwg.mxu0
    %vm9789 = vcmask 1041408
    %v9790 = vsel %vm9789, %v9784, -inf
    %9791 = vmax.xlane.f32.xlu0 %v9790
    %v9792 = vpop.xlane.xlu0 %9791
    %v9793 = vsub.f32 %v9784, %v9792
    %v9794 = vmul.f32 %v9793, 1.442695
    %v9795 = vpow.pop %v9794
    %v9796 = vsel %vm9789, %v9795, 0.0
    %9797 = vadd.xlane.f32.xlu0 %v9796
    %v9798 = vpop.xlane.xlu0 %9797
    %v9799 = vlog2.pop %v9798
    %v9800 = vmul.f32 %v9799, 0.6931472
    %v9801 = vsub.f32 %v9793, %v9800
    %9802 = vst [vmem:[#allocation10] sm:$0x3] %v9801
    // Predicated region
    $region49: #{netz_forward.1} parent=1 // pred_check
      _
    $region50: #{netz_forward.1} parent=1 // pred_check_branch
      %9804 = sbr.rel (0) target = $region52
    $region51: #{netz_forward.1} parent=1 // pred_region
      %s9806 = ssub.s32 32, 32
      %9807 = vsyncadd [#allocation9], %s9806
      %s9809 = sshll.u32 [#allocation10], 4
      %s9810 = int_to_ptr.vmem [resolvable:$true] %s9809
      %9812 = dma.vmem_to_hbm [thread:$0]  %s9810, 32, %s9, [#allocation9]
    $region52: #{netz_forward.1} parent=1 // pred_fallthru
      _
    // Predicated region
    $region53: #{netz_forward.1} parent=1 // pred_check
      _
    $region54: #{netz_forward.1} parent=1 // pred_check_branch
      %9814 = sbr.rel (0) target = $region56
    $region55: #{netz_forward.1} parent=1 // pred_region
      %9815 = dma.done [#allocation9], 32
    $region56: #{netz_forward.1} parent=1 // pred_fallthru
      _
    %9816 = vsyncpa [#allocation8], 1
    %9817 = vsyncpa [#allocation9], 1

</llo_original>
